<compile_context>
chip_gen: v7x
topology: tpu7x:2x2x1
jax: 0.10.0
libtpu: 0.0.40
codegen_flags: <defaults>
</compile_context>

<pallas_src>
import functools

import jax
import jax.numpy as jnp
from jax.experimental import pallas as pl
from jax.experimental.pallas import tpu as pltpu

_NEG_BIG = -1e9  # bias fill for padded logit columns; exp() underflows to 0.


def _round_up(n, m):
    return ((n + m - 1) // m) * m


def _audionet_kernel(x_ref,
                     w1_ref, b1_ref,
                     w2_ref, b2_ref,
                     w3_ref, b3_ref,
                     w4_ref, b4_ref,
                     w5_ref, b5_ref,
                     o_ref,
                     *, only_logsoftmax):
    # fc1..fc4 with ReLU.  Weights are bf16, accumulation is f32 on the MXU,
    # activations re-cast to bf16 between layers (MXU-native input type).
    h = jnp.dot(x_ref[...], w1_ref[...], preferred_element_type=jnp.float32)
    h = jnp.maximum(h + b1_ref[...], 0.0).astype(jnp.bfloat16)

    h = jnp.dot(h, w2_ref[...], preferred_element_type=jnp.float32)
    h = jnp.maximum(h + b2_ref[...], 0.0).astype(jnp.bfloat16)

    h = jnp.dot(h, w3_ref[...], preferred_element_type=jnp.float32)
    h = jnp.maximum(h + b3_ref[...], 0.0).astype(jnp.bfloat16)

    h = jnp.dot(h, w4_ref[...], preferred_element_type=jnp.float32)
    h = jnp.maximum(h + b4_ref[...], 0.0).astype(jnp.bfloat16)

    logits = jnp.dot(h, w5_ref[...], preferred_element_type=jnp.float32)
    logits = logits + b5_ref[...]          # padded columns carry a -1e9 bias

    # numerically-stable (log-)softmax over the lane-dense (padded) last dim;
    # padded columns contribute exp(-1e9 - m) == 0 so real columns are exact.
    m = jnp.max(logits, axis=-1, keepdims=True)
    shifted = logits - m
    e = jnp.exp(shifted)
    denom = jnp.sum(e, axis=-1, keepdims=True)
    if only_logsoftmax:
        o_ref[...] = (shifted - jnp.log(denom)).astype(o_ref.dtype)
    else:
        o_ref[...] = (e * pl.reciprocal(denom, approx=True)).astype(o_ref.dtype)


def audionet_forward(x, params, *, only_logsoftmax=False, batch_tile=None):
    """Pallas implementation of AudioNet.forward.

    only_logsoftmax=False -> eval-mode softmax(dim=-1);
    only_logsoftmax=True  -> log_softmax (training / only_logsoftmax branch).
    """
    (w1, b1), (w2, b2), (w3, b3), (w4, b4), (w5, b5) = params
    B, in_sz = x.shape
    out_sz = w5.shape[1]
    out_pad = _round_up(out_sz, 128)           # lane-dense output slab

    # Batch tiling: <=256 rows per tile (fills the 256-row MXU on v6e/v7x and
    # bounds activation VMEM); ragged batches are zero-padded and sliced off.
    tm = min(256, _round_up(B, 8)) if batch_tile is None else batch_tile
    B_pad = _round_up(B, tm)

    # Cast once in the wrapper: bf16 weights/activations halve HBM traffic on
    # this weight-bandwidth-bound kernel; biases stay f32 (tiny).
    x_p = jnp.pad(x.astype(jnp.bfloat16), ((0, B_pad - B), (0, 0)))
    w1c, w2c, w3c, w4c = (w.astype(jnp.bfloat16) for w in (w1, w2, w3, w4))
    b1c, b2c, b3c, b4c = (b.astype(jnp.float32) for b in (b1, b2, b3, b4))
    w5c = jnp.pad(w5.astype(jnp.bfloat16), ((0, 0), (0, out_pad - out_sz)))
    b5c = jnp.pad(b5.astype(jnp.float32), ((0, 0), (0, out_pad - out_sz)),
                  constant_values=_NEG_BIG)

    def resident(shape):
        # Whole-array block, constant index_map -> resident across batch tiles.
        # Single-buffered: double-buffering constant data only wastes VMEM.
        return pl.BlockSpec(shape, lambda i: (0, 0),
                            pipeline_mode=pl.Buffered(1))

    weight_args = (w1c, b1c, w2c, b2c, w3c, b3c, w4c, b4c, w5c, b5c)
    in_specs = [pl.BlockSpec((tm, in_sz), lambda i: (i, 0))]   # x blocked on batch
    in_specs += [resident(a.shape) for a in weight_args]

    # Advisory cost estimate so XLA can overlap the weight DMA with neighbors.
    flops = 2 * B_pad * (in_sz * 1024 + 1024 * 1024 + 1024 * 1024
                         + 1024 * 512 + 512 * out_pad)
    bytes_accessed = (x_p.size * x_p.dtype.itemsize
                      + sum(a.size * a.dtype.itemsize for a in weight_args)
                      + B_pad * out_pad * 4)
    cost = pl.CostEstimate(flops=flops, transcendentals=B_pad * out_pad,
                           bytes_accessed=bytes_accessed)

    kernel = functools.partial(_audionet_kernel,
                               only_logsoftmax=only_logsoftmax)
    out = pl.pallas_call(
        kernel,
        out_shape=jax.ShapeDtypeStruct((B_pad, out_pad), jnp.float32),
        grid_spec=pltpu.PrefetchScalarGridSpec(
            num_scalar_prefetch=0,
            grid=(B_pad // tm,),
            in_specs=in_specs,
            out_specs=pl.BlockSpec((tm, out_pad), lambda i: (i, 0)),
        ),
        compiler_params=pltpu.CompilerParams(
            # batch tiles are fully independent -> shard across TCs (2 on v7x)
            dimension_semantics=("parallel",),
            # fits v7x's 64 MiB VMEM/TC (bf16 weights ~5.4 MiB, single-buffered)
            vmem_limit_bytes=48 << 20,
        ),
        cost_estimate=cost,
    )(x_p, *weight_args)

    return out[:B, :out_sz]


def init_params(key, inputsize, outputsize):
    """Deterministic synthetic init (PyTorch-Linear-like uniform bounds).

    Weights stored already transposed to (in, out); biases are (1, out).
    """
    dims = [(inputsize, 1024), (1024, 1024), (1024, 1024), (1024, 512),
            (512, outputsize)]
    params = []
    for (fan_in, fan_out) in dims:
        key, kw, kb = jax.random.split(key, 3)
        bound = 1.0 / (fan_in ** 0.5)
        w = jax.random.uniform(kw, (fan_in, fan_out), jnp.float32, -bound, bound)
        b = jax.random.uniform(kb, (1, fan_out), jnp.float32, -bound, bound)
        params.append((w, b))
    return params


def audionet_reference(x, params, *, only_logsoftmax=False):
    h = x
    for (w, b) in params[:-1]:
        h = jnp.maximum(h @ w + b, 0.0)
    w5, b5 = params[-1]
    logits = h @ w5 + b5
    if only_logsoftmax:
        return jax.nn.log_softmax(logits, axis=1)
    return jax.nn.softmax(logits, axis=-1)


if __name__ == "__main__":
    key = jax.random.PRNGKey(0)
    k_param, k_x = jax.random.split(key)

    batch, inputsize, outputsize = 8, 32, 16
    params = init_params(k_param, inputsize, outputsize)
    x = jax.random.normal(k_x, (batch, inputsize), jnp.float32)

    # eval-mode forward (softmax over last dim)
    out = jax.block_until_ready(
        audionet_forward(x, params, only_logsoftmax=False))
    ref = audionet_reference(x, params, only_logsoftmax=False)
    assert out.shape == (batch, outputsize)
    # bf16 weights -> loosened tolerance vs the f32 reference
    assert jnp.allclose(out, ref, atol=2e-2, rtol=2e-2), "softmax mismatch"

    # training / only_logsoftmax=True branch (log_softmax)
    out_ls = jax.block_until_ready(
        audionet_forward(x, params, only_logsoftmax=True))
    ref_ls = audionet_reference(x, params, only_logsoftmax=True)
    assert jnp.allclose(out_ls, ref_ls, atol=2e-2, rtol=2e-2), "logsoftmax mismatch"

    print("KERNEL_OK")
</pallas_src>

<mosaic_0001>
module attributes {stable_mosaic.version = 11 : i64} {
  func.func @_audionet_kernel(%arg0: i32, %arg1: memref<8x32xbf16, #tpu.memory_space<vmem>>, %arg2: memref<32x1024xbf16, #tpu.memory_space<vmem>>, %arg3: memref<1x1024xf32, #tpu.memory_space<vmem>>, %arg4: memref<1024x1024xbf16, #tpu.memory_space<vmem>>, %arg5: memref<1x1024xf32, #tpu.memory_space<vmem>>, %arg6: memref<1024x1024xbf16, #tpu.memory_space<vmem>>, %arg7: memref<1x1024xf32, #tpu.memory_space<vmem>>, %arg8: memref<1024x512xbf16, #tpu.memory_space<vmem>>, %arg9: memref<1x512xf32, #tpu.memory_space<vmem>>, %arg10: memref<512x128xbf16, #tpu.memory_space<vmem>>, %arg11: memref<1x128xf32, #tpu.memory_space<vmem>>, %arg12: memref<8x128xf32, #tpu.memory_space<vmem>>) attributes {dimension_semantics = [#tpu.dimension_semantics<parallel>], iteration_bounds = array<i64: 1>, scalar_prefetch = 0 : i64, scratch_operands = 0 : i64, tpu.core_type = #tpu.core_type<tc>, window_params = [{transform_indices = @transform_0, window_bounds = array<i64: 8, 32>}, {pipeline_mode = #tpu.pipeline_mode<synchronous>, transform_indices = @transform_1, window_bounds = array<i64: 32, 1024>}, {pipeline_mode = #tpu.pipeline_mode<synchronous>, transform_indices = @transform_2, window_bounds = array<i64: 1, 1024>}, {pipeline_mode = #tpu.pipeline_mode<synchronous>, transform_indices = @transform_3, window_bounds = array<i64: 1024, 1024>}, {pipeline_mode = #tpu.pipeline_mode<synchronous>, transform_indices = @transform_4, window_bounds = array<i64: 1, 1024>}, {pipeline_mode = #tpu.pipeline_mode<synchronous>, transform_indices = @transform_5, window_bounds = array<i64: 1024, 1024>}, {pipeline_mode = #tpu.pipeline_mode<synchronous>, transform_indices = @transform_6, window_bounds = array<i64: 1, 1024>}, {pipeline_mode = #tpu.pipeline_mode<synchronous>, transform_indices = @transform_7, window_bounds = array<i64: 1024, 512>}, {pipeline_mode = #tpu.pipeline_mode<synchronous>, transform_indices = @transform_8, window_bounds = array<i64: 1, 512>}, {pipeline_mode = #tpu.pipeline_mode<synchronous>, transform_indices = @transform_9, window_bounds = array<i64: 512, 128>}, {pipeline_mode = #tpu.pipeline_mode<synchronous>, transform_indices = @transform_10, window_bounds = array<i64: 1, 128>}, {transform_indices = @transform_11, window_bounds = array<i64: 8, 128>}]} {
    %c0 = arith.constant 0 : index
    %c0_0 = arith.constant 0 : index
    %0 = vector.load %arg1[%c0, %c0_0] : memref<8x32xbf16, #tpu.memory_space<vmem>>, vector<8x32xbf16>
    %c0_1 = arith.constant 0 : index
    %c0_2 = arith.constant 0 : index
    %1 = vector.load %arg2[%c0_1, %c0_2] : memref<32x1024xbf16, #tpu.memory_space<vmem>>, vector<32x1024xbf16>
    %cst = arith.constant dense<0.000000e+00> : vector<8x1024xf32>
    %2 = tpu.matmul %0, %1, %cst {dimension_numbers = #tpu.dot_dimension_numbers<[1], [0], [0], [1], [0, 0, 1, 1], [], []>} : vector<8x32xbf16>, vector<32x1024xbf16>, vector<8x1024xf32> -> vector<8x1024xf32>
    %c0_3 = arith.constant 0 : index
    %c0_4 = arith.constant 0 : index
    %3 = vector.load %arg3[%c0_3, %c0_4] : memref<1x1024xf32, #tpu.memory_space<vmem>>, vector<1x1024xf32>
    %4 = vector.broadcast %3 : vector<1x1024xf32> to vector<8x1024xf32>
    %5 = arith.addf %2, %4 : vector<8x1024xf32>
    %cst_5 = arith.constant 0.000000e+00 : f32
    %6 = vector.broadcast %cst_5 : f32 to vector<8x1024xf32>
    %7 = arith.maximumf %5, %6 : vector<8x1024xf32>
    %8 = arith.truncf %7 : vector<8x1024xf32> to vector<8x1024xbf16>
    %c0_6 = arith.constant 0 : index
    %c0_7 = arith.constant 0 : index
    %9 = vector.load %arg4[%c0_6, %c0_7] : memref<1024x1024xbf16, #tpu.memory_space<vmem>>, vector<1024x1024xbf16>
    %cst_8 = arith.constant dense<0.000000e+00> : vector<8x1024xf32>
    %10 = tpu.matmul %8, %9, %cst_8 {dimension_numbers = #tpu.dot_dimension_numbers<[1], [0], [0], [1], [0, 0, 1, 1], [], []>} : vector<8x1024xbf16>, vector<1024x1024xbf16>, vector<8x1024xf32> -> vector<8x1024xf32>
    %c0_9 = arith.constant 0 : index
    %c0_10 = arith.constant 0 : index
    %11 = vector.load %arg5[%c0_9, %c0_10] : memref<1x1024xf32, #tpu.memory_space<vmem>>, vector<1x1024xf32>
    %12 = vector.broadcast %11 : vector<1x1024xf32> to vector<8x1024xf32>
    %13 = arith.addf %10, %12 : vector<8x1024xf32>
    %cst_11 = arith.constant 0.000000e+00 : f32
    %14 = vector.broadcast %cst_11 : f32 to vector<8x1024xf32>
    %15 = arith.maximumf %13, %14 : vector<8x1024xf32>
    %16 = arith.truncf %15 : vector<8x1024xf32> to vector<8x1024xbf16>
    %c0_12 = arith.constant 0 : index
    %c0_13 = arith.constant 0 : index
    %17 = vector.load %arg6[%c0_12, %c0_13] : memref<1024x1024xbf16, #tpu.memory_space<vmem>>, vector<1024x1024xbf16>
    %cst_14 = arith.constant dense<0.000000e+00> : vector<8x1024xf32>
    %18 = tpu.matmul %16, %17, %cst_14 {dimension_numbers = #tpu.dot_dimension_numbers<[1], [0], [0], [1], [0, 0, 1, 1], [], []>} : vector<8x1024xbf16>, vector<1024x1024xbf16>, vector<8x1024xf32> -> vector<8x1024xf32>
    %c0_15 = arith.constant 0 : index
    %c0_16 = arith.constant 0 : index
    %19 = vector.load %arg7[%c0_15, %c0_16] : memref<1x1024xf32, #tpu.memory_space<vmem>>, vector<1x1024xf32>
    %20 = vector.broadcast %19 : vector<1x1024xf32> to vector<8x1024xf32>
    %21 = arith.addf %18, %20 : vector<8x1024xf32>
    %cst_17 = arith.constant 0.000000e+00 : f32
    %22 = vector.broadcast %cst_17 : f32 to vector<8x1024xf32>
    %23 = arith.maximumf %21, %22 : vector<8x1024xf32>
    %24 = arith.truncf %23 : vector<8x1024xf32> to vector<8x1024xbf16>
    %c0_18 = arith.constant 0 : index
    %c0_19 = arith.constant 0 : index
    %25 = vector.load %arg8[%c0_18, %c0_19] : memref<1024x512xbf16, #tpu.memory_space<vmem>>, vector<1024x512xbf16>
    %cst_20 = arith.constant dense<0.000000e+00> : vector<8x512xf32>
    %26 = tpu.matmul %24, %25, %cst_20 {dimension_numbers = #tpu.dot_dimension_numbers<[1], [0], [0], [1], [0, 0, 1, 1], [], []>} : vector<8x1024xbf16>, vector<1024x512xbf16>, vector<8x512xf32> -> vector<8x512xf32>
    %c0_21 = arith.constant 0 : index
    %c0_22 = arith.constant 0 : index
    %27 = vector.load %arg9[%c0_21, %c0_22] : memref<1x512xf32, #tpu.memory_space<vmem>>, vector<1x512xf32>
    %28 = vector.broadcast %27 : vector<1x512xf32> to vector<8x512xf32>
    %29 = arith.addf %26, %28 : vector<8x512xf32>
    %cst_23 = arith.constant 0.000000e+00 : f32
    %30 = vector.broadcast %cst_23 : f32 to vector<8x512xf32>
    %31 = arith.maximumf %29, %30 : vector<8x512xf32>
    %32 = arith.truncf %31 : vector<8x512xf32> to vector<8x512xbf16>
    %c0_24 = arith.constant 0 : index
    %c0_25 = arith.constant 0 : index
    %33 = vector.load %arg10[%c0_24, %c0_25] : memref<512x128xbf16, #tpu.memory_space<vmem>>, vector<512x128xbf16>
    %cst_26 = arith.constant dense<0.000000e+00> : vector<8x128xf32>
    %34 = tpu.matmul %32, %33, %cst_26 {dimension_numbers = #tpu.dot_dimension_numbers<[1], [0], [0], [1], [0, 0, 1, 1], [], []>} : vector<8x512xbf16>, vector<512x128xbf16>, vector<8x128xf32> -> vector<8x128xf32>
    %c0_27 = arith.constant 0 : index
    %c0_28 = arith.constant 0 : index
    %35 = vector.load %arg11[%c0_27, %c0_28] : memref<1x128xf32, #tpu.memory_space<vmem>>, vector<1x128xf32>
    %36 = vector.broadcast %35 : vector<1x128xf32> to vector<8x128xf32>
    %37 = arith.addf %34, %36 : vector<8x128xf32>
    %cst_29 = arith.constant dense<0xFF800000> : vector<8xf32>
    %38 = vector.multi_reduction <maximumf>, %37, %cst_29 [1] : vector<8x128xf32> to vector<8xf32>
    %39 = vector.shape_cast %38 : vector<8xf32> to vector<8x1xf32>
    %40 = vector.broadcast %39 : vector<8x1xf32> to vector<8x128xf32>
    %41 = arith.subf %37, %40 : vector<8x128xf32>
    %42 = math.exp %41 : vector<8x128xf32>
    %cst_30 = arith.constant dense<0.000000e+00> : vector<8xf32>
    %43 = vector.multi_reduction <add>, %42, %cst_30 [1] : vector<8x128xf32> to vector<8xf32>
    %44 = vector.shape_cast %43 : vector<8xf32> to vector<8x1xf32>
    %45 = tpu.reciprocal %44 {approx = true} : vector<8x1xf32> -> vector<8x1xf32>
    %46 = vector.broadcast %45 : vector<8x1xf32> to vector<8x128xf32>
    %47 = arith.mulf %42, %46 : vector<8x128xf32>
    %c0_31 = arith.constant 0 : index
    %c0_32 = arith.constant 0 : index
    %48 = vector.load %arg12[%c0_31, %c0_32] : memref<8x128xf32, #tpu.memory_space<vmem>>, vector<8x128xf32>
    tpu.vector_store %arg12[%c0_31, %c0_32], %47 {strides = array<i32>} : memref<8x128xf32, #tpu.memory_space<vmem>>, vector<8x128xf32>,
    return
  }
  func.func @transform_0(%arg0: i32) -> (i32, i32) {
    %c0_i32 = arith.constant 0 : i32
    %c0_i32_0 = arith.constant 0 : i32
    return %arg0, %c0_i32 : i32, i32
  }
  func.func @transform_1(%arg0: i32) -> (i32, i32) {
    %c0_i32 = arith.constant 0 : i32
    %c0_i32_0 = arith.constant 0 : i32
    %c0_i32_1 = arith.constant 0 : i32
    return %c0_i32, %c0_i32_0 : i32, i32
  }
  func.func @transform_2(%arg0: i32) -> (i32, i32) {
    %c0_i32 = arith.constant 0 : i32
    %c0_i32_0 = arith.constant 0 : i32
    %c0_i32_1 = arith.constant 0 : i32
    return %c0_i32, %c0_i32_0 : i32, i32
  }
  func.func @transform_3(%arg0: i32) -> (i32, i32) {
    %c0_i32 = arith.constant 0 : i32
    %c0_i32_0 = arith.constant 0 : i32
    %c0_i32_1 = arith.constant 0 : i32
    return %c0_i32, %c0_i32_0 : i32, i32
  }
  func.func @transform_4(%arg0: i32) -> (i32, i32) {
    %c0_i32 = arith.constant 0 : i32
    %c0_i32_0 = arith.constant 0 : i32
    %c0_i32_1 = arith.constant 0 : i32
    return %c0_i32, %c0_i32_0 : i32, i32
  }
  func.func @transform_5(%arg0: i32) -> (i32, i32) {
    %c0_i32 = arith.constant 0 : i32
    %c0_i32_0 = arith.constant 0 : i32
    %c0_i32_1 = arith.constant 0 : i32
    return %c0_i32, %c0_i32_0 : i32, i32
  }
  func.func @transform_6(%arg0: i32) -> (i32, i32) {
    %c0_i32 = arith.constant 0 : i32
    %c0_i32_0 = arith.constant 0 : i32
    %c0_i32_1 = arith.constant 0 : i32
    return %c0_i32, %c0_i32_0 : i32, i32
  }
  func.func @transform_7(%arg0: i32) -> (i32, i32) {
    %c0_i32 = arith.constant 0 : i32
    %c0_i32_0 = arith.constant 0 : i32
    %c0_i32_1 = arith.constant 0 : i32
    return %c0_i32, %c0_i32_0 : i32, i32
  }
  func.func @transform_8(%arg0: i32) -> (i32, i32) {
    %c0_i32 = arith.constant 0 : i32
    %c0_i32_0 = arith.constant 0 : i32
    %c0_i32_1 = arith.constant 0 : i32
    return %c0_i32, %c0_i32_0 : i32, i32
  }
  func.func @transform_9(%arg0: i32) -> (i32, i32) {
    %c0_i32 = arith.constant 0 : i32
    %c0_i32_0 = arith.constant 0 : i32
    %c0_i32_1 = arith.constant 0 : i32
    return %c0_i32, %c0_i32_0 : i32, i32
  }
  func.func @transform_10(%arg0: i32) -> (i32, i32) {
    %c0_i32 = arith.constant 0 : i32
    %c0_i32_0 = arith.constant 0 : i32
    %c0_i32_1 = arith.constant 0 : i32
    return %c0_i32, %c0_i32_0 : i32, i32
  }
  func.func @transform_11(%arg0: i32) -> (i32, i32) {
    %c0_i32 = arith.constant 0 : i32
    %c0_i32_0 = arith.constant 0 : i32
    return %arg0, %c0_i32 : i32, i32
  }
}

</mosaic_0001>

<llo_original>
// kernel: tpu_custom_call.1
$region0: #{tpu_custom_call.1}
  #allocation0 [shape = 'u32[]', space=smem, size = 0x4, offset = 0x4, fixed_abs, tag = 'smem constant byte address 0x4 - core index']
  #allocation1 [shape = 'u32[144,128]{1,0:T(1,128)}', space=vmem, size = 0x12000, scoped, tag = 'internal scratch']
  %s0 = inlined_call_operand.hbm [shape: bf16[8,32], index: 0, kind: input, shape index: {}]
  %s1 = inlined_call_operand.hbm [shape: bf16[32,1024], index: 1, kind: input, shape index: {}]
  %s2 = inlined_call_operand.hbm [shape: f32[1,1024], index: 2, kind: input, shape index: {}]
  %s3 = inlined_call_operand.hbm [shape: bf16[1024,1024], index: 3, kind: input, shape index: {}]
  %s4 = inlined_call_operand.hbm [shape: f32[1,1024], index: 4, kind: input, shape index: {}]
  %s5 = inlined_call_operand.hbm [shape: bf16[1024,1024], index: 5, kind: input, shape index: {}]
  %s6 = inlined_call_operand.hbm [shape: f32[1,1024], index: 6, kind: input, shape index: {}]
  %s7 = inlined_call_operand.hbm [shape: bf16[1024,512], index: 7, kind: input, shape index: {}]
  %s8 = inlined_call_operand.hbm [shape: f32[1,512], index: 8, kind: input, shape index: {}]
  %s9 = inlined_call_operand.hbm [shape: bf16[512,128], index: 9, kind: input, shape index: {}]
  %s10 = inlined_call_operand.hbm [shape: f32[1,128], index: 10, kind: input, shape index: {}]
  %s11 = inlined_call_operand.hbm [shape: f32[8,128], index: 11, kind: output, shape index: {}]
  %s12 = sld [smem:[#allocation0]]
  $region98: #{tpu_custom_call.1} parent=0
    _
  %s14 = ssub.s32 1, %s12
  %s15 = scalar_select 0, %s14, %s12
  $region1: #{tpu_custom_call.1} parent=0
    #allocation2 [shape = 'u8[2048]{0}', space=vmem, size = 0x800, scoped, tag = 'input window, operand 0, single buffered']
    #allocation3 [shape = 's32[1]{0}', space=sflag, size = 0x4, scoped, tag = 'scoped memory for tpu_custom_call.1']
    #allocation4 [shape = 's32[1]{0}', space=sflag, size = 0x4, scoped, tag = 'scoped memory for tpu_custom_call.1']
    #allocation5 [shape = 'u8[65536]{0}', space=vmem, size = 0x10000, scoped, tag = 'input window, operand 1, single buffered']
    #allocation6 [shape = 's32[1]{0}', space=sflag, size = 0x4, scoped, tag = 'scoped memory for tpu_custom_call.1']
    #allocation7 [shape = 'u8[4096]{0}', space=vmem, size = 0x1000, scoped, tag = 'input window, operand 2, single buffered']
    #allocation8 [shape = 'u8[2097152]{0}', space=vmem, size = 0x200000, scoped, tag = 'input window, operand 3, single buffered']
    #allocation9 [shape = 's32[1]{0}', space=sflag, size = 0x4, scoped, tag = 'scoped memory for tpu_custom_call.1']
    #allocation10 [shape = 'u8[4096]{0}', space=vmem, size = 0x1000, scoped, tag = 'input window, operand 4, single buffered']
    #allocation11 [shape = 'u8[2097152]{0}', space=vmem, size = 0x200000, scoped, tag = 'input window, operand 5, single buffered']
    #allocation12 [shape = 's32[1]{0}', space=sflag, size = 0x4, scoped, tag = 'scoped memory for tpu_custom_call.1']
    #allocation13 [shape = 'u8[4096]{0}', space=vmem, size = 0x1000, scoped, tag = 'input window, operand 6, single buffered']
    #allocation14 [shape = 'u8[1048576]{0}', space=vmem, size = 0x100000, scoped, tag = 'input window, operand 7, single buffered']
    #allocation15 [shape = 's32[1]{0}', space=sflag, size = 0x4, scoped, tag = 'scoped memory for tpu_custom_call.1']
    #allocation16 [shape = 'u8[2048]{0}', space=vmem, size = 0x800, scoped, tag = 'input window, operand 8, single buffered']
    #allocation17 [shape = 'u8[131072]{0}', space=vmem, size = 0x20000, scoped, tag = 'input window, operand 9, single buffered']
    #allocation18 [shape = 's32[1]{0}', space=sflag, size = 0x4, scoped, tag = 'scoped memory for tpu_custom_call.1']
    #allocation19 [shape = 'u8[512]{0}', space=vmem, size = 0x400, scoped, tag = 'input window, operand 10, single buffered']
    #allocation20 [shape = 'u8[4096]{0}', space=vmem, size = 0x1000, scoped, tag = 'output window, operand 0, single buffered']
    %16 = vsyncpa [#allocation3], 0
    %17 = vsyncpa [#allocation6], 0
    %18 = vsyncpa [#allocation9], 0
    %19 = vsyncpa [#allocation12], 0
    %20 = vsyncpa [#allocation15], 0
    %21 = vsyncpa [#allocation18], 0
    %22 = vsyncpa [#allocation4], 0
    // Predicated region
    $region2: #{tpu_custom_call.1} parent=1 // pred_check
      _
    $region3: #{tpu_custom_call.1} parent=1 // pred_check_branch
      %24 = sbr.rel (0) target = $region5
    $region4: #{tpu_custom_call.1} parent=1 // pred_region
      %s26 = ssub.s32 64, 64
      %27 = vsyncadd [#allocation3], %s26
      %s29 = sshll.u32 [#allocation2], 4
      %s30 = int_to_ptr.vmem [resolvable:$true] %s29
      %32 = dma.hbm_to_vmem [thread:$0]  %s0, 64, %s30, [#allocation3]
    $region5: #{tpu_custom_call.1} parent=1 // pred_fallthru
      _
    // Predicated region
    $region6: #{tpu_custom_call.1} parent=1 // pred_check
      _
    $region7: #{tpu_custom_call.1} parent=1 // pred_check_branch
      %34 = sbr.rel (0) target = $region9
    $region8: #{tpu_custom_call.1} parent=1 // pred_region
      %s36 = ssub.s32 2048, 2048
      %37 = vsyncadd [#allocation6], %s36
      %s38 = sshll.u32 [#allocation5], 4
      %s39 = int_to_ptr.vmem [resolvable:$true] %s38
      %44 = dma.hbm_to_vmem [thread:$0]  %s1, 2048, %s39, [#allocation6], 512, 512, 32
    $region9: #{tpu_custom_call.1} parent=1 // pred_fallthru
      _
    // Predicated region
    $region10: #{tpu_custom_call.1} parent=1 // pred_check
      _
    $region11: #{tpu_custom_call.1} parent=1 // pred_check_branch
      %46 = sbr.rel (0) target = $region13
    $region12: #{tpu_custom_call.1} parent=1 // pred_region
      %s48 = ssub.s32 128, 128
      %49 = vsyncadd [#allocation6], %s48
      %s51 = sshll.u32 [#allocation7], 4
      %s52 = int_to_ptr.vmem [resolvable:$true] %s51
      %54 = dma.hbm_to_vmem [thread:$0]  %s2, 128, %s52, [#allocation6]
    $region13: #{tpu_custom_call.1} parent=1 // pred_fallthru
      _
    // Predicated region
    $region14: #{tpu_custom_call.1} parent=1 // pred_check
      _
    $region15: #{tpu_custom_call.1} parent=1 // pred_check_branch
      %56 = sbr.rel (0) target = $region17
    $region16: #{tpu_custom_call.1} parent=1 // pred_region
      %s58 = ssub.s32 65536, 65536
      %59 = vsyncadd [#allocation9], %s58
      %s60 = sshll.u32 [#allocation8], 4
      %s61 = int_to_ptr.vmem [resolvable:$true] %s60
      %66 = dma.hbm_to_vmem [thread:$0]  %s3, 65536, %s61, [#allocation9], 512, 512, 32
    $region17: #{tpu_custom_call.1} parent=1 // pred_fallthru
      _
    // Predicated region
    $region18: #{tpu_custom_call.1} parent=1 // pred_check
      _
    $region19: #{tpu_custom_call.1} parent=1 // pred_check_branch
      %68 = sbr.rel (0) target = $region21
    $region20: #{tpu_custom_call.1} parent=1 // pred_region
      %s70 = ssub.s32 128, 128
      %71 = vsyncadd [#allocation9], %s70
      %s73 = sshll.u32 [#allocation10], 4
      %s74 = int_to_ptr.vmem [resolvable:$true] %s73
      %76 = dma.hbm_to_vmem [thread:$0]  %s4, 128, %s74, [#allocation9]
    $region21: #{tpu_custom_call.1} parent=1 // pred_fallthru
      _
    // Predicated region
    $region22: #{tpu_custom_call.1} parent=1 // pred_check
      _
    $region23: #{tpu_custom_call.1} parent=1 // pred_check_branch
      %78 = sbr.rel (0) target = $region25
    $region24: #{tpu_custom_call.1} parent=1 // pred_region
      %s80 = ssub.s32 65536, 65536
      %81 = vsyncadd [#allocation12], %s80
      %s82 = sshll.u32 [#allocation11], 4
      %s83 = int_to_ptr.vmem [resolvable:$true] %s82
      %88 = dma.hbm_to_vmem [thread:$0]  %s5, 65536, %s83, [#allocation12], 512, 512, 32
    $region25: #{tpu_custom_call.1} parent=1 // pred_fallthru
      _
    // Predicated region
    $region26: #{tpu_custom_call.1} parent=1 // pred_check
      _
    $region27: #{tpu_custom_call.1} parent=1 // pred_check_branch
      %90 = sbr.rel (0) target = $region29
    $region28: #{tpu_custom_call.1} parent=1 // pred_region
      %s92 = ssub.s32 128, 128
      %93 = vsyncadd [#allocation12], %s92
      %s95 = sshll.u32 [#allocation13], 4
      %s96 = int_to_ptr.vmem [resolvable:$true] %s95
      %98 = dma.hbm_to_vmem [thread:$0]  %s6, 128, %s96, [#allocation12]
    $region29: #{tpu_custom_call.1} parent=1 // pred_fallthru
      _
    // Predicated region
    $region30: #{tpu_custom_call.1} parent=1 // pred_check
      _
    $region31: #{tpu_custom_call.1} parent=1 // pred_check_branch
      %100 = sbr.rel (0) target = $region33
    $region32: #{tpu_custom_call.1} parent=1 // pred_region
      %s102 = ssub.s32 32768, 32768
      %103 = vsyncadd [#allocation15], %s102
      %s104 = sshll.u32 [#allocation14], 4
      %s105 = int_to_ptr.vmem [resolvable:$true] %s104
      %110 = dma.hbm_to_vmem [thread:$0]  %s7, 32768, %s105, [#allocation15], 256, 256, 16
    $region33: #{tpu_custom_call.1} parent=1 // pred_fallthru
      _
    // Predicated region
    $region34: #{tpu_custom_call.1} parent=1 // pred_check
      _
    $region35: #{tpu_custom_call.1} parent=1 // pred_check_branch
      %112 = sbr.rel (0) target = $region37
    $region36: #{tpu_custom_call.1} parent=1 // pred_region
      %s114 = ssub.s32 64, 64
      %115 = vsyncadd [#allocation15], %s114
      %s117 = sshll.u32 [#allocation16], 4
      %s118 = int_to_ptr.vmem [resolvable:$true] %s117
      %120 = dma.hbm_to_vmem [thread:$0]  %s8, 64, %s118, [#allocation15]
    $region37: #{tpu_custom_call.1} parent=1 // pred_fallthru
      _
    // Predicated region
    $region38: #{tpu_custom_call.1} parent=1 // pred_check
      _
    $region39: #{tpu_custom_call.1} parent=1 // pred_check_branch
      %122 = sbr.rel (0) target = $region41
    $region40: #{tpu_custom_call.1} parent=1 // pred_region
      %s124 = ssub.s32 4096, 4096
      %125 = vsyncadd [#allocation18], %s124
      %s126 = sshll.u32 [#allocation17], 4
      %s127 = int_to_ptr.vmem [resolvable:$true] %s126
      %132 = dma.hbm_to_vmem [thread:$0]  %s9, 4096, %s127, [#allocation18], 64, 64, 4
    $region41: #{tpu_custom_call.1} parent=1 // pred_fallthru
      _
    // Predicated region
    $region42: #{tpu_custom_call.1} parent=1 // pred_check
      _
    $region43: #{tpu_custom_call.1} parent=1 // pred_check_branch
      %134 = sbr.rel (0) target = $region45
    $region44: #{tpu_custom_call.1} parent=1 // pred_region
      %s136 = ssub.s32 16, 16
      %137 = vsyncadd [#allocation18], %s136
      %s139 = sshll.u32 [#allocation19], 4
      %s140 = int_to_ptr.vmem [resolvable:$true] %s139
      %142 = dma.hbm_to_vmem [thread:$0]  %s10, 16, %s140, [#allocation18]
    $region45: #{tpu_custom_call.1} parent=1 // pred_fallthru
      _
    // Predicated region
    $region46: #{tpu_custom_call.1} parent=1 // pred_check
      _
    $region47: #{tpu_custom_call.1} parent=1 // pred_check_branch
      %144 = sbr.rel (0) target = $region49
    $region48: #{tpu_custom_call.1} parent=1 // pred_region
      %145 = dma.done [#allocation3], 64
    $region49: #{tpu_custom_call.1} parent=1 // pred_fallthru
      _
    // Predicated region
    $region50: #{tpu_custom_call.1} parent=1 // pred_check
      _
    $region51: #{tpu_custom_call.1} parent=1 // pred_check_branch
      %147 = sbr.rel (0) target = $region53
    $region52: #{tpu_custom_call.1} parent=1 // pred_region
      %148 = dma.done [#allocation6], 2048
    $region53: #{tpu_custom_call.1} parent=1 // pred_fallthru
      _
    // Predicated region
    $region54: #{tpu_custom_call.1} parent=1 // pred_check
      _
    $region55: #{tpu_custom_call.1} parent=1 // pred_check_branch
      %150 = sbr.rel (0) target = $region57
    $region56: #{tpu_custom_call.1} parent=1 // pred_region
      %151 = dma.done [#allocation6], 128
    $region57: #{tpu_custom_call.1} parent=1 // pred_fallthru
      _
    // Predicated region
    $region58: #{tpu_custom_call.1} parent=1 // pred_check
      _
    $region59: #{tpu_custom_call.1} parent=1 // pred_check_branch
      %153 = sbr.rel (0) target = $region61
    $region60: #{tpu_custom_call.1} parent=1 // pred_region
      %154 = dma.done [#allocation9], 65536
    $region61: #{tpu_custom_call.1} parent=1 // pred_fallthru
      _
    // Predicated region
    $region62: #{tpu_custom_call.1} parent=1 // pred_check
      _
    $region63: #{tpu_custom_call.1} parent=1 // pred_check_branch
      %156 = sbr.rel (0) target = $region65
    $region64: #{tpu_custom_call.1} parent=1 // pred_region
      %157 = dma.done [#allocation9], 128
    $region65: #{tpu_custom_call.1} parent=1 // pred_fallthru
      _
    // Predicated region
    $region66: #{tpu_custom_call.1} parent=1 // pred_check
      _
    $region67: #{tpu_custom_call.1} parent=1 // pred_check_branch
      %159 = sbr.rel (0) target = $region69
    $region68: #{tpu_custom_call.1} parent=1 // pred_region
      %160 = dma.done [#allocation12], 65536
    $region69: #{tpu_custom_call.1} parent=1 // pred_fallthru
      _
    // Predicated region
    $region70: #{tpu_custom_call.1} parent=1 // pred_check
      _
    $region71: #{tpu_custom_call.1} parent=1 // pred_check_branch
      %162 = sbr.rel (0) target = $region73
    $region72: #{tpu_custom_call.1} parent=1 // pred_region
      %163 = dma.done [#allocation12], 128
    $region73: #{tpu_custom_call.1} parent=1 // pred_fallthru
      _
    // Predicated region
    $region74: #{tpu_custom_call.1} parent=1 // pred_check
      _
    $region75: #{tpu_custom_call.1} parent=1 // pred_check_branch
      %165 = sbr.rel (0) target = $region77
    $region76: #{tpu_custom_call.1} parent=1 // pred_region
      %166 = dma.done [#allocation15], 32768
    $region77: #{tpu_custom_call.1} parent=1 // pred_fallthru
      _
    // Predicated region
    $region78: #{tpu_custom_call.1} parent=1 // pred_check
      _
    $region79: #{tpu_custom_call.1} parent=1 // pred_check_branch
      %168 = sbr.rel (0) target = $region81
    $region80: #{tpu_custom_call.1} parent=1 // pred_region
      %169 = dma.done [#allocation15], 64
    $region81: #{tpu_custom_call.1} parent=1 // pred_fallthru
      _
    // Predicated region
    $region82: #{tpu_custom_call.1} parent=1 // pred_check
      _
    $region83: #{tpu_custom_call.1} parent=1 // pred_check_branch
      %171 = sbr.rel (0) target = $region85
    $region84: #{tpu_custom_call.1} parent=1 // pred_region
      %172 = dma.done [#allocation18], 4096
    $region85: #{tpu_custom_call.1} parent=1 // pred_fallthru
      _
    // Predicated region
    $region86: #{tpu_custom_call.1} parent=1 // pred_check
      _
    $region87: #{tpu_custom_call.1} parent=1 // pred_check_branch
      %174 = sbr.rel (0) target = $region89
    $region88: #{tpu_custom_call.1} parent=1 // pred_region
      %175 = dma.done [#allocation18], 16
    $region89: #{tpu_custom_call.1} parent=1 // pred_fallthru
      _
    %v177 = vld [vmem:[#allocation2] sm:$0xf]
    %v178 = vld [vmem:[#allocation5] sm:$0xff]
    %v179 = vld [vmem:[#allocation5 + $0x8] sm:$0xff]
    %v180 = vld [vmem:[#allocation5 + $0x10] sm:$0xff]
    %v181 = vld [vmem:[#allocation5 + $0x18] sm:$0xff]
    %v182 = vld [vmem:[#allocation5 + $0x20] sm:$0xff]
    %v183 = vld [vmem:[#allocation5 + $0x28] sm:$0xff]
    %v184 = vld [vmem:[#allocation5 + $0x30] sm:$0xff]
    %v185 = vld [vmem:[#allocation5 + $0x38] sm:$0xff]
    %v186 = vld [vmem:[#allocation5 + $0x40] sm:$0xff]
    %v187 = vld [vmem:[#allocation5 + $0x48] sm:$0xff]
    %v188 = vld [vmem:[#allocation5 + $0x50] sm:$0xff]
    %v189 = vld [vmem:[#allocation5 + $0x58] sm:$0xff]
    %v190 = vld [vmem:[#allocation5 + $0x60] sm:$0xff]
    %v191 = vld [vmem:[#allocation5 + $0x68] sm:$0xff]
    %v192 = vld [vmem:[#allocation5 + $0x70] sm:$0xff]
    %v193 = vld [vmem:[#allocation5 + $0x78] sm:$0xff]
    %v194 = vld [vmem:[#allocation7] sm:$0xff]
    %v196 = vlaneseq
    %v197 = vshrl.u32 %v196, 7
    %v198 = vsub.s32 0, %v197
    %v199 = vrot.slane %v194, %v198
    %v200 = vlaneseq
    %v201 = vshrl.u32 %v200, 7
    %v202 = vsub.s32 1, %v201
    %v203 = vrot.slane %v194, %v202
    %v204 = vlaneseq
    %v205 = vshrl.u32 %v204, 7
    %v206 = vsub.s32 2, %v205
    %v207 = vrot.slane %v194, %v206
    %v208 = vlaneseq
    %v209 = vshrl.u32 %v208, 7
    %v210 = vsub.s32 3, %v209
    %v211 = vrot.slane %v194, %v210
    %v212 = vlaneseq
    %v213 = vshrl.u32 %v212, 7
    %v214 = vsub.s32 4, %v213
    %v215 = vrot.slane %v194, %v214
    %v216 = vlaneseq
    %v217 = vshrl.u32 %v216, 7
    %v218 = vsub.s32 5, %v217
    %v219 = vrot.slane %v194, %v218
    %v220 = vlaneseq
    %v221 = vshrl.u32 %v220, 7
    %v222 = vsub.s32 6, %v221
    %v223 = vrot.slane %v194, %v222
    %v224 = vlaneseq
    %v225 = vshrl.u32 %v224, 7
    %v226 = vsub.s32 7, %v225
    %v227 = vrot.slane %v194, %v226
    %v252 = vunpack.c.l.b16 %v178
    %v253 = vunpack.c.h.b16 %v178
    %v254 = vunpack.c.l.b16 %v179
    %v255 = vunpack.c.h.b16 %v179
    %v256 = vunpack.c.l.b16 %v180
    %v257 = vunpack.c.h.b16 %v180
    %v258 = vunpack.c.l.b16 %v181
    %v259 = vunpack.c.h.b16 %v181
    %v260 = vunpack.c.l.b16 %v182
    %v261 = vunpack.c.h.b16 %v182
    %v262 = vunpack.c.l.b16 %v183
    %v263 = vunpack.c.h.b16 %v183
    %v264 = vunpack.c.l.b16 %v184
    %v265 = vunpack.c.h.b16 %v184
    %v266 = vunpack.c.l.b16 %v185
    %v267 = vunpack.c.h.b16 %v185
    %v268 = vunpack.c.l.b16 %v186
    %v269 = vunpack.c.h.b16 %v186
    %v270 = vunpack.c.l.b16 %v187
    %v271 = vunpack.c.h.b16 %v187
    %v272 = vunpack.c.l.b16 %v188
    %v273 = vunpack.c.h.b16 %v188
    %v274 = vunpack.c.l.b16 %v189
    %v275 = vunpack.c.h.b16 %v189
    %v276 = vunpack.c.l.b16 %v190
    %v277 = vunpack.c.h.b16 %v190
    %v278 = vunpack.c.l.b16 %v191
    %v279 = vunpack.c.h.b16 %v191
    %v280 = vunpack.c.l.b16 %v192
    %v281 = vunpack.c.h.b16 %v192
    %v282 = vunpack.c.l.b16 %v193
    %v283 = vunpack.c.h.b16 %v193
    %v284 = vpack.c.b16 %v260, %v252
    %v285 = vpack.c.b16 %v261, %v253
    %v286 = vpack.c.b16 %v262, %v254
    %v287 = vpack.c.b16 %v263, %v255
    %v288 = vpack.c.b16 %v264, %v256
    %v289 = vpack.c.b16 %v265, %v257
    %v290 = vpack.c.b16 %v266, %v258
    %v291 = vpack.c.b16 %v267, %v259
    %v292 = vpack.c.b16 %v276, %v268
    %v293 = vpack.c.b16 %v277, %v269
    %v294 = vpack.c.b16 %v278, %v270
    %v295 = vpack.c.b16 %v279, %v271
    %v296 = vpack.c.b16 %v280, %v272
    %v297 = vpack.c.b16 %v281, %v273
    %v298 = vpack.c.b16 %v282, %v274
    %v299 = vpack.c.b16 %v283, %v275
    %vm316 = vcmask 261120
    %v318 = vsel %vm316, %v177, 0
    %320 = vmatprep.subr.bf16.mxu0 %v285
    %321 = vmatpush1.bf16.msra.mxu0 %v284
    %322 = vmatprep.subr.bf16.mxu0 %v293
    %323 = vmatpush1.bf16.msra.mxu0 %v292
    %324 = vmatprep.subr.bf16.mxu0 0
    %325 = vmatpush1.bf16.msra.mxu0 0
    %326 = vmatprep.subr.bf16.mxu0 0
    %327 = vmatpush1.bf16.msra.mxu0 0
    %328 = vmatprep.subr.bf16.mxu0 0
    %329 = vmatpush1.bf16.msra.mxu0 0
    %330 = vmatprep.subr.bf16.mxu0 0
    %331 = vmatpush1.bf16.msra.mxu0 0
    %332 = vmatprep.subr.bf16.mxu0 0
    %333 = vmatpush1.bf16.msra.mxu0 0
    %334 = vmatprep.subr.bf16.mxu0 0
    %335 = vmatpush1.bf16.msra.mxu0 0
    %336 = vmatprep.subr.bf16.mxu0 0
    %337 = vmatpush1.bf16.msra.mxu0 0
    %338 = vmatprep.subr.bf16.mxu0 0
    %339 = vmatpush1.bf16.msra.mxu0 0
    %340 = vmatprep.subr.bf16.mxu0 0
    %341 = vmatpush1.bf16.msra.mxu0 0
    %342 = vmatprep.subr.bf16.mxu0 0
    %343 = vmatpush1.bf16.msra.mxu0 0
    %344 = vmatprep.subr.bf16.mxu0 0
    %345 = vmatpush1.bf16.msra.mxu0 0
    %346 = vmatprep.subr.bf16.mxu0 0
    %347 = vmatpush1.bf16.msra.mxu0 0
    %348 = vmatprep.subr.bf16.mxu0 0
    %349 = vmatpush1.bf16.msra.mxu0 0
    %350 = vmatprep.subr.bf16.mxu0 0
    %351 = vmatpush1.bf16.msra.mxu0 0
    %352 = vmatprep.mubr.bf16.mxu0 0
    %353 = vmatmul.mubr.bf16.gmra.mrb[0].mxu0 %v318
    %v354 = vpop.f32.mrb[0].mxu0
    %v355 = vadd.f32 %v199, %v354
    %v356 = vpop.f32.mrb[0].mxu0
    %v357 = vadd.f32 %v203, %v356
    %v358 = vpop.f32.mrb[0].mxu0
    %v359 = vpop.f32.mrb[0].mxu0
    %360 = vdwg.mxu0
    %361 = vmatprep.subr.bf16.mxu0 %v287
    %362 = vmatpush1.bf16.msra.mxu0 %v286
    %363 = vmatprep.subr.bf16.mxu0 %v295
    %364 = vmatpush1.bf16.msra.mxu0 %v294
    %365 = vmatprep.subr.bf16.mxu0 0
    %366 = vmatpush1.bf16.msra.mxu0 0
    %367 = vmatprep.subr.bf16.mxu0 0
    %368 = vmatpush1.bf16.msra.mxu0 0
    %369 = vmatprep.subr.bf16.mxu0 0
    %370 = vmatpush1.bf16.msra.mxu0 0
    %371 = vmatprep.subr.bf16.mxu0 0
    %372 = vmatpush1.bf16.msra.mxu0 0
    %373 = vmatprep.subr.bf16.mxu0 0
    %374 = vmatpush1.bf16.msra.mxu0 0
    %375 = vmatprep.subr.bf16.mxu0 0
    %376 = vmatpush1.bf16.msra.mxu0 0
    %377 = vmatprep.subr.bf16.mxu0 0
    %378 = vmatpush1.bf16.msra.mxu0 0
    %379 = vmatprep.subr.bf16.mxu0 0
    %380 = vmatpush1.bf16.msra.mxu0 0
    %381 = vmatprep.subr.bf16.mxu0 0
    %382 = vmatpush1.bf16.msra.mxu0 0
    %383 = vmatprep.subr.bf16.mxu0 0
    %384 = vmatpush1.bf16.msra.mxu0 0
    %385 = vmatprep.subr.bf16.mxu0 0
    %386 = vmatpush1.bf16.msra.mxu0 0
    %387 = vmatprep.subr.bf16.mxu0 0
    %388 = vmatpush1.bf16.msra.mxu0 0
    %389 = vmatprep.subr.bf16.mxu0 0
    %390 = vmatpush1.bf16.msra.mxu0 0
    %391 = vmatprep.subr.bf16.mxu0 0
    %392 = vmatpush1.bf16.msra.mxu0 0
    %393 = vmatprep.mubr.bf16.mxu0 0
    %394 = vmatmul.mubr.bf16.gmra.mrb[0].mxu0 %v318
    %v395 = vpop.f32.mrb[0].mxu0
    %v396 = vadd.f32 %v207, %v395
    %v397 = vpop.f32.mrb[0].mxu0
    %v398 = vadd.f32 %v211, %v397
    %v399 = vpop.f32.mrb[0].mxu0
    %v400 = vpop.f32.mrb[0].mxu0
    %401 = vdwg.mxu0
    %402 = vmatprep.subr.bf16.mxu0 %v289
    %403 = vmatpush1.bf16.msra.mxu0 %v288
    %404 = vmatprep.subr.bf16.mxu0 %v297
    %405 = vmatpush1.bf16.msra.mxu0 %v296
    %406 = vmatprep.subr.bf16.mxu0 0
    %407 = vmatpush1.bf16.msra.mxu0 0
    %408 = vmatprep.subr.bf16.mxu0 0
    %409 = vmatpush1.bf16.msra.mxu0 0
    %410 = vmatprep.subr.bf16.mxu0 0
    %411 = vmatpush1.bf16.msra.mxu0 0
    %412 = vmatprep.subr.bf16.mxu0 0
    %413 = vmatpush1.bf16.msra.mxu0 0
    %414 = vmatprep.subr.bf16.mxu0 0
    %415 = vmatpush1.bf16.msra.mxu0 0
    %416 = vmatprep.subr.bf16.mxu0 0
    %417 = vmatpush1.bf16.msra.mxu0 0
    %418 = vmatprep.subr.bf16.mxu0 0
    %419 = vmatpush1.bf16.msra.mxu0 0
    %420 = vmatprep.subr.bf16.mxu0 0
    %421 = vmatpush1.bf16.msra.mxu0 0
    %422 = vmatprep.subr.bf16.mxu0 0
    %423 = vmatpush1.bf16.msra.mxu0 0
    %424 = vmatprep.subr.bf16.mxu0 0
    %425 = vmatpush1.bf16.msra.mxu0 0
    %426 = vmatprep.subr.bf16.mxu0 0
    %427 = vmatpush1.bf16.msra.mxu0 0
    %428 = vmatprep.subr.bf16.mxu0 0
    %429 = vmatpush1.bf16.msra.mxu0 0
    %430 = vmatprep.subr.bf16.mxu0 0
    %431 = vmatpush1.bf16.msra.mxu0 0
    %432 = vmatprep.subr.bf16.mxu0 0
    %433 = vmatpush1.bf16.msra.mxu0 0
    %434 = vmatprep.mubr.bf16.mxu0 0
    %435 = vmatmul.mubr.bf16.gmra.mrb[0].mxu0 %v318
    %v436 = vpop.f32.mrb[0].mxu0
    %v437 = vadd.f32 %v215, %v436
    %v438 = vpop.f32.mrb[0].mxu0
    %v439 = vadd.f32 %v219, %v438
    %v440 = vpop.f32.mrb[0].mxu0
    %v441 = vpop.f32.mrb[0].mxu0
    %442 = vdwg.mxu0
    %443 = vmatprep.subr.bf16.mxu0 %v291
    %444 = vmatpush1.bf16.msra.mxu0 %v290
    %445 = vmatprep.subr.bf16.mxu0 %v299
    %446 = vmatpush1.bf16.msra.mxu0 %v298
    %447 = vmatprep.subr.bf16.mxu0 0
    %448 = vmatpush1.bf16.msra.mxu0 0
    %449 = vmatprep.subr.bf16.mxu0 0
    %450 = vmatpush1.bf16.msra.mxu0 0
    %451 = vmatprep.subr.bf16.mxu0 0
    %452 = vmatpush1.bf16.msra.mxu0 0
    %453 = vmatprep.subr.bf16.mxu0 0
    %454 = vmatpush1.bf16.msra.mxu0 0
    %455 = vmatprep.subr.bf16.mxu0 0
    %456 = vmatpush1.bf16.msra.mxu0 0
    %457 = vmatprep.subr.bf16.mxu0 0
    %458 = vmatpush1.bf16.msra.mxu0 0
    %459 = vmatprep.subr.bf16.mxu0 0
    %460 = vmatpush1.bf16.msra.mxu0 0
    %461 = vmatprep.subr.bf16.mxu0 0
    %462 = vmatpush1.bf16.msra.mxu0 0
    %463 = vmatprep.subr.bf16.mxu0 0
    %464 = vmatpush1.bf16.msra.mxu0 0
    %465 = vmatprep.subr.bf16.mxu0 0
    %466 = vmatpush1.bf16.msra.mxu0 0
    %467 = vmatprep.subr.bf16.mxu0 0
    %468 = vmatpush1.bf16.msra.mxu0 0
    %469 = vmatprep.subr.bf16.mxu0 0
    %470 = vmatpush1.bf16.msra.mxu0 0
    %471 = vmatprep.subr.bf16.mxu0 0
    %472 = vmatpush1.bf16.msra.mxu0 0
    %473 = vmatprep.subr.bf16.mxu0 0
    %474 = vmatpush1.bf16.msra.mxu0 0
    %475 = vmatprep.mubr.bf16.mxu0 0
    %476 = vmatmul.mubr.bf16.gmra.mrb[0].mxu0 %v318
    %v477 = vpop.f32.mrb[0].mxu0
    %v478 = vadd.f32 %v223, %v477
    %v479 = vpop.f32.mrb[0].mxu0
    %v480 = vadd.f32 %v227, %v479
    %v481 = vpop.f32.mrb[0].mxu0
    %v482 = vpop.f32.mrb[0].mxu0
    %483 = vdwg.mxu0
    %v484 = vmax.f32 %v355, 0.0
    %v485 = vmax.f32 %v357, 0.0
    %v486 = vmax.f32 %v396, 0.0
    %v487 = vmax.f32 %v398, 0.0
    %v488 = vmax.f32 %v437, 0.0
    %v489 = vmax.f32 %v439, 0.0
    %v490 = vmax.f32 %v478, 0.0
    %v491 = vmax.f32 %v480, 0.0
    %v492 = vpack.c.bf16 %v484, %v484
    %v493 = vpack.c.bf16 %v485, %v485
    %v494 = vpack.c.bf16 %v486, %v486
    %v495 = vpack.c.bf16 %v487, %v487
    %v496 = vpack.c.bf16 %v488, %v488
    %v497 = vpack.c.bf16 %v489, %v489
    %v498 = vpack.c.bf16 %v490, %v490
    %v499 = vpack.c.bf16 %v491, %v491
    %v500 = vld [vmem:[#allocation8] sm:$0xff]
    %v501 = vld [vmem:[#allocation8 + $0x8] sm:$0xff]
    %v502 = vld [vmem:[#allocation8 + $0x10] sm:$0xff]
    %v503 = vld [vmem:[#allocation8 + $0x18] sm:$0xff]
    %v504 = vld [vmem:[#allocation8 + $0x20] sm:$0xff]
    %v505 = vld [vmem:[#allocation8 + $0x28] sm:$0xff]
    %v506 = vld [vmem:[#allocation8 + $0x30] sm:$0xff]
    %v507 = vld [vmem:[#allocation8 + $0x38] sm:$0xff]
    %v508 = vld [vmem:[#allocation8 + $0x40] sm:$0xff]
    %v509 = vld [vmem:[#allocation8 + $0x48] sm:$0xff]
    %v510 = vld [vmem:[#allocation8 + $0x50] sm:$0xff]
    %v511 = vld [vmem:[#allocation8 + $0x58] sm:$0xff]
    %v512 = vld [vmem:[#allocation8 + $0x60] sm:$0xff]
    %v513 = vld [vmem:[#allocation8 + $0x68] sm:$0xff]
    %v514 = vld [vmem:[#allocation8 + $0x70] sm:$0xff]
    %v515 = vld [vmem:[#allocation8 + $0x78] sm:$0xff]
    %v516 = vld [vmem:[#allocation8 + $0x80] sm:$0xff]
    %v517 = vld [vmem:[#allocation8 + $0x88] sm:$0xff]
    %v518 = vld [vmem:[#allocation8 + $0x90] sm:$0xff]
    %v519 = vld [vmem:[#allocation8 + $0x98] sm:$0xff]
    %v520 = vld [vmem:[#allocation8 + $0xa0] sm:$0xff]
    %v521 = vld [vmem:[#allocation8 + $0xa8] sm:$0xff]
    %v522 = vld [vmem:[#allocation8 + $0xb0] sm:$0xff]
    %v523 = vld [vmem:[#allocation8 + $0xb8] sm:$0xff]
    %v524 = vld [vmem:[#allocation8 + $0xc0] sm:$0xff]
    %v525 = vld [vmem:[#allocation8 + $0xc8] sm:$0xff]
    %v526 = vld [vmem:[#allocation8 + $0xd0] sm:$0xff]
    %v527 = vld [vmem:[#allocation8 + $0xd8] sm:$0xff]
    %v528 = vld [vmem:[#allocation8 + $0xe0] sm:$0xff]
    %v529 = vld [vmem:[#allocation8 + $0xe8] sm:$0xff]
    %v530 = vld [vmem:[#allocation8 + $0xf0] sm:$0xff]
    %v531 = vld [vmem:[#allocation8 + $0xf8] sm:$0xff]
    %v532 = vld [vmem:[#allocation8 + $0x100] sm:$0xff]
    %v533 = vld [vmem:[#allocation8 + $0x108] sm:$0xff]
    %v534 = vld [vmem:[#allocation8 + $0x110] sm:$0xff]
    %v535 = vld [vmem:[#allocation8 + $0x118] sm:$0xff]
    %v536 = vld [vmem:[#allocation8 + $0x120] sm:$0xff]
    %v537 = vld [vmem:[#allocation8 + $0x128] sm:$0xff]
    %v538 = vld [vmem:[#allocation8 + $0x130] sm:$0xff]
    %v539 = vld [vmem:[#allocation8 + $0x138] sm:$0xff]
    %v540 = vld [vmem:[#allocation8 + $0x140] sm:$0xff]
    %v541 = vld [vmem:[#allocation8 + $0x148] sm:$0xff]
    %v542 = vld [vmem:[#allocation8 + $0x150] sm:$0xff]
    %v543 = vld [vmem:[#allocation8 + $0x158] sm:$0xff]
    %v544 = vld [vmem:[#allocation8 + $0x160] sm:$0xff]
    %v545 = vld [vmem:[#allocation8 + $0x168] sm:$0xff]
    %v546 = vld [vmem:[#allocation8 + $0x170] sm:$0xff]
    %v547 = vld [vmem:[#allocation8 + $0x178] sm:$0xff]
    %v548 = vld [vmem:[#allocation8 + $0x180] sm:$0xff]
    %v549 = vld [vmem:[#allocation8 + $0x188] sm:$0xff]
    %v550 = vld [vmem:[#allocation8 + $0x190] sm:$0xff]
    %v551 = vld [vmem:[#allocation8 + $0x198] sm:$0xff]
    %v552 = vld [vmem:[#allocation8 + $0x1a0] sm:$0xff]
    %v553 = vld [vmem:[#allocation8 + $0x1a8] sm:$0xff]
    %v554 = vld [vmem:[#allocation8 + $0x1b0] sm:$0xff]
    %v555 = vld [vmem:[#allocation8 + $0x1b8] sm:$0xff]
    %v556 = vld [vmem:[#allocation8 + $0x1c0] sm:$0xff]
    %v557 = vld [vmem:[#allocation8 + $0x1c8] sm:$0xff]
    %v558 = vld [vmem:[#allocation8 + $0x1d0] sm:$0xff]
    %v559 = vld [vmem:[#allocation8 + $0x1d8] sm:$0xff]
    %v560 = vld [vmem:[#allocation8 + $0x1e0] sm:$0xff]
    %v561 = vld [vmem:[#allocation8 + $0x1e8] sm:$0xff]
    %v562 = vld [vmem:[#allocation8 + $0x1f0] sm:$0xff]
    %v563 = vld [vmem:[#allocation8 + $0x1f8] sm:$0xff]
    %v564 = vld [vmem:[#allocation8 + $0x200] sm:$0xff]
    %v565 = vld [vmem:[#allocation8 + $0x208] sm:$0xff]
    %v566 = vld [vmem:[#allocation8 + $0x210] sm:$0xff]
    %v567 = vld [vmem:[#allocation8 + $0x218] sm:$0xff]
    %v568 = vld [vmem:[#allocation8 + $0x220] sm:$0xff]
    %v569 = vld [vmem:[#allocation8 + $0x228] sm:$0xff]
    %v570 = vld [vmem:[#allocation8 + $0x230] sm:$0xff]
    %v571 = vld [vmem:[#allocation8 + $0x238] sm:$0xff]
    %v572 = vld [vmem:[#allocation8 + $0x240] sm:$0xff]
    %v573 = vld [vmem:[#allocation8 + $0x248] sm:$0xff]
    %v574 = vld [vmem:[#allocation8 + $0x250] sm:$0xff]
    %v575 = vld [vmem:[#allocation8 + $0x258] sm:$0xff]
    %v576 = vld [vmem:[#allocation8 + $0x260] sm:$0xff]
    %v577 = vld [vmem:[#allocation8 + $0x268] sm:$0xff]
    %v578 = vld [vmem:[#allocation8 + $0x270] sm:$0xff]
    %v579 = vld [vmem:[#allocation8 + $0x278] sm:$0xff]
    %v580 = vld [vmem:[#allocation8 + $0x280] sm:$0xff]
    %v581 = vld [vmem:[#allocation8 + $0x288] sm:$0xff]
    %v582 = vld [vmem:[#allocation8 + $0x290] sm:$0xff]
    %v583 = vld [vmem:[#allocation8 + $0x298] sm:$0xff]
    %v584 = vld [vmem:[#allocation8 + $0x2a0] sm:$0xff]
    %v585 = vld [vmem:[#allocation8 + $0x2a8] sm:$0xff]
    %v586 = vld [vmem:[#allocation8 + $0x2b0] sm:$0xff]
    %v587 = vld [vmem:[#allocation8 + $0x2b8] sm:$0xff]
    %v588 = vld [vmem:[#allocation8 + $0x2c0] sm:$0xff]
    %v589 = vld [vmem:[#allocation8 + $0x2c8] sm:$0xff]
    %v590 = vld [vmem:[#allocation8 + $0x2d0] sm:$0xff]
    %v591 = vld [vmem:[#allocation8 + $0x2d8] sm:$0xff]
    %v592 = vld [vmem:[#allocation8 + $0x2e0] sm:$0xff]
    %v593 = vld [vmem:[#allocation8 + $0x2e8] sm:$0xff]
    %v594 = vld [vmem:[#allocation8 + $0x2f0] sm:$0xff]
    %v595 = vld [vmem:[#allocation8 + $0x2f8] sm:$0xff]
    %v596 = vld [vmem:[#allocation8 + $0x300] sm:$0xff]
    %v597 = vld [vmem:[#allocation8 + $0x308] sm:$0xff]
    %v598 = vld [vmem:[#allocation8 + $0x310] sm:$0xff]
    %v599 = vld [vmem:[#allocation8 + $0x318] sm:$0xff]
    %v600 = vld [vmem:[#allocation8 + $0x320] sm:$0xff]
    %v601 = vld [vmem:[#allocation8 + $0x328] sm:$0xff]
    %v602 = vld [vmem:[#allocation8 + $0x330] sm:$0xff]
    %v603 = vld [vmem:[#allocation8 + $0x338] sm:$0xff]
    %v604 = vld [vmem:[#allocation8 + $0x340] sm:$0xff]
    %v605 = vld [vmem:[#allocation8 + $0x348] sm:$0xff]
    %v606 = vld [vmem:[#allocation8 + $0x350] sm:$0xff]
    %v607 = vld [vmem:[#allocation8 + $0x358] sm:$0xff]
    %v608 = vld [vmem:[#allocation8 + $0x360] sm:$0xff]
    %v609 = vld [vmem:[#allocation8 + $0x368] sm:$0xff]
    %v610 = vld [vmem:[#allocation8 + $0x370] sm:$0xff]
    %v611 = vld [vmem:[#allocation8 + $0x378] sm:$0xff]
    %v612 = vld [vmem:[#allocation8 + $0x380] sm:$0xff]
    %v613 = vld [vmem:[#allocation8 + $0x388] sm:$0xff]
    %v614 = vld [vmem:[#allocation8 + $0x390] sm:$0xff]
    %v615 = vld [vmem:[#allocation8 + $0x398] sm:$0xff]
    %v616 = vld [vmem:[#allocation8 + $0x3a0] sm:$0xff]
    %v617 = vld [vmem:[#allocation8 + $0x3a8] sm:$0xff]
    %v618 = vld [vmem:[#allocation8 + $0x3b0] sm:$0xff]
    %v619 = vld [vmem:[#allocation8 + $0x3b8] sm:$0xff]
    %v620 = vld [vmem:[#allocation8 + $0x3c0] sm:$0xff]
    %v621 = vld [vmem:[#allocation8 + $0x3c8] sm:$0xff]
    %v622 = vld [vmem:[#allocation8 + $0x3d0] sm:$0xff]
    %v623 = vld [vmem:[#allocation8 + $0x3d8] sm:$0xff]
    %v624 = vld [vmem:[#allocation8 + $0x3e0] sm:$0xff]
    %v625 = vld [vmem:[#allocation8 + $0x3e8] sm:$0xff]
    %v626 = vld [vmem:[#allocation8 + $0x3f0] sm:$0xff]
    %v627 = vld [vmem:[#allocation8 + $0x3f8] sm:$0xff]
    %v628 = vld [vmem:[#allocation8 + $0x400] sm:$0xff]
    %v629 = vld [vmem:[#allocation8 + $0x408] sm:$0xff]
    %v630 = vld [vmem:[#allocation8 + $0x410] sm:$0xff]
    %v631 = vld [vmem:[#allocation8 + $0x418] sm:$0xff]
    %v632 = vld [vmem:[#allocation8 + $0x420] sm:$0xff]
    %v633 = vld [vmem:[#allocation8 + $0x428] sm:$0xff]
    %v634 = vld [vmem:[#allocation8 + $0x430] sm:$0xff]
    %v635 = vld [vmem:[#allocation8 + $0x438] sm:$0xff]
    %v636 = vld [vmem:[#allocation8 + $0x440] sm:$0xff]
    %v637 = vld [vmem:[#allocation8 + $0x448] sm:$0xff]
    %v638 = vld [vmem:[#allocation8 + $0x450] sm:$0xff]
    %v639 = vld [vmem:[#allocation8 + $0x458] sm:$0xff]
    %v640 = vld [vmem:[#allocation8 + $0x460] sm:$0xff]
    %v641 = vld [vmem:[#allocation8 + $0x468] sm:$0xff]
    %v642 = vld [vmem:[#allocation8 + $0x470] sm:$0xff]
    %v643 = vld [vmem:[#allocation8 + $0x478] sm:$0xff]
    %v644 = vld [vmem:[#allocation8 + $0x480] sm:$0xff]
    %v645 = vld [vmem:[#allocation8 + $0x488] sm:$0xff]
    %v646 = vld [vmem:[#allocation8 + $0x490] sm:$0xff]
    %v647 = vld [vmem:[#allocation8 + $0x498] sm:$0xff]
    %v648 = vld [vmem:[#allocation8 + $0x4a0] sm:$0xff]
    %v649 = vld [vmem:[#allocation8 + $0x4a8] sm:$0xff]
    %v650 = vld [vmem:[#allocation8 + $0x4b0] sm:$0xff]
    %v651 = vld [vmem:[#allocation8 + $0x4b8] sm:$0xff]
    %v652 = vld [vmem:[#allocation8 + $0x4c0] sm:$0xff]
    %v653 = vld [vmem:[#allocation8 + $0x4c8] sm:$0xff]
    %v654 = vld [vmem:[#allocation8 + $0x4d0] sm:$0xff]
    %v655 = vld [vmem:[#allocation8 + $0x4d8] sm:$0xff]
    %v656 = vld [vmem:[#allocation8 + $0x4e0] sm:$0xff]
    %v657 = vld [vmem:[#allocation8 + $0x4e8] sm:$0xff]
    %v658 = vld [vmem:[#allocation8 + $0x4f0] sm:$0xff]
    %v659 = vld [vmem:[#allocation8 + $0x4f8] sm:$0xff]
    %v660 = vld [vmem:[#allocation8 + $0x500] sm:$0xff]
    %v661 = vld [vmem:[#allocation8 + $0x508] sm:$0xff]
    %v662 = vld [vmem:[#allocation8 + $0x510] sm:$0xff]
    %v663 = vld [vmem:[#allocation8 + $0x518] sm:$0xff]
    %v664 = vld [vmem:[#allocation8 + $0x520] sm:$0xff]
    %v665 = vld [vmem:[#allocation8 + $0x528] sm:$0xff]
    %v666 = vld [vmem:[#allocation8 + $0x530] sm:$0xff]
    %v667 = vld [vmem:[#allocation8 + $0x538] sm:$0xff]
    %v668 = vld [vmem:[#allocation8 + $0x540] sm:$0xff]
    %v669 = vld [vmem:[#allocation8 + $0x548] sm:$0xff]
    %v670 = vld [vmem:[#allocation8 + $0x550] sm:$0xff]
    %v671 = vld [vmem:[#allocation8 + $0x558] sm:$0xff]
    %v672 = vld [vmem:[#allocation8 + $0x560] sm:$0xff]
    %v673 = vld [vmem:[#allocation8 + $0x568] sm:$0xff]
    %v674 = vld [vmem:[#allocation8 + $0x570] sm:$0xff]
    %v675 = vld [vmem:[#allocation8 + $0x578] sm:$0xff]
    %v676 = vld [vmem:[#allocation8 + $0x580] sm:$0xff]
    %v677 = vld [vmem:[#allocation8 + $0x588] sm:$0xff]
    %v678 = vld [vmem:[#allocation8 + $0x590] sm:$0xff]
    %v679 = vld [vmem:[#allocation8 + $0x598] sm:$0xff]
    %v680 = vld [vmem:[#allocation8 + $0x5a0] sm:$0xff]
    %v681 = vld [vmem:[#allocation8 + $0x5a8] sm:$0xff]
    %v682 = vld [vmem:[#allocation8 + $0x5b0] sm:$0xff]
    %v683 = vld [vmem:[#allocation8 + $0x5b8] sm:$0xff]
    %v684 = vld [vmem:[#allocation8 + $0x5c0] sm:$0xff]
    %v685 = vld [vmem:[#allocation8 + $0x5c8] sm:$0xff]
    %v686 = vld [vmem:[#allocation8 + $0x5d0] sm:$0xff]
    %v687 = vld [vmem:[#allocation8 + $0x5d8] sm:$0xff]
    %v688 = vld [vmem:[#allocation8 + $0x5e0] sm:$0xff]
    %v689 = vld [vmem:[#allocation8 + $0x5e8] sm:$0xff]
    %v690 = vld [vmem:[#allocation8 + $0x5f0] sm:$0xff]
    %v691 = vld [vmem:[#allocation8 + $0x5f8] sm:$0xff]
    %v692 = vld [vmem:[#allocation8 + $0x600] sm:$0xff]
    %v693 = vld [vmem:[#allocation8 + $0x608] sm:$0xff]
    %v694 = vld [vmem:[#allocation8 + $0x610] sm:$0xff]
    %v695 = vld [vmem:[#allocation8 + $0x618] sm:$0xff]
    %v696 = vld [vmem:[#allocation8 + $0x620] sm:$0xff]
    %v697 = vld [vmem:[#allocation8 + $0x628] sm:$0xff]
    %v698 = vld [vmem:[#allocation8 + $0x630] sm:$0xff]
    %v699 = vld [vmem:[#allocation8 + $0x638] sm:$0xff]
    %v700 = vld [vmem:[#allocation8 + $0x640] sm:$0xff]
    %v701 = vld [vmem:[#allocation8 + $0x648] sm:$0xff]
    %v702 = vld [vmem:[#allocation8 + $0x650] sm:$0xff]
    %v703 = vld [vmem:[#allocation8 + $0x658] sm:$0xff]
    %v704 = vld [vmem:[#allocation8 + $0x660] sm:$0xff]
    %v705 = vld [vmem:[#allocation8 + $0x668] sm:$0xff]
    %v706 = vld [vmem:[#allocation8 + $0x670] sm:$0xff]
    %v707 = vld [vmem:[#allocation8 + $0x678] sm:$0xff]
    %v708 = vld [vmem:[#allocation8 + $0x680] sm:$0xff]
    %v709 = vld [vmem:[#allocation8 + $0x688] sm:$0xff]
    %v710 = vld [vmem:[#allocation8 + $0x690] sm:$0xff]
    %v711 = vld [vmem:[#allocation8 + $0x698] sm:$0xff]
    %v712 = vld [vmem:[#allocation8 + $0x6a0] sm:$0xff]
    %v713 = vld [vmem:[#allocation8 + $0x6a8] sm:$0xff]
    %v714 = vld [vmem:[#allocation8 + $0x6b0] sm:$0xff]
    %v715 = vld [vmem:[#allocation8 + $0x6b8] sm:$0xff]
    %v716 = vld [vmem:[#allocation8 + $0x6c0] sm:$0xff]
    %v717 = vld [vmem:[#allocation8 + $0x6c8] sm:$0xff]
    %v718 = vld [vmem:[#allocation8 + $0x6d0] sm:$0xff]
    %v719 = vld [vmem:[#allocation8 + $0x6d8] sm:$0xff]
    %v720 = vld [vmem:[#allocation8 + $0x6e0] sm:$0xff]
    %v721 = vld [vmem:[#allocation8 + $0x6e8] sm:$0xff]
    %v722 = vld [vmem:[#allocation8 + $0x6f0] sm:$0xff]
    %v723 = vld [vmem:[#allocation8 + $0x6f8] sm:$0xff]
    %v724 = vld [vmem:[#allocation8 + $0x700] sm:$0xff]
    %v725 = vld [vmem:[#allocation8 + $0x708] sm:$0xff]
    %v726 = vld [vmem:[#allocation8 + $0x710] sm:$0xff]
    %v727 = vld [vmem:[#allocation8 + $0x718] sm:$0xff]
    %v728 = vld [vmem:[#allocation8 + $0x720] sm:$0xff]
    %v729 = vld [vmem:[#allocation8 + $0x728] sm:$0xff]
    %v730 = vld [vmem:[#allocation8 + $0x730] sm:$0xff]
    %v731 = vld [vmem:[#allocation8 + $0x738] sm:$0xff]
    %v732 = vld [vmem:[#allocation8 + $0x740] sm:$0xff]
    %v733 = vld [vmem:[#allocation8 + $0x748] sm:$0xff]
    %v734 = vld [vmem:[#allocation8 + $0x750] sm:$0xff]
    %v735 = vld [vmem:[#allocation8 + $0x758] sm:$0xff]
    %v736 = vld [vmem:[#allocation8 + $0x760] sm:$0xff]
    %v737 = vld [vmem:[#allocation8 + $0x768] sm:$0xff]
    %v738 = vld [vmem:[#allocation8 + $0x770] sm:$0xff]
    %v739 = vld [vmem:[#allocation8 + $0x778] sm:$0xff]
    %v740 = vld [vmem:[#allocation8 + $0x780] sm:$0xff]
    %v741 = vld [vmem:[#allocation8 + $0x788] sm:$0xff]
    %v742 = vld [vmem:[#allocation8 + $0x790] sm:$0xff]
    %v743 = vld [vmem:[#allocation8 + $0x798] sm:$0xff]
    %v744 = vld [vmem:[#allocation8 + $0x7a0] sm:$0xff]
    %v745 = vld [vmem:[#allocation8 + $0x7a8] sm:$0xff]
    %v746 = vld [vmem:[#allocation8 + $0x7b0] sm:$0xff]
    %v747 = vld [vmem:[#allocation8 + $0x7b8] sm:$0xff]
    %v748 = vld [vmem:[#allocation8 + $0x7c0] sm:$0xff]
    %v749 = vld [vmem:[#allocation8 + $0x7c8] sm:$0xff]
    %v750 = vld [vmem:[#allocation8 + $0x7d0] sm:$0xff]
    %v751 = vld [vmem:[#allocation8 + $0x7d8] sm:$0xff]
    %v752 = vld [vmem:[#allocation8 + $0x7e0] sm:$0xff]
    %v753 = vld [vmem:[#allocation8 + $0x7e8] sm:$0xff]
    %v754 = vld [vmem:[#allocation8 + $0x7f0] sm:$0xff]
    %v755 = vld [vmem:[#allocation8 + $0x7f8] sm:$0xff]
    %v756 = vld [vmem:[#allocation8 + $0x800] sm:$0xff]
    %v757 = vld [vmem:[#allocation8 + $0x808] sm:$0xff]
    %v758 = vld [vmem:[#allocation8 + $0x810] sm:$0xff]
    %v759 = vld [vmem:[#allocation8 + $0x818] sm:$0xff]
    %v760 = vld [vmem:[#allocation8 + $0x820] sm:$0xff]
    %v761 = vld [vmem:[#allocation8 + $0x828] sm:$0xff]
    %v762 = vld [vmem:[#allocation8 + $0x830] sm:$0xff]
    %v763 = vld [vmem:[#allocation8 + $0x838] sm:$0xff]
    %v764 = vld [vmem:[#allocation8 + $0x840] sm:$0xff]
    %v765 = vld [vmem:[#allocation8 + $0x848] sm:$0xff]
    %v766 = vld [vmem:[#allocation8 + $0x850] sm:$0xff]
    %v767 = vld [vmem:[#allocation8 + $0x858] sm:$0xff]
    %v768 = vld [vmem:[#allocation8 + $0x860] sm:$0xff]
    %v769 = vld [vmem:[#allocation8 + $0x868] sm:$0xff]
    %v770 = vld [vmem:[#allocation8 + $0x870] sm:$0xff]
    %v771 = vld [vmem:[#allocation8 + $0x878] sm:$0xff]
    %v772 = vld [vmem:[#allocation8 + $0x880] sm:$0xff]
    %v773 = vld [vmem:[#allocation8 + $0x888] sm:$0xff]
    %v774 = vld [vmem:[#allocation8 + $0x890] sm:$0xff]
    %v775 = vld [vmem:[#allocation8 + $0x898] sm:$0xff]
    %v776 = vld [vmem:[#allocation8 + $0x8a0] sm:$0xff]
    %v777 = vld [vmem:[#allocation8 + $0x8a8] sm:$0xff]
    %v778 = vld [vmem:[#allocation8 + $0x8b0] sm:$0xff]
    %v779 = vld [vmem:[#allocation8 + $0x8b8] sm:$0xff]
    %v780 = vld [vmem:[#allocation8 + $0x8c0] sm:$0xff]
    %v781 = vld [vmem:[#allocation8 + $0x8c8] sm:$0xff]
    %v782 = vld [vmem:[#allocation8 + $0x8d0] sm:$0xff]
    %v783 = vld [vmem:[#allocation8 + $0x8d8] sm:$0xff]
    %v784 = vld [vmem:[#allocation8 + $0x8e0] sm:$0xff]
    %v785 = vld [vmem:[#allocation8 + $0x8e8] sm:$0xff]
    %v786 = vld [vmem:[#allocation8 + $0x8f0] sm:$0xff]
    %v787 = vld [vmem:[#allocation8 + $0x8f8] sm:$0xff]
    %v788 = vld [vmem:[#allocation8 + $0x900] sm:$0xff]
    %v789 = vld [vmem:[#allocation8 + $0x908] sm:$0xff]
    %v790 = vld [vmem:[#allocation8 + $0x910] sm:$0xff]
    %v791 = vld [vmem:[#allocation8 + $0x918] sm:$0xff]
    %v792 = vld [vmem:[#allocation8 + $0x920] sm:$0xff]
    %v793 = vld [vmem:[#allocation8 + $0x928] sm:$0xff]
    %v794 = vld [vmem:[#allocation8 + $0x930] sm:$0xff]
    %v795 = vld [vmem:[#allocation8 + $0x938] sm:$0xff]
    %v796 = vld [vmem:[#allocation8 + $0x940] sm:$0xff]
    %v797 = vld [vmem:[#allocation8 + $0x948] sm:$0xff]
    %v798 = vld [vmem:[#allocation8 + $0x950] sm:$0xff]
    %v799 = vld [vmem:[#allocation8 + $0x958] sm:$0xff]
    %v800 = vld [vmem:[#allocation8 + $0x960] sm:$0xff]
    %v801 = vld [vmem:[#allocation8 + $0x968] sm:$0xff]
    %v802 = vld [vmem:[#allocation8 + $0x970] sm:$0xff]
    %v803 = vld [vmem:[#allocation8 + $0x978] sm:$0xff]
    %v804 = vld [vmem:[#allocation8 + $0x980] sm:$0xff]
    %v805 = vld [vmem:[#allocation8 + $0x988] sm:$0xff]
    %v806 = vld [vmem:[#allocation8 + $0x990] sm:$0xff]
    %v807 = vld [vmem:[#allocation8 + $0x998] sm:$0xff]
    %v808 = vld [vmem:[#allocation8 + $0x9a0] sm:$0xff]
    %v809 = vld [vmem:[#allocation8 + $0x9a8] sm:$0xff]
    %v810 = vld [vmem:[#allocation8 + $0x9b0] sm:$0xff]
    %v811 = vld [vmem:[#allocation8 + $0x9b8] sm:$0xff]
    %v812 = vld [vmem:[#allocation8 + $0x9c0] sm:$0xff]
    %v813 = vld [vmem:[#allocation8 + $0x9c8] sm:$0xff]
    %v814 = vld [vmem:[#allocation8 + $0x9d0] sm:$0xff]
    %v815 = vld [vmem:[#allocation8 + $0x9d8] sm:$0xff]
    %v816 = vld [vmem:[#allocation8 + $0x9e0] sm:$0xff]
    %v817 = vld [vmem:[#allocation8 + $0x9e8] sm:$0xff]
    %v818 = vld [vmem:[#allocation8 + $0x9f0] sm:$0xff]
    %v819 = vld [vmem:[#allocation8 + $0x9f8] sm:$0xff]
    %v820 = vld [vmem:[#allocation8 + $0xa00] sm:$0xff]
    %v821 = vld [vmem:[#allocation8 + $0xa08] sm:$0xff]
    %v822 = vld [vmem:[#allocation8 + $0xa10] sm:$0xff]
    %v823 = vld [vmem:[#allocation8 + $0xa18] sm:$0xff]
    %v824 = vld [vmem:[#allocation8 + $0xa20] sm:$0xff]
    %v825 = vld [vmem:[#allocation8 + $0xa28] sm:$0xff]
    %v826 = vld [vmem:[#allocation8 + $0xa30] sm:$0xff]
    %v827 = vld [vmem:[#allocation8 + $0xa38] sm:$0xff]
    %v828 = vld [vmem:[#allocation8 + $0xa40] sm:$0xff]
    %v829 = vld [vmem:[#allocation8 + $0xa48] sm:$0xff]
    %v830 = vld [vmem:[#allocation8 + $0xa50] sm:$0xff]
    %v831 = vld [vmem:[#allocation8 + $0xa58] sm:$0xff]
    %v832 = vld [vmem:[#allocation8 + $0xa60] sm:$0xff]
    %v833 = vld [vmem:[#allocation8 + $0xa68] sm:$0xff]
    %v834 = vld [vmem:[#allocation8 + $0xa70] sm:$0xff]
    %v835 = vld [vmem:[#allocation8 + $0xa78] sm:$0xff]
    %v836 = vld [vmem:[#allocation8 + $0xa80] sm:$0xff]
    %v837 = vld [vmem:[#allocation8 + $0xa88] sm:$0xff]
    %v838 = vld [vmem:[#allocation8 + $0xa90] sm:$0xff]
    %v839 = vld [vmem:[#allocation8 + $0xa98] sm:$0xff]
    %v840 = vld [vmem:[#allocation8 + $0xaa0] sm:$0xff]
    %v841 = vld [vmem:[#allocation8 + $0xaa8] sm:$0xff]
    %v842 = vld [vmem:[#allocation8 + $0xab0] sm:$0xff]
    %v843 = vld [vmem:[#allocation8 + $0xab8] sm:$0xff]
    %v844 = vld [vmem:[#allocation8 + $0xac0] sm:$0xff]
    %v845 = vld [vmem:[#allocation8 + $0xac8] sm:$0xff]
    %v846 = vld [vmem:[#allocation8 + $0xad0] sm:$0xff]
    %v847 = vld [vmem:[#allocation8 + $0xad8] sm:$0xff]
    %v848 = vld [vmem:[#allocation8 + $0xae0] sm:$0xff]
    %v849 = vld [vmem:[#allocation8 + $0xae8] sm:$0xff]
    %v850 = vld [vmem:[#allocation8 + $0xaf0] sm:$0xff]
    %v851 = vld [vmem:[#allocation8 + $0xaf8] sm:$0xff]
    %v852 = vld [vmem:[#allocation8 + $0xb00] sm:$0xff]
    %v853 = vld [vmem:[#allocation8 + $0xb08] sm:$0xff]
    %v854 = vld [vmem:[#allocation8 + $0xb10] sm:$0xff]
    %v855 = vld [vmem:[#allocation8 + $0xb18] sm:$0xff]
    %v856 = vld [vmem:[#allocation8 + $0xb20] sm:$0xff]
    %v857 = vld [vmem:[#allocation8 + $0xb28] sm:$0xff]
    %v858 = vld [vmem:[#allocation8 + $0xb30] sm:$0xff]
    %v859 = vld [vmem:[#allocation8 + $0xb38] sm:$0xff]
    %v860 = vld [vmem:[#allocation8 + $0xb40] sm:$0xff]
    %v861 = vld [vmem:[#allocation8 + $0xb48] sm:$0xff]
    %v862 = vld [vmem:[#allocation8 + $0xb50] sm:$0xff]
    %v863 = vld [vmem:[#allocation8 + $0xb58] sm:$0xff]
    %v864 = vld [vmem:[#allocation8 + $0xb60] sm:$0xff]
    %v865 = vld [vmem:[#allocation8 + $0xb68] sm:$0xff]
    %v866 = vld [vmem:[#allocation8 + $0xb70] sm:$0xff]
    %v867 = vld [vmem:[#allocation8 + $0xb78] sm:$0xff]
    %v868 = vld [vmem:[#allocation8 + $0xb80] sm:$0xff]
    %v869 = vld [vmem:[#allocation8 + $0xb88] sm:$0xff]
    %v870 = vld [vmem:[#allocation8 + $0xb90] sm:$0xff]
    %v871 = vld [vmem:[#allocation8 + $0xb98] sm:$0xff]
    %v872 = vld [vmem:[#allocation8 + $0xba0] sm:$0xff]
    %v873 = vld [vmem:[#allocation8 + $0xba8] sm:$0xff]
    %v874 = vld [vmem:[#allocation8 + $0xbb0] sm:$0xff]
    %v875 = vld [vmem:[#allocation8 + $0xbb8] sm:$0xff]
    %v876 = vld [vmem:[#allocation8 + $0xbc0] sm:$0xff]
    %v877 = vld [vmem:[#allocation8 + $0xbc8] sm:$0xff]
    %v878 = vld [vmem:[#allocation8 + $0xbd0] sm:$0xff]
    %v879 = vld [vmem:[#allocation8 + $0xbd8] sm:$0xff]
    %v880 = vld [vmem:[#allocation8 + $0xbe0] sm:$0xff]
    %v881 = vld [vmem:[#allocation8 + $0xbe8] sm:$0xff]
    %v882 = vld [vmem:[#allocation8 + $0xbf0] sm:$0xff]
    %v883 = vld [vmem:[#allocation8 + $0xbf8] sm:$0xff]
    %v884 = vld [vmem:[#allocation8 + $0xc00] sm:$0xff]
    %v885 = vld [vmem:[#allocation8 + $0xc08] sm:$0xff]
    %v886 = vld [vmem:[#allocation8 + $0xc10] sm:$0xff]
    %v887 = vld [vmem:[#allocation8 + $0xc18] sm:$0xff]
    %v888 = vld [vmem:[#allocation8 + $0xc20] sm:$0xff]
    %v889 = vld [vmem:[#allocation8 + $0xc28] sm:$0xff]
    %v890 = vld [vmem:[#allocation8 + $0xc30] sm:$0xff]
    %v891 = vld [vmem:[#allocation8 + $0xc38] sm:$0xff]
    %v892 = vld [vmem:[#allocation8 + $0xc40] sm:$0xff]
    %v893 = vld [vmem:[#allocation8 + $0xc48] sm:$0xff]
    %v894 = vld [vmem:[#allocation8 + $0xc50] sm:$0xff]
    %v895 = vld [vmem:[#allocation8 + $0xc58] sm:$0xff]
    %v896 = vld [vmem:[#allocation8 + $0xc60] sm:$0xff]
    %v897 = vld [vmem:[#allocation8 + $0xc68] sm:$0xff]
    %v898 = vld [vmem:[#allocation8 + $0xc70] sm:$0xff]
    %v899 = vld [vmem:[#allocation8 + $0xc78] sm:$0xff]
    %v900 = vld [vmem:[#allocation8 + $0xc80] sm:$0xff]
    %v901 = vld [vmem:[#allocation8 + $0xc88] sm:$0xff]
    %v902 = vld [vmem:[#allocation8 + $0xc90] sm:$0xff]
    %v903 = vld [vmem:[#allocation8 + $0xc98] sm:$0xff]
    %v904 = vld [vmem:[#allocation8 + $0xca0] sm:$0xff]
    %v905 = vld [vmem:[#allocation8 + $0xca8] sm:$0xff]
    %v906 = vld [vmem:[#allocation8 + $0xcb0] sm:$0xff]
    %v907 = vld [vmem:[#allocation8 + $0xcb8] sm:$0xff]
    %v908 = vld [vmem:[#allocation8 + $0xcc0] sm:$0xff]
    %v909 = vld [vmem:[#allocation8 + $0xcc8] sm:$0xff]
    %v910 = vld [vmem:[#allocation8 + $0xcd0] sm:$0xff]
    %v911 = vld [vmem:[#allocation8 + $0xcd8] sm:$0xff]
    %v912 = vld [vmem:[#allocation8 + $0xce0] sm:$0xff]
    %v913 = vld [vmem:[#allocation8 + $0xce8] sm:$0xff]
    %v914 = vld [vmem:[#allocation8 + $0xcf0] sm:$0xff]
    %v915 = vld [vmem:[#allocation8 + $0xcf8] sm:$0xff]
    %v916 = vld [vmem:[#allocation8 + $0xd00] sm:$0xff]
    %v917 = vld [vmem:[#allocation8 + $0xd08] sm:$0xff]
    %v918 = vld [vmem:[#allocation8 + $0xd10] sm:$0xff]
    %v919 = vld [vmem:[#allocation8 + $0xd18] sm:$0xff]
    %v920 = vld [vmem:[#allocation8 + $0xd20] sm:$0xff]
    %v921 = vld [vmem:[#allocation8 + $0xd28] sm:$0xff]
    %v922 = vld [vmem:[#allocation8 + $0xd30] sm:$0xff]
    %v923 = vld [vmem:[#allocation8 + $0xd38] sm:$0xff]
    %v924 = vld [vmem:[#allocation8 + $0xd40] sm:$0xff]
    %v925 = vld [vmem:[#allocation8 + $0xd48] sm:$0xff]
    %v926 = vld [vmem:[#allocation8 + $0xd50] sm:$0xff]
    %v927 = vld [vmem:[#allocation8 + $0xd58] sm:$0xff]
    %v928 = vld [vmem:[#allocation8 + $0xd60] sm:$0xff]
    %v929 = vld [vmem:[#allocation8 + $0xd68] sm:$0xff]
    %v930 = vld [vmem:[#allocation8 + $0xd70] sm:$0xff]
    %v931 = vld [vmem:[#allocation8 + $0xd78] sm:$0xff]
    %v932 = vld [vmem:[#allocation8 + $0xd80] sm:$0xff]
    %v933 = vld [vmem:[#allocation8 + $0xd88] sm:$0xff]
    %v934 = vld [vmem:[#allocation8 + $0xd90] sm:$0xff]
    %v935 = vld [vmem:[#allocation8 + $0xd98] sm:$0xff]
    %v936 = vld [vmem:[#allocation8 + $0xda0] sm:$0xff]
    %v937 = vld [vmem:[#allocation8 + $0xda8] sm:$0xff]
    %v938 = vld [vmem:[#allocation8 + $0xdb0] sm:$0xff]
    %v939 = vld [vmem:[#allocation8 + $0xdb8] sm:$0xff]
    %v940 = vld [vmem:[#allocation8 + $0xdc0] sm:$0xff]
    %v941 = vld [vmem:[#allocation8 + $0xdc8] sm:$0xff]
    %v942 = vld [vmem:[#allocation8 + $0xdd0] sm:$0xff]
    %v943 = vld [vmem:[#allocation8 + $0xdd8] sm:$0xff]
    %v944 = vld [vmem:[#allocation8 + $0xde0] sm:$0xff]
    %v945 = vld [vmem:[#allocation8 + $0xde8] sm:$0xff]
    %v946 = vld [vmem:[#allocation8 + $0xdf0] sm:$0xff]
    %v947 = vld [vmem:[#allocation8 + $0xdf8] sm:$0xff]
    %v948 = vld [vmem:[#allocation8 + $0xe00] sm:$0xff]
    %v949 = vld [vmem:[#allocation8 + $0xe08] sm:$0xff]
    %v950 = vld [vmem:[#allocation8 + $0xe10] sm:$0xff]
    %v951 = vld [vmem:[#allocation8 + $0xe18] sm:$0xff]
    %v952 = vld [vmem:[#allocation8 + $0xe20] sm:$0xff]
    %v953 = vld [vmem:[#allocation8 + $0xe28] sm:$0xff]
    %v954 = vld [vmem:[#allocation8 + $0xe30] sm:$0xff]
    %v955 = vld [vmem:[#allocation8 + $0xe38] sm:$0xff]
    %v956 = vld [vmem:[#allocation8 + $0xe40] sm:$0xff]
    %v957 = vld [vmem:[#allocation8 + $0xe48] sm:$0xff]
    %v958 = vld [vmem:[#allocation8 + $0xe50] sm:$0xff]
    %v959 = vld [vmem:[#allocation8 + $0xe58] sm:$0xff]
    %v960 = vld [vmem:[#allocation8 + $0xe60] sm:$0xff]
    %v961 = vld [vmem:[#allocation8 + $0xe68] sm:$0xff]
    %v962 = vld [vmem:[#allocation8 + $0xe70] sm:$0xff]
    %v963 = vld [vmem:[#allocation8 + $0xe78] sm:$0xff]
    %v964 = vld [vmem:[#allocation8 + $0xe80] sm:$0xff]
    %v965 = vld [vmem:[#allocation8 + $0xe88] sm:$0xff]
    %v966 = vld [vmem:[#allocation8 + $0xe90] sm:$0xff]
    %v967 = vld [vmem:[#allocation8 + $0xe98] sm:$0xff]
    %v968 = vld [vmem:[#allocation8 + $0xea0] sm:$0xff]
    %v969 = vld [vmem:[#allocation8 + $0xea8] sm:$0xff]
    %v970 = vld [vmem:[#allocation8 + $0xeb0] sm:$0xff]
    %v971 = vld [vmem:[#allocation8 + $0xeb8] sm:$0xff]
    %v972 = vld [vmem:[#allocation8 + $0xec0] sm:$0xff]
    %v973 = vld [vmem:[#allocation8 + $0xec8] sm:$0xff]
    %v974 = vld [vmem:[#allocation8 + $0xed0] sm:$0xff]
    %v975 = vld [vmem:[#allocation8 + $0xed8] sm:$0xff]
    %v976 = vld [vmem:[#allocation8 + $0xee0] sm:$0xff]
    %v977 = vld [vmem:[#allocation8 + $0xee8] sm:$0xff]
    %v978 = vld [vmem:[#allocation8 + $0xef0] sm:$0xff]
    %v979 = vld [vmem:[#allocation8 + $0xef8] sm:$0xff]
    %v980 = vld [vmem:[#allocation8 + $0xf00] sm:$0xff]
    %v981 = vld [vmem:[#allocation8 + $0xf08] sm:$0xff]
    %v982 = vld [vmem:[#allocation8 + $0xf10] sm:$0xff]
    %v983 = vld [vmem:[#allocation8 + $0xf18] sm:$0xff]
    %v984 = vld [vmem:[#allocation8 + $0xf20] sm:$0xff]
    %v985 = vld [vmem:[#allocation8 + $0xf28] sm:$0xff]
    %v986 = vld [vmem:[#allocation8 + $0xf30] sm:$0xff]
    %v987 = vld [vmem:[#allocation8 + $0xf38] sm:$0xff]
    %v988 = vld [vmem:[#allocation8 + $0xf40] sm:$0xff]
    %v989 = vld [vmem:[#allocation8 + $0xf48] sm:$0xff]
    %v990 = vld [vmem:[#allocation8 + $0xf50] sm:$0xff]
    %v991 = vld [vmem:[#allocation8 + $0xf58] sm:$0xff]
    %v992 = vld [vmem:[#allocation8 + $0xf60] sm:$0xff]
    %v993 = vld [vmem:[#allocation8 + $0xf68] sm:$0xff]
    %v994 = vld [vmem:[#allocation8 + $0xf70] sm:$0xff]
    %v995 = vld [vmem:[#allocation8 + $0xf78] sm:$0xff]
    %v996 = vld [vmem:[#allocation8 + $0xf80] sm:$0xff]
    %v997 = vld [vmem:[#allocation8 + $0xf88] sm:$0xff]
    %v998 = vld [vmem:[#allocation8 + $0xf90] sm:$0xff]
    %v999 = vld [vmem:[#allocation8 + $0xf98] sm:$0xff]
    %v1000 = vld [vmem:[#allocation8 + $0xfa0] sm:$0xff]
    %v1001 = vld [vmem:[#allocation8 + $0xfa8] sm:$0xff]
    %v1002 = vld [vmem:[#allocation8 + $0xfb0] sm:$0xff]
    %v1003 = vld [vmem:[#allocation8 + $0xfb8] sm:$0xff]
    %v1004 = vld [vmem:[#allocation8 + $0xfc0] sm:$0xff]
    %v1005 = vld [vmem:[#allocation8 + $0xfc8] sm:$0xff]
    %v1006 = vld [vmem:[#allocation8 + $0xfd0] sm:$0xff]
    %v1007 = vld [vmem:[#allocation8 + $0xfd8] sm:$0xff]
    %v1008 = vld [vmem:[#allocation8 + $0xfe0] sm:$0xff]
    %v1009 = vld [vmem:[#allocation8 + $0xfe8] sm:$0xff]
    %v1010 = vld [vmem:[#allocation8 + $0xff0] sm:$0xff]
    %v1011 = vld [vmem:[#allocation8 + $0xff8] sm:$0xff]
    %v1012 = vld [vmem:[#allocation10] sm:$0xff]
    %v1014 = vlaneseq
    %v1015 = vshrl.u32 %v1014, 7
    %v1016 = vsub.s32 0, %v1015
    %v1017 = vrot.slane %v1012, %v1016
    %v1018 = vlaneseq
    %v1019 = vshrl.u32 %v1018, 7
    %v1020 = vsub.s32 1, %v1019
    %v1021 = vrot.slane %v1012, %v1020
    %v1022 = vlaneseq
    %v1023 = vshrl.u32 %v1022, 7
    %v1024 = vsub.s32 2, %v1023
    %v1025 = vrot.slane %v1012, %v1024
    %v1026 = vlaneseq
    %v1027 = vshrl.u32 %v1026, 7
    %v1028 = vsub.s32 3, %v1027
    %v1029 = vrot.slane %v1012, %v1028
    %v1030 = vlaneseq
    %v1031 = vshrl.u32 %v1030, 7
    %v1032 = vsub.s32 4, %v1031
    %v1033 = vrot.slane %v1012, %v1032
    %v1034 = vlaneseq
    %v1035 = vshrl.u32 %v1034, 7
    %v1036 = vsub.s32 5, %v1035
    %v1037 = vrot.slane %v1012, %v1036
    %v1038 = vlaneseq
    %v1039 = vshrl.u32 %v1038, 7
    %v1040 = vsub.s32 6, %v1039
    %v1041 = vrot.slane %v1012, %v1040
    %v1042 = vlaneseq
    %v1043 = vshrl.u32 %v1042, 7
    %v1044 = vsub.s32 7, %v1043
    %v1045 = vrot.slane %v1012, %v1044
    %v1566 = vunpack.c.l.b16 %v500
    %v1567 = vunpack.c.h.b16 %v500
    %v1568 = vunpack.c.l.b16 %v501
    %v1569 = vunpack.c.h.b16 %v501
    %v1570 = vunpack.c.l.b16 %v502
    %v1571 = vunpack.c.h.b16 %v502
    %v1572 = vunpack.c.l.b16 %v503
    %v1573 = vunpack.c.h.b16 %v503
    %v1574 = vunpack.c.l.b16 %v504
    %v1575 = vunpack.c.h.b16 %v504
    %v1576 = vunpack.c.l.b16 %v505
    %v1577 = vunpack.c.h.b16 %v505
    %v1578 = vunpack.c.l.b16 %v506
    %v1579 = vunpack.c.h.b16 %v506
    %v1580 = vunpack.c.l.b16 %v507
    %v1581 = vunpack.c.h.b16 %v507
    %v1582 = vunpack.c.l.b16 %v508
    %v1583 = vunpack.c.h.b16 %v508
    %v1584 = vunpack.c.l.b16 %v509
    %v1585 = vunpack.c.h.b16 %v509
    %v1586 = vunpack.c.l.b16 %v510
    %v1587 = vunpack.c.h.b16 %v510
    %v1588 = vunpack.c.l.b16 %v511
    %v1589 = vunpack.c.h.b16 %v511
    %v1590 = vunpack.c.l.b16 %v512
    %v1591 = vunpack.c.h.b16 %v512
    %v1592 = vunpack.c.l.b16 %v513
    %v1593 = vunpack.c.h.b16 %v513
    %v1594 = vunpack.c.l.b16 %v514
    %v1595 = vunpack.c.h.b16 %v514
    %v1596 = vunpack.c.l.b16 %v515
    %v1597 = vunpack.c.h.b16 %v515
    %v1598 = vunpack.c.l.b16 %v516
    %v1599 = vunpack.c.h.b16 %v516
    %v1600 = vunpack.c.l.b16 %v517
    %v1601 = vunpack.c.h.b16 %v517
    %v1602 = vunpack.c.l.b16 %v518
    %v1603 = vunpack.c.h.b16 %v518
    %v1604 = vunpack.c.l.b16 %v519
    %v1605 = vunpack.c.h.b16 %v519
    %v1606 = vunpack.c.l.b16 %v520
    %v1607 = vunpack.c.h.b16 %v520
    %v1608 = vunpack.c.l.b16 %v521
    %v1609 = vunpack.c.h.b16 %v521
    %v1610 = vunpack.c.l.b16 %v522
    %v1611 = vunpack.c.h.b16 %v522
    %v1612 = vunpack.c.l.b16 %v523
    %v1613 = vunpack.c.h.b16 %v523
    %v1614 = vunpack.c.l.b16 %v524
    %v1615 = vunpack.c.h.b16 %v524
    %v1616 = vunpack.c.l.b16 %v525
    %v1617 = vunpack.c.h.b16 %v525
    %v1618 = vunpack.c.l.b16 %v526
    %v1619 = vunpack.c.h.b16 %v526
    %v1620 = vunpack.c.l.b16 %v527
    %v1621 = vunpack.c.h.b16 %v527
    %v1622 = vunpack.c.l.b16 %v528
    %v1623 = vunpack.c.h.b16 %v528
    %v1624 = vunpack.c.l.b16 %v529
    %v1625 = vunpack.c.h.b16 %v529
    %v1626 = vunpack.c.l.b16 %v530
    %v1627 = vunpack.c.h.b16 %v530
    %v1628 = vunpack.c.l.b16 %v531
    %v1629 = vunpack.c.h.b16 %v531
    %v1630 = vunpack.c.l.b16 %v532
    %v1631 = vunpack.c.h.b16 %v532
    %v1632 = vunpack.c.l.b16 %v533
    %v1633 = vunpack.c.h.b16 %v533
    %v1634 = vunpack.c.l.b16 %v534
    %v1635 = vunpack.c.h.b16 %v534
    %v1636 = vunpack.c.l.b16 %v535
    %v1637 = vunpack.c.h.b16 %v535
    %v1638 = vunpack.c.l.b16 %v536
    %v1639 = vunpack.c.h.b16 %v536
    %v1640 = vunpack.c.l.b16 %v537
    %v1641 = vunpack.c.h.b16 %v537
    %v1642 = vunpack.c.l.b16 %v538
    %v1643 = vunpack.c.h.b16 %v538
    %v1644 = vunpack.c.l.b16 %v539
    %v1645 = vunpack.c.h.b16 %v539
    %v1646 = vunpack.c.l.b16 %v540
    %v1647 = vunpack.c.h.b16 %v540
    %v1648 = vunpack.c.l.b16 %v541
    %v1649 = vunpack.c.h.b16 %v541
    %v1650 = vunpack.c.l.b16 %v542
    %v1651 = vunpack.c.h.b16 %v542
    %v1652 = vunpack.c.l.b16 %v543
    %v1653 = vunpack.c.h.b16 %v543
    %v1654 = vunpack.c.l.b16 %v544
    %v1655 = vunpack.c.h.b16 %v544
    %v1656 = vunpack.c.l.b16 %v545
    %v1657 = vunpack.c.h.b16 %v545
    %v1658 = vunpack.c.l.b16 %v546
    %v1659 = vunpack.c.h.b16 %v546
    %v1660 = vunpack.c.l.b16 %v547
    %v1661 = vunpack.c.h.b16 %v547
    %v1662 = vunpack.c.l.b16 %v548
    %v1663 = vunpack.c.h.b16 %v548
    %v1664 = vunpack.c.l.b16 %v549
    %v1665 = vunpack.c.h.b16 %v549
    %v1666 = vunpack.c.l.b16 %v550
    %v1667 = vunpack.c.h.b16 %v550
    %v1668 = vunpack.c.l.b16 %v551
    %v1669 = vunpack.c.h.b16 %v551
    %v1670 = vunpack.c.l.b16 %v552
    %v1671 = vunpack.c.h.b16 %v552
    %v1672 = vunpack.c.l.b16 %v553
    %v1673 = vunpack.c.h.b16 %v553
    %v1674 = vunpack.c.l.b16 %v554
    %v1675 = vunpack.c.h.b16 %v554
    %v1676 = vunpack.c.l.b16 %v555
    %v1677 = vunpack.c.h.b16 %v555
    %v1678 = vunpack.c.l.b16 %v556
    %v1679 = vunpack.c.h.b16 %v556
    %v1680 = vunpack.c.l.b16 %v557
    %v1681 = vunpack.c.h.b16 %v557
    %v1682 = vunpack.c.l.b16 %v558
    %v1683 = vunpack.c.h.b16 %v558
    %v1684 = vunpack.c.l.b16 %v559
    %v1685 = vunpack.c.h.b16 %v559
    %v1686 = vunpack.c.l.b16 %v560
    %v1687 = vunpack.c.h.b16 %v560
    %v1688 = vunpack.c.l.b16 %v561
    %v1689 = vunpack.c.h.b16 %v561
    %v1690 = vunpack.c.l.b16 %v562
    %v1691 = vunpack.c.h.b16 %v562
    %v1692 = vunpack.c.l.b16 %v563
    %v1693 = vunpack.c.h.b16 %v563
    %v1694 = vunpack.c.l.b16 %v564
    %v1695 = vunpack.c.h.b16 %v564
    %v1696 = vunpack.c.l.b16 %v565
    %v1697 = vunpack.c.h.b16 %v565
    %v1698 = vunpack.c.l.b16 %v566
    %v1699 = vunpack.c.h.b16 %v566
    %v1700 = vunpack.c.l.b16 %v567
    %v1701 = vunpack.c.h.b16 %v567
    %v1702 = vunpack.c.l.b16 %v568
    %v1703 = vunpack.c.h.b16 %v568
    %v1704 = vunpack.c.l.b16 %v569
    %v1705 = vunpack.c.h.b16 %v569
    %v1706 = vunpack.c.l.b16 %v570
    %v1707 = vunpack.c.h.b16 %v570
    %v1708 = vunpack.c.l.b16 %v571
    %v1709 = vunpack.c.h.b16 %v571
    %v1710 = vunpack.c.l.b16 %v572
    %v1711 = vunpack.c.h.b16 %v572
    %v1712 = vunpack.c.l.b16 %v573
    %v1713 = vunpack.c.h.b16 %v573
    %v1714 = vunpack.c.l.b16 %v574
    %v1715 = vunpack.c.h.b16 %v574
    %v1716 = vunpack.c.l.b16 %v575
    %v1717 = vunpack.c.h.b16 %v575
    %v1718 = vunpack.c.l.b16 %v576
    %v1719 = vunpack.c.h.b16 %v576
    %v1720 = vunpack.c.l.b16 %v577
    %v1721 = vunpack.c.h.b16 %v577
    %v1722 = vunpack.c.l.b16 %v578
    %v1723 = vunpack.c.h.b16 %v578
    %v1724 = vunpack.c.l.b16 %v579
    %v1725 = vunpack.c.h.b16 %v579
    %v1726 = vunpack.c.l.b16 %v580
    %v1727 = vunpack.c.h.b16 %v580
    %v1728 = vunpack.c.l.b16 %v581
    %v1729 = vunpack.c.h.b16 %v581
    %v1730 = vunpack.c.l.b16 %v582
    %v1731 = vunpack.c.h.b16 %v582
    %v1732 = vunpack.c.l.b16 %v583
    %v1733 = vunpack.c.h.b16 %v583
    %v1734 = vunpack.c.l.b16 %v584
    %v1735 = vunpack.c.h.b16 %v584
    %v1736 = vunpack.c.l.b16 %v585
    %v1737 = vunpack.c.h.b16 %v585
    %v1738 = vunpack.c.l.b16 %v586
    %v1739 = vunpack.c.h.b16 %v586
    %v1740 = vunpack.c.l.b16 %v587
    %v1741 = vunpack.c.h.b16 %v587
    %v1742 = vunpack.c.l.b16 %v588
    %v1743 = vunpack.c.h.b16 %v588
    %v1744 = vunpack.c.l.b16 %v589
    %v1745 = vunpack.c.h.b16 %v589
    %v1746 = vunpack.c.l.b16 %v590
    %v1747 = vunpack.c.h.b16 %v590
    %v1748 = vunpack.c.l.b16 %v591
    %v1749 = vunpack.c.h.b16 %v591
    %v1750 = vunpack.c.l.b16 %v592
    %v1751 = vunpack.c.h.b16 %v592
    %v1752 = vunpack.c.l.b16 %v593
    %v1753 = vunpack.c.h.b16 %v593
    %v1754 = vunpack.c.l.b16 %v594
    %v1755 = vunpack.c.h.b16 %v594
    %v1756 = vunpack.c.l.b16 %v595
    %v1757 = vunpack.c.h.b16 %v595
    %v1758 = vunpack.c.l.b16 %v596
    %v1759 = vunpack.c.h.b16 %v596
    %v1760 = vunpack.c.l.b16 %v597
    %v1761 = vunpack.c.h.b16 %v597
    %v1762 = vunpack.c.l.b16 %v598
    %v1763 = vunpack.c.h.b16 %v598
    %v1764 = vunpack.c.l.b16 %v599
    %v1765 = vunpack.c.h.b16 %v599
    %v1766 = vunpack.c.l.b16 %v600
    %v1767 = vunpack.c.h.b16 %v600
    %v1768 = vunpack.c.l.b16 %v601
    %v1769 = vunpack.c.h.b16 %v601
    %v1770 = vunpack.c.l.b16 %v602
    %v1771 = vunpack.c.h.b16 %v602
    %v1772 = vunpack.c.l.b16 %v603
    %v1773 = vunpack.c.h.b16 %v603
    %v1774 = vunpack.c.l.b16 %v604
    %v1775 = vunpack.c.h.b16 %v604
    %v1776 = vunpack.c.l.b16 %v605
    %v1777 = vunpack.c.h.b16 %v605
    %v1778 = vunpack.c.l.b16 %v606
    %v1779 = vunpack.c.h.b16 %v606
    %v1780 = vunpack.c.l.b16 %v607
    %v1781 = vunpack.c.h.b16 %v607
    %v1782 = vunpack.c.l.b16 %v608
    %v1783 = vunpack.c.h.b16 %v608
    %v1784 = vunpack.c.l.b16 %v609
    %v1785 = vunpack.c.h.b16 %v609
    %v1786 = vunpack.c.l.b16 %v610
    %v1787 = vunpack.c.h.b16 %v610
    %v1788 = vunpack.c.l.b16 %v611
    %v1789 = vunpack.c.h.b16 %v611
    %v1790 = vunpack.c.l.b16 %v612
    %v1791 = vunpack.c.h.b16 %v612
    %v1792 = vunpack.c.l.b16 %v613
    %v1793 = vunpack.c.h.b16 %v613
    %v1794 = vunpack.c.l.b16 %v614
    %v1795 = vunpack.c.h.b16 %v614
    %v1796 = vunpack.c.l.b16 %v615
    %v1797 = vunpack.c.h.b16 %v615
    %v1798 = vunpack.c.l.b16 %v616
    %v1799 = vunpack.c.h.b16 %v616
    %v1800 = vunpack.c.l.b16 %v617
    %v1801 = vunpack.c.h.b16 %v617
    %v1802 = vunpack.c.l.b16 %v618
    %v1803 = vunpack.c.h.b16 %v618
    %v1804 = vunpack.c.l.b16 %v619
    %v1805 = vunpack.c.h.b16 %v619
    %v1806 = vunpack.c.l.b16 %v620
    %v1807 = vunpack.c.h.b16 %v620
    %v1808 = vunpack.c.l.b16 %v621
    %v1809 = vunpack.c.h.b16 %v621
    %v1810 = vunpack.c.l.b16 %v622
    %v1811 = vunpack.c.h.b16 %v622
    %v1812 = vunpack.c.l.b16 %v623
    %v1813 = vunpack.c.h.b16 %v623
    %v1814 = vunpack.c.l.b16 %v624
    %v1815 = vunpack.c.h.b16 %v624
    %v1816 = vunpack.c.l.b16 %v625
    %v1817 = vunpack.c.h.b16 %v625
    %v1818 = vunpack.c.l.b16 %v626
    %v1819 = vunpack.c.h.b16 %v626
    %v1820 = vunpack.c.l.b16 %v627
    %v1821 = vunpack.c.h.b16 %v627
    %v1822 = vunpack.c.l.b16 %v628
    %v1823 = vunpack.c.h.b16 %v628
    %v1824 = vunpack.c.l.b16 %v629
    %v1825 = vunpack.c.h.b16 %v629
    %v1826 = vunpack.c.l.b16 %v630
    %v1827 = vunpack.c.h.b16 %v630
    %v1828 = vunpack.c.l.b16 %v631
    %v1829 = vunpack.c.h.b16 %v631
    %v1830 = vunpack.c.l.b16 %v632
    %v1831 = vunpack.c.h.b16 %v632
    %v1832 = vunpack.c.l.b16 %v633
    %v1833 = vunpack.c.h.b16 %v633
    %v1834 = vunpack.c.l.b16 %v634
    %v1835 = vunpack.c.h.b16 %v634
    %v1836 = vunpack.c.l.b16 %v635
    %v1837 = vunpack.c.h.b16 %v635
    %v1838 = vunpack.c.l.b16 %v636
    %v1839 = vunpack.c.h.b16 %v636
    %v1840 = vunpack.c.l.b16 %v637
    %v1841 = vunpack.c.h.b16 %v637
    %v1842 = vunpack.c.l.b16 %v638
    %v1843 = vunpack.c.h.b16 %v638
    %v1844 = vunpack.c.l.b16 %v639
    %v1845 = vunpack.c.h.b16 %v639
    %v1846 = vunpack.c.l.b16 %v640
    %v1847 = vunpack.c.h.b16 %v640
    %v1848 = vunpack.c.l.b16 %v641
    %v1849 = vunpack.c.h.b16 %v641
    %v1850 = vunpack.c.l.b16 %v642
    %v1851 = vunpack.c.h.b16 %v642
    %v1852 = vunpack.c.l.b16 %v643
    %v1853 = vunpack.c.h.b16 %v643
    %v1854 = vunpack.c.l.b16 %v644
    %v1855 = vunpack.c.h.b16 %v644
    %v1856 = vunpack.c.l.b16 %v645
    %v1857 = vunpack.c.h.b16 %v645
    %v1858 = vunpack.c.l.b16 %v646
    %v1859 = vunpack.c.h.b16 %v646
    %v1860 = vunpack.c.l.b16 %v647
    %v1861 = vunpack.c.h.b16 %v647
    %v1862 = vunpack.c.l.b16 %v648
    %v1863 = vunpack.c.h.b16 %v648
    %v1864 = vunpack.c.l.b16 %v649
    %v1865 = vunpack.c.h.b16 %v649
    %v1866 = vunpack.c.l.b16 %v650
    %v1867 = vunpack.c.h.b16 %v650
    %v1868 = vunpack.c.l.b16 %v651
    %v1869 = vunpack.c.h.b16 %v651
    %v1870 = vunpack.c.l.b16 %v652
    %v1871 = vunpack.c.h.b16 %v652
    %v1872 = vunpack.c.l.b16 %v653
    %v1873 = vunpack.c.h.b16 %v653
    %v1874 = vunpack.c.l.b16 %v654
    %v1875 = vunpack.c.h.b16 %v654
    %v1876 = vunpack.c.l.b16 %v655
    %v1877 = vunpack.c.h.b16 %v655
    %v1878 = vunpack.c.l.b16 %v656
    %v1879 = vunpack.c.h.b16 %v656
    %v1880 = vunpack.c.l.b16 %v657
    %v1881 = vunpack.c.h.b16 %v657
    %v1882 = vunpack.c.l.b16 %v658
    %v1883 = vunpack.c.h.b16 %v658
    %v1884 = vunpack.c.l.b16 %v659
    %v1885 = vunpack.c.h.b16 %v659
    %v1886 = vunpack.c.l.b16 %v660
    %v1887 = vunpack.c.h.b16 %v660
    %v1888 = vunpack.c.l.b16 %v661
    %v1889 = vunpack.c.h.b16 %v661
    %v1890 = vunpack.c.l.b16 %v662
    %v1891 = vunpack.c.h.b16 %v662
    %v1892 = vunpack.c.l.b16 %v663
    %v1893 = vunpack.c.h.b16 %v663
    %v1894 = vunpack.c.l.b16 %v664
    %v1895 = vunpack.c.h.b16 %v664
    %v1896 = vunpack.c.l.b16 %v665
    %v1897 = vunpack.c.h.b16 %v665
    %v1898 = vunpack.c.l.b16 %v666
    %v1899 = vunpack.c.h.b16 %v666
    %v1900 = vunpack.c.l.b16 %v667
    %v1901 = vunpack.c.h.b16 %v667
    %v1902 = vunpack.c.l.b16 %v668
    %v1903 = vunpack.c.h.b16 %v668
    %v1904 = vunpack.c.l.b16 %v669
    %v1905 = vunpack.c.h.b16 %v669
    %v1906 = vunpack.c.l.b16 %v670
    %v1907 = vunpack.c.h.b16 %v670
    %v1908 = vunpack.c.l.b16 %v671
    %v1909 = vunpack.c.h.b16 %v671
    %v1910 = vunpack.c.l.b16 %v672
    %v1911 = vunpack.c.h.b16 %v672
    %v1912 = vunpack.c.l.b16 %v673
    %v1913 = vunpack.c.h.b16 %v673
    %v1914 = vunpack.c.l.b16 %v674
    %v1915 = vunpack.c.h.b16 %v674
    %v1916 = vunpack.c.l.b16 %v675
    %v1917 = vunpack.c.h.b16 %v675
    %v1918 = vunpack.c.l.b16 %v676
    %v1919 = vunpack.c.h.b16 %v676
    %v1920 = vunpack.c.l.b16 %v677
    %v1921 = vunpack.c.h.b16 %v677
    %v1922 = vunpack.c.l.b16 %v678
    %v1923 = vunpack.c.h.b16 %v678
    %v1924 = vunpack.c.l.b16 %v679
    %v1925 = vunpack.c.h.b16 %v679
    %v1926 = vunpack.c.l.b16 %v680
    %v1927 = vunpack.c.h.b16 %v680
    %v1928 = vunpack.c.l.b16 %v681
    %v1929 = vunpack.c.h.b16 %v681
    %v1930 = vunpack.c.l.b16 %v682
    %v1931 = vunpack.c.h.b16 %v682
    %v1932 = vunpack.c.l.b16 %v683
    %v1933 = vunpack.c.h.b16 %v683
    %v1934 = vunpack.c.l.b16 %v684
    %v1935 = vunpack.c.h.b16 %v684
    %v1936 = vunpack.c.l.b16 %v685
    %v1937 = vunpack.c.h.b16 %v685
    %v1938 = vunpack.c.l.b16 %v686
    %v1939 = vunpack.c.h.b16 %v686
    %v1940 = vunpack.c.l.b16 %v687
    %v1941 = vunpack.c.h.b16 %v687
    %v1942 = vunpack.c.l.b16 %v688
    %v1943 = vunpack.c.h.b16 %v688
    %v1944 = vunpack.c.l.b16 %v689
    %v1945 = vunpack.c.h.b16 %v689
    %v1946 = vunpack.c.l.b16 %v690
    %v1947 = vunpack.c.h.b16 %v690
    %v1948 = vunpack.c.l.b16 %v691
    %v1949 = vunpack.c.h.b16 %v691
    %v1950 = vunpack.c.l.b16 %v692
    %v1951 = vunpack.c.h.b16 %v692
    %v1952 = vunpack.c.l.b16 %v693
    %v1953 = vunpack.c.h.b16 %v693
    %v1954 = vunpack.c.l.b16 %v694
    %v1955 = vunpack.c.h.b16 %v694
    %v1956 = vunpack.c.l.b16 %v695
    %v1957 = vunpack.c.h.b16 %v695
    %v1958 = vunpack.c.l.b16 %v696
    %v1959 = vunpack.c.h.b16 %v696
    %v1960 = vunpack.c.l.b16 %v697
    %v1961 = vunpack.c.h.b16 %v697
    %v1962 = vunpack.c.l.b16 %v698
    %v1963 = vunpack.c.h.b16 %v698
    %v1964 = vunpack.c.l.b16 %v699
    %v1965 = vunpack.c.h.b16 %v699
    %v1966 = vunpack.c.l.b16 %v700
    %v1967 = vunpack.c.h.b16 %v700
    %v1968 = vunpack.c.l.b16 %v701
    %v1969 = vunpack.c.h.b16 %v701
    %v1970 = vunpack.c.l.b16 %v702
    %v1971 = vunpack.c.h.b16 %v702
    %v1972 = vunpack.c.l.b16 %v703
    %v1973 = vunpack.c.h.b16 %v703
    %v1974 = vunpack.c.l.b16 %v704
    %v1975 = vunpack.c.h.b16 %v704
    %v1976 = vunpack.c.l.b16 %v705
    %v1977 = vunpack.c.h.b16 %v705
    %v1978 = vunpack.c.l.b16 %v706
    %v1979 = vunpack.c.h.b16 %v706
    %v1980 = vunpack.c.l.b16 %v707
    %v1981 = vunpack.c.h.b16 %v707
    %v1982 = vunpack.c.l.b16 %v708
    %v1983 = vunpack.c.h.b16 %v708
    %v1984 = vunpack.c.l.b16 %v709
    %v1985 = vunpack.c.h.b16 %v709
    %v1986 = vunpack.c.l.b16 %v710
    %v1987 = vunpack.c.h.b16 %v710
    %v1988 = vunpack.c.l.b16 %v711
    %v1989 = vunpack.c.h.b16 %v711
    %v1990 = vunpack.c.l.b16 %v712
    %v1991 = vunpack.c.h.b16 %v712
    %v1992 = vunpack.c.l.b16 %v713
    %v1993 = vunpack.c.h.b16 %v713
    %v1994 = vunpack.c.l.b16 %v714
    %v1995 = vunpack.c.h.b16 %v714
    %v1996 = vunpack.c.l.b16 %v715
    %v1997 = vunpack.c.h.b16 %v715
    %v1998 = vunpack.c.l.b16 %v716
    %v1999 = vunpack.c.h.b16 %v716
    %v2000 = vunpack.c.l.b16 %v717
    %v2001 = vunpack.c.h.b16 %v717
    %v2002 = vunpack.c.l.b16 %v718
    %v2003 = vunpack.c.h.b16 %v718
    %v2004 = vunpack.c.l.b16 %v719
    %v2005 = vunpack.c.h.b16 %v719
    %v2006 = vunpack.c.l.b16 %v720
    %v2007 = vunpack.c.h.b16 %v720
    %v2008 = vunpack.c.l.b16 %v721
    %v2009 = vunpack.c.h.b16 %v721
    %v2010 = vunpack.c.l.b16 %v722
    %v2011 = vunpack.c.h.b16 %v722
    %v2012 = vunpack.c.l.b16 %v723
    %v2013 = vunpack.c.h.b16 %v723
    %v2014 = vunpack.c.l.b16 %v724
    %v2015 = vunpack.c.h.b16 %v724
    %v2016 = vunpack.c.l.b16 %v725
    %v2017 = vunpack.c.h.b16 %v725
    %v2018 = vunpack.c.l.b16 %v726
    %v2019 = vunpack.c.h.b16 %v726
    %v2020 = vunpack.c.l.b16 %v727
    %v2021 = vunpack.c.h.b16 %v727
    %v2022 = vunpack.c.l.b16 %v728
    %v2023 = vunpack.c.h.b16 %v728
    %v2024 = vunpack.c.l.b16 %v729
    %v2025 = vunpack.c.h.b16 %v729
    %v2026 = vunpack.c.l.b16 %v730
    %v2027 = vunpack.c.h.b16 %v730
    %v2028 = vunpack.c.l.b16 %v731
    %v2029 = vunpack.c.h.b16 %v731
    %v2030 = vunpack.c.l.b16 %v732
    %v2031 = vunpack.c.h.b16 %v732
    %v2032 = vunpack.c.l.b16 %v733
    %v2033 = vunpack.c.h.b16 %v733
    %v2034 = vunpack.c.l.b16 %v734
    %v2035 = vunpack.c.h.b16 %v734
    %v2036 = vunpack.c.l.b16 %v735
    %v2037 = vunpack.c.h.b16 %v735
    %v2038 = vunpack.c.l.b16 %v736
    %v2039 = vunpack.c.h.b16 %v736
    %v2040 = vunpack.c.l.b16 %v737
    %v2041 = vunpack.c.h.b16 %v737
    %v2042 = vunpack.c.l.b16 %v738
    %v2043 = vunpack.c.h.b16 %v738
    %v2044 = vunpack.c.l.b16 %v739
    %v2045 = vunpack.c.h.b16 %v739
    %v2046 = vunpack.c.l.b16 %v740
    %v2047 = vunpack.c.h.b16 %v740
    %v2048 = vunpack.c.l.b16 %v741
    %v2049 = vunpack.c.h.b16 %v741
    %v2050 = vunpack.c.l.b16 %v742
    %v2051 = vunpack.c.h.b16 %v742
    %v2052 = vunpack.c.l.b16 %v743
    %v2053 = vunpack.c.h.b16 %v743
    %v2054 = vunpack.c.l.b16 %v744
    %v2055 = vunpack.c.h.b16 %v744
    %v2056 = vunpack.c.l.b16 %v745
    %v2057 = vunpack.c.h.b16 %v745
    %v2058 = vunpack.c.l.b16 %v746
    %v2059 = vunpack.c.h.b16 %v746
    %v2060 = vunpack.c.l.b16 %v747
    %v2061 = vunpack.c.h.b16 %v747
    %v2062 = vunpack.c.l.b16 %v748
    %v2063 = vunpack.c.h.b16 %v748
    %v2064 = vunpack.c.l.b16 %v749
    %v2065 = vunpack.c.h.b16 %v749
    %v2066 = vunpack.c.l.b16 %v750
    %v2067 = vunpack.c.h.b16 %v750
    %v2068 = vunpack.c.l.b16 %v751
    %v2069 = vunpack.c.h.b16 %v751
    %v2070 = vunpack.c.l.b16 %v752
    %v2071 = vunpack.c.h.b16 %v752
    %v2072 = vunpack.c.l.b16 %v753
    %v2073 = vunpack.c.h.b16 %v753
    %v2074 = vunpack.c.l.b16 %v754
    %v2075 = vunpack.c.h.b16 %v754
    %v2076 = vunpack.c.l.b16 %v755
    %v2077 = vunpack.c.h.b16 %v755
    %v2078 = vunpack.c.l.b16 %v756
    %v2079 = vunpack.c.h.b16 %v756
    %v2080 = vunpack.c.l.b16 %v757
    %v2081 = vunpack.c.h.b16 %v757
    %v2082 = vunpack.c.l.b16 %v758
    %v2083 = vunpack.c.h.b16 %v758
    %v2084 = vunpack.c.l.b16 %v759
    %v2085 = vunpack.c.h.b16 %v759
    %v2086 = vunpack.c.l.b16 %v760
    %v2087 = vunpack.c.h.b16 %v760
    %v2088 = vunpack.c.l.b16 %v761
    %v2089 = vunpack.c.h.b16 %v761
    %v2090 = vunpack.c.l.b16 %v762
    %v2091 = vunpack.c.h.b16 %v762
    %v2092 = vunpack.c.l.b16 %v763
    %v2093 = vunpack.c.h.b16 %v763
    %v2094 = vunpack.c.l.b16 %v764
    %v2095 = vunpack.c.h.b16 %v764
    %v2096 = vunpack.c.l.b16 %v765
    %v2097 = vunpack.c.h.b16 %v765
    %v2098 = vunpack.c.l.b16 %v766
    %v2099 = vunpack.c.h.b16 %v766
    %v2100 = vunpack.c.l.b16 %v767
    %v2101 = vunpack.c.h.b16 %v767
    %v2102 = vunpack.c.l.b16 %v768
    %v2103 = vunpack.c.h.b16 %v768
    %v2104 = vunpack.c.l.b16 %v769
    %v2105 = vunpack.c.h.b16 %v769
    %v2106 = vunpack.c.l.b16 %v770
    %v2107 = vunpack.c.h.b16 %v770
    %v2108 = vunpack.c.l.b16 %v771
    %v2109 = vunpack.c.h.b16 %v771
    %v2110 = vunpack.c.l.b16 %v772
    %v2111 = vunpack.c.h.b16 %v772
    %v2112 = vunpack.c.l.b16 %v773
    %v2113 = vunpack.c.h.b16 %v773
    %v2114 = vunpack.c.l.b16 %v774
    %v2115 = vunpack.c.h.b16 %v774
    %v2116 = vunpack.c.l.b16 %v775
    %v2117 = vunpack.c.h.b16 %v775
    %v2118 = vunpack.c.l.b16 %v776
    %v2119 = vunpack.c.h.b16 %v776
    %v2120 = vunpack.c.l.b16 %v777
    %v2121 = vunpack.c.h.b16 %v777
    %v2122 = vunpack.c.l.b16 %v778
    %v2123 = vunpack.c.h.b16 %v778
    %v2124 = vunpack.c.l.b16 %v779
    %v2125 = vunpack.c.h.b16 %v779
    %v2126 = vunpack.c.l.b16 %v780
    %v2127 = vunpack.c.h.b16 %v780
    %v2128 = vunpack.c.l.b16 %v781
    %v2129 = vunpack.c.h.b16 %v781
    %v2130 = vunpack.c.l.b16 %v782
    %v2131 = vunpack.c.h.b16 %v782
    %v2132 = vunpack.c.l.b16 %v783
    %v2133 = vunpack.c.h.b16 %v783
    %v2134 = vunpack.c.l.b16 %v784
    %v2135 = vunpack.c.h.b16 %v784
    %v2136 = vunpack.c.l.b16 %v785
    %v2137 = vunpack.c.h.b16 %v785
    %v2138 = vunpack.c.l.b16 %v786
    %v2139 = vunpack.c.h.b16 %v786
    %v2140 = vunpack.c.l.b16 %v787
    %v2141 = vunpack.c.h.b16 %v787
    %v2142 = vunpack.c.l.b16 %v788
    %v2143 = vunpack.c.h.b16 %v788
    %v2144 = vunpack.c.l.b16 %v789
    %v2145 = vunpack.c.h.b16 %v789
    %v2146 = vunpack.c.l.b16 %v790
    %v2147 = vunpack.c.h.b16 %v790
    %v2148 = vunpack.c.l.b16 %v791
    %v2149 = vunpack.c.h.b16 %v791
    %v2150 = vunpack.c.l.b16 %v792
    %v2151 = vunpack.c.h.b16 %v792
    %v2152 = vunpack.c.l.b16 %v793
    %v2153 = vunpack.c.h.b16 %v793
    %v2154 = vunpack.c.l.b16 %v794
    %v2155 = vunpack.c.h.b16 %v794
    %v2156 = vunpack.c.l.b16 %v795
    %v2157 = vunpack.c.h.b16 %v795
    %v2158 = vunpack.c.l.b16 %v796
    %v2159 = vunpack.c.h.b16 %v796
    %v2160 = vunpack.c.l.b16 %v797
    %v2161 = vunpack.c.h.b16 %v797
    %v2162 = vunpack.c.l.b16 %v798
    %v2163 = vunpack.c.h.b16 %v798
    %v2164 = vunpack.c.l.b16 %v799
    %v2165 = vunpack.c.h.b16 %v799
    %v2166 = vunpack.c.l.b16 %v800
    %v2167 = vunpack.c.h.b16 %v800
    %v2168 = vunpack.c.l.b16 %v801
    %v2169 = vunpack.c.h.b16 %v801
    %v2170 = vunpack.c.l.b16 %v802
    %v2171 = vunpack.c.h.b16 %v802
    %v2172 = vunpack.c.l.b16 %v803
    %v2173 = vunpack.c.h.b16 %v803
    %v2174 = vunpack.c.l.b16 %v804
    %v2175 = vunpack.c.h.b16 %v804
    %v2176 = vunpack.c.l.b16 %v805
    %v2177 = vunpack.c.h.b16 %v805
    %v2178 = vunpack.c.l.b16 %v806
    %v2179 = vunpack.c.h.b16 %v806
    %v2180 = vunpack.c.l.b16 %v807
    %v2181 = vunpack.c.h.b16 %v807
    %v2182 = vunpack.c.l.b16 %v808
    %v2183 = vunpack.c.h.b16 %v808
    %v2184 = vunpack.c.l.b16 %v809
    %v2185 = vunpack.c.h.b16 %v809
    %v2186 = vunpack.c.l.b16 %v810
    %v2187 = vunpack.c.h.b16 %v810
    %v2188 = vunpack.c.l.b16 %v811
    %v2189 = vunpack.c.h.b16 %v811
    %v2190 = vunpack.c.l.b16 %v812
    %v2191 = vunpack.c.h.b16 %v812
    %v2192 = vunpack.c.l.b16 %v813
    %v2193 = vunpack.c.h.b16 %v813
    %v2194 = vunpack.c.l.b16 %v814
    %v2195 = vunpack.c.h.b16 %v814
    %v2196 = vunpack.c.l.b16 %v815
    %v2197 = vunpack.c.h.b16 %v815
    %v2198 = vunpack.c.l.b16 %v816
    %v2199 = vunpack.c.h.b16 %v816
    %v2200 = vunpack.c.l.b16 %v817
    %v2201 = vunpack.c.h.b16 %v817
    %v2202 = vunpack.c.l.b16 %v818
    %v2203 = vunpack.c.h.b16 %v818
    %v2204 = vunpack.c.l.b16 %v819
    %v2205 = vunpack.c.h.b16 %v819
    %v2206 = vunpack.c.l.b16 %v820
    %v2207 = vunpack.c.h.b16 %v820
    %v2208 = vunpack.c.l.b16 %v821
    %v2209 = vunpack.c.h.b16 %v821
    %v2210 = vunpack.c.l.b16 %v822
    %v2211 = vunpack.c.h.b16 %v822
    %v2212 = vunpack.c.l.b16 %v823
    %v2213 = vunpack.c.h.b16 %v823
    %v2214 = vunpack.c.l.b16 %v824
    %v2215 = vunpack.c.h.b16 %v824
    %v2216 = vunpack.c.l.b16 %v825
    %v2217 = vunpack.c.h.b16 %v825
    %v2218 = vunpack.c.l.b16 %v826
    %v2219 = vunpack.c.h.b16 %v826
    %v2220 = vunpack.c.l.b16 %v827
    %v2221 = vunpack.c.h.b16 %v827
    %v2222 = vunpack.c.l.b16 %v828
    %v2223 = vunpack.c.h.b16 %v828
    %v2224 = vunpack.c.l.b16 %v829
    %v2225 = vunpack.c.h.b16 %v829
    %v2226 = vunpack.c.l.b16 %v830
    %v2227 = vunpack.c.h.b16 %v830
    %v2228 = vunpack.c.l.b16 %v831
    %v2229 = vunpack.c.h.b16 %v831
    %v2230 = vunpack.c.l.b16 %v832
    %v2231 = vunpack.c.h.b16 %v832
    %v2232 = vunpack.c.l.b16 %v833
    %v2233 = vunpack.c.h.b16 %v833
    %v2234 = vunpack.c.l.b16 %v834
    %v2235 = vunpack.c.h.b16 %v834
    %v2236 = vunpack.c.l.b16 %v835
    %v2237 = vunpack.c.h.b16 %v835
    %v2238 = vunpack.c.l.b16 %v836
    %v2239 = vunpack.c.h.b16 %v836
    %v2240 = vunpack.c.l.b16 %v837
    %v2241 = vunpack.c.h.b16 %v837
    %v2242 = vunpack.c.l.b16 %v838
    %v2243 = vunpack.c.h.b16 %v838
    %v2244 = vunpack.c.l.b16 %v839
    %v2245 = vunpack.c.h.b16 %v839
    %v2246 = vunpack.c.l.b16 %v840
    %v2247 = vunpack.c.h.b16 %v840
    %v2248 = vunpack.c.l.b16 %v841
    %v2249 = vunpack.c.h.b16 %v841
    %v2250 = vunpack.c.l.b16 %v842
    %v2251 = vunpack.c.h.b16 %v842
    %v2252 = vunpack.c.l.b16 %v843
    %v2253 = vunpack.c.h.b16 %v843
    %v2254 = vunpack.c.l.b16 %v844
    %v2255 = vunpack.c.h.b16 %v844
    %v2256 = vunpack.c.l.b16 %v845
    %v2257 = vunpack.c.h.b16 %v845
    %v2258 = vunpack.c.l.b16 %v846
    %v2259 = vunpack.c.h.b16 %v846
    %v2260 = vunpack.c.l.b16 %v847
    %v2261 = vunpack.c.h.b16 %v847
    %v2262 = vunpack.c.l.b16 %v848
    %v2263 = vunpack.c.h.b16 %v848
    %v2264 = vunpack.c.l.b16 %v849
    %v2265 = vunpack.c.h.b16 %v849
    %v2266 = vunpack.c.l.b16 %v850
    %v2267 = vunpack.c.h.b16 %v850
    %v2268 = vunpack.c.l.b16 %v851
    %v2269 = vunpack.c.h.b16 %v851
    %v2270 = vunpack.c.l.b16 %v852
    %v2271 = vunpack.c.h.b16 %v852
    %v2272 = vunpack.c.l.b16 %v853
    %v2273 = vunpack.c.h.b16 %v853
    %v2274 = vunpack.c.l.b16 %v854
    %v2275 = vunpack.c.h.b16 %v854
    %v2276 = vunpack.c.l.b16 %v855
    %v2277 = vunpack.c.h.b16 %v855
    %v2278 = vunpack.c.l.b16 %v856
    %v2279 = vunpack.c.h.b16 %v856
    %v2280 = vunpack.c.l.b16 %v857
    %v2281 = vunpack.c.h.b16 %v857
    %v2282 = vunpack.c.l.b16 %v858
    %v2283 = vunpack.c.h.b16 %v858
    %v2284 = vunpack.c.l.b16 %v859
    %v2285 = vunpack.c.h.b16 %v859
    %v2286 = vunpack.c.l.b16 %v860
    %v2287 = vunpack.c.h.b16 %v860
    %v2288 = vunpack.c.l.b16 %v861
    %v2289 = vunpack.c.h.b16 %v861
    %v2290 = vunpack.c.l.b16 %v862
    %v2291 = vunpack.c.h.b16 %v862
    %v2292 = vunpack.c.l.b16 %v863
    %v2293 = vunpack.c.h.b16 %v863
    %v2294 = vunpack.c.l.b16 %v864
    %v2295 = vunpack.c.h.b16 %v864
    %v2296 = vunpack.c.l.b16 %v865
    %v2297 = vunpack.c.h.b16 %v865
    %v2298 = vunpack.c.l.b16 %v866
    %v2299 = vunpack.c.h.b16 %v866
    %v2300 = vunpack.c.l.b16 %v867
    %v2301 = vunpack.c.h.b16 %v867
    %v2302 = vunpack.c.l.b16 %v868
    %v2303 = vunpack.c.h.b16 %v868
    %v2304 = vunpack.c.l.b16 %v869
    %v2305 = vunpack.c.h.b16 %v869
    %v2306 = vunpack.c.l.b16 %v870
    %v2307 = vunpack.c.h.b16 %v870
    %v2308 = vunpack.c.l.b16 %v871
    %v2309 = vunpack.c.h.b16 %v871
    %v2310 = vunpack.c.l.b16 %v872
    %v2311 = vunpack.c.h.b16 %v872
    %v2312 = vunpack.c.l.b16 %v873
    %v2313 = vunpack.c.h.b16 %v873
    %v2314 = vunpack.c.l.b16 %v874
    %v2315 = vunpack.c.h.b16 %v874
    %v2316 = vunpack.c.l.b16 %v875
    %v2317 = vunpack.c.h.b16 %v875
    %v2318 = vunpack.c.l.b16 %v876
    %v2319 = vunpack.c.h.b16 %v876
    %v2320 = vunpack.c.l.b16 %v877
    %v2321 = vunpack.c.h.b16 %v877
    %v2322 = vunpack.c.l.b16 %v878
    %v2323 = vunpack.c.h.b16 %v878
    %v2324 = vunpack.c.l.b16 %v879
    %v2325 = vunpack.c.h.b16 %v879
    %v2326 = vunpack.c.l.b16 %v880
    %v2327 = vunpack.c.h.b16 %v880
    %v2328 = vunpack.c.l.b16 %v881
    %v2329 = vunpack.c.h.b16 %v881
    %v2330 = vunpack.c.l.b16 %v882
    %v2331 = vunpack.c.h.b16 %v882
    %v2332 = vunpack.c.l.b16 %v883
    %v2333 = vunpack.c.h.b16 %v883
    %v2334 = vunpack.c.l.b16 %v884
    %v2335 = vunpack.c.h.b16 %v884
    %v2336 = vunpack.c.l.b16 %v885
    %v2337 = vunpack.c.h.b16 %v885
    %v2338 = vunpack.c.l.b16 %v886
    %v2339 = vunpack.c.h.b16 %v886
    %v2340 = vunpack.c.l.b16 %v887
    %v2341 = vunpack.c.h.b16 %v887
    %v2342 = vunpack.c.l.b16 %v888
    %v2343 = vunpack.c.h.b16 %v888
    %v2344 = vunpack.c.l.b16 %v889
    %v2345 = vunpack.c.h.b16 %v889
    %v2346 = vunpack.c.l.b16 %v890
    %v2347 = vunpack.c.h.b16 %v890
    %v2348 = vunpack.c.l.b16 %v891
    %v2349 = vunpack.c.h.b16 %v891
    %v2350 = vunpack.c.l.b16 %v892
    %v2351 = vunpack.c.h.b16 %v892
    %v2352 = vunpack.c.l.b16 %v893
    %v2353 = vunpack.c.h.b16 %v893
    %v2354 = vunpack.c.l.b16 %v894
    %v2355 = vunpack.c.h.b16 %v894
    %v2356 = vunpack.c.l.b16 %v895
    %v2357 = vunpack.c.h.b16 %v895
    %v2358 = vunpack.c.l.b16 %v896
    %v2359 = vunpack.c.h.b16 %v896
    %v2360 = vunpack.c.l.b16 %v897
    %v2361 = vunpack.c.h.b16 %v897
    %v2362 = vunpack.c.l.b16 %v898
    %v2363 = vunpack.c.h.b16 %v898
    %v2364 = vunpack.c.l.b16 %v899
    %v2365 = vunpack.c.h.b16 %v899
    %v2366 = vunpack.c.l.b16 %v900
    %v2367 = vunpack.c.h.b16 %v900
    %v2368 = vunpack.c.l.b16 %v901
    %v2369 = vunpack.c.h.b16 %v901
    %v2370 = vunpack.c.l.b16 %v902
    %v2371 = vunpack.c.h.b16 %v902
    %v2372 = vunpack.c.l.b16 %v903
    %v2373 = vunpack.c.h.b16 %v903
    %v2374 = vunpack.c.l.b16 %v904
    %v2375 = vunpack.c.h.b16 %v904
    %v2376 = vunpack.c.l.b16 %v905
    %v2377 = vunpack.c.h.b16 %v905
    %v2378 = vunpack.c.l.b16 %v906
    %v2379 = vunpack.c.h.b16 %v906
    %v2380 = vunpack.c.l.b16 %v907
    %v2381 = vunpack.c.h.b16 %v907
    %v2382 = vunpack.c.l.b16 %v908
    %v2383 = vunpack.c.h.b16 %v908
    %v2384 = vunpack.c.l.b16 %v909
    %v2385 = vunpack.c.h.b16 %v909
    %v2386 = vunpack.c.l.b16 %v910
    %v2387 = vunpack.c.h.b16 %v910
    %v2388 = vunpack.c.l.b16 %v911
    %v2389 = vunpack.c.h.b16 %v911
    %v2390 = vunpack.c.l.b16 %v912
    %v2391 = vunpack.c.h.b16 %v912
    %v2392 = vunpack.c.l.b16 %v913
    %v2393 = vunpack.c.h.b16 %v913
    %v2394 = vunpack.c.l.b16 %v914
    %v2395 = vunpack.c.h.b16 %v914
    %v2396 = vunpack.c.l.b16 %v915
    %v2397 = vunpack.c.h.b16 %v915
    %v2398 = vunpack.c.l.b16 %v916
    %v2399 = vunpack.c.h.b16 %v916
    %v2400 = vunpack.c.l.b16 %v917
    %v2401 = vunpack.c.h.b16 %v917
    %v2402 = vunpack.c.l.b16 %v918
    %v2403 = vunpack.c.h.b16 %v918
    %v2404 = vunpack.c.l.b16 %v919
    %v2405 = vunpack.c.h.b16 %v919
    %v2406 = vunpack.c.l.b16 %v920
    %v2407 = vunpack.c.h.b16 %v920
    %v2408 = vunpack.c.l.b16 %v921
    %v2409 = vunpack.c.h.b16 %v921
    %v2410 = vunpack.c.l.b16 %v922
    %v2411 = vunpack.c.h.b16 %v922
    %v2412 = vunpack.c.l.b16 %v923
    %v2413 = vunpack.c.h.b16 %v923
    %v2414 = vunpack.c.l.b16 %v924
    %v2415 = vunpack.c.h.b16 %v924
    %v2416 = vunpack.c.l.b16 %v925
    %v2417 = vunpack.c.h.b16 %v925
    %v2418 = vunpack.c.l.b16 %v926
    %v2419 = vunpack.c.h.b16 %v926
    %v2420 = vunpack.c.l.b16 %v927
    %v2421 = vunpack.c.h.b16 %v927
    %v2422 = vunpack.c.l.b16 %v928
    %v2423 = vunpack.c.h.b16 %v928
    %v2424 = vunpack.c.l.b16 %v929
    %v2425 = vunpack.c.h.b16 %v929
    %v2426 = vunpack.c.l.b16 %v930
    %v2427 = vunpack.c.h.b16 %v930
    %v2428 = vunpack.c.l.b16 %v931
    %v2429 = vunpack.c.h.b16 %v931
    %v2430 = vunpack.c.l.b16 %v932
    %v2431 = vunpack.c.h.b16 %v932
    %v2432 = vunpack.c.l.b16 %v933
    %v2433 = vunpack.c.h.b16 %v933
    %v2434 = vunpack.c.l.b16 %v934
    %v2435 = vunpack.c.h.b16 %v934
    %v2436 = vunpack.c.l.b16 %v935
    %v2437 = vunpack.c.h.b16 %v935
    %v2438 = vunpack.c.l.b16 %v936
    %v2439 = vunpack.c.h.b16 %v936
    %v2440 = vunpack.c.l.b16 %v937
    %v2441 = vunpack.c.h.b16 %v937
    %v2442 = vunpack.c.l.b16 %v938
    %v2443 = vunpack.c.h.b16 %v938
    %v2444 = vunpack.c.l.b16 %v939
    %v2445 = vunpack.c.h.b16 %v939
    %v2446 = vunpack.c.l.b16 %v940
    %v2447 = vunpack.c.h.b16 %v940
    %v2448 = vunpack.c.l.b16 %v941
    %v2449 = vunpack.c.h.b16 %v941
    %v2450 = vunpack.c.l.b16 %v942
    %v2451 = vunpack.c.h.b16 %v942
    %v2452 = vunpack.c.l.b16 %v943
    %v2453 = vunpack.c.h.b16 %v943
    %v2454 = vunpack.c.l.b16 %v944
    %v2455 = vunpack.c.h.b16 %v944
    %v2456 = vunpack.c.l.b16 %v945
    %v2457 = vunpack.c.h.b16 %v945
    %v2458 = vunpack.c.l.b16 %v946
    %v2459 = vunpack.c.h.b16 %v946
    %v2460 = vunpack.c.l.b16 %v947
    %v2461 = vunpack.c.h.b16 %v947
    %v2462 = vunpack.c.l.b16 %v948
    %v2463 = vunpack.c.h.b16 %v948
    %v2464 = vunpack.c.l.b16 %v949
    %v2465 = vunpack.c.h.b16 %v949
    %v2466 = vunpack.c.l.b16 %v950
    %v2467 = vunpack.c.h.b16 %v950
    %v2468 = vunpack.c.l.b16 %v951
    %v2469 = vunpack.c.h.b16 %v951
    %v2470 = vunpack.c.l.b16 %v952
    %v2471 = vunpack.c.h.b16 %v952
    %v2472 = vunpack.c.l.b16 %v953
    %v2473 = vunpack.c.h.b16 %v953
    %v2474 = vunpack.c.l.b16 %v954
    %v2475 = vunpack.c.h.b16 %v954
    %v2476 = vunpack.c.l.b16 %v955
    %v2477 = vunpack.c.h.b16 %v955
    %v2478 = vunpack.c.l.b16 %v956
    %v2479 = vunpack.c.h.b16 %v956
    %v2480 = vunpack.c.l.b16 %v957
    %v2481 = vunpack.c.h.b16 %v957
    %v2482 = vunpack.c.l.b16 %v958
    %v2483 = vunpack.c.h.b16 %v958
    %v2484 = vunpack.c.l.b16 %v959
    %v2485 = vunpack.c.h.b16 %v959
    %v2486 = vunpack.c.l.b16 %v960
    %v2487 = vunpack.c.h.b16 %v960
    %v2488 = vunpack.c.l.b16 %v961
    %v2489 = vunpack.c.h.b16 %v961
    %v2490 = vunpack.c.l.b16 %v962
    %v2491 = vunpack.c.h.b16 %v962
    %v2492 = vunpack.c.l.b16 %v963
    %v2493 = vunpack.c.h.b16 %v963
    %v2494 = vunpack.c.l.b16 %v964
    %v2495 = vunpack.c.h.b16 %v964
    %v2496 = vunpack.c.l.b16 %v965
    %v2497 = vunpack.c.h.b16 %v965
    %v2498 = vunpack.c.l.b16 %v966
    %v2499 = vunpack.c.h.b16 %v966
    %v2500 = vunpack.c.l.b16 %v967
    %v2501 = vunpack.c.h.b16 %v967
    %v2502 = vunpack.c.l.b16 %v968
    %v2503 = vunpack.c.h.b16 %v968
    %v2504 = vunpack.c.l.b16 %v969
    %v2505 = vunpack.c.h.b16 %v969
    %v2506 = vunpack.c.l.b16 %v970
    %v2507 = vunpack.c.h.b16 %v970
    %v2508 = vunpack.c.l.b16 %v971
    %v2509 = vunpack.c.h.b16 %v971
    %v2510 = vunpack.c.l.b16 %v972
    %v2511 = vunpack.c.h.b16 %v972
    %v2512 = vunpack.c.l.b16 %v973
    %v2513 = vunpack.c.h.b16 %v973
    %v2514 = vunpack.c.l.b16 %v974
    %v2515 = vunpack.c.h.b16 %v974
    %v2516 = vunpack.c.l.b16 %v975
    %v2517 = vunpack.c.h.b16 %v975
    %v2518 = vunpack.c.l.b16 %v976
    %v2519 = vunpack.c.h.b16 %v976
    %v2520 = vunpack.c.l.b16 %v977
    %v2521 = vunpack.c.h.b16 %v977
    %v2522 = vunpack.c.l.b16 %v978
    %v2523 = vunpack.c.h.b16 %v978
    %v2524 = vunpack.c.l.b16 %v979
    %v2525 = vunpack.c.h.b16 %v979
    %v2526 = vunpack.c.l.b16 %v980
    %v2527 = vunpack.c.h.b16 %v980
    %v2528 = vunpack.c.l.b16 %v981
    %v2529 = vunpack.c.h.b16 %v981
    %v2530 = vunpack.c.l.b16 %v982
    %v2531 = vunpack.c.h.b16 %v982
    %v2532 = vunpack.c.l.b16 %v983
    %v2533 = vunpack.c.h.b16 %v983
    %v2534 = vunpack.c.l.b16 %v984
    %v2535 = vunpack.c.h.b16 %v984
    %v2536 = vunpack.c.l.b16 %v985
    %v2537 = vunpack.c.h.b16 %v985
    %v2538 = vunpack.c.l.b16 %v986
    %v2539 = vunpack.c.h.b16 %v986
    %v2540 = vunpack.c.l.b16 %v987
    %v2541 = vunpack.c.h.b16 %v987
    %v2542 = vunpack.c.l.b16 %v988
    %v2543 = vunpack.c.h.b16 %v988
    %v2544 = vunpack.c.l.b16 %v989
    %v2545 = vunpack.c.h.b16 %v989
    %v2546 = vunpack.c.l.b16 %v990
    %v2547 = vunpack.c.h.b16 %v990
    %v2548 = vunpack.c.l.b16 %v991
    %v2549 = vunpack.c.h.b16 %v991
    %v2550 = vunpack.c.l.b16 %v992
    %v2551 = vunpack.c.h.b16 %v992
    %v2552 = vunpack.c.l.b16 %v993
    %v2553 = vunpack.c.h.b16 %v993
    %v2554 = vunpack.c.l.b16 %v994
    %v2555 = vunpack.c.h.b16 %v994
    %v2556 = vunpack.c.l.b16 %v995
    %v2557 = vunpack.c.h.b16 %v995
    %v2558 = vunpack.c.l.b16 %v996
    %v2559 = vunpack.c.h.b16 %v996
    %v2560 = vunpack.c.l.b16 %v997
    %v2561 = vunpack.c.h.b16 %v997
    %v2562 = vunpack.c.l.b16 %v998
    %v2563 = vunpack.c.h.b16 %v998
    %v2564 = vunpack.c.l.b16 %v999
    %v2565 = vunpack.c.h.b16 %v999
    %v2566 = vunpack.c.l.b16 %v1000
    %v2567 = vunpack.c.h.b16 %v1000
    %v2568 = vunpack.c.l.b16 %v1001
    %v2569 = vunpack.c.h.b16 %v1001
    %v2570 = vunpack.c.l.b16 %v1002
    %v2571 = vunpack.c.h.b16 %v1002
    %v2572 = vunpack.c.l.b16 %v1003
    %v2573 = vunpack.c.h.b16 %v1003
    %v2574 = vunpack.c.l.b16 %v1004
    %v2575 = vunpack.c.h.b16 %v1004
    %v2576 = vunpack.c.l.b16 %v1005
    %v2577 = vunpack.c.h.b16 %v1005
    %v2578 = vunpack.c.l.b16 %v1006
    %v2579 = vunpack.c.h.b16 %v1006
    %v2580 = vunpack.c.l.b16 %v1007
    %v2581 = vunpack.c.h.b16 %v1007
    %v2582 = vunpack.c.l.b16 %v1008
    %v2583 = vunpack.c.h.b16 %v1008
    %v2584 = vunpack.c.l.b16 %v1009
    %v2585 = vunpack.c.h.b16 %v1009
    %v2586 = vunpack.c.l.b16 %v1010
    %v2587 = vunpack.c.h.b16 %v1010
    %v2588 = vunpack.c.l.b16 %v1011
    %v2589 = vunpack.c.h.b16 %v1011
    %v2590 = vpack.c.b16 %v1574, %v1566
    %v2591 = vpack.c.b16 %v1575, %v1567
    %v2592 = vpack.c.b16 %v1576, %v1568
    %v2593 = vpack.c.b16 %v1577, %v1569
    %v2594 = vpack.c.b16 %v1578, %v1570
    %v2595 = vpack.c.b16 %v1579, %v1571
    %v2596 = vpack.c.b16 %v1580, %v1572
    %v2597 = vpack.c.b16 %v1581, %v1573
    %v2598 = vpack.c.b16 %v1590, %v1582
    %v2599 = vpack.c.b16 %v1591, %v1583
    %v2600 = vpack.c.b16 %v1592, %v1584
    %v2601 = vpack.c.b16 %v1593, %v1585
    %v2602 = vpack.c.b16 %v1594, %v1586
    %v2603 = vpack.c.b16 %v1595, %v1587
    %v2604 = vpack.c.b16 %v1596, %v1588
    %v2605 = vpack.c.b16 %v1597, %v1589
    %v2606 = vpack.c.b16 %v1606, %v1598
    %v2607 = vpack.c.b16 %v1607, %v1599
    %v2608 = vpack.c.b16 %v1608, %v1600
    %v2609 = vpack.c.b16 %v1609, %v1601
    %v2610 = vpack.c.b16 %v1610, %v1602
    %v2611 = vpack.c.b16 %v1611, %v1603
    %v2612 = vpack.c.b16 %v1612, %v1604
    %v2613 = vpack.c.b16 %v1613, %v1605
    %v2614 = vpack.c.b16 %v1622, %v1614
    %v2615 = vpack.c.b16 %v1623, %v1615
    %v2616 = vpack.c.b16 %v1624, %v1616
    %v2617 = vpack.c.b16 %v1625, %v1617
    %v2618 = vpack.c.b16 %v1626, %v1618
    %v2619 = vpack.c.b16 %v1627, %v1619
    %v2620 = vpack.c.b16 %v1628, %v1620
    %v2621 = vpack.c.b16 %v1629, %v1621
    %v2622 = vpack.c.b16 %v1638, %v1630
    %v2623 = vpack.c.b16 %v1639, %v1631
    %v2624 = vpack.c.b16 %v1640, %v1632
    %v2625 = vpack.c.b16 %v1641, %v1633
    %v2626 = vpack.c.b16 %v1642, %v1634
    %v2627 = vpack.c.b16 %v1643, %v1635
    %v2628 = vpack.c.b16 %v1644, %v1636
    %v2629 = vpack.c.b16 %v1645, %v1637
    %v2630 = vpack.c.b16 %v1654, %v1646
    %v2631 = vpack.c.b16 %v1655, %v1647
    %v2632 = vpack.c.b16 %v1656, %v1648
    %v2633 = vpack.c.b16 %v1657, %v1649
    %v2634 = vpack.c.b16 %v1658, %v1650
    %v2635 = vpack.c.b16 %v1659, %v1651
    %v2636 = vpack.c.b16 %v1660, %v1652
    %v2637 = vpack.c.b16 %v1661, %v1653
    %v2638 = vpack.c.b16 %v1670, %v1662
    %v2639 = vpack.c.b16 %v1671, %v1663
    %v2640 = vpack.c.b16 %v1672, %v1664
    %v2641 = vpack.c.b16 %v1673, %v1665
    %v2642 = vpack.c.b16 %v1674, %v1666
    %v2643 = vpack.c.b16 %v1675, %v1667
    %v2644 = vpack.c.b16 %v1676, %v1668
    %v2645 = vpack.c.b16 %v1677, %v1669
    %v2646 = vpack.c.b16 %v1686, %v1678
    %v2647 = vpack.c.b16 %v1687, %v1679
    %v2648 = vpack.c.b16 %v1688, %v1680
    %v2649 = vpack.c.b16 %v1689, %v1681
    %v2650 = vpack.c.b16 %v1690, %v1682
    %v2651 = vpack.c.b16 %v1691, %v1683
    %v2652 = vpack.c.b16 %v1692, %v1684
    %v2653 = vpack.c.b16 %v1693, %v1685
    %v2654 = vpack.c.b16 %v1702, %v1694
    %v2655 = vpack.c.b16 %v1703, %v1695
    %v2656 = vpack.c.b16 %v1704, %v1696
    %v2657 = vpack.c.b16 %v1705, %v1697
    %v2658 = vpack.c.b16 %v1706, %v1698
    %v2659 = vpack.c.b16 %v1707, %v1699
    %v2660 = vpack.c.b16 %v1708, %v1700
    %v2661 = vpack.c.b16 %v1709, %v1701
    %v2662 = vpack.c.b16 %v1718, %v1710
    %v2663 = vpack.c.b16 %v1719, %v1711
    %v2664 = vpack.c.b16 %v1720, %v1712
    %v2665 = vpack.c.b16 %v1721, %v1713
    %v2666 = vpack.c.b16 %v1722, %v1714
    %v2667 = vpack.c.b16 %v1723, %v1715
    %v2668 = vpack.c.b16 %v1724, %v1716
    %v2669 = vpack.c.b16 %v1725, %v1717
    %v2670 = vpack.c.b16 %v1734, %v1726
    %v2671 = vpack.c.b16 %v1735, %v1727
    %v2672 = vpack.c.b16 %v1736, %v1728
    %v2673 = vpack.c.b16 %v1737, %v1729
    %v2674 = vpack.c.b16 %v1738, %v1730
    %v2675 = vpack.c.b16 %v1739, %v1731
    %v2676 = vpack.c.b16 %v1740, %v1732
    %v2677 = vpack.c.b16 %v1741, %v1733
    %v2678 = vpack.c.b16 %v1750, %v1742
    %v2679 = vpack.c.b16 %v1751, %v1743
    %v2680 = vpack.c.b16 %v1752, %v1744
    %v2681 = vpack.c.b16 %v1753, %v1745
    %v2682 = vpack.c.b16 %v1754, %v1746
    %v2683 = vpack.c.b16 %v1755, %v1747
    %v2684 = vpack.c.b16 %v1756, %v1748
    %v2685 = vpack.c.b16 %v1757, %v1749
    %v2686 = vpack.c.b16 %v1766, %v1758
    %v2687 = vpack.c.b16 %v1767, %v1759
    %v2688 = vpack.c.b16 %v1768, %v1760
    %v2689 = vpack.c.b16 %v1769, %v1761
    %v2690 = vpack.c.b16 %v1770, %v1762
    %v2691 = vpack.c.b16 %v1771, %v1763
    %v2692 = vpack.c.b16 %v1772, %v1764
    %v2693 = vpack.c.b16 %v1773, %v1765
    %v2694 = vpack.c.b16 %v1782, %v1774
    %v2695 = vpack.c.b16 %v1783, %v1775
    %v2696 = vpack.c.b16 %v1784, %v1776
    %v2697 = vpack.c.b16 %v1785, %v1777
    %v2698 = vpack.c.b16 %v1786, %v1778
    %v2699 = vpack.c.b16 %v1787, %v1779
    %v2700 = vpack.c.b16 %v1788, %v1780
    %v2701 = vpack.c.b16 %v1789, %v1781
    %v2702 = vpack.c.b16 %v1798, %v1790
    %v2703 = vpack.c.b16 %v1799, %v1791
    %v2704 = vpack.c.b16 %v1800, %v1792
    %v2705 = vpack.c.b16 %v1801, %v1793
    %v2706 = vpack.c.b16 %v1802, %v1794
    %v2707 = vpack.c.b16 %v1803, %v1795
    %v2708 = vpack.c.b16 %v1804, %v1796
    %v2709 = vpack.c.b16 %v1805, %v1797
    %v2710 = vpack.c.b16 %v1814, %v1806
    %v2711 = vpack.c.b16 %v1815, %v1807
    %v2712 = vpack.c.b16 %v1816, %v1808
    %v2713 = vpack.c.b16 %v1817, %v1809
    %v2714 = vpack.c.b16 %v1818, %v1810
    %v2715 = vpack.c.b16 %v1819, %v1811
    %v2716 = vpack.c.b16 %v1820, %v1812
    %v2717 = vpack.c.b16 %v1821, %v1813
    %v2718 = vpack.c.b16 %v1830, %v1822
    %v2719 = vpack.c.b16 %v1831, %v1823
    %v2720 = vpack.c.b16 %v1832, %v1824
    %v2721 = vpack.c.b16 %v1833, %v1825
    %v2722 = vpack.c.b16 %v1834, %v1826
    %v2723 = vpack.c.b16 %v1835, %v1827
    %v2724 = vpack.c.b16 %v1836, %v1828
    %v2725 = vpack.c.b16 %v1837, %v1829
    %v2726 = vpack.c.b16 %v1846, %v1838
    %v2727 = vpack.c.b16 %v1847, %v1839
    %v2728 = vpack.c.b16 %v1848, %v1840
    %v2729 = vpack.c.b16 %v1849, %v1841
    %v2730 = vpack.c.b16 %v1850, %v1842
    %v2731 = vpack.c.b16 %v1851, %v1843
    %v2732 = vpack.c.b16 %v1852, %v1844
    %v2733 = vpack.c.b16 %v1853, %v1845
    %v2734 = vpack.c.b16 %v1862, %v1854
    %v2735 = vpack.c.b16 %v1863, %v1855
    %v2736 = vpack.c.b16 %v1864, %v1856
    %v2737 = vpack.c.b16 %v1865, %v1857
    %v2738 = vpack.c.b16 %v1866, %v1858
    %v2739 = vpack.c.b16 %v1867, %v1859
    %v2740 = vpack.c.b16 %v1868, %v1860
    %v2741 = vpack.c.b16 %v1869, %v1861
    %v2742 = vpack.c.b16 %v1878, %v1870
    %v2743 = vpack.c.b16 %v1879, %v1871
    %v2744 = vpack.c.b16 %v1880, %v1872
    %v2745 = vpack.c.b16 %v1881, %v1873
    %v2746 = vpack.c.b16 %v1882, %v1874
    %v2747 = vpack.c.b16 %v1883, %v1875
    %v2748 = vpack.c.b16 %v1884, %v1876
    %v2749 = vpack.c.b16 %v1885, %v1877
    %v2750 = vpack.c.b16 %v1894, %v1886
    %v2751 = vpack.c.b16 %v1895, %v1887
    %v2752 = vpack.c.b16 %v1896, %v1888
    %v2753 = vpack.c.b16 %v1897, %v1889
    %v2754 = vpack.c.b16 %v1898, %v1890
    %v2755 = vpack.c.b16 %v1899, %v1891
    %v2756 = vpack.c.b16 %v1900, %v1892
    %v2757 = vpack.c.b16 %v1901, %v1893
    %v2758 = vpack.c.b16 %v1910, %v1902
    %v2759 = vpack.c.b16 %v1911, %v1903
    %v2760 = vpack.c.b16 %v1912, %v1904
    %v2761 = vpack.c.b16 %v1913, %v1905
    %v2762 = vpack.c.b16 %v1914, %v1906
    %v2763 = vpack.c.b16 %v1915, %v1907
    %v2764 = vpack.c.b16 %v1916, %v1908
    %v2765 = vpack.c.b16 %v1917, %v1909
    %v2766 = vpack.c.b16 %v1926, %v1918
    %v2767 = vpack.c.b16 %v1927, %v1919
    %v2768 = vpack.c.b16 %v1928, %v1920
    %v2769 = vpack.c.b16 %v1929, %v1921
    %v2770 = vpack.c.b16 %v1930, %v1922
    %v2771 = vpack.c.b16 %v1931, %v1923
    %v2772 = vpack.c.b16 %v1932, %v1924
    %v2773 = vpack.c.b16 %v1933, %v1925
    %v2774 = vpack.c.b16 %v1942, %v1934
    %v2775 = vpack.c.b16 %v1943, %v1935
    %v2776 = vpack.c.b16 %v1944, %v1936
    %v2777 = vpack.c.b16 %v1945, %v1937
    %v2778 = vpack.c.b16 %v1946, %v1938
    %v2779 = vpack.c.b16 %v1947, %v1939
    %v2780 = vpack.c.b16 %v1948, %v1940
    %v2781 = vpack.c.b16 %v1949, %v1941
    %v2782 = vpack.c.b16 %v1958, %v1950
    %v2783 = vpack.c.b16 %v1959, %v1951
    %v2784 = vpack.c.b16 %v1960, %v1952
    %v2785 = vpack.c.b16 %v1961, %v1953
    %v2786 = vpack.c.b16 %v1962, %v1954
    %v2787 = vpack.c.b16 %v1963, %v1955
    %v2788 = vpack.c.b16 %v1964, %v1956
    %v2789 = vpack.c.b16 %v1965, %v1957
    %v2790 = vpack.c.b16 %v1974, %v1966
    %v2791 = vpack.c.b16 %v1975, %v1967
    %v2792 = vpack.c.b16 %v1976, %v1968
    %v2793 = vpack.c.b16 %v1977, %v1969
    %v2794 = vpack.c.b16 %v1978, %v1970
    %v2795 = vpack.c.b16 %v1979, %v1971
    %v2796 = vpack.c.b16 %v1980, %v1972
    %v2797 = vpack.c.b16 %v1981, %v1973
    %v2798 = vpack.c.b16 %v1990, %v1982
    %v2799 = vpack.c.b16 %v1991, %v1983
    %v2800 = vpack.c.b16 %v1992, %v1984
    %v2801 = vpack.c.b16 %v1993, %v1985
    %v2802 = vpack.c.b16 %v1994, %v1986
    %v2803 = vpack.c.b16 %v1995, %v1987
    %v2804 = vpack.c.b16 %v1996, %v1988
    %v2805 = vpack.c.b16 %v1997, %v1989
    %v2806 = vpack.c.b16 %v2006, %v1998
    %v2807 = vpack.c.b16 %v2007, %v1999
    %v2808 = vpack.c.b16 %v2008, %v2000
    %v2809 = vpack.c.b16 %v2009, %v2001
    %v2810 = vpack.c.b16 %v2010, %v2002
    %v2811 = vpack.c.b16 %v2011, %v2003
    %v2812 = vpack.c.b16 %v2012, %v2004
    %v2813 = vpack.c.b16 %v2013, %v2005
    %v2814 = vpack.c.b16 %v2022, %v2014
    %v2815 = vpack.c.b16 %v2023, %v2015
    %v2816 = vpack.c.b16 %v2024, %v2016
    %v2817 = vpack.c.b16 %v2025, %v2017
    %v2818 = vpack.c.b16 %v2026, %v2018
    %v2819 = vpack.c.b16 %v2027, %v2019
    %v2820 = vpack.c.b16 %v2028, %v2020
    %v2821 = vpack.c.b16 %v2029, %v2021
    %v2822 = vpack.c.b16 %v2038, %v2030
    %v2823 = vpack.c.b16 %v2039, %v2031
    %v2824 = vpack.c.b16 %v2040, %v2032
    %v2825 = vpack.c.b16 %v2041, %v2033
    %v2826 = vpack.c.b16 %v2042, %v2034
    %v2827 = vpack.c.b16 %v2043, %v2035
    %v2828 = vpack.c.b16 %v2044, %v2036
    %v2829 = vpack.c.b16 %v2045, %v2037
    %v2830 = vpack.c.b16 %v2054, %v2046
    %v2831 = vpack.c.b16 %v2055, %v2047
    %v2832 = vpack.c.b16 %v2056, %v2048
    %v2833 = vpack.c.b16 %v2057, %v2049
    %v2834 = vpack.c.b16 %v2058, %v2050
    %v2835 = vpack.c.b16 %v2059, %v2051
    %v2836 = vpack.c.b16 %v2060, %v2052
    %v2837 = vpack.c.b16 %v2061, %v2053
    %v2838 = vpack.c.b16 %v2070, %v2062
    %v2839 = vpack.c.b16 %v2071, %v2063
    %v2840 = vpack.c.b16 %v2072, %v2064
    %v2841 = vpack.c.b16 %v2073, %v2065
    %v2842 = vpack.c.b16 %v2074, %v2066
    %v2843 = vpack.c.b16 %v2075, %v2067
    %v2844 = vpack.c.b16 %v2076, %v2068
    %v2845 = vpack.c.b16 %v2077, %v2069
    %v2846 = vpack.c.b16 %v2086, %v2078
    %v2847 = vpack.c.b16 %v2087, %v2079
    %v2848 = vpack.c.b16 %v2088, %v2080
    %v2849 = vpack.c.b16 %v2089, %v2081
    %v2850 = vpack.c.b16 %v2090, %v2082
    %v2851 = vpack.c.b16 %v2091, %v2083
    %v2852 = vpack.c.b16 %v2092, %v2084
    %v2853 = vpack.c.b16 %v2093, %v2085
    %v2854 = vpack.c.b16 %v2102, %v2094
    %v2855 = vpack.c.b16 %v2103, %v2095
    %v2856 = vpack.c.b16 %v2104, %v2096
    %v2857 = vpack.c.b16 %v2105, %v2097
    %v2858 = vpack.c.b16 %v2106, %v2098
    %v2859 = vpack.c.b16 %v2107, %v2099
    %v2860 = vpack.c.b16 %v2108, %v2100
    %v2861 = vpack.c.b16 %v2109, %v2101
    %v2862 = vpack.c.b16 %v2118, %v2110
    %v2863 = vpack.c.b16 %v2119, %v2111
    %v2864 = vpack.c.b16 %v2120, %v2112
    %v2865 = vpack.c.b16 %v2121, %v2113
    %v2866 = vpack.c.b16 %v2122, %v2114
    %v2867 = vpack.c.b16 %v2123, %v2115
    %v2868 = vpack.c.b16 %v2124, %v2116
    %v2869 = vpack.c.b16 %v2125, %v2117
    %v2870 = vpack.c.b16 %v2134, %v2126
    %v2871 = vpack.c.b16 %v2135, %v2127
    %v2872 = vpack.c.b16 %v2136, %v2128
    %v2873 = vpack.c.b16 %v2137, %v2129
    %v2874 = vpack.c.b16 %v2138, %v2130
    %v2875 = vpack.c.b16 %v2139, %v2131
    %v2876 = vpack.c.b16 %v2140, %v2132
    %v2877 = vpack.c.b16 %v2141, %v2133
    %v2878 = vpack.c.b16 %v2150, %v2142
    %v2879 = vpack.c.b16 %v2151, %v2143
    %v2880 = vpack.c.b16 %v2152, %v2144
    %v2881 = vpack.c.b16 %v2153, %v2145
    %v2882 = vpack.c.b16 %v2154, %v2146
    %v2883 = vpack.c.b16 %v2155, %v2147
    %v2884 = vpack.c.b16 %v2156, %v2148
    %v2885 = vpack.c.b16 %v2157, %v2149
    %v2886 = vpack.c.b16 %v2166, %v2158
    %v2887 = vpack.c.b16 %v2167, %v2159
    %v2888 = vpack.c.b16 %v2168, %v2160
    %v2889 = vpack.c.b16 %v2169, %v2161
    %v2890 = vpack.c.b16 %v2170, %v2162
    %v2891 = vpack.c.b16 %v2171, %v2163
    %v2892 = vpack.c.b16 %v2172, %v2164
    %v2893 = vpack.c.b16 %v2173, %v2165
    %v2894 = vpack.c.b16 %v2182, %v2174
    %v2895 = vpack.c.b16 %v2183, %v2175
    %v2896 = vpack.c.b16 %v2184, %v2176
    %v2897 = vpack.c.b16 %v2185, %v2177
    %v2898 = vpack.c.b16 %v2186, %v2178
    %v2899 = vpack.c.b16 %v2187, %v2179
    %v2900 = vpack.c.b16 %v2188, %v2180
    %v2901 = vpack.c.b16 %v2189, %v2181
    %v2902 = vpack.c.b16 %v2198, %v2190
    %v2903 = vpack.c.b16 %v2199, %v2191
    %v2904 = vpack.c.b16 %v2200, %v2192
    %v2905 = vpack.c.b16 %v2201, %v2193
    %v2906 = vpack.c.b16 %v2202, %v2194
    %v2907 = vpack.c.b16 %v2203, %v2195
    %v2908 = vpack.c.b16 %v2204, %v2196
    %v2909 = vpack.c.b16 %v2205, %v2197
    %v2910 = vpack.c.b16 %v2214, %v2206
    %v2911 = vpack.c.b16 %v2215, %v2207
    %v2912 = vpack.c.b16 %v2216, %v2208
    %v2913 = vpack.c.b16 %v2217, %v2209
    %v2914 = vpack.c.b16 %v2218, %v2210
    %v2915 = vpack.c.b16 %v2219, %v2211
    %v2916 = vpack.c.b16 %v2220, %v2212
    %v2917 = vpack.c.b16 %v2221, %v2213
    %v2918 = vpack.c.b16 %v2230, %v2222
    %v2919 = vpack.c.b16 %v2231, %v2223
    %v2920 = vpack.c.b16 %v2232, %v2224
    %v2921 = vpack.c.b16 %v2233, %v2225
    %v2922 = vpack.c.b16 %v2234, %v2226
    %v2923 = vpack.c.b16 %v2235, %v2227
    %v2924 = vpack.c.b16 %v2236, %v2228
    %v2925 = vpack.c.b16 %v2237, %v2229
    %v2926 = vpack.c.b16 %v2246, %v2238
    %v2927 = vpack.c.b16 %v2247, %v2239
    %v2928 = vpack.c.b16 %v2248, %v2240
    %v2929 = vpack.c.b16 %v2249, %v2241
    %v2930 = vpack.c.b16 %v2250, %v2242
    %v2931 = vpack.c.b16 %v2251, %v2243
    %v2932 = vpack.c.b16 %v2252, %v2244
    %v2933 = vpack.c.b16 %v2253, %v2245
    %v2934 = vpack.c.b16 %v2262, %v2254
    %v2935 = vpack.c.b16 %v2263, %v2255
    %v2936 = vpack.c.b16 %v2264, %v2256
    %v2937 = vpack.c.b16 %v2265, %v2257
    %v2938 = vpack.c.b16 %v2266, %v2258
    %v2939 = vpack.c.b16 %v2267, %v2259
    %v2940 = vpack.c.b16 %v2268, %v2260
    %v2941 = vpack.c.b16 %v2269, %v2261
    %v2942 = vpack.c.b16 %v2278, %v2270
    %v2943 = vpack.c.b16 %v2279, %v2271
    %v2944 = vpack.c.b16 %v2280, %v2272
    %v2945 = vpack.c.b16 %v2281, %v2273
    %v2946 = vpack.c.b16 %v2282, %v2274
    %v2947 = vpack.c.b16 %v2283, %v2275
    %v2948 = vpack.c.b16 %v2284, %v2276
    %v2949 = vpack.c.b16 %v2285, %v2277
    %v2950 = vpack.c.b16 %v2294, %v2286
    %v2951 = vpack.c.b16 %v2295, %v2287
    %v2952 = vpack.c.b16 %v2296, %v2288
    %v2953 = vpack.c.b16 %v2297, %v2289
    %v2954 = vpack.c.b16 %v2298, %v2290
    %v2955 = vpack.c.b16 %v2299, %v2291
    %v2956 = vpack.c.b16 %v2300, %v2292
    %v2957 = vpack.c.b16 %v2301, %v2293
    %v2958 = vpack.c.b16 %v2310, %v2302
    %v2959 = vpack.c.b16 %v2311, %v2303
    %v2960 = vpack.c.b16 %v2312, %v2304
    %v2961 = vpack.c.b16 %v2313, %v2305
    %v2962 = vpack.c.b16 %v2314, %v2306
    %v2963 = vpack.c.b16 %v2315, %v2307
    %v2964 = vpack.c.b16 %v2316, %v2308
    %v2965 = vpack.c.b16 %v2317, %v2309
    %v2966 = vpack.c.b16 %v2326, %v2318
    %v2967 = vpack.c.b16 %v2327, %v2319
    %v2968 = vpack.c.b16 %v2328, %v2320
    %v2969 = vpack.c.b16 %v2329, %v2321
    %v2970 = vpack.c.b16 %v2330, %v2322
    %v2971 = vpack.c.b16 %v2331, %v2323
    %v2972 = vpack.c.b16 %v2332, %v2324
    %v2973 = vpack.c.b16 %v2333, %v2325
    %v2974 = vpack.c.b16 %v2342, %v2334
    %v2975 = vpack.c.b16 %v2343, %v2335
    %v2976 = vpack.c.b16 %v2344, %v2336
    %v2977 = vpack.c.b16 %v2345, %v2337
    %v2978 = vpack.c.b16 %v2346, %v2338
    %v2979 = vpack.c.b16 %v2347, %v2339
    %v2980 = vpack.c.b16 %v2348, %v2340
    %v2981 = vpack.c.b16 %v2349, %v2341
    %v2982 = vpack.c.b16 %v2358, %v2350
    %v2983 = vpack.c.b16 %v2359, %v2351
    %v2984 = vpack.c.b16 %v2360, %v2352
    %v2985 = vpack.c.b16 %v2361, %v2353
    %v2986 = vpack.c.b16 %v2362, %v2354
    %v2987 = vpack.c.b16 %v2363, %v2355
    %v2988 = vpack.c.b16 %v2364, %v2356
    %v2989 = vpack.c.b16 %v2365, %v2357
    %v2990 = vpack.c.b16 %v2374, %v2366
    %v2991 = vpack.c.b16 %v2375, %v2367
    %v2992 = vpack.c.b16 %v2376, %v2368
    %v2993 = vpack.c.b16 %v2377, %v2369
    %v2994 = vpack.c.b16 %v2378, %v2370
    %v2995 = vpack.c.b16 %v2379, %v2371
    %v2996 = vpack.c.b16 %v2380, %v2372
    %v2997 = vpack.c.b16 %v2381, %v2373
    %v2998 = vpack.c.b16 %v2390, %v2382
    %v2999 = vpack.c.b16 %v2391, %v2383
    %v3000 = vpack.c.b16 %v2392, %v2384
    %v3001 = vpack.c.b16 %v2393, %v2385
    %v3002 = vpack.c.b16 %v2394, %v2386
    %v3003 = vpack.c.b16 %v2395, %v2387
    %v3004 = vpack.c.b16 %v2396, %v2388
    %v3005 = vpack.c.b16 %v2397, %v2389
    %v3006 = vpack.c.b16 %v2406, %v2398
    %v3007 = vpack.c.b16 %v2407, %v2399
    %v3008 = vpack.c.b16 %v2408, %v2400
    %v3009 = vpack.c.b16 %v2409, %v2401
    %v3010 = vpack.c.b16 %v2410, %v2402
    %v3011 = vpack.c.b16 %v2411, %v2403
    %v3012 = vpack.c.b16 %v2412, %v2404
    %v3013 = vpack.c.b16 %v2413, %v2405
    %v3014 = vpack.c.b16 %v2422, %v2414
    %v3015 = vpack.c.b16 %v2423, %v2415
    %v3016 = vpack.c.b16 %v2424, %v2416
    %v3017 = vpack.c.b16 %v2425, %v2417
    %v3018 = vpack.c.b16 %v2426, %v2418
    %v3019 = vpack.c.b16 %v2427, %v2419
    %v3020 = vpack.c.b16 %v2428, %v2420
    %v3021 = vpack.c.b16 %v2429, %v2421
    %v3022 = vpack.c.b16 %v2438, %v2430
    %v3023 = vpack.c.b16 %v2439, %v2431
    %v3024 = vpack.c.b16 %v2440, %v2432
    %v3025 = vpack.c.b16 %v2441, %v2433
    %v3026 = vpack.c.b16 %v2442, %v2434
    %v3027 = vpack.c.b16 %v2443, %v2435
    %v3028 = vpack.c.b16 %v2444, %v2436
    %v3029 = vpack.c.b16 %v2445, %v2437
    %v3030 = vpack.c.b16 %v2454, %v2446
    %v3031 = vpack.c.b16 %v2455, %v2447
    %v3032 = vpack.c.b16 %v2456, %v2448
    %v3033 = vpack.c.b16 %v2457, %v2449
    %v3034 = vpack.c.b16 %v2458, %v2450
    %v3035 = vpack.c.b16 %v2459, %v2451
    %v3036 = vpack.c.b16 %v2460, %v2452
    %v3037 = vpack.c.b16 %v2461, %v2453
    %v3038 = vpack.c.b16 %v2470, %v2462
    %v3039 = vpack.c.b16 %v2471, %v2463
    %v3040 = vpack.c.b16 %v2472, %v2464
    %v3041 = vpack.c.b16 %v2473, %v2465
    %v3042 = vpack.c.b16 %v2474, %v2466
    %v3043 = vpack.c.b16 %v2475, %v2467
    %v3044 = vpack.c.b16 %v2476, %v2468
    %v3045 = vpack.c.b16 %v2477, %v2469
    %v3046 = vpack.c.b16 %v2486, %v2478
    %v3047 = vpack.c.b16 %v2487, %v2479
    %v3048 = vpack.c.b16 %v2488, %v2480
    %v3049 = vpack.c.b16 %v2489, %v2481
    %v3050 = vpack.c.b16 %v2490, %v2482
    %v3051 = vpack.c.b16 %v2491, %v2483
    %v3052 = vpack.c.b16 %v2492, %v2484
    %v3053 = vpack.c.b16 %v2493, %v2485
    %v3054 = vpack.c.b16 %v2502, %v2494
    %v3055 = vpack.c.b16 %v2503, %v2495
    %v3056 = vpack.c.b16 %v2504, %v2496
    %v3057 = vpack.c.b16 %v2505, %v2497
    %v3058 = vpack.c.b16 %v2506, %v2498
    %v3059 = vpack.c.b16 %v2507, %v2499
    %v3060 = vpack.c.b16 %v2508, %v2500
    %v3061 = vpack.c.b16 %v2509, %v2501
    %v3062 = vpack.c.b16 %v2518, %v2510
    %v3063 = vpack.c.b16 %v2519, %v2511
    %v3064 = vpack.c.b16 %v2520, %v2512
    %v3065 = vpack.c.b16 %v2521, %v2513
    %v3066 = vpack.c.b16 %v2522, %v2514
    %v3067 = vpack.c.b16 %v2523, %v2515
    %v3068 = vpack.c.b16 %v2524, %v2516
    %v3069 = vpack.c.b16 %v2525, %v2517
    %v3070 = vpack.c.b16 %v2534, %v2526
    %v3071 = vpack.c.b16 %v2535, %v2527
    %v3072 = vpack.c.b16 %v2536, %v2528
    %v3073 = vpack.c.b16 %v2537, %v2529
    %v3074 = vpack.c.b16 %v2538, %v2530
    %v3075 = vpack.c.b16 %v2539, %v2531
    %v3076 = vpack.c.b16 %v2540, %v2532
    %v3077 = vpack.c.b16 %v2541, %v2533
    %v3078 = vpack.c.b16 %v2550, %v2542
    %v3079 = vpack.c.b16 %v2551, %v2543
    %v3080 = vpack.c.b16 %v2552, %v2544
    %v3081 = vpack.c.b16 %v2553, %v2545
    %v3082 = vpack.c.b16 %v2554, %v2546
    %v3083 = vpack.c.b16 %v2555, %v2547
    %v3084 = vpack.c.b16 %v2556, %v2548
    %v3085 = vpack.c.b16 %v2557, %v2549
    %v3086 = vpack.c.b16 %v2566, %v2558
    %v3087 = vpack.c.b16 %v2567, %v2559
    %v3088 = vpack.c.b16 %v2568, %v2560
    %v3089 = vpack.c.b16 %v2569, %v2561
    %v3090 = vpack.c.b16 %v2570, %v2562
    %v3091 = vpack.c.b16 %v2571, %v2563
    %v3092 = vpack.c.b16 %v2572, %v2564
    %v3093 = vpack.c.b16 %v2573, %v2565
    %v3094 = vpack.c.b16 %v2582, %v2574
    %v3095 = vpack.c.b16 %v2583, %v2575
    %v3096 = vpack.c.b16 %v2584, %v2576
    %v3097 = vpack.c.b16 %v2585, %v2577
    %v3098 = vpack.c.b16 %v2586, %v2578
    %v3099 = vpack.c.b16 %v2587, %v2579
    %v3100 = vpack.c.b16 %v2588, %v2580
    %v3101 = vpack.c.b16 %v2589, %v2581
    %3614 = vmatprep.subr.bf16.mxu0 %v2591
    %3615 = vmatpush1.bf16.msra.mxu0 %v2590
    %3616 = vmatprep.subr.bf16.mxu0 %v2599
    %3617 = vmatpush1.bf16.msra.mxu0 %v2598
    %3618 = vmatprep.subr.bf16.mxu0 %v2607
    %3619 = vmatpush1.bf16.msra.mxu0 %v2606
    %3620 = vmatprep.subr.bf16.mxu0 %v2615
    %3621 = vmatpush1.bf16.msra.mxu0 %v2614
    %3622 = vmatprep.subr.bf16.mxu0 %v2623
    %3623 = vmatpush1.bf16.msra.mxu0 %v2622
    %3624 = vmatprep.subr.bf16.mxu0 %v2631
    %3625 = vmatpush1.bf16.msra.mxu0 %v2630
    %3626 = vmatprep.subr.bf16.mxu0 %v2639
    %3627 = vmatpush1.bf16.msra.mxu0 %v2638
    %3628 = vmatprep.subr.bf16.mxu0 %v2647
    %3629 = vmatpush1.bf16.msra.mxu0 %v2646
    %3630 = vmatprep.subr.bf16.mxu0 %v2655
    %3631 = vmatpush1.bf16.msra.mxu0 %v2654
    %3632 = vmatprep.subr.bf16.mxu0 %v2663
    %3633 = vmatpush1.bf16.msra.mxu0 %v2662
    %3634 = vmatprep.subr.bf16.mxu0 %v2671
    %3635 = vmatpush1.bf16.msra.mxu0 %v2670
    %3636 = vmatprep.subr.bf16.mxu0 %v2679
    %3637 = vmatpush1.bf16.msra.mxu0 %v2678
    %3638 = vmatprep.subr.bf16.mxu0 %v2687
    %3639 = vmatpush1.bf16.msra.mxu0 %v2686
    %3640 = vmatprep.subr.bf16.mxu0 %v2695
    %3641 = vmatpush1.bf16.msra.mxu0 %v2694
    %3642 = vmatprep.subr.bf16.mxu0 %v2703
    %3643 = vmatpush1.bf16.msra.mxu0 %v2702
    %3644 = vmatprep.subr.bf16.mxu0 %v2711
    %3645 = vmatpush1.bf16.msra.mxu0 %v2710
    %3646 = vmatprep.mubr.bf16.mxu0 %v493
    %3647 = vmatmul.mubr.bf16.gmra.mrb[0].mxu0 %v492
    %v3648 = vpop.f32.mrb[0].mxu0
    %v3649 = vadd.f32 %v1017, %v3648
    %v3650 = vpop.f32.mrb[0].mxu0
    %v3651 = vadd.f32 %v1021, %v3650
    %v3652 = vpop.f32.mrb[0].mxu0
    %v3653 = vpop.f32.mrb[0].mxu0
    %3654 = vdwg.mxu0
    %3655 = vmatprep.subr.bf16.mxu0 %v2719
    %3656 = vmatpush1.bf16.msra.mxu0 %v2718
    %3657 = vmatprep.subr.bf16.mxu0 %v2727
    %3658 = vmatpush1.bf16.msra.mxu0 %v2726
    %3659 = vmatprep.subr.bf16.mxu0 %v2735
    %3660 = vmatpush1.bf16.msra.mxu0 %v2734
    %3661 = vmatprep.subr.bf16.mxu0 %v2743
    %3662 = vmatpush1.bf16.msra.mxu0 %v2742
    %3663 = vmatprep.subr.bf16.mxu0 %v2751
    %3664 = vmatpush1.bf16.msra.mxu0 %v2750
    %3665 = vmatprep.subr.bf16.mxu0 %v2759
    %3666 = vmatpush1.bf16.msra.mxu0 %v2758
    %3667 = vmatprep.subr.bf16.mxu0 %v2767
    %3668 = vmatpush1.bf16.msra.mxu0 %v2766
    %3669 = vmatprep.subr.bf16.mxu0 %v2775
    %3670 = vmatpush1.bf16.msra.mxu0 %v2774
    %3671 = vmatprep.subr.bf16.mxu0 %v2783
    %3672 = vmatpush1.bf16.msra.mxu0 %v2782
    %3673 = vmatprep.subr.bf16.mxu0 %v2791
    %3674 = vmatpush1.bf16.msra.mxu0 %v2790
    %3675 = vmatprep.subr.bf16.mxu0 %v2799
    %3676 = vmatpush1.bf16.msra.mxu0 %v2798
    %3677 = vmatprep.subr.bf16.mxu0 %v2807
    %3678 = vmatpush1.bf16.msra.mxu0 %v2806
    %3679 = vmatprep.subr.bf16.mxu0 %v2815
    %3680 = vmatpush1.bf16.msra.mxu0 %v2814
    %3681 = vmatprep.subr.bf16.mxu0 %v2823
    %3682 = vmatpush1.bf16.msra.mxu0 %v2822
    %3683 = vmatprep.subr.bf16.mxu0 %v2831
    %3684 = vmatpush1.bf16.msra.mxu0 %v2830
    %3685 = vmatprep.subr.bf16.mxu0 %v2839
    %3686 = vmatpush1.bf16.msra.mxu0 %v2838
    %3687 = vmatprep.mubr.bf16.mxu0 %v495
    %3688 = vmatmul.mubr.bf16.gmra.mrb[0].mxu0 %v494
    %v3689 = vpop.f32.mrb[0].mxu0
    %v3690 = vadd.f32 %v3649, %v3689
    %v3691 = vpop.f32.mrb[0].mxu0
    %v3692 = vadd.f32 %v3651, %v3691
    %v3693 = vpop.f32.mrb[0].mxu0
    %v3694 = vpop.f32.mrb[0].mxu0
    %3695 = vdwg.mxu0
    %3696 = vmatprep.subr.bf16.mxu0 %v2847
    %3697 = vmatpush1.bf16.msra.mxu0 %v2846
    %3698 = vmatprep.subr.bf16.mxu0 %v2855
    %3699 = vmatpush1.bf16.msra.mxu0 %v2854
    %3700 = vmatprep.subr.bf16.mxu0 %v2863
    %3701 = vmatpush1.bf16.msra.mxu0 %v2862
    %3702 = vmatprep.subr.bf16.mxu0 %v2871
    %3703 = vmatpush1.bf16.msra.mxu0 %v2870
    %3704 = vmatprep.subr.bf16.mxu0 %v2879
    %3705 = vmatpush1.bf16.msra.mxu0 %v2878
    %3706 = vmatprep.subr.bf16.mxu0 %v2887
    %3707 = vmatpush1.bf16.msra.mxu0 %v2886
    %3708 = vmatprep.subr.bf16.mxu0 %v2895
    %3709 = vmatpush1.bf16.msra.mxu0 %v2894
    %3710 = vmatprep.subr.bf16.mxu0 %v2903
    %3711 = vmatpush1.bf16.msra.mxu0 %v2902
    %3712 = vmatprep.subr.bf16.mxu0 %v2911
    %3713 = vmatpush1.bf16.msra.mxu0 %v2910
    %3714 = vmatprep.subr.bf16.mxu0 %v2919
    %3715 = vmatpush1.bf16.msra.mxu0 %v2918
    %3716 = vmatprep.subr.bf16.mxu0 %v2927
    %3717 = vmatpush1.bf16.msra.mxu0 %v2926
    %3718 = vmatprep.subr.bf16.mxu0 %v2935
    %3719 = vmatpush1.bf16.msra.mxu0 %v2934
    %3720 = vmatprep.subr.bf16.mxu0 %v2943
    %3721 = vmatpush1.bf16.msra.mxu0 %v2942
    %3722 = vmatprep.subr.bf16.mxu0 %v2951
    %3723 = vmatpush1.bf16.msra.mxu0 %v2950
    %3724 = vmatprep.subr.bf16.mxu0 %v2959
    %3725 = vmatpush1.bf16.msra.mxu0 %v2958
    %3726 = vmatprep.subr.bf16.mxu0 %v2967
    %3727 = vmatpush1.bf16.msra.mxu0 %v2966
    %3728 = vmatprep.mubr.bf16.mxu0 %v497
    %3729 = vmatmul.mubr.bf16.gmra.mrb[0].mxu0 %v496
    %v3730 = vpop.f32.mrb[0].mxu0
    %v3731 = vadd.f32 %v3690, %v3730
    %v3732 = vpop.f32.mrb[0].mxu0
    %v3733 = vadd.f32 %v3692, %v3732
    %v3734 = vpop.f32.mrb[0].mxu0
    %v3735 = vpop.f32.mrb[0].mxu0
    %3736 = vdwg.mxu0
    %3737 = vmatprep.subr.bf16.mxu0 %v2975
    %3738 = vmatpush1.bf16.msra.mxu0 %v2974
    %3739 = vmatprep.subr.bf16.mxu0 %v2983
    %3740 = vmatpush1.bf16.msra.mxu0 %v2982
    %3741 = vmatprep.subr.bf16.mxu0 %v2991
    %3742 = vmatpush1.bf16.msra.mxu0 %v2990
    %3743 = vmatprep.subr.bf16.mxu0 %v2999
    %3744 = vmatpush1.bf16.msra.mxu0 %v2998
    %3745 = vmatprep.subr.bf16.mxu0 %v3007
    %3746 = vmatpush1.bf16.msra.mxu0 %v3006
    %3747 = vmatprep.subr.bf16.mxu0 %v3015
    %3748 = vmatpush1.bf16.msra.mxu0 %v3014
    %3749 = vmatprep.subr.bf16.mxu0 %v3023
    %3750 = vmatpush1.bf16.msra.mxu0 %v3022
    %3751 = vmatprep.subr.bf16.mxu0 %v3031
    %3752 = vmatpush1.bf16.msra.mxu0 %v3030
    %3753 = vmatprep.subr.bf16.mxu0 %v3039
    %3754 = vmatpush1.bf16.msra.mxu0 %v3038
    %3755 = vmatprep.subr.bf16.mxu0 %v3047
    %3756 = vmatpush1.bf16.msra.mxu0 %v3046
    %3757 = vmatprep.subr.bf16.mxu0 %v3055
    %3758 = vmatpush1.bf16.msra.mxu0 %v3054
    %3759 = vmatprep.subr.bf16.mxu0 %v3063
    %3760 = vmatpush1.bf16.msra.mxu0 %v3062
    %3761 = vmatprep.subr.bf16.mxu0 %v3071
    %3762 = vmatpush1.bf16.msra.mxu0 %v3070
    %3763 = vmatprep.subr.bf16.mxu0 %v3079
    %3764 = vmatpush1.bf16.msra.mxu0 %v3078
    %3765 = vmatprep.subr.bf16.mxu0 %v3087
    %3766 = vmatpush1.bf16.msra.mxu0 %v3086
    %3767 = vmatprep.subr.bf16.mxu0 %v3095
    %3768 = vmatpush1.bf16.msra.mxu0 %v3094
    %3769 = vmatprep.mubr.bf16.mxu0 %v499
    %3770 = vmatmul.mubr.bf16.gmra.mrb[0].mxu0 %v498
    %v3771 = vpop.f32.mrb[0].mxu0
    %v3772 = vadd.f32 %v3731, %v3771
    %v3773 = vpop.f32.mrb[0].mxu0
    %v3774 = vadd.f32 %v3733, %v3773
    %v3775 = vpop.f32.mrb[0].mxu0
    %v3776 = vpop.f32.mrb[0].mxu0
    %3777 = vdwg.mxu0
    %3778 = vmatprep.subr.bf16.mxu0 %v2593
    %3779 = vmatpush1.bf16.msra.mxu0 %v2592
    %3780 = vmatprep.subr.bf16.mxu0 %v2601
    %3781 = vmatpush1.bf16.msra.mxu0 %v2600
    %3782 = vmatprep.subr.bf16.mxu0 %v2609
    %3783 = vmatpush1.bf16.msra.mxu0 %v2608
    %3784 = vmatprep.subr.bf16.mxu0 %v2617
    %3785 = vmatpush1.bf16.msra.mxu0 %v2616
    %3786 = vmatprep.subr.bf16.mxu0 %v2625
    %3787 = vmatpush1.bf16.msra.mxu0 %v2624
    %3788 = vmatprep.subr.bf16.mxu0 %v2633
    %3789 = vmatpush1.bf16.msra.mxu0 %v2632
    %3790 = vmatprep.subr.bf16.mxu0 %v2641
    %3791 = vmatpush1.bf16.msra.mxu0 %v2640
    %3792 = vmatprep.subr.bf16.mxu0 %v2649
    %3793 = vmatpush1.bf16.msra.mxu0 %v2648
    %3794 = vmatprep.subr.bf16.mxu0 %v2657
    %3795 = vmatpush1.bf16.msra.mxu0 %v2656
    %3796 = vmatprep.subr.bf16.mxu0 %v2665
    %3797 = vmatpush1.bf16.msra.mxu0 %v2664
    %3798 = vmatprep.subr.bf16.mxu0 %v2673
    %3799 = vmatpush1.bf16.msra.mxu0 %v2672
    %3800 = vmatprep.subr.bf16.mxu0 %v2681
    %3801 = vmatpush1.bf16.msra.mxu0 %v2680
    %3802 = vmatprep.subr.bf16.mxu0 %v2689
    %3803 = vmatpush1.bf16.msra.mxu0 %v2688
    %3804 = vmatprep.subr.bf16.mxu0 %v2697
    %3805 = vmatpush1.bf16.msra.mxu0 %v2696
    %3806 = vmatprep.subr.bf16.mxu0 %v2705
    %3807 = vmatpush1.bf16.msra.mxu0 %v2704
    %3808 = vmatprep.subr.bf16.mxu0 %v2713
    %3809 = vmatpush1.bf16.msra.mxu0 %v2712
    %3810 = vmatprep.mubr.bf16.mxu0 %v493
    %3811 = vmatmul.mubr.bf16.gmra.mrb[0].mxu0 %v492
    %v3812 = vpop.f32.mrb[0].mxu0
    %v3813 = vadd.f32 %v1025, %v3812
    %v3814 = vpop.f32.mrb[0].mxu0
    %v3815 = vadd.f32 %v1029, %v3814
    %v3816 = vpop.f32.mrb[0].mxu0
    %v3817 = vpop.f32.mrb[0].mxu0
    %3818 = vdwg.mxu0
    %3819 = vmatprep.subr.bf16.mxu0 %v2721
    %3820 = vmatpush1.bf16.msra.mxu0 %v2720
    %3821 = vmatprep.subr.bf16.mxu0 %v2729
    %3822 = vmatpush1.bf16.msra.mxu0 %v2728
    %3823 = vmatprep.subr.bf16.mxu0 %v2737
    %3824 = vmatpush1.bf16.msra.mxu0 %v2736
    %3825 = vmatprep.subr.bf16.mxu0 %v2745
    %3826 = vmatpush1.bf16.msra.mxu0 %v2744
    %3827 = vmatprep.subr.bf16.mxu0 %v2753
    %3828 = vmatpush1.bf16.msra.mxu0 %v2752
    %3829 = vmatprep.subr.bf16.mxu0 %v2761
    %3830 = vmatpush1.bf16.msra.mxu0 %v2760
    %3831 = vmatprep.subr.bf16.mxu0 %v2769
    %3832 = vmatpush1.bf16.msra.mxu0 %v2768
    %3833 = vmatprep.subr.bf16.mxu0 %v2777
    %3834 = vmatpush1.bf16.msra.mxu0 %v2776
    %3835 = vmatprep.subr.bf16.mxu0 %v2785
    %3836 = vmatpush1.bf16.msra.mxu0 %v2784
    %3837 = vmatprep.subr.bf16.mxu0 %v2793
    %3838 = vmatpush1.bf16.msra.mxu0 %v2792
    %3839 = vmatprep.subr.bf16.mxu0 %v2801
    %3840 = vmatpush1.bf16.msra.mxu0 %v2800
    %3841 = vmatprep.subr.bf16.mxu0 %v2809
    %3842 = vmatpush1.bf16.msra.mxu0 %v2808
    %3843 = vmatprep.subr.bf16.mxu0 %v2817
    %3844 = vmatpush1.bf16.msra.mxu0 %v2816
    %3845 = vmatprep.subr.bf16.mxu0 %v2825
    %3846 = vmatpush1.bf16.msra.mxu0 %v2824
    %3847 = vmatprep.subr.bf16.mxu0 %v2833
    %3848 = vmatpush1.bf16.msra.mxu0 %v2832
    %3849 = vmatprep.subr.bf16.mxu0 %v2841
    %3850 = vmatpush1.bf16.msra.mxu0 %v2840
    %3851 = vmatprep.mubr.bf16.mxu0 %v495
    %3852 = vmatmul.mubr.bf16.gmra.mrb[0].mxu0 %v494
    %v3853 = vpop.f32.mrb[0].mxu0
    %v3854 = vadd.f32 %v3813, %v3853
    %v3855 = vpop.f32.mrb[0].mxu0
    %v3856 = vadd.f32 %v3815, %v3855
    %v3857 = vpop.f32.mrb[0].mxu0
    %v3858 = vpop.f32.mrb[0].mxu0
    %3859 = vdwg.mxu0
    %3860 = vmatprep.subr.bf16.mxu0 %v2849
    %3861 = vmatpush1.bf16.msra.mxu0 %v2848
    %3862 = vmatprep.subr.bf16.mxu0 %v2857
    %3863 = vmatpush1.bf16.msra.mxu0 %v2856
    %3864 = vmatprep.subr.bf16.mxu0 %v2865
    %3865 = vmatpush1.bf16.msra.mxu0 %v2864
    %3866 = vmatprep.subr.bf16.mxu0 %v2873
    %3867 = vmatpush1.bf16.msra.mxu0 %v2872
    %3868 = vmatprep.subr.bf16.mxu0 %v2881
    %3869 = vmatpush1.bf16.msra.mxu0 %v2880
    %3870 = vmatprep.subr.bf16.mxu0 %v2889
    %3871 = vmatpush1.bf16.msra.mxu0 %v2888
    %3872 = vmatprep.subr.bf16.mxu0 %v2897
    %3873 = vmatpush1.bf16.msra.mxu0 %v2896
    %3874 = vmatprep.subr.bf16.mxu0 %v2905
    %3875 = vmatpush1.bf16.msra.mxu0 %v2904
    %3876 = vmatprep.subr.bf16.mxu0 %v2913
    %3877 = vmatpush1.bf16.msra.mxu0 %v2912
    %3878 = vmatprep.subr.bf16.mxu0 %v2921
    %3879 = vmatpush1.bf16.msra.mxu0 %v2920
    %3880 = vmatprep.subr.bf16.mxu0 %v2929
    %3881 = vmatpush1.bf16.msra.mxu0 %v2928
    %3882 = vmatprep.subr.bf16.mxu0 %v2937
    %3883 = vmatpush1.bf16.msra.mxu0 %v2936
    %3884 = vmatprep.subr.bf16.mxu0 %v2945
    %3885 = vmatpush1.bf16.msra.mxu0 %v2944
    %3886 = vmatprep.subr.bf16.mxu0 %v2953
    %3887 = vmatpush1.bf16.msra.mxu0 %v2952
    %3888 = vmatprep.subr.bf16.mxu0 %v2961
    %3889 = vmatpush1.bf16.msra.mxu0 %v2960
    %3890 = vmatprep.subr.bf16.mxu0 %v2969
    %3891 = vmatpush1.bf16.msra.mxu0 %v2968
    %3892 = vmatprep.mubr.bf16.mxu0 %v497
    %3893 = vmatmul.mubr.bf16.gmra.mrb[0].mxu0 %v496
    %v3894 = vpop.f32.mrb[0].mxu0
    %v3895 = vadd.f32 %v3854, %v3894
    %v3896 = vpop.f32.mrb[0].mxu0
    %v3897 = vadd.f32 %v3856, %v3896
    %v3898 = vpop.f32.mrb[0].mxu0
    %v3899 = vpop.f32.mrb[0].mxu0
    %3900 = vdwg.mxu0
    %3901 = vmatprep.subr.bf16.mxu0 %v2977
    %3902 = vmatpush1.bf16.msra.mxu0 %v2976
    %3903 = vmatprep.subr.bf16.mxu0 %v2985
    %3904 = vmatpush1.bf16.msra.mxu0 %v2984
    %3905 = vmatprep.subr.bf16.mxu0 %v2993
    %3906 = vmatpush1.bf16.msra.mxu0 %v2992
    %3907 = vmatprep.subr.bf16.mxu0 %v3001
    %3908 = vmatpush1.bf16.msra.mxu0 %v3000
    %3909 = vmatprep.subr.bf16.mxu0 %v3009
    %3910 = vmatpush1.bf16.msra.mxu0 %v3008
    %3911 = vmatprep.subr.bf16.mxu0 %v3017
    %3912 = vmatpush1.bf16.msra.mxu0 %v3016
    %3913 = vmatprep.subr.bf16.mxu0 %v3025
    %3914 = vmatpush1.bf16.msra.mxu0 %v3024
    %3915 = vmatprep.subr.bf16.mxu0 %v3033
    %3916 = vmatpush1.bf16.msra.mxu0 %v3032
    %3917 = vmatprep.subr.bf16.mxu0 %v3041
    %3918 = vmatpush1.bf16.msra.mxu0 %v3040
    %3919 = vmatprep.subr.bf16.mxu0 %v3049
    %3920 = vmatpush1.bf16.msra.mxu0 %v3048
    %3921 = vmatprep.subr.bf16.mxu0 %v3057
    %3922 = vmatpush1.bf16.msra.mxu0 %v3056
    %3923 = vmatprep.subr.bf16.mxu0 %v3065
    %3924 = vmatpush1.bf16.msra.mxu0 %v3064
    %3925 = vmatprep.subr.bf16.mxu0 %v3073
    %3926 = vmatpush1.bf16.msra.mxu0 %v3072
    %3927 = vmatprep.subr.bf16.mxu0 %v3081
    %3928 = vmatpush1.bf16.msra.mxu0 %v3080
    %3929 = vmatprep.subr.bf16.mxu0 %v3089
    %3930 = vmatpush1.bf16.msra.mxu0 %v3088
    %3931 = vmatprep.subr.bf16.mxu0 %v3097
    %3932 = vmatpush1.bf16.msra.mxu0 %v3096
    %3933 = vmatprep.mubr.bf16.mxu0 %v499
    %3934 = vmatmul.mubr.bf16.gmra.mrb[0].mxu0 %v498
    %v3935 = vpop.f32.mrb[0].mxu0
    %v3936 = vadd.f32 %v3895, %v3935
    %v3937 = vpop.f32.mrb[0].mxu0
    %v3938 = vadd.f32 %v3897, %v3937
    %v3939 = vpop.f32.mrb[0].mxu0
    %v3940 = vpop.f32.mrb[0].mxu0
    %3941 = vdwg.mxu0
    %3942 = vmatprep.subr.bf16.mxu0 %v2595
    %3943 = vmatpush1.bf16.msra.mxu0 %v2594
    %3944 = vmatprep.subr.bf16.mxu0 %v2603
    %3945 = vmatpush1.bf16.msra.mxu0 %v2602
    %3946 = vmatprep.subr.bf16.mxu0 %v2611
    %3947 = vmatpush1.bf16.msra.mxu0 %v2610
    %3948 = vmatprep.subr.bf16.mxu0 %v2619
    %3949 = vmatpush1.bf16.msra.mxu0 %v2618
    %3950 = vmatprep.subr.bf16.mxu0 %v2627
    %3951 = vmatpush1.bf16.msra.mxu0 %v2626
    %3952 = vmatprep.subr.bf16.mxu0 %v2635
    %3953 = vmatpush1.bf16.msra.mxu0 %v2634
    %3954 = vmatprep.subr.bf16.mxu0 %v2643
    %3955 = vmatpush1.bf16.msra.mxu0 %v2642
    %3956 = vmatprep.subr.bf16.mxu0 %v2651
    %3957 = vmatpush1.bf16.msra.mxu0 %v2650
    %3958 = vmatprep.subr.bf16.mxu0 %v2659
    %3959 = vmatpush1.bf16.msra.mxu0 %v2658
    %3960 = vmatprep.subr.bf16.mxu0 %v2667
    %3961 = vmatpush1.bf16.msra.mxu0 %v2666
    %3962 = vmatprep.subr.bf16.mxu0 %v2675
    %3963 = vmatpush1.bf16.msra.mxu0 %v2674
    %3964 = vmatprep.subr.bf16.mxu0 %v2683
    %3965 = vmatpush1.bf16.msra.mxu0 %v2682
    %3966 = vmatprep.subr.bf16.mxu0 %v2691
    %3967 = vmatpush1.bf16.msra.mxu0 %v2690
    %3968 = vmatprep.subr.bf16.mxu0 %v2699
    %3969 = vmatpush1.bf16.msra.mxu0 %v2698
    %3970 = vmatprep.subr.bf16.mxu0 %v2707
    %3971 = vmatpush1.bf16.msra.mxu0 %v2706
    %3972 = vmatprep.subr.bf16.mxu0 %v2715
    %3973 = vmatpush1.bf16.msra.mxu0 %v2714
    %3974 = vmatprep.mubr.bf16.mxu0 %v493
    %3975 = vmatmul.mubr.bf16.gmra.mrb[0].mxu0 %v492
    %v3976 = vpop.f32.mrb[0].mxu0
    %v3977 = vadd.f32 %v1033, %v3976
    %v3978 = vpop.f32.mrb[0].mxu0
    %v3979 = vadd.f32 %v1037, %v3978
    %v3980 = vpop.f32.mrb[0].mxu0
    %v3981 = vpop.f32.mrb[0].mxu0
    %3982 = vdwg.mxu0
    %3983 = vmatprep.subr.bf16.mxu0 %v2723
    %3984 = vmatpush1.bf16.msra.mxu0 %v2722
    %3985 = vmatprep.subr.bf16.mxu0 %v2731
    %3986 = vmatpush1.bf16.msra.mxu0 %v2730
    %3987 = vmatprep.subr.bf16.mxu0 %v2739
    %3988 = vmatpush1.bf16.msra.mxu0 %v2738
    %3989 = vmatprep.subr.bf16.mxu0 %v2747
    %3990 = vmatpush1.bf16.msra.mxu0 %v2746
    %3991 = vmatprep.subr.bf16.mxu0 %v2755
    %3992 = vmatpush1.bf16.msra.mxu0 %v2754
    %3993 = vmatprep.subr.bf16.mxu0 %v2763
    %3994 = vmatpush1.bf16.msra.mxu0 %v2762
    %3995 = vmatprep.subr.bf16.mxu0 %v2771
    %3996 = vmatpush1.bf16.msra.mxu0 %v2770
    %3997 = vmatprep.subr.bf16.mxu0 %v2779
    %3998 = vmatpush1.bf16.msra.mxu0 %v2778
    %3999 = vmatprep.subr.bf16.mxu0 %v2787
    %4000 = vmatpush1.bf16.msra.mxu0 %v2786
    %4001 = vmatprep.subr.bf16.mxu0 %v2795
    %4002 = vmatpush1.bf16.msra.mxu0 %v2794
    %4003 = vmatprep.subr.bf16.mxu0 %v2803
    %4004 = vmatpush1.bf16.msra.mxu0 %v2802
    %4005 = vmatprep.subr.bf16.mxu0 %v2811
    %4006 = vmatpush1.bf16.msra.mxu0 %v2810
    %4007 = vmatprep.subr.bf16.mxu0 %v2819
    %4008 = vmatpush1.bf16.msra.mxu0 %v2818
    %4009 = vmatprep.subr.bf16.mxu0 %v2827
    %4010 = vmatpush1.bf16.msra.mxu0 %v2826
    %4011 = vmatprep.subr.bf16.mxu0 %v2835
    %4012 = vmatpush1.bf16.msra.mxu0 %v2834
    %4013 = vmatprep.subr.bf16.mxu0 %v2843
    %4014 = vmatpush1.bf16.msra.mxu0 %v2842
    %4015 = vmatprep.mubr.bf16.mxu0 %v495
    %4016 = vmatmul.mubr.bf16.gmra.mrb[0].mxu0 %v494
    %v4017 = vpop.f32.mrb[0].mxu0
    %v4018 = vadd.f32 %v3977, %v4017
    %v4019 = vpop.f32.mrb[0].mxu0
    %v4020 = vadd.f32 %v3979, %v4019
    %v4021 = vpop.f32.mrb[0].mxu0
    %v4022 = vpop.f32.mrb[0].mxu0
    %4023 = vdwg.mxu0
    %4024 = vmatprep.subr.bf16.mxu0 %v2851
    %4025 = vmatpush1.bf16.msra.mxu0 %v2850
    %4026 = vmatprep.subr.bf16.mxu0 %v2859
    %4027 = vmatpush1.bf16.msra.mxu0 %v2858
    %4028 = vmatprep.subr.bf16.mxu0 %v2867
    %4029 = vmatpush1.bf16.msra.mxu0 %v2866
    %4030 = vmatprep.subr.bf16.mxu0 %v2875
    %4031 = vmatpush1.bf16.msra.mxu0 %v2874
    %4032 = vmatprep.subr.bf16.mxu0 %v2883
    %4033 = vmatpush1.bf16.msra.mxu0 %v2882
    %4034 = vmatprep.subr.bf16.mxu0 %v2891
    %4035 = vmatpush1.bf16.msra.mxu0 %v2890
    %4036 = vmatprep.subr.bf16.mxu0 %v2899
    %4037 = vmatpush1.bf16.msra.mxu0 %v2898
    %4038 = vmatprep.subr.bf16.mxu0 %v2907
    %4039 = vmatpush1.bf16.msra.mxu0 %v2906
    %4040 = vmatprep.subr.bf16.mxu0 %v2915
    %4041 = vmatpush1.bf16.msra.mxu0 %v2914
    %4042 = vmatprep.subr.bf16.mxu0 %v2923
    %4043 = vmatpush1.bf16.msra.mxu0 %v2922
    %4044 = vmatprep.subr.bf16.mxu0 %v2931
    %4045 = vmatpush1.bf16.msra.mxu0 %v2930
    %4046 = vmatprep.subr.bf16.mxu0 %v2939
    %4047 = vmatpush1.bf16.msra.mxu0 %v2938
    %4048 = vmatprep.subr.bf16.mxu0 %v2947
    %4049 = vmatpush1.bf16.msra.mxu0 %v2946
    %4050 = vmatprep.subr.bf16.mxu0 %v2955
    %4051 = vmatpush1.bf16.msra.mxu0 %v2954
    %4052 = vmatprep.subr.bf16.mxu0 %v2963
    %4053 = vmatpush1.bf16.msra.mxu0 %v2962
    %4054 = vmatprep.subr.bf16.mxu0 %v2971
    %4055 = vmatpush1.bf16.msra.mxu0 %v2970
    %4056 = vmatprep.mubr.bf16.mxu0 %v497
    %4057 = vmatmul.mubr.bf16.gmra.mrb[0].mxu0 %v496
    %v4058 = vpop.f32.mrb[0].mxu0
    %v4059 = vadd.f32 %v4018, %v4058
    %v4060 = vpop.f32.mrb[0].mxu0
    %v4061 = vadd.f32 %v4020, %v4060
    %v4062 = vpop.f32.mrb[0].mxu0
    %v4063 = vpop.f32.mrb[0].mxu0
    %4064 = vdwg.mxu0
    %4065 = vmatprep.subr.bf16.mxu0 %v2979
    %4066 = vmatpush1.bf16.msra.mxu0 %v2978
    %4067 = vmatprep.subr.bf16.mxu0 %v2987
    %4068 = vmatpush1.bf16.msra.mxu0 %v2986
    %4069 = vmatprep.subr.bf16.mxu0 %v2995
    %4070 = vmatpush1.bf16.msra.mxu0 %v2994
    %4071 = vmatprep.subr.bf16.mxu0 %v3003
    %4072 = vmatpush1.bf16.msra.mxu0 %v3002
    %4073 = vmatprep.subr.bf16.mxu0 %v3011
    %4074 = vmatpush1.bf16.msra.mxu0 %v3010
    %4075 = vmatprep.subr.bf16.mxu0 %v3019
    %4076 = vmatpush1.bf16.msra.mxu0 %v3018
    %4077 = vmatprep.subr.bf16.mxu0 %v3027
    %4078 = vmatpush1.bf16.msra.mxu0 %v3026
    %4079 = vmatprep.subr.bf16.mxu0 %v3035
    %4080 = vmatpush1.bf16.msra.mxu0 %v3034
    %4081 = vmatprep.subr.bf16.mxu0 %v3043
    %4082 = vmatpush1.bf16.msra.mxu0 %v3042
    %4083 = vmatprep.subr.bf16.mxu0 %v3051
    %4084 = vmatpush1.bf16.msra.mxu0 %v3050
    %4085 = vmatprep.subr.bf16.mxu0 %v3059
    %4086 = vmatpush1.bf16.msra.mxu0 %v3058
    %4087 = vmatprep.subr.bf16.mxu0 %v3067
    %4088 = vmatpush1.bf16.msra.mxu0 %v3066
    %4089 = vmatprep.subr.bf16.mxu0 %v3075
    %4090 = vmatpush1.bf16.msra.mxu0 %v3074
    %4091 = vmatprep.subr.bf16.mxu0 %v3083
    %4092 = vmatpush1.bf16.msra.mxu0 %v3082
    %4093 = vmatprep.subr.bf16.mxu0 %v3091
    %4094 = vmatpush1.bf16.msra.mxu0 %v3090
    %4095 = vmatprep.subr.bf16.mxu0 %v3099
    %4096 = vmatpush1.bf16.msra.mxu0 %v3098
    %4097 = vmatprep.mubr.bf16.mxu0 %v499
    %4098 = vmatmul.mubr.bf16.gmra.mrb[0].mxu0 %v498
    %v4099 = vpop.f32.mrb[0].mxu0
    %v4100 = vadd.f32 %v4059, %v4099
    %v4101 = vpop.f32.mrb[0].mxu0
    %v4102 = vadd.f32 %v4061, %v4101
    %v4103 = vpop.f32.mrb[0].mxu0
    %v4104 = vpop.f32.mrb[0].mxu0
    %4105 = vdwg.mxu0
    %4106 = vmatprep.subr.bf16.mxu0 %v2597
    %4107 = vmatpush1.bf16.msra.mxu0 %v2596
    %4108 = vmatprep.subr.bf16.mxu0 %v2605
    %4109 = vmatpush1.bf16.msra.mxu0 %v2604
    %4110 = vmatprep.subr.bf16.mxu0 %v2613
    %4111 = vmatpush1.bf16.msra.mxu0 %v2612
    %4112 = vmatprep.subr.bf16.mxu0 %v2621
    %4113 = vmatpush1.bf16.msra.mxu0 %v2620
    %4114 = vmatprep.subr.bf16.mxu0 %v2629
    %4115 = vmatpush1.bf16.msra.mxu0 %v2628
    %4116 = vmatprep.subr.bf16.mxu0 %v2637
    %4117 = vmatpush1.bf16.msra.mxu0 %v2636
    %4118 = vmatprep.subr.bf16.mxu0 %v2645
    %4119 = vmatpush1.bf16.msra.mxu0 %v2644
    %4120 = vmatprep.subr.bf16.mxu0 %v2653
    %4121 = vmatpush1.bf16.msra.mxu0 %v2652
    %4122 = vmatprep.subr.bf16.mxu0 %v2661
    %4123 = vmatpush1.bf16.msra.mxu0 %v2660
    %4124 = vmatprep.subr.bf16.mxu0 %v2669
    %4125 = vmatpush1.bf16.msra.mxu0 %v2668
    %4126 = vmatprep.subr.bf16.mxu0 %v2677
    %4127 = vmatpush1.bf16.msra.mxu0 %v2676
    %4128 = vmatprep.subr.bf16.mxu0 %v2685
    %4129 = vmatpush1.bf16.msra.mxu0 %v2684
    %4130 = vmatprep.subr.bf16.mxu0 %v2693
    %4131 = vmatpush1.bf16.msra.mxu0 %v2692
    %4132 = vmatprep.subr.bf16.mxu0 %v2701
    %4133 = vmatpush1.bf16.msra.mxu0 %v2700
    %4134 = vmatprep.subr.bf16.mxu0 %v2709
    %4135 = vmatpush1.bf16.msra.mxu0 %v2708
    %4136 = vmatprep.subr.bf16.mxu0 %v2717
    %4137 = vmatpush1.bf16.msra.mxu0 %v2716
    %4138 = vmatprep.mubr.bf16.mxu0 %v493
    %4139 = vmatmul.mubr.bf16.gmra.mrb[0].mxu0 %v492
    %v4140 = vpop.f32.mrb[0].mxu0
    %v4141 = vadd.f32 %v1041, %v4140
    %v4142 = vpop.f32.mrb[0].mxu0
    %v4143 = vadd.f32 %v1045, %v4142
    %v4144 = vpop.f32.mrb[0].mxu0
    %v4145 = vpop.f32.mrb[0].mxu0
    %4146 = vdwg.mxu0
    %4147 = vmatprep.subr.bf16.mxu0 %v2725
    %4148 = vmatpush1.bf16.msra.mxu0 %v2724
    %4149 = vmatprep.subr.bf16.mxu0 %v2733
    %4150 = vmatpush1.bf16.msra.mxu0 %v2732
    %4151 = vmatprep.subr.bf16.mxu0 %v2741
    %4152 = vmatpush1.bf16.msra.mxu0 %v2740
    %4153 = vmatprep.subr.bf16.mxu0 %v2749
    %4154 = vmatpush1.bf16.msra.mxu0 %v2748
    %4155 = vmatprep.subr.bf16.mxu0 %v2757
    %4156 = vmatpush1.bf16.msra.mxu0 %v2756
    %4157 = vmatprep.subr.bf16.mxu0 %v2765
    %4158 = vmatpush1.bf16.msra.mxu0 %v2764
    %4159 = vmatprep.subr.bf16.mxu0 %v2773
    %4160 = vmatpush1.bf16.msra.mxu0 %v2772
    %4161 = vmatprep.subr.bf16.mxu0 %v2781
    %4162 = vmatpush1.bf16.msra.mxu0 %v2780
    %4163 = vmatprep.subr.bf16.mxu0 %v2789
    %4164 = vmatpush1.bf16.msra.mxu0 %v2788
    %4165 = vmatprep.subr.bf16.mxu0 %v2797
    %4166 = vmatpush1.bf16.msra.mxu0 %v2796
    %4167 = vmatprep.subr.bf16.mxu0 %v2805
    %4168 = vmatpush1.bf16.msra.mxu0 %v2804
    %4169 = vmatprep.subr.bf16.mxu0 %v2813
    %4170 = vmatpush1.bf16.msra.mxu0 %v2812
    %4171 = vmatprep.subr.bf16.mxu0 %v2821
    %4172 = vmatpush1.bf16.msra.mxu0 %v2820
    %4173 = vmatprep.subr.bf16.mxu0 %v2829
    %4174 = vmatpush1.bf16.msra.mxu0 %v2828
    %4175 = vmatprep.subr.bf16.mxu0 %v2837
    %4176 = vmatpush1.bf16.msra.mxu0 %v2836
    %4177 = vmatprep.subr.bf16.mxu0 %v2845
    %4178 = vmatpush1.bf16.msra.mxu0 %v2844
    %4179 = vmatprep.mubr.bf16.mxu0 %v495
    %4180 = vmatmul.mubr.bf16.gmra.mrb[0].mxu0 %v494
    %v4181 = vpop.f32.mrb[0].mxu0
    %v4182 = vadd.f32 %v4141, %v4181
    %v4183 = vpop.f32.mrb[0].mxu0
    %v4184 = vadd.f32 %v4143, %v4183
    %v4185 = vpop.f32.mrb[0].mxu0
    %v4186 = vpop.f32.mrb[0].mxu0
    %4187 = vdwg.mxu0
    %4188 = vmatprep.subr.bf16.mxu0 %v2853
    %4189 = vmatpush1.bf16.msra.mxu0 %v2852
    %4190 = vmatprep.subr.bf16.mxu0 %v2861
    %4191 = vmatpush1.bf16.msra.mxu0 %v2860
    %4192 = vmatprep.subr.bf16.mxu0 %v2869
    %4193 = vmatpush1.bf16.msra.mxu0 %v2868
    %4194 = vmatprep.subr.bf16.mxu0 %v2877
    %4195 = vmatpush1.bf16.msra.mxu0 %v2876
    %4196 = vmatprep.subr.bf16.mxu0 %v2885
    %4197 = vmatpush1.bf16.msra.mxu0 %v2884
    %4198 = vmatprep.subr.bf16.mxu0 %v2893
    %4199 = vmatpush1.bf16.msra.mxu0 %v2892
    %4200 = vmatprep.subr.bf16.mxu0 %v2901
    %4201 = vmatpush1.bf16.msra.mxu0 %v2900
    %4202 = vmatprep.subr.bf16.mxu0 %v2909
    %4203 = vmatpush1.bf16.msra.mxu0 %v2908
    %4204 = vmatprep.subr.bf16.mxu0 %v2917
    %4205 = vmatpush1.bf16.msra.mxu0 %v2916
    %4206 = vmatprep.subr.bf16.mxu0 %v2925
    %4207 = vmatpush1.bf16.msra.mxu0 %v2924
    %4208 = vmatprep.subr.bf16.mxu0 %v2933
    %4209 = vmatpush1.bf16.msra.mxu0 %v2932
    %4210 = vmatprep.subr.bf16.mxu0 %v2941
    %4211 = vmatpush1.bf16.msra.mxu0 %v2940
    %4212 = vmatprep.subr.bf16.mxu0 %v2949
    %4213 = vmatpush1.bf16.msra.mxu0 %v2948
    %4214 = vmatprep.subr.bf16.mxu0 %v2957
    %4215 = vmatpush1.bf16.msra.mxu0 %v2956
    %4216 = vmatprep.subr.bf16.mxu0 %v2965
    %4217 = vmatpush1.bf16.msra.mxu0 %v2964
    %4218 = vmatprep.subr.bf16.mxu0 %v2973
    %4219 = vmatpush1.bf16.msra.mxu0 %v2972
    %4220 = vmatprep.mubr.bf16.mxu0 %v497
    %4221 = vmatmul.mubr.bf16.gmra.mrb[0].mxu0 %v496
    %v4222 = vpop.f32.mrb[0].mxu0
    %v4223 = vadd.f32 %v4182, %v4222
    %v4224 = vpop.f32.mrb[0].mxu0
    %v4225 = vadd.f32 %v4184, %v4224
    %v4226 = vpop.f32.mrb[0].mxu0
    %v4227 = vpop.f32.mrb[0].mxu0
    %4228 = vdwg.mxu0
    %4229 = vmatprep.subr.bf16.mxu0 %v2981
    %4230 = vmatpush1.bf16.msra.mxu0 %v2980
    %4231 = vmatprep.subr.bf16.mxu0 %v2989
    %4232 = vmatpush1.bf16.msra.mxu0 %v2988
    %4233 = vmatprep.subr.bf16.mxu0 %v2997
    %4234 = vmatpush1.bf16.msra.mxu0 %v2996
    %4235 = vmatprep.subr.bf16.mxu0 %v3005
    %4236 = vmatpush1.bf16.msra.mxu0 %v3004
    %4237 = vmatprep.subr.bf16.mxu0 %v3013
    %4238 = vmatpush1.bf16.msra.mxu0 %v3012
    %4239 = vmatprep.subr.bf16.mxu0 %v3021
    %4240 = vmatpush1.bf16.msra.mxu0 %v3020
    %4241 = vmatprep.subr.bf16.mxu0 %v3029
    %4242 = vmatpush1.bf16.msra.mxu0 %v3028
    %4243 = vmatprep.subr.bf16.mxu0 %v3037
    %4244 = vmatpush1.bf16.msra.mxu0 %v3036
    %4245 = vmatprep.subr.bf16.mxu0 %v3045
    %4246 = vmatpush1.bf16.msra.mxu0 %v3044
    %4247 = vmatprep.subr.bf16.mxu0 %v3053
    %4248 = vmatpush1.bf16.msra.mxu0 %v3052
    %4249 = vmatprep.subr.bf16.mxu0 %v3061
    %4250 = vmatpush1.bf16.msra.mxu0 %v3060
    %4251 = vmatprep.subr.bf16.mxu0 %v3069
    %4252 = vmatpush1.bf16.msra.mxu0 %v3068
    %4253 = vmatprep.subr.bf16.mxu0 %v3077
    %4254 = vmatpush1.bf16.msra.mxu0 %v3076
    %4255 = vmatprep.subr.bf16.mxu0 %v3085
    %4256 = vmatpush1.bf16.msra.mxu0 %v3084
    %4257 = vmatprep.subr.bf16.mxu0 %v3093
    %4258 = vmatpush1.bf16.msra.mxu0 %v3092
    %4259 = vmatprep.subr.bf16.mxu0 %v3101
    %4260 = vmatpush1.bf16.msra.mxu0 %v3100
    %4261 = vmatprep.mubr.bf16.mxu0 %v499
    %4262 = vmatmul.mubr.bf16.gmra.mrb[0].mxu0 %v498
    %v4263 = vpop.f32.mrb[0].mxu0
    %v4264 = vadd.f32 %v4223, %v4263
    %v4265 = vpop.f32.mrb[0].mxu0
    %v4266 = vadd.f32 %v4225, %v4265
    %v4267 = vpop.f32.mrb[0].mxu0
    %v4268 = vpop.f32.mrb[0].mxu0
    %4269 = vdwg.mxu0
    %v4270 = vmax.f32 %v3772, 0.0
    %v4271 = vmax.f32 %v3774, 0.0
    %v4272 = vmax.f32 %v3936, 0.0
    %v4273 = vmax.f32 %v3938, 0.0
    %v4274 = vmax.f32 %v4100, 0.0
    %v4275 = vmax.f32 %v4102, 0.0
    %v4276 = vmax.f32 %v4264, 0.0
    %v4277 = vmax.f32 %v4266, 0.0
    %v4278 = vpack.c.bf16 %v4270, %v4270
    %v4279 = vpack.c.bf16 %v4271, %v4271
    %v4280 = vpack.c.bf16 %v4272, %v4272
    %v4281 = vpack.c.bf16 %v4273, %v4273
    %v4282 = vpack.c.bf16 %v4274, %v4274
    %v4283 = vpack.c.bf16 %v4275, %v4275
    %v4284 = vpack.c.bf16 %v4276, %v4276
    %v4285 = vpack.c.bf16 %v4277, %v4277
    %v4286 = vld [vmem:[#allocation11] sm:$0xff]
    %v4287 = vld [vmem:[#allocation11 + $0x8] sm:$0xff]
    %v4288 = vld [vmem:[#allocation11 + $0x10] sm:$0xff]
    %v4289 = vld [vmem:[#allocation11 + $0x18] sm:$0xff]
    %v4290 = vld [vmem:[#allocation11 + $0x20] sm:$0xff]
    %v4291 = vld [vmem:[#allocation11 + $0x28] sm:$0xff]
    %v4292 = vld [vmem:[#allocation11 + $0x30] sm:$0xff]
    %v4293 = vld [vmem:[#allocation11 + $0x38] sm:$0xff]
    %v4294 = vld [vmem:[#allocation11 + $0x40] sm:$0xff]
    %v4295 = vld [vmem:[#allocation11 + $0x48] sm:$0xff]
    %v4296 = vld [vmem:[#allocation11 + $0x50] sm:$0xff]
    %v4297 = vld [vmem:[#allocation11 + $0x58] sm:$0xff]
    %v4298 = vld [vmem:[#allocation11 + $0x60] sm:$0xff]
    %v4299 = vld [vmem:[#allocation11 + $0x68] sm:$0xff]
    %v4300 = vld [vmem:[#allocation11 + $0x70] sm:$0xff]
    %v4301 = vld [vmem:[#allocation11 + $0x78] sm:$0xff]
    %v4302 = vld [vmem:[#allocation11 + $0x80] sm:$0xff]
    %v4303 = vld [vmem:[#allocation11 + $0x88] sm:$0xff]
    %v4304 = vld [vmem:[#allocation11 + $0x90] sm:$0xff]
    %v4305 = vld [vmem:[#allocation11 + $0x98] sm:$0xff]
    %v4306 = vld [vmem:[#allocation11 + $0xa0] sm:$0xff]
    %v4307 = vld [vmem:[#allocation11 + $0xa8] sm:$0xff]
    %v4308 = vld [vmem:[#allocation11 + $0xb0] sm:$0xff]
    %v4309 = vld [vmem:[#allocation11 + $0xb8] sm:$0xff]
    %v4310 = vld [vmem:[#allocation11 + $0xc0] sm:$0xff]
    %v4311 = vld [vmem:[#allocation11 + $0xc8] sm:$0xff]
    %v4312 = vld [vmem:[#allocation11 + $0xd0] sm:$0xff]
    %v4313 = vld [vmem:[#allocation11 + $0xd8] sm:$0xff]
    %v4314 = vld [vmem:[#allocation11 + $0xe0] sm:$0xff]
    %v4315 = vld [vmem:[#allocation11 + $0xe8] sm:$0xff]
    %v4316 = vld [vmem:[#allocation11 + $0xf0] sm:$0xff]
    %v4317 = vld [vmem:[#allocation11 + $0xf8] sm:$0xff]
    %v4318 = vld [vmem:[#allocation11 + $0x100] sm:$0xff]
    %v4319 = vld [vmem:[#allocation11 + $0x108] sm:$0xff]
    %v4320 = vld [vmem:[#allocation11 + $0x110] sm:$0xff]
    %v4321 = vld [vmem:[#allocation11 + $0x118] sm:$0xff]
    %v4322 = vld [vmem:[#allocation11 + $0x120] sm:$0xff]
    %v4323 = vld [vmem:[#allocation11 + $0x128] sm:$0xff]
    %v4324 = vld [vmem:[#allocation11 + $0x130] sm:$0xff]
    %v4325 = vld [vmem:[#allocation11 + $0x138] sm:$0xff]
    %v4326 = vld [vmem:[#allocation11 + $0x140] sm:$0xff]
    %v4327 = vld [vmem:[#allocation11 + $0x148] sm:$0xff]
    %v4328 = vld [vmem:[#allocation11 + $0x150] sm:$0xff]
    %v4329 = vld [vmem:[#allocation11 + $0x158] sm:$0xff]
    %v4330 = vld [vmem:[#allocation11 + $0x160] sm:$0xff]
    %v4331 = vld [vmem:[#allocation11 + $0x168] sm:$0xff]
    %v4332 = vld [vmem:[#allocation11 + $0x170] sm:$0xff]
    %v4333 = vld [vmem:[#allocation11 + $0x178] sm:$0xff]
    %v4334 = vld [vmem:[#allocation11 + $0x180] sm:$0xff]
    %v4335 = vld [vmem:[#allocation11 + $0x188] sm:$0xff]
    %v4336 = vld [vmem:[#allocation11 + $0x190] sm:$0xff]
    %v4337 = vld [vmem:[#allocation11 + $0x198] sm:$0xff]
    %v4338 = vld [vmem:[#allocation11 + $0x1a0] sm:$0xff]
    %v4339 = vld [vmem:[#allocation11 + $0x1a8] sm:$0xff]
    %v4340 = vld [vmem:[#allocation11 + $0x1b0] sm:$0xff]
    %v4341 = vld [vmem:[#allocation11 + $0x1b8] sm:$0xff]
    %v4342 = vld [vmem:[#allocation11 + $0x1c0] sm:$0xff]
    %v4343 = vld [vmem:[#allocation11 + $0x1c8] sm:$0xff]
    %v4344 = vld [vmem:[#allocation11 + $0x1d0] sm:$0xff]
    %v4345 = vld [vmem:[#allocation11 + $0x1d8] sm:$0xff]
    %v4346 = vld [vmem:[#allocation11 + $0x1e0] sm:$0xff]
    %v4347 = vld [vmem:[#allocation11 + $0x1e8] sm:$0xff]
    %v4348 = vld [vmem:[#allocation11 + $0x1f0] sm:$0xff]
    %v4349 = vld [vmem:[#allocation11 + $0x1f8] sm:$0xff]
    %v4350 = vld [vmem:[#allocation11 + $0x200] sm:$0xff]
    %v4351 = vld [vmem:[#allocation11 + $0x208] sm:$0xff]
    %v4352 = vld [vmem:[#allocation11 + $0x210] sm:$0xff]
    %v4353 = vld [vmem:[#allocation11 + $0x218] sm:$0xff]
    %v4354 = vld [vmem:[#allocation11 + $0x220] sm:$0xff]
    %v4355 = vld [vmem:[#allocation11 + $0x228] sm:$0xff]
    %v4356 = vld [vmem:[#allocation11 + $0x230] sm:$0xff]
    %v4357 = vld [vmem:[#allocation11 + $0x238] sm:$0xff]
    %v4358 = vld [vmem:[#allocation11 + $0x240] sm:$0xff]
    %v4359 = vld [vmem:[#allocation11 + $0x248] sm:$0xff]
    %v4360 = vld [vmem:[#allocation11 + $0x250] sm:$0xff]
    %v4361 = vld [vmem:[#allocation11 + $0x258] sm:$0xff]
    %v4362 = vld [vmem:[#allocation11 + $0x260] sm:$0xff]
    %v4363 = vld [vmem:[#allocation11 + $0x268] sm:$0xff]
    %v4364 = vld [vmem:[#allocation11 + $0x270] sm:$0xff]
    %v4365 = vld [vmem:[#allocation11 + $0x278] sm:$0xff]
    %v4366 = vld [vmem:[#allocation11 + $0x280] sm:$0xff]
    %v4367 = vld [vmem:[#allocation11 + $0x288] sm:$0xff]
    %v4368 = vld [vmem:[#allocation11 + $0x290] sm:$0xff]
    %v4369 = vld [vmem:[#allocation11 + $0x298] sm:$0xff]
    %v4370 = vld [vmem:[#allocation11 + $0x2a0] sm:$0xff]
    %v4371 = vld [vmem:[#allocation11 + $0x2a8] sm:$0xff]
    %v4372 = vld [vmem:[#allocation11 + $0x2b0] sm:$0xff]
    %v4373 = vld [vmem:[#allocation11 + $0x2b8] sm:$0xff]
    %v4374 = vld [vmem:[#allocation11 + $0x2c0] sm:$0xff]
    %v4375 = vld [vmem:[#allocation11 + $0x2c8] sm:$0xff]
    %v4376 = vld [vmem:[#allocation11 + $0x2d0] sm:$0xff]
    %v4377 = vld [vmem:[#allocation11 + $0x2d8] sm:$0xff]
    %v4378 = vld [vmem:[#allocation11 + $0x2e0] sm:$0xff]
    %v4379 = vld [vmem:[#allocation11 + $0x2e8] sm:$0xff]
    %v4380 = vld [vmem:[#allocation11 + $0x2f0] sm:$0xff]
    %v4381 = vld [vmem:[#allocation11 + $0x2f8] sm:$0xff]
    %v4382 = vld [vmem:[#allocation11 + $0x300] sm:$0xff]
    %v4383 = vld [vmem:[#allocation11 + $0x308] sm:$0xff]
    %v4384 = vld [vmem:[#allocation11 + $0x310] sm:$0xff]
    %v4385 = vld [vmem:[#allocation11 + $0x318] sm:$0xff]
    %v4386 = vld [vmem:[#allocation11 + $0x320] sm:$0xff]
    %v4387 = vld [vmem:[#allocation11 + $0x328] sm:$0xff]
    %v4388 = vld [vmem:[#allocation11 + $0x330] sm:$0xff]
    %v4389 = vld [vmem:[#allocation11 + $0x338] sm:$0xff]
    %v4390 = vld [vmem:[#allocation11 + $0x340] sm:$0xff]
    %v4391 = vld [vmem:[#allocation11 + $0x348] sm:$0xff]
    %v4392 = vld [vmem:[#allocation11 + $0x350] sm:$0xff]
    %v4393 = vld [vmem:[#allocation11 + $0x358] sm:$0xff]
    %v4394 = vld [vmem:[#allocation11 + $0x360] sm:$0xff]
    %v4395 = vld [vmem:[#allocation11 + $0x368] sm:$0xff]
    %v4396 = vld [vmem:[#allocation11 + $0x370] sm:$0xff]
    %v4397 = vld [vmem:[#allocation11 + $0x378] sm:$0xff]
    %v4398 = vld [vmem:[#allocation11 + $0x380] sm:$0xff]
    %v4399 = vld [vmem:[#allocation11 + $0x388] sm:$0xff]
    %v4400 = vld [vmem:[#allocation11 + $0x390] sm:$0xff]
    %v4401 = vld [vmem:[#allocation11 + $0x398] sm:$0xff]
    %v4402 = vld [vmem:[#allocation11 + $0x3a0] sm:$0xff]
    %v4403 = vld [vmem:[#allocation11 + $0x3a8] sm:$0xff]
    %v4404 = vld [vmem:[#allocation11 + $0x3b0] sm:$0xff]
    %v4405 = vld [vmem:[#allocation11 + $0x3b8] sm:$0xff]
    %v4406 = vld [vmem:[#allocation11 + $0x3c0] sm:$0xff]
    %v4407 = vld [vmem:[#allocation11 + $0x3c8] sm:$0xff]
    %v4408 = vld [vmem:[#allocation11 + $0x3d0] sm:$0xff]
    %v4409 = vld [vmem:[#allocation11 + $0x3d8] sm:$0xff]
    %v4410 = vld [vmem:[#allocation11 + $0x3e0] sm:$0xff]
    %v4411 = vld [vmem:[#allocation11 + $0x3e8] sm:$0xff]
    %v4412 = vld [vmem:[#allocation11 + $0x3f0] sm:$0xff]
    %v4413 = vld [vmem:[#allocation11 + $0x3f8] sm:$0xff]
    %v4414 = vld [vmem:[#allocation11 + $0x400] sm:$0xff]
    %v4415 = vld [vmem:[#allocation11 + $0x408] sm:$0xff]
    %v4416 = vld [vmem:[#allocation11 + $0x410] sm:$0xff]
    %v4417 = vld [vmem:[#allocation11 + $0x418] sm:$0xff]
    %v4418 = vld [vmem:[#allocation11 + $0x420] sm:$0xff]
    %v4419 = vld [vmem:[#allocation11 + $0x428] sm:$0xff]
    %v4420 = vld [vmem:[#allocation11 + $0x430] sm:$0xff]
    %v4421 = vld [vmem:[#allocation11 + $0x438] sm:$0xff]
    %v4422 = vld [vmem:[#allocation11 + $0x440] sm:$0xff]
    %v4423 = vld [vmem:[#allocation11 + $0x448] sm:$0xff]
    %v4424 = vld [vmem:[#allocation11 + $0x450] sm:$0xff]
    %v4425 = vld [vmem:[#allocation11 + $0x458] sm:$0xff]
    %v4426 = vld [vmem:[#allocation11 + $0x460] sm:$0xff]
    %v4427 = vld [vmem:[#allocation11 + $0x468] sm:$0xff]
    %v4428 = vld [vmem:[#allocation11 + $0x470] sm:$0xff]
    %v4429 = vld [vmem:[#allocation11 + $0x478] sm:$0xff]
    %v4430 = vld [vmem:[#allocation11 + $0x480] sm:$0xff]
    %v4431 = vld [vmem:[#allocation11 + $0x488] sm:$0xff]
    %v4432 = vld [vmem:[#allocation11 + $0x490] sm:$0xff]
    %v4433 = vld [vmem:[#allocation11 + $0x498] sm:$0xff]
    %v4434 = vld [vmem:[#allocation11 + $0x4a0] sm:$0xff]
    %v4435 = vld [vmem:[#allocation11 + $0x4a8] sm:$0xff]
    %v4436 = vld [vmem:[#allocation11 + $0x4b0] sm:$0xff]
    %v4437 = vld [vmem:[#allocation11 + $0x4b8] sm:$0xff]
    %v4438 = vld [vmem:[#allocation11 + $0x4c0] sm:$0xff]
    %v4439 = vld [vmem:[#allocation11 + $0x4c8] sm:$0xff]
    %v4440 = vld [vmem:[#allocation11 + $0x4d0] sm:$0xff]
    %v4441 = vld [vmem:[#allocation11 + $0x4d8] sm:$0xff]
    %v4442 = vld [vmem:[#allocation11 + $0x4e0] sm:$0xff]
    %v4443 = vld [vmem:[#allocation11 + $0x4e8] sm:$0xff]
    %v4444 = vld [vmem:[#allocation11 + $0x4f0] sm:$0xff]
    %v4445 = vld [vmem:[#allocation11 + $0x4f8] sm:$0xff]
    %v4446 = vld [vmem:[#allocation11 + $0x500] sm:$0xff]
    %v4447 = vld [vmem:[#allocation11 + $0x508] sm:$0xff]
    %v4448 = vld [vmem:[#allocation11 + $0x510] sm:$0xff]
    %v4449 = vld [vmem:[#allocation11 + $0x518] sm:$0xff]
    %v4450 = vld [vmem:[#allocation11 + $0x520] sm:$0xff]
    %v4451 = vld [vmem:[#allocation11 + $0x528] sm:$0xff]
    %v4452 = vld [vmem:[#allocation11 + $0x530] sm:$0xff]
    %v4453 = vld [vmem:[#allocation11 + $0x538] sm:$0xff]
    %v4454 = vld [vmem:[#allocation11 + $0x540] sm:$0xff]
    %v4455 = vld [vmem:[#allocation11 + $0x548] sm:$0xff]
    %v4456 = vld [vmem:[#allocation11 + $0x550] sm:$0xff]
    %v4457 = vld [vmem:[#allocation11 + $0x558] sm:$0xff]
    %v4458 = vld [vmem:[#allocation11 + $0x560] sm:$0xff]
    %v4459 = vld [vmem:[#allocation11 + $0x568] sm:$0xff]
    %v4460 = vld [vmem:[#allocation11 + $0x570] sm:$0xff]
    %v4461 = vld [vmem:[#allocation11 + $0x578] sm:$0xff]
    %v4462 = vld [vmem:[#allocation11 + $0x580] sm:$0xff]
    %v4463 = vld [vmem:[#allocation11 + $0x588] sm:$0xff]
    %v4464 = vld [vmem:[#allocation11 + $0x590] sm:$0xff]
    %v4465 = vld [vmem:[#allocation11 + $0x598] sm:$0xff]
    %v4466 = vld [vmem:[#allocation11 + $0x5a0] sm:$0xff]
    %v4467 = vld [vmem:[#allocation11 + $0x5a8] sm:$0xff]
    %v4468 = vld [vmem:[#allocation11 + $0x5b0] sm:$0xff]
    %v4469 = vld [vmem:[#allocation11 + $0x5b8] sm:$0xff]
    %v4470 = vld [vmem:[#allocation11 + $0x5c0] sm:$0xff]
    %v4471 = vld [vmem:[#allocation11 + $0x5c8] sm:$0xff]
    %v4472 = vld [vmem:[#allocation11 + $0x5d0] sm:$0xff]
    %v4473 = vld [vmem:[#allocation11 + $0x5d8] sm:$0xff]
    %v4474 = vld [vmem:[#allocation11 + $0x5e0] sm:$0xff]
    %v4475 = vld [vmem:[#allocation11 + $0x5e8] sm:$0xff]
    %v4476 = vld [vmem:[#allocation11 + $0x5f0] sm:$0xff]
    %v4477 = vld [vmem:[#allocation11 + $0x5f8] sm:$0xff]
    %v4478 = vld [vmem:[#allocation11 + $0x600] sm:$0xff]
    %v4479 = vld [vmem:[#allocation11 + $0x608] sm:$0xff]
    %v4480 = vld [vmem:[#allocation11 + $0x610] sm:$0xff]
    %v4481 = vld [vmem:[#allocation11 + $0x618] sm:$0xff]
    %v4482 = vld [vmem:[#allocation11 + $0x620] sm:$0xff]
    %v4483 = vld [vmem:[#allocation11 + $0x628] sm:$0xff]
    %v4484 = vld [vmem:[#allocation11 + $0x630] sm:$0xff]
    %v4485 = vld [vmem:[#allocation11 + $0x638] sm:$0xff]
    %v4486 = vld [vmem:[#allocation11 + $0x640] sm:$0xff]
    %v4487 = vld [vmem:[#allocation11 + $0x648] sm:$0xff]
    %v4488 = vld [vmem:[#allocation11 + $0x650] sm:$0xff]
    %v4489 = vld [vmem:[#allocation11 + $0x658] sm:$0xff]
    %v4490 = vld [vmem:[#allocation11 + $0x660] sm:$0xff]
    %v4491 = vld [vmem:[#allocation11 + $0x668] sm:$0xff]
    %v4492 = vld [vmem:[#allocation11 + $0x670] sm:$0xff]
    %v4493 = vld [vmem:[#allocation11 + $0x678] sm:$0xff]
    %v4494 = vld [vmem:[#allocation11 + $0x680] sm:$0xff]
    %v4495 = vld [vmem:[#allocation11 + $0x688] sm:$0xff]
    %v4496 = vld [vmem:[#allocation11 + $0x690] sm:$0xff]
    %v4497 = vld [vmem:[#allocation11 + $0x698] sm:$0xff]
    %v4498 = vld [vmem:[#allocation11 + $0x6a0] sm:$0xff]
    %v4499 = vld [vmem:[#allocation11 + $0x6a8] sm:$0xff]
    %v4500 = vld [vmem:[#allocation11 + $0x6b0] sm:$0xff]
    %v4501 = vld [vmem:[#allocation11 + $0x6b8] sm:$0xff]
    %v4502 = vld [vmem:[#allocation11 + $0x6c0] sm:$0xff]
    %v4503 = vld [vmem:[#allocation11 + $0x6c8] sm:$0xff]
    %v4504 = vld [vmem:[#allocation11 + $0x6d0] sm:$0xff]
    %v4505 = vld [vmem:[#allocation11 + $0x6d8] sm:$0xff]
    %v4506 = vld [vmem:[#allocation11 + $0x6e0] sm:$0xff]
    %v4507 = vld [vmem:[#allocation11 + $0x6e8] sm:$0xff]
    %v4508 = vld [vmem:[#allocation11 + $0x6f0] sm:$0xff]
    %v4509 = vld [vmem:[#allocation11 + $0x6f8] sm:$0xff]
    %v4510 = vld [vmem:[#allocation11 + $0x700] sm:$0xff]
    %v4511 = vld [vmem:[#allocation11 + $0x708] sm:$0xff]
    %v4512 = vld [vmem:[#allocation11 + $0x710] sm:$0xff]
    %v4513 = vld [vmem:[#allocation11 + $0x718] sm:$0xff]
    %v4514 = vld [vmem:[#allocation11 + $0x720] sm:$0xff]
    %v4515 = vld [vmem:[#allocation11 + $0x728] sm:$0xff]
    %v4516 = vld [vmem:[#allocation11 + $0x730] sm:$0xff]
    %v4517 = vld [vmem:[#allocation11 + $0x738] sm:$0xff]
    %v4518 = vld [vmem:[#allocation11 + $0x740] sm:$0xff]
    %v4519 = vld [vmem:[#allocation11 + $0x748] sm:$0xff]
    %v4520 = vld [vmem:[#allocation11 + $0x750] sm:$0xff]
    %v4521 = vld [vmem:[#allocation11 + $0x758] sm:$0xff]
    %v4522 = vld [vmem:[#allocation11 + $0x760] sm:$0xff]
    %v4523 = vld [vmem:[#allocation11 + $0x768] sm:$0xff]
    %v4524 = vld [vmem:[#allocation11 + $0x770] sm:$0xff]
    %v4525 = vld [vmem:[#allocation11 + $0x778] sm:$0xff]
    %v4526 = vld [vmem:[#allocation11 + $0x780] sm:$0xff]
    %v4527 = vld [vmem:[#allocation11 + $0x788] sm:$0xff]
    %v4528 = vld [vmem:[#allocation11 + $0x790] sm:$0xff]
    %v4529 = vld [vmem:[#allocation11 + $0x798] sm:$0xff]
    %v4530 = vld [vmem:[#allocation11 + $0x7a0] sm:$0xff]
    %v4531 = vld [vmem:[#allocation11 + $0x7a8] sm:$0xff]
    %v4532 = vld [vmem:[#allocation11 + $0x7b0] sm:$0xff]
    %v4533 = vld [vmem:[#allocation11 + $0x7b8] sm:$0xff]
    %v4534 = vld [vmem:[#allocation11 + $0x7c0] sm:$0xff]
    %v4535 = vld [vmem:[#allocation11 + $0x7c8] sm:$0xff]
    %v4536 = vld [vmem:[#allocation11 + $0x7d0] sm:$0xff]
    %v4537 = vld [vmem:[#allocation11 + $0x7d8] sm:$0xff]
    %v4538 = vld [vmem:[#allocation11 + $0x7e0] sm:$0xff]
    %v4539 = vld [vmem:[#allocation11 + $0x7e8] sm:$0xff]
    %v4540 = vld [vmem:[#allocation11 + $0x7f0] sm:$0xff]
    %v4541 = vld [vmem:[#allocation11 + $0x7f8] sm:$0xff]
    %v4542 = vld [vmem:[#allocation11 + $0x800] sm:$0xff]
    %v4543 = vld [vmem:[#allocation11 + $0x808] sm:$0xff]
    %v4544 = vld [vmem:[#allocation11 + $0x810] sm:$0xff]
    %v4545 = vld [vmem:[#allocation11 + $0x818] sm:$0xff]
    %v4546 = vld [vmem:[#allocation11 + $0x820] sm:$0xff]
    %v4547 = vld [vmem:[#allocation11 + $0x828] sm:$0xff]
    %v4548 = vld [vmem:[#allocation11 + $0x830] sm:$0xff]
    %v4549 = vld [vmem:[#allocation11 + $0x838] sm:$0xff]
    %v4550 = vld [vmem:[#allocation11 + $0x840] sm:$0xff]
    %v4551 = vld [vmem:[#allocation11 + $0x848] sm:$0xff]
    %v4552 = vld [vmem:[#allocation11 + $0x850] sm:$0xff]
    %v4553 = vld [vmem:[#allocation11 + $0x858] sm:$0xff]
    %v4554 = vld [vmem:[#allocation11 + $0x860] sm:$0xff]
    %v4555 = vld [vmem:[#allocation11 + $0x868] sm:$0xff]
    %v4556 = vld [vmem:[#allocation11 + $0x870] sm:$0xff]
    %v4557 = vld [vmem:[#allocation11 + $0x878] sm:$0xff]
    %v4558 = vld [vmem:[#allocation11 + $0x880] sm:$0xff]
    %v4559 = vld [vmem:[#allocation11 + $0x888] sm:$0xff]
    %v4560 = vld [vmem:[#allocation11 + $0x890] sm:$0xff]
    %v4561 = vld [vmem:[#allocation11 + $0x898] sm:$0xff]
    %v4562 = vld [vmem:[#allocation11 + $0x8a0] sm:$0xff]
    %v4563 = vld [vmem:[#allocation11 + $0x8a8] sm:$0xff]
    %v4564 = vld [vmem:[#allocation11 + $0x8b0] sm:$0xff]
    %v4565 = vld [vmem:[#allocation11 + $0x8b8] sm:$0xff]
    %v4566 = vld [vmem:[#allocation11 + $0x8c0] sm:$0xff]
    %v4567 = vld [vmem:[#allocation11 + $0x8c8] sm:$0xff]
    %v4568 = vld [vmem:[#allocation11 + $0x8d0] sm:$0xff]
    %v4569 = vld [vmem:[#allocation11 + $0x8d8] sm:$0xff]
    %v4570 = vld [vmem:[#allocation11 + $0x8e0] sm:$0xff]
    %v4571 = vld [vmem:[#allocation11 + $0x8e8] sm:$0xff]
    %v4572 = vld [vmem:[#allocation11 + $0x8f0] sm:$0xff]
    %v4573 = vld [vmem:[#allocation11 + $0x8f8] sm:$0xff]
    %v4574 = vld [vmem:[#allocation11 + $0x900] sm:$0xff]
    %v4575 = vld [vmem:[#allocation11 + $0x908] sm:$0xff]
    %v4576 = vld [vmem:[#allocation11 + $0x910] sm:$0xff]
    %v4577 = vld [vmem:[#allocation11 + $0x918] sm:$0xff]
    %v4578 = vld [vmem:[#allocation11 + $0x920] sm:$0xff]
    %v4579 = vld [vmem:[#allocation11 + $0x928] sm:$0xff]
    %v4580 = vld [vmem:[#allocation11 + $0x930] sm:$0xff]
    %v4581 = vld [vmem:[#allocation11 + $0x938] sm:$0xff]
    %v4582 = vld [vmem:[#allocation11 + $0x940] sm:$0xff]
    %v4583 = vld [vmem:[#allocation11 + $0x948] sm:$0xff]
    %v4584 = vld [vmem:[#allocation11 + $0x950] sm:$0xff]
    %v4585 = vld [vmem:[#allocation11 + $0x958] sm:$0xff]
    %v4586 = vld [vmem:[#allocation11 + $0x960] sm:$0xff]
    %v4587 = vld [vmem:[#allocation11 + $0x968] sm:$0xff]
    %v4588 = vld [vmem:[#allocation11 + $0x970] sm:$0xff]
    %v4589 = vld [vmem:[#allocation11 + $0x978] sm:$0xff]
    %v4590 = vld [vmem:[#allocation11 + $0x980] sm:$0xff]
    %v4591 = vld [vmem:[#allocation11 + $0x988] sm:$0xff]
    %v4592 = vld [vmem:[#allocation11 + $0x990] sm:$0xff]
    %v4593 = vld [vmem:[#allocation11 + $0x998] sm:$0xff]
    %v4594 = vld [vmem:[#allocation11 + $0x9a0] sm:$0xff]
    %v4595 = vld [vmem:[#allocation11 + $0x9a8] sm:$0xff]
    %v4596 = vld [vmem:[#allocation11 + $0x9b0] sm:$0xff]
    %v4597 = vld [vmem:[#allocation11 + $0x9b8] sm:$0xff]
    %v4598 = vld [vmem:[#allocation11 + $0x9c0] sm:$0xff]
    %v4599 = vld [vmem:[#allocation11 + $0x9c8] sm:$0xff]
    %v4600 = vld [vmem:[#allocation11 + $0x9d0] sm:$0xff]
    %v4601 = vld [vmem:[#allocation11 + $0x9d8] sm:$0xff]
    %v4602 = vld [vmem:[#allocation11 + $0x9e0] sm:$0xff]
    %v4603 = vld [vmem:[#allocation11 + $0x9e8] sm:$0xff]
    %v4604 = vld [vmem:[#allocation11 + $0x9f0] sm:$0xff]
    %v4605 = vld [vmem:[#allocation11 + $0x9f8] sm:$0xff]
    %v4606 = vld [vmem:[#allocation11 + $0xa00] sm:$0xff]
    %v4607 = vld [vmem:[#allocation11 + $0xa08] sm:$0xff]
    %v4608 = vld [vmem:[#allocation11 + $0xa10] sm:$0xff]
    %v4609 = vld [vmem:[#allocation11 + $0xa18] sm:$0xff]
    %v4610 = vld [vmem:[#allocation11 + $0xa20] sm:$0xff]
    %v4611 = vld [vmem:[#allocation11 + $0xa28] sm:$0xff]
    %v4612 = vld [vmem:[#allocation11 + $0xa30] sm:$0xff]
    %v4613 = vld [vmem:[#allocation11 + $0xa38] sm:$0xff]
    %v4614 = vld [vmem:[#allocation11 + $0xa40] sm:$0xff]
    %v4615 = vld [vmem:[#allocation11 + $0xa48] sm:$0xff]
    %v4616 = vld [vmem:[#allocation11 + $0xa50] sm:$0xff]
    %v4617 = vld [vmem:[#allocation11 + $0xa58] sm:$0xff]
    %v4618 = vld [vmem:[#allocation11 + $0xa60] sm:$0xff]
    %v4619 = vld [vmem:[#allocation11 + $0xa68] sm:$0xff]
    %v4620 = vld [vmem:[#allocation11 + $0xa70] sm:$0xff]
    %v4621 = vld [vmem:[#allocation11 + $0xa78] sm:$0xff]
    %v4622 = vld [vmem:[#allocation11 + $0xa80] sm:$0xff]
    %v4623 = vld [vmem:[#allocation11 + $0xa88] sm:$0xff]
    %v4624 = vld [vmem:[#allocation11 + $0xa90] sm:$0xff]
    %v4625 = vld [vmem:[#allocation11 + $0xa98] sm:$0xff]
    %v4626 = vld [vmem:[#allocation11 + $0xaa0] sm:$0xff]
    %v4627 = vld [vmem:[#allocation11 + $0xaa8] sm:$0xff]
    %v4628 = vld [vmem:[#allocation11 + $0xab0] sm:$0xff]
    %v4629 = vld [vmem:[#allocation11 + $0xab8] sm:$0xff]
    %v4630 = vld [vmem:[#allocation11 + $0xac0] sm:$0xff]
    %v4631 = vld [vmem:[#allocation11 + $0xac8] sm:$0xff]
    %v4632 = vld [vmem:[#allocation11 + $0xad0] sm:$0xff]
    %v4633 = vld [vmem:[#allocation11 + $0xad8] sm:$0xff]
    %v4634 = vld [vmem:[#allocation11 + $0xae0] sm:$0xff]
    %v4635 = vld [vmem:[#allocation11 + $0xae8] sm:$0xff]
    %v4636 = vld [vmem:[#allocation11 + $0xaf0] sm:$0xff]
    %v4637 = vld [vmem:[#allocation11 + $0xaf8] sm:$0xff]
    %v4638 = vld [vmem:[#allocation11 + $0xb00] sm:$0xff]
    %v4639 = vld [vmem:[#allocation11 + $0xb08] sm:$0xff]
    %v4640 = vld [vmem:[#allocation11 + $0xb10] sm:$0xff]
    %v4641 = vld [vmem:[#allocation11 + $0xb18] sm:$0xff]
    %v4642 = vld [vmem:[#allocation11 + $0xb20] sm:$0xff]
    %v4643 = vld [vmem:[#allocation11 + $0xb28] sm:$0xff]
    %v4644 = vld [vmem:[#allocation11 + $0xb30] sm:$0xff]
    %v4645 = vld [vmem:[#allocation11 + $0xb38] sm:$0xff]
    %v4646 = vld [vmem:[#allocation11 + $0xb40] sm:$0xff]
    %v4647 = vld [vmem:[#allocation11 + $0xb48] sm:$0xff]
    %v4648 = vld [vmem:[#allocation11 + $0xb50] sm:$0xff]
    %v4649 = vld [vmem:[#allocation11 + $0xb58] sm:$0xff]
    %v4650 = vld [vmem:[#allocation11 + $0xb60] sm:$0xff]
    %v4651 = vld [vmem:[#allocation11 + $0xb68] sm:$0xff]
    %v4652 = vld [vmem:[#allocation11 + $0xb70] sm:$0xff]
    %v4653 = vld [vmem:[#allocation11 + $0xb78] sm:$0xff]
    %v4654 = vld [vmem:[#allocation11 + $0xb80] sm:$0xff]
    %v4655 = vld [vmem:[#allocation11 + $0xb88] sm:$0xff]
    %v4656 = vld [vmem:[#allocation11 + $0xb90] sm:$0xff]
    %v4657 = vld [vmem:[#allocation11 + $0xb98] sm:$0xff]
    %v4658 = vld [vmem:[#allocation11 + $0xba0] sm:$0xff]
    %v4659 = vld [vmem:[#allocation11 + $0xba8] sm:$0xff]
    %v4660 = vld [vmem:[#allocation11 + $0xbb0] sm:$0xff]
    %v4661 = vld [vmem:[#allocation11 + $0xbb8] sm:$0xff]
    %v4662 = vld [vmem:[#allocation11 + $0xbc0] sm:$0xff]
    %v4663 = vld [vmem:[#allocation11 + $0xbc8] sm:$0xff]
    %v4664 = vld [vmem:[#allocation11 + $0xbd0] sm:$0xff]
    %v4665 = vld [vmem:[#allocation11 + $0xbd8] sm:$0xff]
    %v4666 = vld [vmem:[#allocation11 + $0xbe0] sm:$0xff]
    %v4667 = vld [vmem:[#allocation11 + $0xbe8] sm:$0xff]
    %v4668 = vld [vmem:[#allocation11 + $0xbf0] sm:$0xff]
    %v4669 = vld [vmem:[#allocation11 + $0xbf8] sm:$0xff]
    %v4670 = vld [vmem:[#allocation11 + $0xc00] sm:$0xff]
    %v4671 = vld [vmem:[#allocation11 + $0xc08] sm:$0xff]
    %v4672 = vld [vmem:[#allocation11 + $0xc10] sm:$0xff]
    %v4673 = vld [vmem:[#allocation11 + $0xc18] sm:$0xff]
    %v4674 = vld [vmem:[#allocation11 + $0xc20] sm:$0xff]
    %v4675 = vld [vmem:[#allocation11 + $0xc28] sm:$0xff]
    %v4676 = vld [vmem:[#allocation11 + $0xc30] sm:$0xff]
    %v4677 = vld [vmem:[#allocation11 + $0xc38] sm:$0xff]
    %v4678 = vld [vmem:[#allocation11 + $0xc40] sm:$0xff]
    %v4679 = vld [vmem:[#allocation11 + $0xc48] sm:$0xff]
    %v4680 = vld [vmem:[#allocation11 + $0xc50] sm:$0xff]
    %v4681 = vld [vmem:[#allocation11 + $0xc58] sm:$0xff]
    %v4682 = vld [vmem:[#allocation11 + $0xc60] sm:$0xff]
    %v4683 = vld [vmem:[#allocation11 + $0xc68] sm:$0xff]
    %v4684 = vld [vmem:[#allocation11 + $0xc70] sm:$0xff]
    %v4685 = vld [vmem:[#allocation11 + $0xc78] sm:$0xff]
    %v4686 = vld [vmem:[#allocation11 + $0xc80] sm:$0xff]
    %v4687 = vld [vmem:[#allocation11 + $0xc88] sm:$0xff]
    %v4688 = vld [vmem:[#allocation11 + $0xc90] sm:$0xff]
    %v4689 = vld [vmem:[#allocation11 + $0xc98] sm:$0xff]
    %v4690 = vld [vmem:[#allocation11 + $0xca0] sm:$0xff]
    %v4691 = vld [vmem:[#allocation11 + $0xca8] sm:$0xff]
    %v4692 = vld [vmem:[#allocation11 + $0xcb0] sm:$0xff]
    %v4693 = vld [vmem:[#allocation11 + $0xcb8] sm:$0xff]
    %v4694 = vld [vmem:[#allocation11 + $0xcc0] sm:$0xff]
    %v4695 = vld [vmem:[#allocation11 + $0xcc8] sm:$0xff]
    %v4696 = vld [vmem:[#allocation11 + $0xcd0] sm:$0xff]
    %v4697 = vld [vmem:[#allocation11 + $0xcd8] sm:$0xff]
    %v4698 = vld [vmem:[#allocation11 + $0xce0] sm:$0xff]
    %v4699 = vld [vmem:[#allocation11 + $0xce8] sm:$0xff]
    %v4700 = vld [vmem:[#allocation11 + $0xcf0] sm:$0xff]
    %v4701 = vld [vmem:[#allocation11 + $0xcf8] sm:$0xff]
    %v4702 = vld [vmem:[#allocation11 + $0xd00] sm:$0xff]
    %v4703 = vld [vmem:[#allocation11 + $0xd08] sm:$0xff]
    %v4704 = vld [vmem:[#allocation11 + $0xd10] sm:$0xff]
    %v4705 = vld [vmem:[#allocation11 + $0xd18] sm:$0xff]
    %v4706 = vld [vmem:[#allocation11 + $0xd20] sm:$0xff]
    %v4707 = vld [vmem:[#allocation11 + $0xd28] sm:$0xff]
    %v4708 = vld [vmem:[#allocation11 + $0xd30] sm:$0xff]
    %v4709 = vld [vmem:[#allocation11 + $0xd38] sm:$0xff]
    %v4710 = vld [vmem:[#allocation11 + $0xd40] sm:$0xff]
    %v4711 = vld [vmem:[#allocation11 + $0xd48] sm:$0xff]
    %v4712 = vld [vmem:[#allocation11 + $0xd50] sm:$0xff]
    %v4713 = vld [vmem:[#allocation11 + $0xd58] sm:$0xff]
    %v4714 = vld [vmem:[#allocation11 + $0xd60] sm:$0xff]
    %v4715 = vld [vmem:[#allocation11 + $0xd68] sm:$0xff]
    %v4716 = vld [vmem:[#allocation11 + $0xd70] sm:$0xff]
    %v4717 = vld [vmem:[#allocation11 + $0xd78] sm:$0xff]
    %v4718 = vld [vmem:[#allocation11 + $0xd80] sm:$0xff]
    %v4719 = vld [vmem:[#allocation11 + $0xd88] sm:$0xff]
    %v4720 = vld [vmem:[#allocation11 + $0xd90] sm:$0xff]
    %v4721 = vld [vmem:[#allocation11 + $0xd98] sm:$0xff]
    %v4722 = vld [vmem:[#allocation11 + $0xda0] sm:$0xff]
    %v4723 = vld [vmem:[#allocation11 + $0xda8] sm:$0xff]
    %v4724 = vld [vmem:[#allocation11 + $0xdb0] sm:$0xff]
    %v4725 = vld [vmem:[#allocation11 + $0xdb8] sm:$0xff]
    %v4726 = vld [vmem:[#allocation11 + $0xdc0] sm:$0xff]
    %v4727 = vld [vmem:[#allocation11 + $0xdc8] sm:$0xff]
    %v4728 = vld [vmem:[#allocation11 + $0xdd0] sm:$0xff]
    %v4729 = vld [vmem:[#allocation11 + $0xdd8] sm:$0xff]
    %v4730 = vld [vmem:[#allocation11 + $0xde0] sm:$0xff]
    %v4731 = vld [vmem:[#allocation11 + $0xde8] sm:$0xff]
    %v4732 = vld [vmem:[#allocation11 + $0xdf0] sm:$0xff]
    %v4733 = vld [vmem:[#allocation11 + $0xdf8] sm:$0xff]
    %v4734 = vld [vmem:[#allocation11 + $0xe00] sm:$0xff]
    %v4735 = vld [vmem:[#allocation11 + $0xe08] sm:$0xff]
    %v4736 = vld [vmem:[#allocation11 + $0xe10] sm:$0xff]
    %v4737 = vld [vmem:[#allocation11 + $0xe18] sm:$0xff]
    %v4738 = vld [vmem:[#allocation11 + $0xe20] sm:$0xff]
    %v4739 = vld [vmem:[#allocation11 + $0xe28] sm:$0xff]
    %v4740 = vld [vmem:[#allocation11 + $0xe30] sm:$0xff]
    %v4741 = vld [vmem:[#allocation11 + $0xe38] sm:$0xff]
    %v4742 = vld [vmem:[#allocation11 + $0xe40] sm:$0xff]
    %v4743 = vld [vmem:[#allocation11 + $0xe48] sm:$0xff]
    %v4744 = vld [vmem:[#allocation11 + $0xe50] sm:$0xff]
    %v4745 = vld [vmem:[#allocation11 + $0xe58] sm:$0xff]
    %v4746 = vld [vmem:[#allocation11 + $0xe60] sm:$0xff]
    %v4747 = vld [vmem:[#allocation11 + $0xe68] sm:$0xff]
    %v4748 = vld [vmem:[#allocation11 + $0xe70] sm:$0xff]
    %v4749 = vld [vmem:[#allocation11 + $0xe78] sm:$0xff]
    %v4750 = vld [vmem:[#allocation11 + $0xe80] sm:$0xff]
    %v4751 = vld [vmem:[#allocation11 + $0xe88] sm:$0xff]
    %v4752 = vld [vmem:[#allocation11 + $0xe90] sm:$0xff]
    %v4753 = vld [vmem:[#allocation11 + $0xe98] sm:$0xff]
    %v4754 = vld [vmem:[#allocation11 + $0xea0] sm:$0xff]
    %v4755 = vld [vmem:[#allocation11 + $0xea8] sm:$0xff]
    %v4756 = vld [vmem:[#allocation11 + $0xeb0] sm:$0xff]
    %v4757 = vld [vmem:[#allocation11 + $0xeb8] sm:$0xff]
    %v4758 = vld [vmem:[#allocation11 + $0xec0] sm:$0xff]
    %v4759 = vld [vmem:[#allocation11 + $0xec8] sm:$0xff]
    %v4760 = vld [vmem:[#allocation11 + $0xed0] sm:$0xff]
    %v4761 = vld [vmem:[#allocation11 + $0xed8] sm:$0xff]
    %v4762 = vld [vmem:[#allocation11 + $0xee0] sm:$0xff]
    %v4763 = vld [vmem:[#allocation11 + $0xee8] sm:$0xff]
    %v4764 = vld [vmem:[#allocation11 + $0xef0] sm:$0xff]
    %v4765 = vld [vmem:[#allocation11 + $0xef8] sm:$0xff]
    %v4766 = vld [vmem:[#allocation11 + $0xf00] sm:$0xff]
    %v4767 = vld [vmem:[#allocation11 + $0xf08] sm:$0xff]
    %v4768 = vld [vmem:[#allocation11 + $0xf10] sm:$0xff]
    %v4769 = vld [vmem:[#allocation11 + $0xf18] sm:$0xff]
    %v4770 = vld [vmem:[#allocation11 + $0xf20] sm:$0xff]
    %v4771 = vld [vmem:[#allocation11 + $0xf28] sm:$0xff]
    %v4772 = vld [vmem:[#allocation11 + $0xf30] sm:$0xff]
    %v4773 = vld [vmem:[#allocation11 + $0xf38] sm:$0xff]
    %v4774 = vld [vmem:[#allocation11 + $0xf40] sm:$0xff]
    %v4775 = vld [vmem:[#allocation11 + $0xf48] sm:$0xff]
    %v4776 = vld [vmem:[#allocation11 + $0xf50] sm:$0xff]
    %v4777 = vld [vmem:[#allocation11 + $0xf58] sm:$0xff]
    %v4778 = vld [vmem:[#allocation11 + $0xf60] sm:$0xff]
    %v4779 = vld [vmem:[#allocation11 + $0xf68] sm:$0xff]
    %v4780 = vld [vmem:[#allocation11 + $0xf70] sm:$0xff]
    %v4781 = vld [vmem:[#allocation11 + $0xf78] sm:$0xff]
    %v4782 = vld [vmem:[#allocation11 + $0xf80] sm:$0xff]
    %v4783 = vld [vmem:[#allocation11 + $0xf88] sm:$0xff]
    %v4784 = vld [vmem:[#allocation11 + $0xf90] sm:$0xff]
    %v4785 = vld [vmem:[#allocation11 + $0xf98] sm:$0xff]
    %v4786 = vld [vmem:[#allocation11 + $0xfa0] sm:$0xff]
    %v4787 = vld [vmem:[#allocation11 + $0xfa8] sm:$0xff]
    %v4788 = vld [vmem:[#allocation11 + $0xfb0] sm:$0xff]
    %v4789 = vld [vmem:[#allocation11 + $0xfb8] sm:$0xff]
    %v4790 = vld [vmem:[#allocation11 + $0xfc0] sm:$0xff]
    %v4791 = vld [vmem:[#allocation11 + $0xfc8] sm:$0xff]
    %v4792 = vld [vmem:[#allocation11 + $0xfd0] sm:$0xff]
    %v4793 = vld [vmem:[#allocation11 + $0xfd8] sm:$0xff]
    %v4794 = vld [vmem:[#allocation11 + $0xfe0] sm:$0xff]
    %v4795 = vld [vmem:[#allocation11 + $0xfe8] sm:$0xff]
    %v4796 = vld [vmem:[#allocation11 + $0xff0] sm:$0xff]
    %v4797 = vld [vmem:[#allocation11 + $0xff8] sm:$0xff]
    %v4798 = vld [vmem:[#allocation13] sm:$0xff]
    %v4800 = vlaneseq
    %v4801 = vshrl.u32 %v4800, 7
    %v4802 = vsub.s32 0, %v4801
    %v4803 = vrot.slane %v4798, %v4802
    %v4804 = vlaneseq
    %v4805 = vshrl.u32 %v4804, 7
    %v4806 = vsub.s32 1, %v4805
    %v4807 = vrot.slane %v4798, %v4806
    %v4808 = vlaneseq
    %v4809 = vshrl.u32 %v4808, 7
    %v4810 = vsub.s32 2, %v4809
    %v4811 = vrot.slane %v4798, %v4810
    %v4812 = vlaneseq
    %v4813 = vshrl.u32 %v4812, 7
    %v4814 = vsub.s32 3, %v4813
    %v4815 = vrot.slane %v4798, %v4814
    %v4816 = vlaneseq
    %v4817 = vshrl.u32 %v4816, 7
    %v4818 = vsub.s32 4, %v4817
    %v4819 = vrot.slane %v4798, %v4818
    %v4820 = vlaneseq
    %v4821 = vshrl.u32 %v4820, 7
    %v4822 = vsub.s32 5, %v4821
    %v4823 = vrot.slane %v4798, %v4822
    %v4824 = vlaneseq
    %v4825 = vshrl.u32 %v4824, 7
    %v4826 = vsub.s32 6, %v4825
    %v4827 = vrot.slane %v4798, %v4826
    %v4828 = vlaneseq
    %v4829 = vshrl.u32 %v4828, 7
    %v4830 = vsub.s32 7, %v4829
    %v4831 = vrot.slane %v4798, %v4830
    %v5352 = vunpack.c.l.b16 %v4286
    %v5353 = vunpack.c.h.b16 %v4286
    %v5354 = vunpack.c.l.b16 %v4287
    %v5355 = vunpack.c.h.b16 %v4287
    %v5356 = vunpack.c.l.b16 %v4288
    %v5357 = vunpack.c.h.b16 %v4288
    %v5358 = vunpack.c.l.b16 %v4289
    %v5359 = vunpack.c.h.b16 %v4289
    %v5360 = vunpack.c.l.b16 %v4290
    %v5361 = vunpack.c.h.b16 %v4290
    %v5362 = vunpack.c.l.b16 %v4291
    %v5363 = vunpack.c.h.b16 %v4291
    %v5364 = vunpack.c.l.b16 %v4292
    %v5365 = vunpack.c.h.b16 %v4292
    %v5366 = vunpack.c.l.b16 %v4293
    %v5367 = vunpack.c.h.b16 %v4293
    %v5368 = vunpack.c.l.b16 %v4294
    %v5369 = vunpack.c.h.b16 %v4294
    %v5370 = vunpack.c.l.b16 %v4295
    %v5371 = vunpack.c.h.b16 %v4295
    %v5372 = vunpack.c.l.b16 %v4296
    %v5373 = vunpack.c.h.b16 %v4296
    %v5374 = vunpack.c.l.b16 %v4297
    %v5375 = vunpack.c.h.b16 %v4297
    %v5376 = vunpack.c.l.b16 %v4298
    %v5377 = vunpack.c.h.b16 %v4298
    %v5378 = vunpack.c.l.b16 %v4299
    %v5379 = vunpack.c.h.b16 %v4299
    %v5380 = vunpack.c.l.b16 %v4300
    %v5381 = vunpack.c.h.b16 %v4300
    %v5382 = vunpack.c.l.b16 %v4301
    %v5383 = vunpack.c.h.b16 %v4301
    %v5384 = vunpack.c.l.b16 %v4302
    %v5385 = vunpack.c.h.b16 %v4302
    %v5386 = vunpack.c.l.b16 %v4303
    %v5387 = vunpack.c.h.b16 %v4303
    %v5388 = vunpack.c.l.b16 %v4304
    %v5389 = vunpack.c.h.b16 %v4304
    %v5390 = vunpack.c.l.b16 %v4305
    %v5391 = vunpack.c.h.b16 %v4305
    %v5392 = vunpack.c.l.b16 %v4306
    %v5393 = vunpack.c.h.b16 %v4306
    %v5394 = vunpack.c.l.b16 %v4307
    %v5395 = vunpack.c.h.b16 %v4307
    %v5396 = vunpack.c.l.b16 %v4308
    %v5397 = vunpack.c.h.b16 %v4308
    %v5398 = vunpack.c.l.b16 %v4309
    %v5399 = vunpack.c.h.b16 %v4309
    %v5400 = vunpack.c.l.b16 %v4310
    %v5401 = vunpack.c.h.b16 %v4310
    %v5402 = vunpack.c.l.b16 %v4311
    %v5403 = vunpack.c.h.b16 %v4311
    %v5404 = vunpack.c.l.b16 %v4312
    %v5405 = vunpack.c.h.b16 %v4312
    %v5406 = vunpack.c.l.b16 %v4313
    %v5407 = vunpack.c.h.b16 %v4313
    %v5408 = vunpack.c.l.b16 %v4314
    %v5409 = vunpack.c.h.b16 %v4314
    %v5410 = vunpack.c.l.b16 %v4315
    %v5411 = vunpack.c.h.b16 %v4315
    %v5412 = vunpack.c.l.b16 %v4316
    %v5413 = vunpack.c.h.b16 %v4316
    %v5414 = vunpack.c.l.b16 %v4317
    %v5415 = vunpack.c.h.b16 %v4317
    %v5416 = vunpack.c.l.b16 %v4318
    %v5417 = vunpack.c.h.b16 %v4318
    %v5418 = vunpack.c.l.b16 %v4319
    %v5419 = vunpack.c.h.b16 %v4319
    %v5420 = vunpack.c.l.b16 %v4320
    %v5421 = vunpack.c.h.b16 %v4320
    %v5422 = vunpack.c.l.b16 %v4321
    %v5423 = vunpack.c.h.b16 %v4321
    %v5424 = vunpack.c.l.b16 %v4322
    %v5425 = vunpack.c.h.b16 %v4322
    %v5426 = vunpack.c.l.b16 %v4323
    %v5427 = vunpack.c.h.b16 %v4323
    %v5428 = vunpack.c.l.b16 %v4324
    %v5429 = vunpack.c.h.b16 %v4324
    %v5430 = vunpack.c.l.b16 %v4325
    %v5431 = vunpack.c.h.b16 %v4325
    %v5432 = vunpack.c.l.b16 %v4326
    %v5433 = vunpack.c.h.b16 %v4326
    %v5434 = vunpack.c.l.b16 %v4327
    %v5435 = vunpack.c.h.b16 %v4327
    %v5436 = vunpack.c.l.b16 %v4328
    %v5437 = vunpack.c.h.b16 %v4328
    %v5438 = vunpack.c.l.b16 %v4329
    %v5439 = vunpack.c.h.b16 %v4329
    %v5440 = vunpack.c.l.b16 %v4330
    %v5441 = vunpack.c.h.b16 %v4330
    %v5442 = vunpack.c.l.b16 %v4331
    %v5443 = vunpack.c.h.b16 %v4331
    %v5444 = vunpack.c.l.b16 %v4332
    %v5445 = vunpack.c.h.b16 %v4332
    %v5446 = vunpack.c.l.b16 %v4333
    %v5447 = vunpack.c.h.b16 %v4333
    %v5448 = vunpack.c.l.b16 %v4334
    %v5449 = vunpack.c.h.b16 %v4334
    %v5450 = vunpack.c.l.b16 %v4335
    %v5451 = vunpack.c.h.b16 %v4335
    %v5452 = vunpack.c.l.b16 %v4336
    %v5453 = vunpack.c.h.b16 %v4336
    %v5454 = vunpack.c.l.b16 %v4337
    %v5455 = vunpack.c.h.b16 %v4337
    %v5456 = vunpack.c.l.b16 %v4338
    %v5457 = vunpack.c.h.b16 %v4338
    %v5458 = vunpack.c.l.b16 %v4339
    %v5459 = vunpack.c.h.b16 %v4339
    %v5460 = vunpack.c.l.b16 %v4340
    %v5461 = vunpack.c.h.b16 %v4340
    %v5462 = vunpack.c.l.b16 %v4341
    %v5463 = vunpack.c.h.b16 %v4341
    %v5464 = vunpack.c.l.b16 %v4342
    %v5465 = vunpack.c.h.b16 %v4342
    %v5466 = vunpack.c.l.b16 %v4343
    %v5467 = vunpack.c.h.b16 %v4343
    %v5468 = vunpack.c.l.b16 %v4344
    %v5469 = vunpack.c.h.b16 %v4344
    %v5470 = vunpack.c.l.b16 %v4345
    %v5471 = vunpack.c.h.b16 %v4345
    %v5472 = vunpack.c.l.b16 %v4346
    %v5473 = vunpack.c.h.b16 %v4346
    %v5474 = vunpack.c.l.b16 %v4347
    %v5475 = vunpack.c.h.b16 %v4347
    %v5476 = vunpack.c.l.b16 %v4348
    %v5477 = vunpack.c.h.b16 %v4348
    %v5478 = vunpack.c.l.b16 %v4349
    %v5479 = vunpack.c.h.b16 %v4349
    %v5480 = vunpack.c.l.b16 %v4350
    %v5481 = vunpack.c.h.b16 %v4350
    %v5482 = vunpack.c.l.b16 %v4351
    %v5483 = vunpack.c.h.b16 %v4351
    %v5484 = vunpack.c.l.b16 %v4352
    %v5485 = vunpack.c.h.b16 %v4352
    %v5486 = vunpack.c.l.b16 %v4353
    %v5487 = vunpack.c.h.b16 %v4353
    %v5488 = vunpack.c.l.b16 %v4354
    %v5489 = vunpack.c.h.b16 %v4354
    %v5490 = vunpack.c.l.b16 %v4355
    %v5491 = vunpack.c.h.b16 %v4355
    %v5492 = vunpack.c.l.b16 %v4356
    %v5493 = vunpack.c.h.b16 %v4356
    %v5494 = vunpack.c.l.b16 %v4357
    %v5495 = vunpack.c.h.b16 %v4357
    %v5496 = vunpack.c.l.b16 %v4358
    %v5497 = vunpack.c.h.b16 %v4358
    %v5498 = vunpack.c.l.b16 %v4359
    %v5499 = vunpack.c.h.b16 %v4359
    %v5500 = vunpack.c.l.b16 %v4360
    %v5501 = vunpack.c.h.b16 %v4360
    %v5502 = vunpack.c.l.b16 %v4361
    %v5503 = vunpack.c.h.b16 %v4361
    %v5504 = vunpack.c.l.b16 %v4362
    %v5505 = vunpack.c.h.b16 %v4362
    %v5506 = vunpack.c.l.b16 %v4363
    %v5507 = vunpack.c.h.b16 %v4363
    %v5508 = vunpack.c.l.b16 %v4364
    %v5509 = vunpack.c.h.b16 %v4364
    %v5510 = vunpack.c.l.b16 %v4365
    %v5511 = vunpack.c.h.b16 %v4365
    %v5512 = vunpack.c.l.b16 %v4366
    %v5513 = vunpack.c.h.b16 %v4366
    %v5514 = vunpack.c.l.b16 %v4367
    %v5515 = vunpack.c.h.b16 %v4367
    %v5516 = vunpack.c.l.b16 %v4368
    %v5517 = vunpack.c.h.b16 %v4368
    %v5518 = vunpack.c.l.b16 %v4369
    %v5519 = vunpack.c.h.b16 %v4369
    %v5520 = vunpack.c.l.b16 %v4370
    %v5521 = vunpack.c.h.b16 %v4370
    %v5522 = vunpack.c.l.b16 %v4371
    %v5523 = vunpack.c.h.b16 %v4371
    %v5524 = vunpack.c.l.b16 %v4372
    %v5525 = vunpack.c.h.b16 %v4372
    %v5526 = vunpack.c.l.b16 %v4373
    %v5527 = vunpack.c.h.b16 %v4373
    %v5528 = vunpack.c.l.b16 %v4374
    %v5529 = vunpack.c.h.b16 %v4374
    %v5530 = vunpack.c.l.b16 %v4375
    %v5531 = vunpack.c.h.b16 %v4375
    %v5532 = vunpack.c.l.b16 %v4376
    %v5533 = vunpack.c.h.b16 %v4376
    %v5534 = vunpack.c.l.b16 %v4377
    %v5535 = vunpack.c.h.b16 %v4377
    %v5536 = vunpack.c.l.b16 %v4378
    %v5537 = vunpack.c.h.b16 %v4378
    %v5538 = vunpack.c.l.b16 %v4379
    %v5539 = vunpack.c.h.b16 %v4379
    %v5540 = vunpack.c.l.b16 %v4380
    %v5541 = vunpack.c.h.b16 %v4380
    %v5542 = vunpack.c.l.b16 %v4381
    %v5543 = vunpack.c.h.b16 %v4381
    %v5544 = vunpack.c.l.b16 %v4382
    %v5545 = vunpack.c.h.b16 %v4382
    %v5546 = vunpack.c.l.b16 %v4383
    %v5547 = vunpack.c.h.b16 %v4383
    %v5548 = vunpack.c.l.b16 %v4384
    %v5549 = vunpack.c.h.b16 %v4384
    %v5550 = vunpack.c.l.b16 %v4385
    %v5551 = vunpack.c.h.b16 %v4385
    %v5552 = vunpack.c.l.b16 %v4386
    %v5553 = vunpack.c.h.b16 %v4386
    %v5554 = vunpack.c.l.b16 %v4387
    %v5555 = vunpack.c.h.b16 %v4387
    %v5556 = vunpack.c.l.b16 %v4388
    %v5557 = vunpack.c.h.b16 %v4388
    %v5558 = vunpack.c.l.b16 %v4389
    %v5559 = vunpack.c.h.b16 %v4389
    %v5560 = vunpack.c.l.b16 %v4390
    %v5561 = vunpack.c.h.b16 %v4390
    %v5562 = vunpack.c.l.b16 %v4391
    %v5563 = vunpack.c.h.b16 %v4391
    %v5564 = vunpack.c.l.b16 %v4392
    %v5565 = vunpack.c.h.b16 %v4392
    %v5566 = vunpack.c.l.b16 %v4393
    %v5567 = vunpack.c.h.b16 %v4393
    %v5568 = vunpack.c.l.b16 %v4394
    %v5569 = vunpack.c.h.b16 %v4394
    %v5570 = vunpack.c.l.b16 %v4395
    %v5571 = vunpack.c.h.b16 %v4395
    %v5572 = vunpack.c.l.b16 %v4396
    %v5573 = vunpack.c.h.b16 %v4396
    %v5574 = vunpack.c.l.b16 %v4397
    %v5575 = vunpack.c.h.b16 %v4397
    %v5576 = vunpack.c.l.b16 %v4398
    %v5577 = vunpack.c.h.b16 %v4398
    %v5578 = vunpack.c.l.b16 %v4399
    %v5579 = vunpack.c.h.b16 %v4399
    %v5580 = vunpack.c.l.b16 %v4400
    %v5581 = vunpack.c.h.b16 %v4400
    %v5582 = vunpack.c.l.b16 %v4401
    %v5583 = vunpack.c.h.b16 %v4401
    %v5584 = vunpack.c.l.b16 %v4402
    %v5585 = vunpack.c.h.b16 %v4402
    %v5586 = vunpack.c.l.b16 %v4403
    %v5587 = vunpack.c.h.b16 %v4403
    %v5588 = vunpack.c.l.b16 %v4404
    %v5589 = vunpack.c.h.b16 %v4404
    %v5590 = vunpack.c.l.b16 %v4405
    %v5591 = vunpack.c.h.b16 %v4405
    %v5592 = vunpack.c.l.b16 %v4406
    %v5593 = vunpack.c.h.b16 %v4406
    %v5594 = vunpack.c.l.b16 %v4407
    %v5595 = vunpack.c.h.b16 %v4407
    %v5596 = vunpack.c.l.b16 %v4408
    %v5597 = vunpack.c.h.b16 %v4408
    %v5598 = vunpack.c.l.b16 %v4409
    %v5599 = vunpack.c.h.b16 %v4409
    %v5600 = vunpack.c.l.b16 %v4410
    %v5601 = vunpack.c.h.b16 %v4410
    %v5602 = vunpack.c.l.b16 %v4411
    %v5603 = vunpack.c.h.b16 %v4411
    %v5604 = vunpack.c.l.b16 %v4412
    %v5605 = vunpack.c.h.b16 %v4412
    %v5606 = vunpack.c.l.b16 %v4413
    %v5607 = vunpack.c.h.b16 %v4413
    %v5608 = vunpack.c.l.b16 %v4414
    %v5609 = vunpack.c.h.b16 %v4414
    %v5610 = vunpack.c.l.b16 %v4415
    %v5611 = vunpack.c.h.b16 %v4415
    %v5612 = vunpack.c.l.b16 %v4416
    %v5613 = vunpack.c.h.b16 %v4416
    %v5614 = vunpack.c.l.b16 %v4417
    %v5615 = vunpack.c.h.b16 %v4417
    %v5616 = vunpack.c.l.b16 %v4418
    %v5617 = vunpack.c.h.b16 %v4418
    %v5618 = vunpack.c.l.b16 %v4419
    %v5619 = vunpack.c.h.b16 %v4419
    %v5620 = vunpack.c.l.b16 %v4420
    %v5621 = vunpack.c.h.b16 %v4420
    %v5622 = vunpack.c.l.b16 %v4421
    %v5623 = vunpack.c.h.b16 %v4421
    %v5624 = vunpack.c.l.b16 %v4422
    %v5625 = vunpack.c.h.b16 %v4422
    %v5626 = vunpack.c.l.b16 %v4423
    %v5627 = vunpack.c.h.b16 %v4423
    %v5628 = vunpack.c.l.b16 %v4424
    %v5629 = vunpack.c.h.b16 %v4424
    %v5630 = vunpack.c.l.b16 %v4425
    %v5631 = vunpack.c.h.b16 %v4425
    %v5632 = vunpack.c.l.b16 %v4426
    %v5633 = vunpack.c.h.b16 %v4426
    %v5634 = vunpack.c.l.b16 %v4427
    %v5635 = vunpack.c.h.b16 %v4427
    %v5636 = vunpack.c.l.b16 %v4428
    %v5637 = vunpack.c.h.b16 %v4428
    %v5638 = vunpack.c.l.b16 %v4429
    %v5639 = vunpack.c.h.b16 %v4429
    %v5640 = vunpack.c.l.b16 %v4430
    %v5641 = vunpack.c.h.b16 %v4430
    %v5642 = vunpack.c.l.b16 %v4431
    %v5643 = vunpack.c.h.b16 %v4431
    %v5644 = vunpack.c.l.b16 %v4432
    %v5645 = vunpack.c.h.b16 %v4432
    %v5646 = vunpack.c.l.b16 %v4433
    %v5647 = vunpack.c.h.b16 %v4433
    %v5648 = vunpack.c.l.b16 %v4434
    %v5649 = vunpack.c.h.b16 %v4434
    %v5650 = vunpack.c.l.b16 %v4435
    %v5651 = vunpack.c.h.b16 %v4435
    %v5652 = vunpack.c.l.b16 %v4436
    %v5653 = vunpack.c.h.b16 %v4436
    %v5654 = vunpack.c.l.b16 %v4437
    %v5655 = vunpack.c.h.b16 %v4437
    %v5656 = vunpack.c.l.b16 %v4438
    %v5657 = vunpack.c.h.b16 %v4438
    %v5658 = vunpack.c.l.b16 %v4439
    %v5659 = vunpack.c.h.b16 %v4439
    %v5660 = vunpack.c.l.b16 %v4440
    %v5661 = vunpack.c.h.b16 %v4440
    %v5662 = vunpack.c.l.b16 %v4441
    %v5663 = vunpack.c.h.b16 %v4441
    %v5664 = vunpack.c.l.b16 %v4442
    %v5665 = vunpack.c.h.b16 %v4442
    %v5666 = vunpack.c.l.b16 %v4443
    %v5667 = vunpack.c.h.b16 %v4443
    %v5668 = vunpack.c.l.b16 %v4444
    %v5669 = vunpack.c.h.b16 %v4444
    %v5670 = vunpack.c.l.b16 %v4445
    %v5671 = vunpack.c.h.b16 %v4445
    %v5672 = vunpack.c.l.b16 %v4446
    %v5673 = vunpack.c.h.b16 %v4446
    %v5674 = vunpack.c.l.b16 %v4447
    %v5675 = vunpack.c.h.b16 %v4447
    %v5676 = vunpack.c.l.b16 %v4448
    %v5677 = vunpack.c.h.b16 %v4448
    %v5678 = vunpack.c.l.b16 %v4449
    %v5679 = vunpack.c.h.b16 %v4449
    %v5680 = vunpack.c.l.b16 %v4450
    %v5681 = vunpack.c.h.b16 %v4450
    %v5682 = vunpack.c.l.b16 %v4451
    %v5683 = vunpack.c.h.b16 %v4451
    %v5684 = vunpack.c.l.b16 %v4452
    %v5685 = vunpack.c.h.b16 %v4452
    %v5686 = vunpack.c.l.b16 %v4453
    %v5687 = vunpack.c.h.b16 %v4453
    %v5688 = vunpack.c.l.b16 %v4454
    %v5689 = vunpack.c.h.b16 %v4454
    %v5690 = vunpack.c.l.b16 %v4455
    %v5691 = vunpack.c.h.b16 %v4455
    %v5692 = vunpack.c.l.b16 %v4456
    %v5693 = vunpack.c.h.b16 %v4456
    %v5694 = vunpack.c.l.b16 %v4457
    %v5695 = vunpack.c.h.b16 %v4457
    %v5696 = vunpack.c.l.b16 %v4458
    %v5697 = vunpack.c.h.b16 %v4458
    %v5698 = vunpack.c.l.b16 %v4459
    %v5699 = vunpack.c.h.b16 %v4459
    %v5700 = vunpack.c.l.b16 %v4460
    %v5701 = vunpack.c.h.b16 %v4460
    %v5702 = vunpack.c.l.b16 %v4461
    %v5703 = vunpack.c.h.b16 %v4461
    %v5704 = vunpack.c.l.b16 %v4462
    %v5705 = vunpack.c.h.b16 %v4462
    %v5706 = vunpack.c.l.b16 %v4463
    %v5707 = vunpack.c.h.b16 %v4463
    %v5708 = vunpack.c.l.b16 %v4464
    %v5709 = vunpack.c.h.b16 %v4464
    %v5710 = vunpack.c.l.b16 %v4465
    %v5711 = vunpack.c.h.b16 %v4465
    %v5712 = vunpack.c.l.b16 %v4466
    %v5713 = vunpack.c.h.b16 %v4466
    %v5714 = vunpack.c.l.b16 %v4467
    %v5715 = vunpack.c.h.b16 %v4467
    %v5716 = vunpack.c.l.b16 %v4468
    %v5717 = vunpack.c.h.b16 %v4468
    %v5718 = vunpack.c.l.b16 %v4469
    %v5719 = vunpack.c.h.b16 %v4469
    %v5720 = vunpack.c.l.b16 %v4470
    %v5721 = vunpack.c.h.b16 %v4470
    %v5722 = vunpack.c.l.b16 %v4471
    %v5723 = vunpack.c.h.b16 %v4471
    %v5724 = vunpack.c.l.b16 %v4472
    %v5725 = vunpack.c.h.b16 %v4472
    %v5726 = vunpack.c.l.b16 %v4473
    %v5727 = vunpack.c.h.b16 %v4473
    %v5728 = vunpack.c.l.b16 %v4474
    %v5729 = vunpack.c.h.b16 %v4474
    %v5730 = vunpack.c.l.b16 %v4475
    %v5731 = vunpack.c.h.b16 %v4475
    %v5732 = vunpack.c.l.b16 %v4476
    %v5733 = vunpack.c.h.b16 %v4476
    %v5734 = vunpack.c.l.b16 %v4477
    %v5735 = vunpack.c.h.b16 %v4477
    %v5736 = vunpack.c.l.b16 %v4478
    %v5737 = vunpack.c.h.b16 %v4478
    %v5738 = vunpack.c.l.b16 %v4479
    %v5739 = vunpack.c.h.b16 %v4479
    %v5740 = vunpack.c.l.b16 %v4480
    %v5741 = vunpack.c.h.b16 %v4480
    %v5742 = vunpack.c.l.b16 %v4481
    %v5743 = vunpack.c.h.b16 %v4481
    %v5744 = vunpack.c.l.b16 %v4482
    %v5745 = vunpack.c.h.b16 %v4482
    %v5746 = vunpack.c.l.b16 %v4483
    %v5747 = vunpack.c.h.b16 %v4483
    %v5748 = vunpack.c.l.b16 %v4484
    %v5749 = vunpack.c.h.b16 %v4484
    %v5750 = vunpack.c.l.b16 %v4485
    %v5751 = vunpack.c.h.b16 %v4485
    %v5752 = vunpack.c.l.b16 %v4486
    %v5753 = vunpack.c.h.b16 %v4486
    %v5754 = vunpack.c.l.b16 %v4487
    %v5755 = vunpack.c.h.b16 %v4487
    %v5756 = vunpack.c.l.b16 %v4488
    %v5757 = vunpack.c.h.b16 %v4488
    %v5758 = vunpack.c.l.b16 %v4489
    %v5759 = vunpack.c.h.b16 %v4489
    %v5760 = vunpack.c.l.b16 %v4490
    %v5761 = vunpack.c.h.b16 %v4490
    %v5762 = vunpack.c.l.b16 %v4491
    %v5763 = vunpack.c.h.b16 %v4491
    %v5764 = vunpack.c.l.b16 %v4492
    %v5765 = vunpack.c.h.b16 %v4492
    %v5766 = vunpack.c.l.b16 %v4493
    %v5767 = vunpack.c.h.b16 %v4493
    %v5768 = vunpack.c.l.b16 %v4494
    %v5769 = vunpack.c.h.b16 %v4494
    %v5770 = vunpack.c.l.b16 %v4495
    %v5771 = vunpack.c.h.b16 %v4495
    %v5772 = vunpack.c.l.b16 %v4496
    %v5773 = vunpack.c.h.b16 %v4496
    %v5774 = vunpack.c.l.b16 %v4497
    %v5775 = vunpack.c.h.b16 %v4497
    %v5776 = vunpack.c.l.b16 %v4498
    %v5777 = vunpack.c.h.b16 %v4498
    %v5778 = vunpack.c.l.b16 %v4499
    %v5779 = vunpack.c.h.b16 %v4499
    %v5780 = vunpack.c.l.b16 %v4500
    %v5781 = vunpack.c.h.b16 %v4500
    %v5782 = vunpack.c.l.b16 %v4501
    %v5783 = vunpack.c.h.b16 %v4501
    %v5784 = vunpack.c.l.b16 %v4502
    %v5785 = vunpack.c.h.b16 %v4502
    %v5786 = vunpack.c.l.b16 %v4503
    %v5787 = vunpack.c.h.b16 %v4503
    %v5788 = vunpack.c.l.b16 %v4504
    %v5789 = vunpack.c.h.b16 %v4504
    %v5790 = vunpack.c.l.b16 %v4505
    %v5791 = vunpack.c.h.b16 %v4505
    %v5792 = vunpack.c.l.b16 %v4506
    %v5793 = vunpack.c.h.b16 %v4506
    %v5794 = vunpack.c.l.b16 %v4507
    %v5795 = vunpack.c.h.b16 %v4507
    %v5796 = vunpack.c.l.b16 %v4508
    %v5797 = vunpack.c.h.b16 %v4508
    %v5798 = vunpack.c.l.b16 %v4509
    %v5799 = vunpack.c.h.b16 %v4509
    %v5800 = vunpack.c.l.b16 %v4510
    %v5801 = vunpack.c.h.b16 %v4510
    %v5802 = vunpack.c.l.b16 %v4511
    %v5803 = vunpack.c.h.b16 %v4511
    %v5804 = vunpack.c.l.b16 %v4512
    %v5805 = vunpack.c.h.b16 %v4512
    %v5806 = vunpack.c.l.b16 %v4513
    %v5807 = vunpack.c.h.b16 %v4513
    %v5808 = vunpack.c.l.b16 %v4514
    %v5809 = vunpack.c.h.b16 %v4514
    %v5810 = vunpack.c.l.b16 %v4515
    %v5811 = vunpack.c.h.b16 %v4515
    %v5812 = vunpack.c.l.b16 %v4516
    %v5813 = vunpack.c.h.b16 %v4516
    %v5814 = vunpack.c.l.b16 %v4517
    %v5815 = vunpack.c.h.b16 %v4517
    %v5816 = vunpack.c.l.b16 %v4518
    %v5817 = vunpack.c.h.b16 %v4518
    %v5818 = vunpack.c.l.b16 %v4519
    %v5819 = vunpack.c.h.b16 %v4519
    %v5820 = vunpack.c.l.b16 %v4520
    %v5821 = vunpack.c.h.b16 %v4520
    %v5822 = vunpack.c.l.b16 %v4521
    %v5823 = vunpack.c.h.b16 %v4521
    %v5824 = vunpack.c.l.b16 %v4522
    %v5825 = vunpack.c.h.b16 %v4522
    %v5826 = vunpack.c.l.b16 %v4523
    %v5827 = vunpack.c.h.b16 %v4523
    %v5828 = vunpack.c.l.b16 %v4524
    %v5829 = vunpack.c.h.b16 %v4524
    %v5830 = vunpack.c.l.b16 %v4525
    %v5831 = vunpack.c.h.b16 %v4525
    %v5832 = vunpack.c.l.b16 %v4526
    %v5833 = vunpack.c.h.b16 %v4526
    %v5834 = vunpack.c.l.b16 %v4527
    %v5835 = vunpack.c.h.b16 %v4527
    %v5836 = vunpack.c.l.b16 %v4528
    %v5837 = vunpack.c.h.b16 %v4528
    %v5838 = vunpack.c.l.b16 %v4529
    %v5839 = vunpack.c.h.b16 %v4529
    %v5840 = vunpack.c.l.b16 %v4530
    %v5841 = vunpack.c.h.b16 %v4530
    %v5842 = vunpack.c.l.b16 %v4531
    %v5843 = vunpack.c.h.b16 %v4531
    %v5844 = vunpack.c.l.b16 %v4532
    %v5845 = vunpack.c.h.b16 %v4532
    %v5846 = vunpack.c.l.b16 %v4533
    %v5847 = vunpack.c.h.b16 %v4533
    %v5848 = vunpack.c.l.b16 %v4534
    %v5849 = vunpack.c.h.b16 %v4534
    %v5850 = vunpack.c.l.b16 %v4535
    %v5851 = vunpack.c.h.b16 %v4535
    %v5852 = vunpack.c.l.b16 %v4536
    %v5853 = vunpack.c.h.b16 %v4536
    %v5854 = vunpack.c.l.b16 %v4537
    %v5855 = vunpack.c.h.b16 %v4537
    %v5856 = vunpack.c.l.b16 %v4538
    %v5857 = vunpack.c.h.b16 %v4538
    %v5858 = vunpack.c.l.b16 %v4539
    %v5859 = vunpack.c.h.b16 %v4539
    %v5860 = vunpack.c.l.b16 %v4540
    %v5861 = vunpack.c.h.b16 %v4540
    %v5862 = vunpack.c.l.b16 %v4541
    %v5863 = vunpack.c.h.b16 %v4541
    %v5864 = vunpack.c.l.b16 %v4542
    %v5865 = vunpack.c.h.b16 %v4542
    %v5866 = vunpack.c.l.b16 %v4543
    %v5867 = vunpack.c.h.b16 %v4543
    %v5868 = vunpack.c.l.b16 %v4544
    %v5869 = vunpack.c.h.b16 %v4544
    %v5870 = vunpack.c.l.b16 %v4545
    %v5871 = vunpack.c.h.b16 %v4545
    %v5872 = vunpack.c.l.b16 %v4546
    %v5873 = vunpack.c.h.b16 %v4546
    %v5874 = vunpack.c.l.b16 %v4547
    %v5875 = vunpack.c.h.b16 %v4547
    %v5876 = vunpack.c.l.b16 %v4548
    %v5877 = vunpack.c.h.b16 %v4548
    %v5878 = vunpack.c.l.b16 %v4549
    %v5879 = vunpack.c.h.b16 %v4549
    %v5880 = vunpack.c.l.b16 %v4550
    %v5881 = vunpack.c.h.b16 %v4550
    %v5882 = vunpack.c.l.b16 %v4551
    %v5883 = vunpack.c.h.b16 %v4551
    %v5884 = vunpack.c.l.b16 %v4552
    %v5885 = vunpack.c.h.b16 %v4552
    %v5886 = vunpack.c.l.b16 %v4553
    %v5887 = vunpack.c.h.b16 %v4553
    %v5888 = vunpack.c.l.b16 %v4554
    %v5889 = vunpack.c.h.b16 %v4554
    %v5890 = vunpack.c.l.b16 %v4555
    %v5891 = vunpack.c.h.b16 %v4555
    %v5892 = vunpack.c.l.b16 %v4556
    %v5893 = vunpack.c.h.b16 %v4556
    %v5894 = vunpack.c.l.b16 %v4557
    %v5895 = vunpack.c.h.b16 %v4557
    %v5896 = vunpack.c.l.b16 %v4558
    %v5897 = vunpack.c.h.b16 %v4558
    %v5898 = vunpack.c.l.b16 %v4559
    %v5899 = vunpack.c.h.b16 %v4559
    %v5900 = vunpack.c.l.b16 %v4560
    %v5901 = vunpack.c.h.b16 %v4560
    %v5902 = vunpack.c.l.b16 %v4561
    %v5903 = vunpack.c.h.b16 %v4561
    %v5904 = vunpack.c.l.b16 %v4562
    %v5905 = vunpack.c.h.b16 %v4562
    %v5906 = vunpack.c.l.b16 %v4563
    %v5907 = vunpack.c.h.b16 %v4563
    %v5908 = vunpack.c.l.b16 %v4564
    %v5909 = vunpack.c.h.b16 %v4564
    %v5910 = vunpack.c.l.b16 %v4565
    %v5911 = vunpack.c.h.b16 %v4565
    %v5912 = vunpack.c.l.b16 %v4566
    %v5913 = vunpack.c.h.b16 %v4566
    %v5914 = vunpack.c.l.b16 %v4567
    %v5915 = vunpack.c.h.b16 %v4567
    %v5916 = vunpack.c.l.b16 %v4568
    %v5917 = vunpack.c.h.b16 %v4568
    %v5918 = vunpack.c.l.b16 %v4569
    %v5919 = vunpack.c.h.b16 %v4569
    %v5920 = vunpack.c.l.b16 %v4570
    %v5921 = vunpack.c.h.b16 %v4570
    %v5922 = vunpack.c.l.b16 %v4571
    %v5923 = vunpack.c.h.b16 %v4571
    %v5924 = vunpack.c.l.b16 %v4572
    %v5925 = vunpack.c.h.b16 %v4572
    %v5926 = vunpack.c.l.b16 %v4573
    %v5927 = vunpack.c.h.b16 %v4573
    %v5928 = vunpack.c.l.b16 %v4574
    %v5929 = vunpack.c.h.b16 %v4574
    %v5930 = vunpack.c.l.b16 %v4575
    %v5931 = vunpack.c.h.b16 %v4575
    %v5932 = vunpack.c.l.b16 %v4576
    %v5933 = vunpack.c.h.b16 %v4576
    %v5934 = vunpack.c.l.b16 %v4577
    %v5935 = vunpack.c.h.b16 %v4577
    %v5936 = vunpack.c.l.b16 %v4578
    %v5937 = vunpack.c.h.b16 %v4578
    %v5938 = vunpack.c.l.b16 %v4579
    %v5939 = vunpack.c.h.b16 %v4579
    %v5940 = vunpack.c.l.b16 %v4580
    %v5941 = vunpack.c.h.b16 %v4580
    %v5942 = vunpack.c.l.b16 %v4581
    %v5943 = vunpack.c.h.b16 %v4581
    %v5944 = vunpack.c.l.b16 %v4582
    %v5945 = vunpack.c.h.b16 %v4582
    %v5946 = vunpack.c.l.b16 %v4583
    %v5947 = vunpack.c.h.b16 %v4583
    %v5948 = vunpack.c.l.b16 %v4584
    %v5949 = vunpack.c.h.b16 %v4584
    %v5950 = vunpack.c.l.b16 %v4585
    %v5951 = vunpack.c.h.b16 %v4585
    %v5952 = vunpack.c.l.b16 %v4586
    %v5953 = vunpack.c.h.b16 %v4586
    %v5954 = vunpack.c.l.b16 %v4587
    %v5955 = vunpack.c.h.b16 %v4587
    %v5956 = vunpack.c.l.b16 %v4588
    %v5957 = vunpack.c.h.b16 %v4588
    %v5958 = vunpack.c.l.b16 %v4589
    %v5959 = vunpack.c.h.b16 %v4589
    %v5960 = vunpack.c.l.b16 %v4590
    %v5961 = vunpack.c.h.b16 %v4590
    %v5962 = vunpack.c.l.b16 %v4591
    %v5963 = vunpack.c.h.b16 %v4591
    %v5964 = vunpack.c.l.b16 %v4592
    %v5965 = vunpack.c.h.b16 %v4592
    %v5966 = vunpack.c.l.b16 %v4593
    %v5967 = vunpack.c.h.b16 %v4593
    %v5968 = vunpack.c.l.b16 %v4594
    %v5969 = vunpack.c.h.b16 %v4594
    %v5970 = vunpack.c.l.b16 %v4595
    %v5971 = vunpack.c.h.b16 %v4595
    %v5972 = vunpack.c.l.b16 %v4596
    %v5973 = vunpack.c.h.b16 %v4596
    %v5974 = vunpack.c.l.b16 %v4597
    %v5975 = vunpack.c.h.b16 %v4597
    %v5976 = vunpack.c.l.b16 %v4598
    %v5977 = vunpack.c.h.b16 %v4598
    %v5978 = vunpack.c.l.b16 %v4599
    %v5979 = vunpack.c.h.b16 %v4599
    %v5980 = vunpack.c.l.b16 %v4600
    %v5981 = vunpack.c.h.b16 %v4600
    %v5982 = vunpack.c.l.b16 %v4601
    %v5983 = vunpack.c.h.b16 %v4601
    %v5984 = vunpack.c.l.b16 %v4602
    %v5985 = vunpack.c.h.b16 %v4602
    %v5986 = vunpack.c.l.b16 %v4603
    %v5987 = vunpack.c.h.b16 %v4603
    %v5988 = vunpack.c.l.b16 %v4604
    %v5989 = vunpack.c.h.b16 %v4604
    %v5990 = vunpack.c.l.b16 %v4605
    %v5991 = vunpack.c.h.b16 %v4605
    %v5992 = vunpack.c.l.b16 %v4606
    %v5993 = vunpack.c.h.b16 %v4606
    %v5994 = vunpack.c.l.b16 %v4607
    %v5995 = vunpack.c.h.b16 %v4607
    %v5996 = vunpack.c.l.b16 %v4608
    %v5997 = vunpack.c.h.b16 %v4608
    %v5998 = vunpack.c.l.b16 %v4609
    %v5999 = vunpack.c.h.b16 %v4609
    %v6000 = vunpack.c.l.b16 %v4610
    %v6001 = vunpack.c.h.b16 %v4610
    %v6002 = vunpack.c.l.b16 %v4611
    %v6003 = vunpack.c.h.b16 %v4611
    %v6004 = vunpack.c.l.b16 %v4612
    %v6005 = vunpack.c.h.b16 %v4612
    %v6006 = vunpack.c.l.b16 %v4613
    %v6007 = vunpack.c.h.b16 %v4613
    %v6008 = vunpack.c.l.b16 %v4614
    %v6009 = vunpack.c.h.b16 %v4614
    %v6010 = vunpack.c.l.b16 %v4615
    %v6011 = vunpack.c.h.b16 %v4615
    %v6012 = vunpack.c.l.b16 %v4616
    %v6013 = vunpack.c.h.b16 %v4616
    %v6014 = vunpack.c.l.b16 %v4617
    %v6015 = vunpack.c.h.b16 %v4617
    %v6016 = vunpack.c.l.b16 %v4618
    %v6017 = vunpack.c.h.b16 %v4618
    %v6018 = vunpack.c.l.b16 %v4619
    %v6019 = vunpack.c.h.b16 %v4619
    %v6020 = vunpack.c.l.b16 %v4620
    %v6021 = vunpack.c.h.b16 %v4620
    %v6022 = vunpack.c.l.b16 %v4621
    %v6023 = vunpack.c.h.b16 %v4621
    %v6024 = vunpack.c.l.b16 %v4622
    %v6025 = vunpack.c.h.b16 %v4622
    %v6026 = vunpack.c.l.b16 %v4623
    %v6027 = vunpack.c.h.b16 %v4623
    %v6028 = vunpack.c.l.b16 %v4624
    %v6029 = vunpack.c.h.b16 %v4624
    %v6030 = vunpack.c.l.b16 %v4625
    %v6031 = vunpack.c.h.b16 %v4625
    %v6032 = vunpack.c.l.b16 %v4626
    %v6033 = vunpack.c.h.b16 %v4626
    %v6034 = vunpack.c.l.b16 %v4627
    %v6035 = vunpack.c.h.b16 %v4627
    %v6036 = vunpack.c.l.b16 %v4628
    %v6037 = vunpack.c.h.b16 %v4628
    %v6038 = vunpack.c.l.b16 %v4629
    %v6039 = vunpack.c.h.b16 %v4629
    %v6040 = vunpack.c.l.b16 %v4630
    %v6041 = vunpack.c.h.b16 %v4630
    %v6042 = vunpack.c.l.b16 %v4631
    %v6043 = vunpack.c.h.b16 %v4631
    %v6044 = vunpack.c.l.b16 %v4632
    %v6045 = vunpack.c.h.b16 %v4632
    %v6046 = vunpack.c.l.b16 %v4633
    %v6047 = vunpack.c.h.b16 %v4633
    %v6048 = vunpack.c.l.b16 %v4634
    %v6049 = vunpack.c.h.b16 %v4634
    %v6050 = vunpack.c.l.b16 %v4635
    %v6051 = vunpack.c.h.b16 %v4635
    %v6052 = vunpack.c.l.b16 %v4636
    %v6053 = vunpack.c.h.b16 %v4636
    %v6054 = vunpack.c.l.b16 %v4637
    %v6055 = vunpack.c.h.b16 %v4637
    %v6056 = vunpack.c.l.b16 %v4638
    %v6057 = vunpack.c.h.b16 %v4638
    %v6058 = vunpack.c.l.b16 %v4639
    %v6059 = vunpack.c.h.b16 %v4639
    %v6060 = vunpack.c.l.b16 %v4640
    %v6061 = vunpack.c.h.b16 %v4640
    %v6062 = vunpack.c.l.b16 %v4641
    %v6063 = vunpack.c.h.b16 %v4641
    %v6064 = vunpack.c.l.b16 %v4642
    %v6065 = vunpack.c.h.b16 %v4642
    %v6066 = vunpack.c.l.b16 %v4643
    %v6067 = vunpack.c.h.b16 %v4643
    %v6068 = vunpack.c.l.b16 %v4644
    %v6069 = vunpack.c.h.b16 %v4644
    %v6070 = vunpack.c.l.b16 %v4645
    %v6071 = vunpack.c.h.b16 %v4645
    %v6072 = vunpack.c.l.b16 %v4646
    %v6073 = vunpack.c.h.b16 %v4646
    %v6074 = vunpack.c.l.b16 %v4647
    %v6075 = vunpack.c.h.b16 %v4647
    %v6076 = vunpack.c.l.b16 %v4648
    %v6077 = vunpack.c.h.b16 %v4648
    %v6078 = vunpack.c.l.b16 %v4649
    %v6079 = vunpack.c.h.b16 %v4649
    %v6080 = vunpack.c.l.b16 %v4650
    %v6081 = vunpack.c.h.b16 %v4650
    %v6082 = vunpack.c.l.b16 %v4651
    %v6083 = vunpack.c.h.b16 %v4651
    %v6084 = vunpack.c.l.b16 %v4652
    %v6085 = vunpack.c.h.b16 %v4652
    %v6086 = vunpack.c.l.b16 %v4653
    %v6087 = vunpack.c.h.b16 %v4653
    %v6088 = vunpack.c.l.b16 %v4654
    %v6089 = vunpack.c.h.b16 %v4654
    %v6090 = vunpack.c.l.b16 %v4655
    %v6091 = vunpack.c.h.b16 %v4655
    %v6092 = vunpack.c.l.b16 %v4656
    %v6093 = vunpack.c.h.b16 %v4656
    %v6094 = vunpack.c.l.b16 %v4657
    %v6095 = vunpack.c.h.b16 %v4657
    %v6096 = vunpack.c.l.b16 %v4658
    %v6097 = vunpack.c.h.b16 %v4658
    %v6098 = vunpack.c.l.b16 %v4659
    %v6099 = vunpack.c.h.b16 %v4659
    %v6100 = vunpack.c.l.b16 %v4660
    %v6101 = vunpack.c.h.b16 %v4660
    %v6102 = vunpack.c.l.b16 %v4661
    %v6103 = vunpack.c.h.b16 %v4661
    %v6104 = vunpack.c.l.b16 %v4662
    %v6105 = vunpack.c.h.b16 %v4662
    %v6106 = vunpack.c.l.b16 %v4663
    %v6107 = vunpack.c.h.b16 %v4663
    %v6108 = vunpack.c.l.b16 %v4664
    %v6109 = vunpack.c.h.b16 %v4664
    %v6110 = vunpack.c.l.b16 %v4665
    %v6111 = vunpack.c.h.b16 %v4665
    %v6112 = vunpack.c.l.b16 %v4666
    %v6113 = vunpack.c.h.b16 %v4666
    %v6114 = vunpack.c.l.b16 %v4667
    %v6115 = vunpack.c.h.b16 %v4667
    %v6116 = vunpack.c.l.b16 %v4668
    %v6117 = vunpack.c.h.b16 %v4668
    %v6118 = vunpack.c.l.b16 %v4669
    %v6119 = vunpack.c.h.b16 %v4669
    %v6120 = vunpack.c.l.b16 %v4670
    %v6121 = vunpack.c.h.b16 %v4670
    %v6122 = vunpack.c.l.b16 %v4671
    %v6123 = vunpack.c.h.b16 %v4671
    %v6124 = vunpack.c.l.b16 %v4672
    %v6125 = vunpack.c.h.b16 %v4672
    %v6126 = vunpack.c.l.b16 %v4673
    %v6127 = vunpack.c.h.b16 %v4673
    %v6128 = vunpack.c.l.b16 %v4674
    %v6129 = vunpack.c.h.b16 %v4674
    %v6130 = vunpack.c.l.b16 %v4675
    %v6131 = vunpack.c.h.b16 %v4675
    %v6132 = vunpack.c.l.b16 %v4676
    %v6133 = vunpack.c.h.b16 %v4676
    %v6134 = vunpack.c.l.b16 %v4677
    %v6135 = vunpack.c.h.b16 %v4677
    %v6136 = vunpack.c.l.b16 %v4678
    %v6137 = vunpack.c.h.b16 %v4678
    %v6138 = vunpack.c.l.b16 %v4679
    %v6139 = vunpack.c.h.b16 %v4679
    %v6140 = vunpack.c.l.b16 %v4680
    %v6141 = vunpack.c.h.b16 %v4680
    %v6142 = vunpack.c.l.b16 %v4681
    %v6143 = vunpack.c.h.b16 %v4681
    %v6144 = vunpack.c.l.b16 %v4682
    %v6145 = vunpack.c.h.b16 %v4682
    %v6146 = vunpack.c.l.b16 %v4683
    %v6147 = vunpack.c.h.b16 %v4683
    %v6148 = vunpack.c.l.b16 %v4684
    %v6149 = vunpack.c.h.b16 %v4684
    %v6150 = vunpack.c.l.b16 %v4685
    %v6151 = vunpack.c.h.b16 %v4685
    %v6152 = vunpack.c.l.b16 %v4686
    %v6153 = vunpack.c.h.b16 %v4686
    %v6154 = vunpack.c.l.b16 %v4687
    %v6155 = vunpack.c.h.b16 %v4687
    %v6156 = vunpack.c.l.b16 %v4688
    %v6157 = vunpack.c.h.b16 %v4688
    %v6158 = vunpack.c.l.b16 %v4689
    %v6159 = vunpack.c.h.b16 %v4689
    %v6160 = vunpack.c.l.b16 %v4690
    %v6161 = vunpack.c.h.b16 %v4690
    %v6162 = vunpack.c.l.b16 %v4691
    %v6163 = vunpack.c.h.b16 %v4691
    %v6164 = vunpack.c.l.b16 %v4692
    %v6165 = vunpack.c.h.b16 %v4692
    %v6166 = vunpack.c.l.b16 %v4693
    %v6167 = vunpack.c.h.b16 %v4693
    %v6168 = vunpack.c.l.b16 %v4694
    %v6169 = vunpack.c.h.b16 %v4694
    %v6170 = vunpack.c.l.b16 %v4695
    %v6171 = vunpack.c.h.b16 %v4695
    %v6172 = vunpack.c.l.b16 %v4696
    %v6173 = vunpack.c.h.b16 %v4696
    %v6174 = vunpack.c.l.b16 %v4697
    %v6175 = vunpack.c.h.b16 %v4697
    %v6176 = vunpack.c.l.b16 %v4698
    %v6177 = vunpack.c.h.b16 %v4698
    %v6178 = vunpack.c.l.b16 %v4699
    %v6179 = vunpack.c.h.b16 %v4699
    %v6180 = vunpack.c.l.b16 %v4700
    %v6181 = vunpack.c.h.b16 %v4700
    %v6182 = vunpack.c.l.b16 %v4701
    %v6183 = vunpack.c.h.b16 %v4701
    %v6184 = vunpack.c.l.b16 %v4702
    %v6185 = vunpack.c.h.b16 %v4702
    %v6186 = vunpack.c.l.b16 %v4703
    %v6187 = vunpack.c.h.b16 %v4703
    %v6188 = vunpack.c.l.b16 %v4704
    %v6189 = vunpack.c.h.b16 %v4704
    %v6190 = vunpack.c.l.b16 %v4705
    %v6191 = vunpack.c.h.b16 %v4705
    %v6192 = vunpack.c.l.b16 %v4706
    %v6193 = vunpack.c.h.b16 %v4706
    %v6194 = vunpack.c.l.b16 %v4707
    %v6195 = vunpack.c.h.b16 %v4707
    %v6196 = vunpack.c.l.b16 %v4708
    %v6197 = vunpack.c.h.b16 %v4708
    %v6198 = vunpack.c.l.b16 %v4709
    %v6199 = vunpack.c.h.b16 %v4709
    %v6200 = vunpack.c.l.b16 %v4710
    %v6201 = vunpack.c.h.b16 %v4710
    %v6202 = vunpack.c.l.b16 %v4711
    %v6203 = vunpack.c.h.b16 %v4711
    %v6204 = vunpack.c.l.b16 %v4712
    %v6205 = vunpack.c.h.b16 %v4712
    %v6206 = vunpack.c.l.b16 %v4713
    %v6207 = vunpack.c.h.b16 %v4713
    %v6208 = vunpack.c.l.b16 %v4714
    %v6209 = vunpack.c.h.b16 %v4714
    %v6210 = vunpack.c.l.b16 %v4715
    %v6211 = vunpack.c.h.b16 %v4715
    %v6212 = vunpack.c.l.b16 %v4716
    %v6213 = vunpack.c.h.b16 %v4716
    %v6214 = vunpack.c.l.b16 %v4717
    %v6215 = vunpack.c.h.b16 %v4717
    %v6216 = vunpack.c.l.b16 %v4718
    %v6217 = vunpack.c.h.b16 %v4718
    %v6218 = vunpack.c.l.b16 %v4719
    %v6219 = vunpack.c.h.b16 %v4719
    %v6220 = vunpack.c.l.b16 %v4720
    %v6221 = vunpack.c.h.b16 %v4720
    %v6222 = vunpack.c.l.b16 %v4721
    %v6223 = vunpack.c.h.b16 %v4721
    %v6224 = vunpack.c.l.b16 %v4722
    %v6225 = vunpack.c.h.b16 %v4722
    %v6226 = vunpack.c.l.b16 %v4723
    %v6227 = vunpack.c.h.b16 %v4723
    %v6228 = vunpack.c.l.b16 %v4724
    %v6229 = vunpack.c.h.b16 %v4724
    %v6230 = vunpack.c.l.b16 %v4725
    %v6231 = vunpack.c.h.b16 %v4725
    %v6232 = vunpack.c.l.b16 %v4726
    %v6233 = vunpack.c.h.b16 %v4726
    %v6234 = vunpack.c.l.b16 %v4727
    %v6235 = vunpack.c.h.b16 %v4727
    %v6236 = vunpack.c.l.b16 %v4728
    %v6237 = vunpack.c.h.b16 %v4728
    %v6238 = vunpack.c.l.b16 %v4729
    %v6239 = vunpack.c.h.b16 %v4729
    %v6240 = vunpack.c.l.b16 %v4730
    %v6241 = vunpack.c.h.b16 %v4730
    %v6242 = vunpack.c.l.b16 %v4731
    %v6243 = vunpack.c.h.b16 %v4731
    %v6244 = vunpack.c.l.b16 %v4732
    %v6245 = vunpack.c.h.b16 %v4732
    %v6246 = vunpack.c.l.b16 %v4733
    %v6247 = vunpack.c.h.b16 %v4733
    %v6248 = vunpack.c.l.b16 %v4734
    %v6249 = vunpack.c.h.b16 %v4734
    %v6250 = vunpack.c.l.b16 %v4735
    %v6251 = vunpack.c.h.b16 %v4735
    %v6252 = vunpack.c.l.b16 %v4736
    %v6253 = vunpack.c.h.b16 %v4736
    %v6254 = vunpack.c.l.b16 %v4737
    %v6255 = vunpack.c.h.b16 %v4737
    %v6256 = vunpack.c.l.b16 %v4738
    %v6257 = vunpack.c.h.b16 %v4738
    %v6258 = vunpack.c.l.b16 %v4739
    %v6259 = vunpack.c.h.b16 %v4739
    %v6260 = vunpack.c.l.b16 %v4740
    %v6261 = vunpack.c.h.b16 %v4740
    %v6262 = vunpack.c.l.b16 %v4741
    %v6263 = vunpack.c.h.b16 %v4741
    %v6264 = vunpack.c.l.b16 %v4742
    %v6265 = vunpack.c.h.b16 %v4742
    %v6266 = vunpack.c.l.b16 %v4743
    %v6267 = vunpack.c.h.b16 %v4743
    %v6268 = vunpack.c.l.b16 %v4744
    %v6269 = vunpack.c.h.b16 %v4744
    %v6270 = vunpack.c.l.b16 %v4745
    %v6271 = vunpack.c.h.b16 %v4745
    %v6272 = vunpack.c.l.b16 %v4746
    %v6273 = vunpack.c.h.b16 %v4746
    %v6274 = vunpack.c.l.b16 %v4747
    %v6275 = vunpack.c.h.b16 %v4747
    %v6276 = vunpack.c.l.b16 %v4748
    %v6277 = vunpack.c.h.b16 %v4748
    %v6278 = vunpack.c.l.b16 %v4749
    %v6279 = vunpack.c.h.b16 %v4749
    %v6280 = vunpack.c.l.b16 %v4750
    %v6281 = vunpack.c.h.b16 %v4750
    %v6282 = vunpack.c.l.b16 %v4751
    %v6283 = vunpack.c.h.b16 %v4751
    %v6284 = vunpack.c.l.b16 %v4752
    %v6285 = vunpack.c.h.b16 %v4752
    %v6286 = vunpack.c.l.b16 %v4753
    %v6287 = vunpack.c.h.b16 %v4753
    %v6288 = vunpack.c.l.b16 %v4754
    %v6289 = vunpack.c.h.b16 %v4754
    %v6290 = vunpack.c.l.b16 %v4755
    %v6291 = vunpack.c.h.b16 %v4755
    %v6292 = vunpack.c.l.b16 %v4756
    %v6293 = vunpack.c.h.b16 %v4756
    %v6294 = vunpack.c.l.b16 %v4757
    %v6295 = vunpack.c.h.b16 %v4757
    %v6296 = vunpack.c.l.b16 %v4758
    %v6297 = vunpack.c.h.b16 %v4758
    %v6298 = vunpack.c.l.b16 %v4759
    %v6299 = vunpack.c.h.b16 %v4759
    %v6300 = vunpack.c.l.b16 %v4760
    %v6301 = vunpack.c.h.b16 %v4760
    %v6302 = vunpack.c.l.b16 %v4761
    %v6303 = vunpack.c.h.b16 %v4761
    %v6304 = vunpack.c.l.b16 %v4762
    %v6305 = vunpack.c.h.b16 %v4762
    %v6306 = vunpack.c.l.b16 %v4763
    %v6307 = vunpack.c.h.b16 %v4763
    %v6308 = vunpack.c.l.b16 %v4764
    %v6309 = vunpack.c.h.b16 %v4764
    %v6310 = vunpack.c.l.b16 %v4765
    %v6311 = vunpack.c.h.b16 %v4765
    %v6312 = vunpack.c.l.b16 %v4766
    %v6313 = vunpack.c.h.b16 %v4766
    %v6314 = vunpack.c.l.b16 %v4767
    %v6315 = vunpack.c.h.b16 %v4767
    %v6316 = vunpack.c.l.b16 %v4768
    %v6317 = vunpack.c.h.b16 %v4768
    %v6318 = vunpack.c.l.b16 %v4769
    %v6319 = vunpack.c.h.b16 %v4769
    %v6320 = vunpack.c.l.b16 %v4770
    %v6321 = vunpack.c.h.b16 %v4770
    %v6322 = vunpack.c.l.b16 %v4771
    %v6323 = vunpack.c.h.b16 %v4771
    %v6324 = vunpack.c.l.b16 %v4772
    %v6325 = vunpack.c.h.b16 %v4772
    %v6326 = vunpack.c.l.b16 %v4773
    %v6327 = vunpack.c.h.b16 %v4773
    %v6328 = vunpack.c.l.b16 %v4774
    %v6329 = vunpack.c.h.b16 %v4774
    %v6330 = vunpack.c.l.b16 %v4775
    %v6331 = vunpack.c.h.b16 %v4775
    %v6332 = vunpack.c.l.b16 %v4776
    %v6333 = vunpack.c.h.b16 %v4776
    %v6334 = vunpack.c.l.b16 %v4777
    %v6335 = vunpack.c.h.b16 %v4777
    %v6336 = vunpack.c.l.b16 %v4778
    %v6337 = vunpack.c.h.b16 %v4778
    %v6338 = vunpack.c.l.b16 %v4779
    %v6339 = vunpack.c.h.b16 %v4779
    %v6340 = vunpack.c.l.b16 %v4780
    %v6341 = vunpack.c.h.b16 %v4780
    %v6342 = vunpack.c.l.b16 %v4781
    %v6343 = vunpack.c.h.b16 %v4781
    %v6344 = vunpack.c.l.b16 %v4782
    %v6345 = vunpack.c.h.b16 %v4782
    %v6346 = vunpack.c.l.b16 %v4783
    %v6347 = vunpack.c.h.b16 %v4783
    %v6348 = vunpack.c.l.b16 %v4784
    %v6349 = vunpack.c.h.b16 %v4784
    %v6350 = vunpack.c.l.b16 %v4785
    %v6351 = vunpack.c.h.b16 %v4785
    %v6352 = vunpack.c.l.b16 %v4786
    %v6353 = vunpack.c.h.b16 %v4786
    %v6354 = vunpack.c.l.b16 %v4787
    %v6355 = vunpack.c.h.b16 %v4787
    %v6356 = vunpack.c.l.b16 %v4788
    %v6357 = vunpack.c.h.b16 %v4788
    %v6358 = vunpack.c.l.b16 %v4789
    %v6359 = vunpack.c.h.b16 %v4789
    %v6360 = vunpack.c.l.b16 %v4790
    %v6361 = vunpack.c.h.b16 %v4790
    %v6362 = vunpack.c.l.b16 %v4791
    %v6363 = vunpack.c.h.b16 %v4791
    %v6364 = vunpack.c.l.b16 %v4792
    %v6365 = vunpack.c.h.b16 %v4792
    %v6366 = vunpack.c.l.b16 %v4793
    %v6367 = vunpack.c.h.b16 %v4793
    %v6368 = vunpack.c.l.b16 %v4794
    %v6369 = vunpack.c.h.b16 %v4794
    %v6370 = vunpack.c.l.b16 %v4795
    %v6371 = vunpack.c.h.b16 %v4795
    %v6372 = vunpack.c.l.b16 %v4796
    %v6373 = vunpack.c.h.b16 %v4796
    %v6374 = vunpack.c.l.b16 %v4797
    %v6375 = vunpack.c.h.b16 %v4797
    %v6376 = vpack.c.b16 %v5360, %v5352
    %v6377 = vpack.c.b16 %v5361, %v5353
    %v6378 = vpack.c.b16 %v5362, %v5354
    %v6379 = vpack.c.b16 %v5363, %v5355
    %v6380 = vpack.c.b16 %v5364, %v5356
    %v6381 = vpack.c.b16 %v5365, %v5357
    %v6382 = vpack.c.b16 %v5366, %v5358
    %v6383 = vpack.c.b16 %v5367, %v5359
    %v6384 = vpack.c.b16 %v5376, %v5368
    %v6385 = vpack.c.b16 %v5377, %v5369
    %v6386 = vpack.c.b16 %v5378, %v5370
    %v6387 = vpack.c.b16 %v5379, %v5371
    %v6388 = vpack.c.b16 %v5380, %v5372
    %v6389 = vpack.c.b16 %v5381, %v5373
    %v6390 = vpack.c.b16 %v5382, %v5374
    %v6391 = vpack.c.b16 %v5383, %v5375
    %v6392 = vpack.c.b16 %v5392, %v5384
    %v6393 = vpack.c.b16 %v5393, %v5385
    %v6394 = vpack.c.b16 %v5394, %v5386
    %v6395 = vpack.c.b16 %v5395, %v5387
    %v6396 = vpack.c.b16 %v5396, %v5388
    %v6397 = vpack.c.b16 %v5397, %v5389
    %v6398 = vpack.c.b16 %v5398, %v5390
    %v6399 = vpack.c.b16 %v5399, %v5391
    %v6400 = vpack.c.b16 %v5408, %v5400
    %v6401 = vpack.c.b16 %v5409, %v5401
    %v6402 = vpack.c.b16 %v5410, %v5402
    %v6403 = vpack.c.b16 %v5411, %v5403
    %v6404 = vpack.c.b16 %v5412, %v5404
    %v6405 = vpack.c.b16 %v5413, %v5405
    %v6406 = vpack.c.b16 %v5414, %v5406
    %v6407 = vpack.c.b16 %v5415, %v5407
    %v6408 = vpack.c.b16 %v5424, %v5416
    %v6409 = vpack.c.b16 %v5425, %v5417
    %v6410 = vpack.c.b16 %v5426, %v5418
    %v6411 = vpack.c.b16 %v5427, %v5419
    %v6412 = vpack.c.b16 %v5428, %v5420
    %v6413 = vpack.c.b16 %v5429, %v5421
    %v6414 = vpack.c.b16 %v5430, %v5422
    %v6415 = vpack.c.b16 %v5431, %v5423
    %v6416 = vpack.c.b16 %v5440, %v5432
    %v6417 = vpack.c.b16 %v5441, %v5433
    %v6418 = vpack.c.b16 %v5442, %v5434
    %v6419 = vpack.c.b16 %v5443, %v5435
    %v6420 = vpack.c.b16 %v5444, %v5436
    %v6421 = vpack.c.b16 %v5445, %v5437
    %v6422 = vpack.c.b16 %v5446, %v5438
    %v6423 = vpack.c.b16 %v5447, %v5439
    %v6424 = vpack.c.b16 %v5456, %v5448
    %v6425 = vpack.c.b16 %v5457, %v5449
    %v6426 = vpack.c.b16 %v5458, %v5450
    %v6427 = vpack.c.b16 %v5459, %v5451
    %v6428 = vpack.c.b16 %v5460, %v5452
    %v6429 = vpack.c.b16 %v5461, %v5453
    %v6430 = vpack.c.b16 %v5462, %v5454
    %v6431 = vpack.c.b16 %v5463, %v5455
    %v6432 = vpack.c.b16 %v5472, %v5464
    %v6433 = vpack.c.b16 %v5473, %v5465
    %v6434 = vpack.c.b16 %v5474, %v5466
    %v6435 = vpack.c.b16 %v5475, %v5467
    %v6436 = vpack.c.b16 %v5476, %v5468
    %v6437 = vpack.c.b16 %v5477, %v5469
    %v6438 = vpack.c.b16 %v5478, %v5470
    %v6439 = vpack.c.b16 %v5479, %v5471
    %v6440 = vpack.c.b16 %v5488, %v5480
    %v6441 = vpack.c.b16 %v5489, %v5481
    %v6442 = vpack.c.b16 %v5490, %v5482
    %v6443 = vpack.c.b16 %v5491, %v5483
    %v6444 = vpack.c.b16 %v5492, %v5484
    %v6445 = vpack.c.b16 %v5493, %v5485
    %v6446 = vpack.c.b16 %v5494, %v5486
    %v6447 = vpack.c.b16 %v5495, %v5487
    %v6448 = vpack.c.b16 %v5504, %v5496
    %v6449 = vpack.c.b16 %v5505, %v5497
    %v6450 = vpack.c.b16 %v5506, %v5498
    %v6451 = vpack.c.b16 %v5507, %v5499
    %v6452 = vpack.c.b16 %v5508, %v5500
    %v6453 = vpack.c.b16 %v5509, %v5501
    %v6454 = vpack.c.b16 %v5510, %v5502
    %v6455 = vpack.c.b16 %v5511, %v5503
    %v6456 = vpack.c.b16 %v5520, %v5512
    %v6457 = vpack.c.b16 %v5521, %v5513
    %v6458 = vpack.c.b16 %v5522, %v5514
    %v6459 = vpack.c.b16 %v5523, %v5515
    %v6460 = vpack.c.b16 %v5524, %v5516
    %v6461 = vpack.c.b16 %v5525, %v5517
    %v6462 = vpack.c.b16 %v5526, %v5518
    %v6463 = vpack.c.b16 %v5527, %v5519
    %v6464 = vpack.c.b16 %v5536, %v5528
    %v6465 = vpack.c.b16 %v5537, %v5529
    %v6466 = vpack.c.b16 %v5538, %v5530
    %v6467 = vpack.c.b16 %v5539, %v5531
    %v6468 = vpack.c.b16 %v5540, %v5532
    %v6469 = vpack.c.b16 %v5541, %v5533
    %v6470 = vpack.c.b16 %v5542, %v5534
    %v6471 = vpack.c.b16 %v5543, %v5535
    %v6472 = vpack.c.b16 %v5552, %v5544
    %v6473 = vpack.c.b16 %v5553, %v5545
    %v6474 = vpack.c.b16 %v5554, %v5546
    %v6475 = vpack.c.b16 %v5555, %v5547
    %v6476 = vpack.c.b16 %v5556, %v5548
    %v6477 = vpack.c.b16 %v5557, %v5549
    %v6478 = vpack.c.b16 %v5558, %v5550
    %v6479 = vpack.c.b16 %v5559, %v5551
    %v6480 = vpack.c.b16 %v5568, %v5560
    %v6481 = vpack.c.b16 %v5569, %v5561
    %v6482 = vpack.c.b16 %v5570, %v5562
    %v6483 = vpack.c.b16 %v5571, %v5563
    %v6484 = vpack.c.b16 %v5572, %v5564
    %v6485 = vpack.c.b16 %v5573, %v5565
    %v6486 = vpack.c.b16 %v5574, %v5566
    %v6487 = vpack.c.b16 %v5575, %v5567
    %v6488 = vpack.c.b16 %v5584, %v5576
    %v6489 = vpack.c.b16 %v5585, %v5577
    %v6490 = vpack.c.b16 %v5586, %v5578
    %v6491 = vpack.c.b16 %v5587, %v5579
    %v6492 = vpack.c.b16 %v5588, %v5580
    %v6493 = vpack.c.b16 %v5589, %v5581
    %v6494 = vpack.c.b16 %v5590, %v5582
    %v6495 = vpack.c.b16 %v5591, %v5583
    %v6496 = vpack.c.b16 %v5600, %v5592
    %v6497 = vpack.c.b16 %v5601, %v5593
    %v6498 = vpack.c.b16 %v5602, %v5594
    %v6499 = vpack.c.b16 %v5603, %v5595
    %v6500 = vpack.c.b16 %v5604, %v5596
    %v6501 = vpack.c.b16 %v5605, %v5597
    %v6502 = vpack.c.b16 %v5606, %v5598
    %v6503 = vpack.c.b16 %v5607, %v5599
    %v6504 = vpack.c.b16 %v5616, %v5608
    %v6505 = vpack.c.b16 %v5617, %v5609
    %v6506 = vpack.c.b16 %v5618, %v5610
    %v6507 = vpack.c.b16 %v5619, %v5611
    %v6508 = vpack.c.b16 %v5620, %v5612
    %v6509 = vpack.c.b16 %v5621, %v5613
    %v6510 = vpack.c.b16 %v5622, %v5614
    %v6511 = vpack.c.b16 %v5623, %v5615
    %v6512 = vpack.c.b16 %v5632, %v5624
    %v6513 = vpack.c.b16 %v5633, %v5625
    %v6514 = vpack.c.b16 %v5634, %v5626
    %v6515 = vpack.c.b16 %v5635, %v5627
    %v6516 = vpack.c.b16 %v5636, %v5628
    %v6517 = vpack.c.b16 %v5637, %v5629
    %v6518 = vpack.c.b16 %v5638, %v5630
    %v6519 = vpack.c.b16 %v5639, %v5631
    %v6520 = vpack.c.b16 %v5648, %v5640
    %v6521 = vpack.c.b16 %v5649, %v5641
    %v6522 = vpack.c.b16 %v5650, %v5642
    %v6523 = vpack.c.b16 %v5651, %v5643
    %v6524 = vpack.c.b16 %v5652, %v5644
    %v6525 = vpack.c.b16 %v5653, %v5645
    %v6526 = vpack.c.b16 %v5654, %v5646
    %v6527 = vpack.c.b16 %v5655, %v5647
    %v6528 = vpack.c.b16 %v5664, %v5656
    %v6529 = vpack.c.b16 %v5665, %v5657
    %v6530 = vpack.c.b16 %v5666, %v5658
    %v6531 = vpack.c.b16 %v5667, %v5659
    %v6532 = vpack.c.b16 %v5668, %v5660
    %v6533 = vpack.c.b16 %v5669, %v5661
    %v6534 = vpack.c.b16 %v5670, %v5662
    %v6535 = vpack.c.b16 %v5671, %v5663
    %v6536 = vpack.c.b16 %v5680, %v5672
    %v6537 = vpack.c.b16 %v5681, %v5673
    %v6538 = vpack.c.b16 %v5682, %v5674
    %v6539 = vpack.c.b16 %v5683, %v5675
    %v6540 = vpack.c.b16 %v5684, %v5676
    %v6541 = vpack.c.b16 %v5685, %v5677
    %v6542 = vpack.c.b16 %v5686, %v5678
    %v6543 = vpack.c.b16 %v5687, %v5679
    %v6544 = vpack.c.b16 %v5696, %v5688
    %v6545 = vpack.c.b16 %v5697, %v5689
    %v6546 = vpack.c.b16 %v5698, %v5690
    %v6547 = vpack.c.b16 %v5699, %v5691
    %v6548 = vpack.c.b16 %v5700, %v5692
    %v6549 = vpack.c.b16 %v5701, %v5693
    %v6550 = vpack.c.b16 %v5702, %v5694
    %v6551 = vpack.c.b16 %v5703, %v5695
    %v6552 = vpack.c.b16 %v5712, %v5704
    %v6553 = vpack.c.b16 %v5713, %v5705
    %v6554 = vpack.c.b16 %v5714, %v5706
    %v6555 = vpack.c.b16 %v5715, %v5707
    %v6556 = vpack.c.b16 %v5716, %v5708
    %v6557 = vpack.c.b16 %v5717, %v5709
    %v6558 = vpack.c.b16 %v5718, %v5710
    %v6559 = vpack.c.b16 %v5719, %v5711
    %v6560 = vpack.c.b16 %v5728, %v5720
    %v6561 = vpack.c.b16 %v5729, %v5721
    %v6562 = vpack.c.b16 %v5730, %v5722
    %v6563 = vpack.c.b16 %v5731, %v5723
    %v6564 = vpack.c.b16 %v5732, %v5724
    %v6565 = vpack.c.b16 %v5733, %v5725
    %v6566 = vpack.c.b16 %v5734, %v5726
    %v6567 = vpack.c.b16 %v5735, %v5727
    %v6568 = vpack.c.b16 %v5744, %v5736
    %v6569 = vpack.c.b16 %v5745, %v5737
    %v6570 = vpack.c.b16 %v5746, %v5738
    %v6571 = vpack.c.b16 %v5747, %v5739
    %v6572 = vpack.c.b16 %v5748, %v5740
    %v6573 = vpack.c.b16 %v5749, %v5741
    %v6574 = vpack.c.b16 %v5750, %v5742
    %v6575 = vpack.c.b16 %v5751, %v5743
    %v6576 = vpack.c.b16 %v5760, %v5752
    %v6577 = vpack.c.b16 %v5761, %v5753
    %v6578 = vpack.c.b16 %v5762, %v5754
    %v6579 = vpack.c.b16 %v5763, %v5755
    %v6580 = vpack.c.b16 %v5764, %v5756
    %v6581 = vpack.c.b16 %v5765, %v5757
    %v6582 = vpack.c.b16 %v5766, %v5758
    %v6583 = vpack.c.b16 %v5767, %v5759
    %v6584 = vpack.c.b16 %v5776, %v5768
    %v6585 = vpack.c.b16 %v5777, %v5769
    %v6586 = vpack.c.b16 %v5778, %v5770
    %v6587 = vpack.c.b16 %v5779, %v5771
    %v6588 = vpack.c.b16 %v5780, %v5772
    %v6589 = vpack.c.b16 %v5781, %v5773
    %v6590 = vpack.c.b16 %v5782, %v5774
    %v6591 = vpack.c.b16 %v5783, %v5775
    %v6592 = vpack.c.b16 %v5792, %v5784
    %v6593 = vpack.c.b16 %v5793, %v5785
    %v6594 = vpack.c.b16 %v5794, %v5786
    %v6595 = vpack.c.b16 %v5795, %v5787
    %v6596 = vpack.c.b16 %v5796, %v5788
    %v6597 = vpack.c.b16 %v5797, %v5789
    %v6598 = vpack.c.b16 %v5798, %v5790
    %v6599 = vpack.c.b16 %v5799, %v5791
    %v6600 = vpack.c.b16 %v5808, %v5800
    %v6601 = vpack.c.b16 %v5809, %v5801
    %v6602 = vpack.c.b16 %v5810, %v5802
    %v6603 = vpack.c.b16 %v5811, %v5803
    %v6604 = vpack.c.b16 %v5812, %v5804
    %v6605 = vpack.c.b16 %v5813, %v5805
    %v6606 = vpack.c.b16 %v5814, %v5806
    %v6607 = vpack.c.b16 %v5815, %v5807
    %v6608 = vpack.c.b16 %v5824, %v5816
    %v6609 = vpack.c.b16 %v5825, %v5817
    %v6610 = vpack.c.b16 %v5826, %v5818
    %v6611 = vpack.c.b16 %v5827, %v5819
    %v6612 = vpack.c.b16 %v5828, %v5820
    %v6613 = vpack.c.b16 %v5829, %v5821
    %v6614 = vpack.c.b16 %v5830, %v5822
    %v6615 = vpack.c.b16 %v5831, %v5823
    %v6616 = vpack.c.b16 %v5840, %v5832
    %v6617 = vpack.c.b16 %v5841, %v5833
    %v6618 = vpack.c.b16 %v5842, %v5834
    %v6619 = vpack.c.b16 %v5843, %v5835
    %v6620 = vpack.c.b16 %v5844, %v5836
    %v6621 = vpack.c.b16 %v5845, %v5837
    %v6622 = vpack.c.b16 %v5846, %v5838
    %v6623 = vpack.c.b16 %v5847, %v5839
    %v6624 = vpack.c.b16 %v5856, %v5848
    %v6625 = vpack.c.b16 %v5857, %v5849
    %v6626 = vpack.c.b16 %v5858, %v5850
    %v6627 = vpack.c.b16 %v5859, %v5851
    %v6628 = vpack.c.b16 %v5860, %v5852
    %v6629 = vpack.c.b16 %v5861, %v5853
    %v6630 = vpack.c.b16 %v5862, %v5854
    %v6631 = vpack.c.b16 %v5863, %v5855
    %v6632 = vpack.c.b16 %v5872, %v5864
    %v6633 = vpack.c.b16 %v5873, %v5865
    %v6634 = vpack.c.b16 %v5874, %v5866
    %v6635 = vpack.c.b16 %v5875, %v5867
    %v6636 = vpack.c.b16 %v5876, %v5868
    %v6637 = vpack.c.b16 %v5877, %v5869
    %v6638 = vpack.c.b16 %v5878, %v5870
    %v6639 = vpack.c.b16 %v5879, %v5871
    %v6640 = vpack.c.b16 %v5888, %v5880
    %v6641 = vpack.c.b16 %v5889, %v5881
    %v6642 = vpack.c.b16 %v5890, %v5882
    %v6643 = vpack.c.b16 %v5891, %v5883
    %v6644 = vpack.c.b16 %v5892, %v5884
    %v6645 = vpack.c.b16 %v5893, %v5885
    %v6646 = vpack.c.b16 %v5894, %v5886
    %v6647 = vpack.c.b16 %v5895, %v5887
    %v6648 = vpack.c.b16 %v5904, %v5896
    %v6649 = vpack.c.b16 %v5905, %v5897
    %v6650 = vpack.c.b16 %v5906, %v5898
    %v6651 = vpack.c.b16 %v5907, %v5899
    %v6652 = vpack.c.b16 %v5908, %v5900
    %v6653 = vpack.c.b16 %v5909, %v5901
    %v6654 = vpack.c.b16 %v5910, %v5902
    %v6655 = vpack.c.b16 %v5911, %v5903
    %v6656 = vpack.c.b16 %v5920, %v5912
    %v6657 = vpack.c.b16 %v5921, %v5913
    %v6658 = vpack.c.b16 %v5922, %v5914
    %v6659 = vpack.c.b16 %v5923, %v5915
    %v6660 = vpack.c.b16 %v5924, %v5916
    %v6661 = vpack.c.b16 %v5925, %v5917
    %v6662 = vpack.c.b16 %v5926, %v5918
    %v6663 = vpack.c.b16 %v5927, %v5919
    %v6664 = vpack.c.b16 %v5936, %v5928
    %v6665 = vpack.c.b16 %v5937, %v5929
    %v6666 = vpack.c.b16 %v5938, %v5930
    %v6667 = vpack.c.b16 %v5939, %v5931
    %v6668 = vpack.c.b16 %v5940, %v5932
    %v6669 = vpack.c.b16 %v5941, %v5933
    %v6670 = vpack.c.b16 %v5942, %v5934
    %v6671 = vpack.c.b16 %v5943, %v5935
    %v6672 = vpack.c.b16 %v5952, %v5944
    %v6673 = vpack.c.b16 %v5953, %v5945
    %v6674 = vpack.c.b16 %v5954, %v5946
    %v6675 = vpack.c.b16 %v5955, %v5947
    %v6676 = vpack.c.b16 %v5956, %v5948
    %v6677 = vpack.c.b16 %v5957, %v5949
    %v6678 = vpack.c.b16 %v5958, %v5950
    %v6679 = vpack.c.b16 %v5959, %v5951
    %v6680 = vpack.c.b16 %v5968, %v5960
    %v6681 = vpack.c.b16 %v5969, %v5961
    %v6682 = vpack.c.b16 %v5970, %v5962
    %v6683 = vpack.c.b16 %v5971, %v5963
    %v6684 = vpack.c.b16 %v5972, %v5964
    %v6685 = vpack.c.b16 %v5973, %v5965
    %v6686 = vpack.c.b16 %v5974, %v5966
    %v6687 = vpack.c.b16 %v5975, %v5967
    %v6688 = vpack.c.b16 %v5984, %v5976
    %v6689 = vpack.c.b16 %v5985, %v5977
    %v6690 = vpack.c.b16 %v5986, %v5978
    %v6691 = vpack.c.b16 %v5987, %v5979
    %v6692 = vpack.c.b16 %v5988, %v5980
    %v6693 = vpack.c.b16 %v5989, %v5981
    %v6694 = vpack.c.b16 %v5990, %v5982
    %v6695 = vpack.c.b16 %v5991, %v5983
    %v6696 = vpack.c.b16 %v6000, %v5992
    %v6697 = vpack.c.b16 %v6001, %v5993
    %v6698 = vpack.c.b16 %v6002, %v5994
    %v6699 = vpack.c.b16 %v6003, %v5995
    %v6700 = vpack.c.b16 %v6004, %v5996
    %v6701 = vpack.c.b16 %v6005, %v5997
    %v6702 = vpack.c.b16 %v6006, %v5998
    %v6703 = vpack.c.b16 %v6007, %v5999
    %v6704 = vpack.c.b16 %v6016, %v6008
    %v6705 = vpack.c.b16 %v6017, %v6009
    %v6706 = vpack.c.b16 %v6018, %v6010
    %v6707 = vpack.c.b16 %v6019, %v6011
    %v6708 = vpack.c.b16 %v6020, %v6012
    %v6709 = vpack.c.b16 %v6021, %v6013
    %v6710 = vpack.c.b16 %v6022, %v6014
    %v6711 = vpack.c.b16 %v6023, %v6015
    %v6712 = vpack.c.b16 %v6032, %v6024
    %v6713 = vpack.c.b16 %v6033, %v6025
    %v6714 = vpack.c.b16 %v6034, %v6026
    %v6715 = vpack.c.b16 %v6035, %v6027
    %v6716 = vpack.c.b16 %v6036, %v6028
    %v6717 = vpack.c.b16 %v6037, %v6029
    %v6718 = vpack.c.b16 %v6038, %v6030
    %v6719 = vpack.c.b16 %v6039, %v6031
    %v6720 = vpack.c.b16 %v6048, %v6040
    %v6721 = vpack.c.b16 %v6049, %v6041
    %v6722 = vpack.c.b16 %v6050, %v6042
    %v6723 = vpack.c.b16 %v6051, %v6043
    %v6724 = vpack.c.b16 %v6052, %v6044
    %v6725 = vpack.c.b16 %v6053, %v6045
    %v6726 = vpack.c.b16 %v6054, %v6046
    %v6727 = vpack.c.b16 %v6055, %v6047
    %v6728 = vpack.c.b16 %v6064, %v6056
    %v6729 = vpack.c.b16 %v6065, %v6057
    %v6730 = vpack.c.b16 %v6066, %v6058
    %v6731 = vpack.c.b16 %v6067, %v6059
    %v6732 = vpack.c.b16 %v6068, %v6060
    %v6733 = vpack.c.b16 %v6069, %v6061
    %v6734 = vpack.c.b16 %v6070, %v6062
    %v6735 = vpack.c.b16 %v6071, %v6063
    %v6736 = vpack.c.b16 %v6080, %v6072
    %v6737 = vpack.c.b16 %v6081, %v6073
    %v6738 = vpack.c.b16 %v6082, %v6074
    %v6739 = vpack.c.b16 %v6083, %v6075
    %v6740 = vpack.c.b16 %v6084, %v6076
    %v6741 = vpack.c.b16 %v6085, %v6077
    %v6742 = vpack.c.b16 %v6086, %v6078
    %v6743 = vpack.c.b16 %v6087, %v6079
    %v6744 = vpack.c.b16 %v6096, %v6088
    %v6745 = vpack.c.b16 %v6097, %v6089
    %v6746 = vpack.c.b16 %v6098, %v6090
    %v6747 = vpack.c.b16 %v6099, %v6091
    %v6748 = vpack.c.b16 %v6100, %v6092
    %v6749 = vpack.c.b16 %v6101, %v6093
    %v6750 = vpack.c.b16 %v6102, %v6094
    %v6751 = vpack.c.b16 %v6103, %v6095
    %v6752 = vpack.c.b16 %v6112, %v6104
    %v6753 = vpack.c.b16 %v6113, %v6105
    %v6754 = vpack.c.b16 %v6114, %v6106
    %v6755 = vpack.c.b16 %v6115, %v6107
    %v6756 = vpack.c.b16 %v6116, %v6108
    %v6757 = vpack.c.b16 %v6117, %v6109
    %v6758 = vpack.c.b16 %v6118, %v6110
    %v6759 = vpack.c.b16 %v6119, %v6111
    %v6760 = vpack.c.b16 %v6128, %v6120
    %v6761 = vpack.c.b16 %v6129, %v6121
    %v6762 = vpack.c.b16 %v6130, %v6122
    %v6763 = vpack.c.b16 %v6131, %v6123
    %v6764 = vpack.c.b16 %v6132, %v6124
    %v6765 = vpack.c.b16 %v6133, %v6125
    %v6766 = vpack.c.b16 %v6134, %v6126
    %v6767 = vpack.c.b16 %v6135, %v6127
    %v6768 = vpack.c.b16 %v6144, %v6136
    %v6769 = vpack.c.b16 %v6145, %v6137
    %v6770 = vpack.c.b16 %v6146, %v6138
    %v6771 = vpack.c.b16 %v6147, %v6139
    %v6772 = vpack.c.b16 %v6148, %v6140
    %v6773 = vpack.c.b16 %v6149, %v6141
    %v6774 = vpack.c.b16 %v6150, %v6142
    %v6775 = vpack.c.b16 %v6151, %v6143
    %v6776 = vpack.c.b16 %v6160, %v6152
    %v6777 = vpack.c.b16 %v6161, %v6153
    %v6778 = vpack.c.b16 %v6162, %v6154
    %v6779 = vpack.c.b16 %v6163, %v6155
    %v6780 = vpack.c.b16 %v6164, %v6156
    %v6781 = vpack.c.b16 %v6165, %v6157
    %v6782 = vpack.c.b16 %v6166, %v6158
    %v6783 = vpack.c.b16 %v6167, %v6159
    %v6784 = vpack.c.b16 %v6176, %v6168
    %v6785 = vpack.c.b16 %v6177, %v6169
    %v6786 = vpack.c.b16 %v6178, %v6170
    %v6787 = vpack.c.b16 %v6179, %v6171
    %v6788 = vpack.c.b16 %v6180, %v6172
    %v6789 = vpack.c.b16 %v6181, %v6173
    %v6790 = vpack.c.b16 %v6182, %v6174
    %v6791 = vpack.c.b16 %v6183, %v6175
    %v6792 = vpack.c.b16 %v6192, %v6184
    %v6793 = vpack.c.b16 %v6193, %v6185
    %v6794 = vpack.c.b16 %v6194, %v6186
    %v6795 = vpack.c.b16 %v6195, %v6187
    %v6796 = vpack.c.b16 %v6196, %v6188
    %v6797 = vpack.c.b16 %v6197, %v6189
    %v6798 = vpack.c.b16 %v6198, %v6190
    %v6799 = vpack.c.b16 %v6199, %v6191
    %v6800 = vpack.c.b16 %v6208, %v6200
    %v6801 = vpack.c.b16 %v6209, %v6201
    %v6802 = vpack.c.b16 %v6210, %v6202
    %v6803 = vpack.c.b16 %v6211, %v6203
    %v6804 = vpack.c.b16 %v6212, %v6204
    %v6805 = vpack.c.b16 %v6213, %v6205
    %v6806 = vpack.c.b16 %v6214, %v6206
    %v6807 = vpack.c.b16 %v6215, %v6207
    %v6808 = vpack.c.b16 %v6224, %v6216
    %v6809 = vpack.c.b16 %v6225, %v6217
    %v6810 = vpack.c.b16 %v6226, %v6218
    %v6811 = vpack.c.b16 %v6227, %v6219
    %v6812 = vpack.c.b16 %v6228, %v6220
    %v6813 = vpack.c.b16 %v6229, %v6221
    %v6814 = vpack.c.b16 %v6230, %v6222
    %v6815 = vpack.c.b16 %v6231, %v6223
    %v6816 = vpack.c.b16 %v6240, %v6232
    %v6817 = vpack.c.b16 %v6241, %v6233
    %v6818 = vpack.c.b16 %v6242, %v6234
    %v6819 = vpack.c.b16 %v6243, %v6235
    %v6820 = vpack.c.b16 %v6244, %v6236
    %v6821 = vpack.c.b16 %v6245, %v6237
    %v6822 = vpack.c.b16 %v6246, %v6238
    %v6823 = vpack.c.b16 %v6247, %v6239
    %v6824 = vpack.c.b16 %v6256, %v6248
    %v6825 = vpack.c.b16 %v6257, %v6249
    %v6826 = vpack.c.b16 %v6258, %v6250
    %v6827 = vpack.c.b16 %v6259, %v6251
    %v6828 = vpack.c.b16 %v6260, %v6252
    %v6829 = vpack.c.b16 %v6261, %v6253
    %v6830 = vpack.c.b16 %v6262, %v6254
    %v6831 = vpack.c.b16 %v6263, %v6255
    %v6832 = vpack.c.b16 %v6272, %v6264
    %v6833 = vpack.c.b16 %v6273, %v6265
    %v6834 = vpack.c.b16 %v6274, %v6266
    %v6835 = vpack.c.b16 %v6275, %v6267
    %v6836 = vpack.c.b16 %v6276, %v6268
    %v6837 = vpack.c.b16 %v6277, %v6269
    %v6838 = vpack.c.b16 %v6278, %v6270
    %v6839 = vpack.c.b16 %v6279, %v6271
    %v6840 = vpack.c.b16 %v6288, %v6280
    %v6841 = vpack.c.b16 %v6289, %v6281
    %v6842 = vpack.c.b16 %v6290, %v6282
    %v6843 = vpack.c.b16 %v6291, %v6283
    %v6844 = vpack.c.b16 %v6292, %v6284
    %v6845 = vpack.c.b16 %v6293, %v6285
    %v6846 = vpack.c.b16 %v6294, %v6286
    %v6847 = vpack.c.b16 %v6295, %v6287
    %v6848 = vpack.c.b16 %v6304, %v6296
    %v6849 = vpack.c.b16 %v6305, %v6297
    %v6850 = vpack.c.b16 %v6306, %v6298
    %v6851 = vpack.c.b16 %v6307, %v6299
    %v6852 = vpack.c.b16 %v6308, %v6300
    %v6853 = vpack.c.b16 %v6309, %v6301
    %v6854 = vpack.c.b16 %v6310, %v6302
    %v6855 = vpack.c.b16 %v6311, %v6303
    %v6856 = vpack.c.b16 %v6320, %v6312
    %v6857 = vpack.c.b16 %v6321, %v6313
    %v6858 = vpack.c.b16 %v6322, %v6314
    %v6859 = vpack.c.b16 %v6323, %v6315
    %v6860 = vpack.c.b16 %v6324, %v6316
    %v6861 = vpack.c.b16 %v6325, %v6317
    %v6862 = vpack.c.b16 %v6326, %v6318
    %v6863 = vpack.c.b16 %v6327, %v6319
    %v6864 = vpack.c.b16 %v6336, %v6328
    %v6865 = vpack.c.b16 %v6337, %v6329
    %v6866 = vpack.c.b16 %v6338, %v6330
    %v6867 = vpack.c.b16 %v6339, %v6331
    %v6868 = vpack.c.b16 %v6340, %v6332
    %v6869 = vpack.c.b16 %v6341, %v6333
    %v6870 = vpack.c.b16 %v6342, %v6334
    %v6871 = vpack.c.b16 %v6343, %v6335
    %v6872 = vpack.c.b16 %v6352, %v6344
    %v6873 = vpack.c.b16 %v6353, %v6345
    %v6874 = vpack.c.b16 %v6354, %v6346
    %v6875 = vpack.c.b16 %v6355, %v6347
    %v6876 = vpack.c.b16 %v6356, %v6348
    %v6877 = vpack.c.b16 %v6357, %v6349
    %v6878 = vpack.c.b16 %v6358, %v6350
    %v6879 = vpack.c.b16 %v6359, %v6351
    %v6880 = vpack.c.b16 %v6368, %v6360
    %v6881 = vpack.c.b16 %v6369, %v6361
    %v6882 = vpack.c.b16 %v6370, %v6362
    %v6883 = vpack.c.b16 %v6371, %v6363
    %v6884 = vpack.c.b16 %v6372, %v6364
    %v6885 = vpack.c.b16 %v6373, %v6365
    %v6886 = vpack.c.b16 %v6374, %v6366
    %v6887 = vpack.c.b16 %v6375, %v6367
    %7400 = vmatprep.subr.bf16.mxu0 %v6377
    %7401 = vmatpush1.bf16.msra.mxu0 %v6376
    %7402 = vmatprep.subr.bf16.mxu0 %v6385
    %7403 = vmatpush1.bf16.msra.mxu0 %v6384
    %7404 = vmatprep.subr.bf16.mxu0 %v6393
    %7405 = vmatpush1.bf16.msra.mxu0 %v6392
    %7406 = vmatprep.subr.bf16.mxu0 %v6401
    %7407 = vmatpush1.bf16.msra.mxu0 %v6400
    %7408 = vmatprep.subr.bf16.mxu0 %v6409
    %7409 = vmatpush1.bf16.msra.mxu0 %v6408
    %7410 = vmatprep.subr.bf16.mxu0 %v6417
    %7411 = vmatpush1.bf16.msra.mxu0 %v6416
    %7412 = vmatprep.subr.bf16.mxu0 %v6425
    %7413 = vmatpush1.bf16.msra.mxu0 %v6424
    %7414 = vmatprep.subr.bf16.mxu0 %v6433
    %7415 = vmatpush1.bf16.msra.mxu0 %v6432
    %7416 = vmatprep.subr.bf16.mxu0 %v6441
    %7417 = vmatpush1.bf16.msra.mxu0 %v6440
    %7418 = vmatprep.subr.bf16.mxu0 %v6449
    %7419 = vmatpush1.bf16.msra.mxu0 %v6448
    %7420 = vmatprep.subr.bf16.mxu0 %v6457
    %7421 = vmatpush1.bf16.msra.mxu0 %v6456
    %7422 = vmatprep.subr.bf16.mxu0 %v6465
    %7423 = vmatpush1.bf16.msra.mxu0 %v6464
    %7424 = vmatprep.subr.bf16.mxu0 %v6473
    %7425 = vmatpush1.bf16.msra.mxu0 %v6472
    %7426 = vmatprep.subr.bf16.mxu0 %v6481
    %7427 = vmatpush1.bf16.msra.mxu0 %v6480
    %7428 = vmatprep.subr.bf16.mxu0 %v6489
    %7429 = vmatpush1.bf16.msra.mxu0 %v6488
    %7430 = vmatprep.subr.bf16.mxu0 %v6497
    %7431 = vmatpush1.bf16.msra.mxu0 %v6496
    %7432 = vmatprep.mubr.bf16.mxu0 %v4279
    %7433 = vmatmul.mubr.bf16.gmra.mrb[0].mxu0 %v4278
    %v7434 = vpop.f32.mrb[0].mxu0
    %v7435 = vadd.f32 %v4803, %v7434
    %v7436 = vpop.f32.mrb[0].mxu0
    %v7437 = vadd.f32 %v4807, %v7436
    %v7438 = vpop.f32.mrb[0].mxu0
    %v7439 = vpop.f32.mrb[0].mxu0
    %7440 = vdwg.mxu0
    %7441 = vmatprep.subr.bf16.mxu0 %v6505
    %7442 = vmatpush1.bf16.msra.mxu0 %v6504
    %7443 = vmatprep.subr.bf16.mxu0 %v6513
    %7444 = vmatpush1.bf16.msra.mxu0 %v6512
    %7445 = vmatprep.subr.bf16.mxu0 %v6521
    %7446 = vmatpush1.bf16.msra.mxu0 %v6520
    %7447 = vmatprep.subr.bf16.mxu0 %v6529
    %7448 = vmatpush1.bf16.msra.mxu0 %v6528
    %7449 = vmatprep.subr.bf16.mxu0 %v6537
    %7450 = vmatpush1.bf16.msra.mxu0 %v6536
    %7451 = vmatprep.subr.bf16.mxu0 %v6545
    %7452 = vmatpush1.bf16.msra.mxu0 %v6544
    %7453 = vmatprep.subr.bf16.mxu0 %v6553
    %7454 = vmatpush1.bf16.msra.mxu0 %v6552
    %7455 = vmatprep.subr.bf16.mxu0 %v6561
    %7456 = vmatpush1.bf16.msra.mxu0 %v6560
    %7457 = vmatprep.subr.bf16.mxu0 %v6569
    %7458 = vmatpush1.bf16.msra.mxu0 %v6568
    %7459 = vmatprep.subr.bf16.mxu0 %v6577
    %7460 = vmatpush1.bf16.msra.mxu0 %v6576
    %7461 = vmatprep.subr.bf16.mxu0 %v6585
    %7462 = vmatpush1.bf16.msra.mxu0 %v6584
    %7463 = vmatprep.subr.bf16.mxu0 %v6593
    %7464 = vmatpush1.bf16.msra.mxu0 %v6592
    %7465 = vmatprep.subr.bf16.mxu0 %v6601
    %7466 = vmatpush1.bf16.msra.mxu0 %v6600
    %7467 = vmatprep.subr.bf16.mxu0 %v6609
    %7468 = vmatpush1.bf16.msra.mxu0 %v6608
    %7469 = vmatprep.subr.bf16.mxu0 %v6617
    %7470 = vmatpush1.bf16.msra.mxu0 %v6616
    %7471 = vmatprep.subr.bf16.mxu0 %v6625
    %7472 = vmatpush1.bf16.msra.mxu0 %v6624
    %7473 = vmatprep.mubr.bf16.mxu0 %v4281
    %7474 = vmatmul.mubr.bf16.gmra.mrb[0].mxu0 %v4280
    %v7475 = vpop.f32.mrb[0].mxu0
    %v7476 = vadd.f32 %v7435, %v7475
    %v7477 = vpop.f32.mrb[0].mxu0
    %v7478 = vadd.f32 %v7437, %v7477
    %v7479 = vpop.f32.mrb[0].mxu0
    %v7480 = vpop.f32.mrb[0].mxu0
    %7481 = vdwg.mxu0
    %7482 = vmatprep.subr.bf16.mxu0 %v6633
    %7483 = vmatpush1.bf16.msra.mxu0 %v6632
    %7484 = vmatprep.subr.bf16.mxu0 %v6641
    %7485 = vmatpush1.bf16.msra.mxu0 %v6640
    %7486 = vmatprep.subr.bf16.mxu0 %v6649
    %7487 = vmatpush1.bf16.msra.mxu0 %v6648
    %7488 = vmatprep.subr.bf16.mxu0 %v6657
    %7489 = vmatpush1.bf16.msra.mxu0 %v6656
    %7490 = vmatprep.subr.bf16.mxu0 %v6665
    %7491 = vmatpush1.bf16.msra.mxu0 %v6664
    %7492 = vmatprep.subr.bf16.mxu0 %v6673
    %7493 = vmatpush1.bf16.msra.mxu0 %v6672
    %7494 = vmatprep.subr.bf16.mxu0 %v6681
    %7495 = vmatpush1.bf16.msra.mxu0 %v6680
    %7496 = vmatprep.subr.bf16.mxu0 %v6689
    %7497 = vmatpush1.bf16.msra.mxu0 %v6688
    %7498 = vmatprep.subr.bf16.mxu0 %v6697
    %7499 = vmatpush1.bf16.msra.mxu0 %v6696
    %7500 = vmatprep.subr.bf16.mxu0 %v6705
    %7501 = vmatpush1.bf16.msra.mxu0 %v6704
    %7502 = vmatprep.subr.bf16.mxu0 %v6713
    %7503 = vmatpush1.bf16.msra.mxu0 %v6712
    %7504 = vmatprep.subr.bf16.mxu0 %v6721
    %7505 = vmatpush1.bf16.msra.mxu0 %v6720
    %7506 = vmatprep.subr.bf16.mxu0 %v6729
    %7507 = vmatpush1.bf16.msra.mxu0 %v6728
    %7508 = vmatprep.subr.bf16.mxu0 %v6737
    %7509 = vmatpush1.bf16.msra.mxu0 %v6736
    %7510 = vmatprep.subr.bf16.mxu0 %v6745
    %7511 = vmatpush1.bf16.msra.mxu0 %v6744
    %7512 = vmatprep.subr.bf16.mxu0 %v6753
    %7513 = vmatpush1.bf16.msra.mxu0 %v6752
    %7514 = vmatprep.mubr.bf16.mxu0 %v4283
    %7515 = vmatmul.mubr.bf16.gmra.mrb[0].mxu0 %v4282
    %v7516 = vpop.f32.mrb[0].mxu0
    %v7517 = vadd.f32 %v7476, %v7516
    %v7518 = vpop.f32.mrb[0].mxu0
    %v7519 = vadd.f32 %v7478, %v7518
    %v7520 = vpop.f32.mrb[0].mxu0
    %v7521 = vpop.f32.mrb[0].mxu0
    %7522 = vdwg.mxu0
    %7523 = vmatprep.subr.bf16.mxu0 %v6761
    %7524 = vmatpush1.bf16.msra.mxu0 %v6760
    %7525 = vmatprep.subr.bf16.mxu0 %v6769
    %7526 = vmatpush1.bf16.msra.mxu0 %v6768
    %7527 = vmatprep.subr.bf16.mxu0 %v6777
    %7528 = vmatpush1.bf16.msra.mxu0 %v6776
    %7529 = vmatprep.subr.bf16.mxu0 %v6785
    %7530 = vmatpush1.bf16.msra.mxu0 %v6784
    %7531 = vmatprep.subr.bf16.mxu0 %v6793
    %7532 = vmatpush1.bf16.msra.mxu0 %v6792
    %7533 = vmatprep.subr.bf16.mxu0 %v6801
    %7534 = vmatpush1.bf16.msra.mxu0 %v6800
    %7535 = vmatprep.subr.bf16.mxu0 %v6809
    %7536 = vmatpush1.bf16.msra.mxu0 %v6808
    %7537 = vmatprep.subr.bf16.mxu0 %v6817
    %7538 = vmatpush1.bf16.msra.mxu0 %v6816
    %7539 = vmatprep.subr.bf16.mxu0 %v6825
    %7540 = vmatpush1.bf16.msra.mxu0 %v6824
    %7541 = vmatprep.subr.bf16.mxu0 %v6833
    %7542 = vmatpush1.bf16.msra.mxu0 %v6832
    %7543 = vmatprep.subr.bf16.mxu0 %v6841
    %7544 = vmatpush1.bf16.msra.mxu0 %v6840
    %7545 = vmatprep.subr.bf16.mxu0 %v6849
    %7546 = vmatpush1.bf16.msra.mxu0 %v6848
    %7547 = vmatprep.subr.bf16.mxu0 %v6857
    %7548 = vmatpush1.bf16.msra.mxu0 %v6856
    %7549 = vmatprep.subr.bf16.mxu0 %v6865
    %7550 = vmatpush1.bf16.msra.mxu0 %v6864
    %7551 = vmatprep.subr.bf16.mxu0 %v6873
    %7552 = vmatpush1.bf16.msra.mxu0 %v6872
    %7553 = vmatprep.subr.bf16.mxu0 %v6881
    %7554 = vmatpush1.bf16.msra.mxu0 %v6880
    %7555 = vmatprep.mubr.bf16.mxu0 %v4285
    %7556 = vmatmul.mubr.bf16.gmra.mrb[0].mxu0 %v4284
    %v7557 = vpop.f32.mrb[0].mxu0
    %v7558 = vadd.f32 %v7517, %v7557
    %v7559 = vpop.f32.mrb[0].mxu0
    %v7560 = vadd.f32 %v7519, %v7559
    %v7561 = vpop.f32.mrb[0].mxu0
    %v7562 = vpop.f32.mrb[0].mxu0
    %7563 = vdwg.mxu0
    %7564 = vmatprep.subr.bf16.mxu0 %v6379
    %7565 = vmatpush1.bf16.msra.mxu0 %v6378
    %7566 = vmatprep.subr.bf16.mxu0 %v6387
    %7567 = vmatpush1.bf16.msra.mxu0 %v6386
    %7568 = vmatprep.subr.bf16.mxu0 %v6395
    %7569 = vmatpush1.bf16.msra.mxu0 %v6394
    %7570 = vmatprep.subr.bf16.mxu0 %v6403
    %7571 = vmatpush1.bf16.msra.mxu0 %v6402
    %7572 = vmatprep.subr.bf16.mxu0 %v6411
    %7573 = vmatpush1.bf16.msra.mxu0 %v6410
    %7574 = vmatprep.subr.bf16.mxu0 %v6419
    %7575 = vmatpush1.bf16.msra.mxu0 %v6418
    %7576 = vmatprep.subr.bf16.mxu0 %v6427
    %7577 = vmatpush1.bf16.msra.mxu0 %v6426
    %7578 = vmatprep.subr.bf16.mxu0 %v6435
    %7579 = vmatpush1.bf16.msra.mxu0 %v6434
    %7580 = vmatprep.subr.bf16.mxu0 %v6443
    %7581 = vmatpush1.bf16.msra.mxu0 %v6442
    %7582 = vmatprep.subr.bf16.mxu0 %v6451
    %7583 = vmatpush1.bf16.msra.mxu0 %v6450
    %7584 = vmatprep.subr.bf16.mxu0 %v6459
    %7585 = vmatpush1.bf16.msra.mxu0 %v6458
    %7586 = vmatprep.subr.bf16.mxu0 %v6467
    %7587 = vmatpush1.bf16.msra.mxu0 %v6466
    %7588 = vmatprep.subr.bf16.mxu0 %v6475
    %7589 = vmatpush1.bf16.msra.mxu0 %v6474
    %7590 = vmatprep.subr.bf16.mxu0 %v6483
    %7591 = vmatpush1.bf16.msra.mxu0 %v6482
    %7592 = vmatprep.subr.bf16.mxu0 %v6491
    %7593 = vmatpush1.bf16.msra.mxu0 %v6490
    %7594 = vmatprep.subr.bf16.mxu0 %v6499
    %7595 = vmatpush1.bf16.msra.mxu0 %v6498
    %7596 = vmatprep.mubr.bf16.mxu0 %v4279
    %7597 = vmatmul.mubr.bf16.gmra.mrb[0].mxu0 %v4278
    %v7598 = vpop.f32.mrb[0].mxu0
    %v7599 = vadd.f32 %v4811, %v7598
    %v7600 = vpop.f32.mrb[0].mxu0
    %v7601 = vadd.f32 %v4815, %v7600
    %v7602 = vpop.f32.mrb[0].mxu0
    %v7603 = vpop.f32.mrb[0].mxu0
    %7604 = vdwg.mxu0
    %7605 = vmatprep.subr.bf16.mxu0 %v6507
    %7606 = vmatpush1.bf16.msra.mxu0 %v6506
    %7607 = vmatprep.subr.bf16.mxu0 %v6515
    %7608 = vmatpush1.bf16.msra.mxu0 %v6514
    %7609 = vmatprep.subr.bf16.mxu0 %v6523
    %7610 = vmatpush1.bf16.msra.mxu0 %v6522
    %7611 = vmatprep.subr.bf16.mxu0 %v6531
    %7612 = vmatpush1.bf16.msra.mxu0 %v6530
    %7613 = vmatprep.subr.bf16.mxu0 %v6539
    %7614 = vmatpush1.bf16.msra.mxu0 %v6538
    %7615 = vmatprep.subr.bf16.mxu0 %v6547
    %7616 = vmatpush1.bf16.msra.mxu0 %v6546
    %7617 = vmatprep.subr.bf16.mxu0 %v6555
    %7618 = vmatpush1.bf16.msra.mxu0 %v6554
    %7619 = vmatprep.subr.bf16.mxu0 %v6563
    %7620 = vmatpush1.bf16.msra.mxu0 %v6562
    %7621 = vmatprep.subr.bf16.mxu0 %v6571
    %7622 = vmatpush1.bf16.msra.mxu0 %v6570
    %7623 = vmatprep.subr.bf16.mxu0 %v6579
    %7624 = vmatpush1.bf16.msra.mxu0 %v6578
    %7625 = vmatprep.subr.bf16.mxu0 %v6587
    %7626 = vmatpush1.bf16.msra.mxu0 %v6586
    %7627 = vmatprep.subr.bf16.mxu0 %v6595
    %7628 = vmatpush1.bf16.msra.mxu0 %v6594
    %7629 = vmatprep.subr.bf16.mxu0 %v6603
    %7630 = vmatpush1.bf16.msra.mxu0 %v6602
    %7631 = vmatprep.subr.bf16.mxu0 %v6611
    %7632 = vmatpush1.bf16.msra.mxu0 %v6610
    %7633 = vmatprep.subr.bf16.mxu0 %v6619
    %7634 = vmatpush1.bf16.msra.mxu0 %v6618
    %7635 = vmatprep.subr.bf16.mxu0 %v6627
    %7636 = vmatpush1.bf16.msra.mxu0 %v6626
    %7637 = vmatprep.mubr.bf16.mxu0 %v4281
    %7638 = vmatmul.mubr.bf16.gmra.mrb[0].mxu0 %v4280
    %v7639 = vpop.f32.mrb[0].mxu0
    %v7640 = vadd.f32 %v7599, %v7639
    %v7641 = vpop.f32.mrb[0].mxu0
    %v7642 = vadd.f32 %v7601, %v7641
    %v7643 = vpop.f32.mrb[0].mxu0
    %v7644 = vpop.f32.mrb[0].mxu0
    %7645 = vdwg.mxu0
    %7646 = vmatprep.subr.bf16.mxu0 %v6635
    %7647 = vmatpush1.bf16.msra.mxu0 %v6634
    %7648 = vmatprep.subr.bf16.mxu0 %v6643
    %7649 = vmatpush1.bf16.msra.mxu0 %v6642
    %7650 = vmatprep.subr.bf16.mxu0 %v6651
    %7651 = vmatpush1.bf16.msra.mxu0 %v6650
    %7652 = vmatprep.subr.bf16.mxu0 %v6659
    %7653 = vmatpush1.bf16.msra.mxu0 %v6658
    %7654 = vmatprep.subr.bf16.mxu0 %v6667
    %7655 = vmatpush1.bf16.msra.mxu0 %v6666
    %7656 = vmatprep.subr.bf16.mxu0 %v6675
    %7657 = vmatpush1.bf16.msra.mxu0 %v6674
    %7658 = vmatprep.subr.bf16.mxu0 %v6683
    %7659 = vmatpush1.bf16.msra.mxu0 %v6682
    %7660 = vmatprep.subr.bf16.mxu0 %v6691
    %7661 = vmatpush1.bf16.msra.mxu0 %v6690
    %7662 = vmatprep.subr.bf16.mxu0 %v6699
    %7663 = vmatpush1.bf16.msra.mxu0 %v6698
    %7664 = vmatprep.subr.bf16.mxu0 %v6707
    %7665 = vmatpush1.bf16.msra.mxu0 %v6706
    %7666 = vmatprep.subr.bf16.mxu0 %v6715
    %7667 = vmatpush1.bf16.msra.mxu0 %v6714
    %7668 = vmatprep.subr.bf16.mxu0 %v6723
    %7669 = vmatpush1.bf16.msra.mxu0 %v6722
    %7670 = vmatprep.subr.bf16.mxu0 %v6731
    %7671 = vmatpush1.bf16.msra.mxu0 %v6730
    %7672 = vmatprep.subr.bf16.mxu0 %v6739
    %7673 = vmatpush1.bf16.msra.mxu0 %v6738
    %7674 = vmatprep.subr.bf16.mxu0 %v6747
    %7675 = vmatpush1.bf16.msra.mxu0 %v6746
    %7676 = vmatprep.subr.bf16.mxu0 %v6755
    %7677 = vmatpush1.bf16.msra.mxu0 %v6754
    %7678 = vmatprep.mubr.bf16.mxu0 %v4283
    %7679 = vmatmul.mubr.bf16.gmra.mrb[0].mxu0 %v4282
    %v7680 = vpop.f32.mrb[0].mxu0
    %v7681 = vadd.f32 %v7640, %v7680
    %v7682 = vpop.f32.mrb[0].mxu0
    %v7683 = vadd.f32 %v7642, %v7682
    %v7684 = vpop.f32.mrb[0].mxu0
    %v7685 = vpop.f32.mrb[0].mxu0
    %7686 = vdwg.mxu0
    %7687 = vmatprep.subr.bf16.mxu0 %v6763
    %7688 = vmatpush1.bf16.msra.mxu0 %v6762
    %7689 = vmatprep.subr.bf16.mxu0 %v6771
    %7690 = vmatpush1.bf16.msra.mxu0 %v6770
    %7691 = vmatprep.subr.bf16.mxu0 %v6779
    %7692 = vmatpush1.bf16.msra.mxu0 %v6778
    %7693 = vmatprep.subr.bf16.mxu0 %v6787
    %7694 = vmatpush1.bf16.msra.mxu0 %v6786
    %7695 = vmatprep.subr.bf16.mxu0 %v6795
    %7696 = vmatpush1.bf16.msra.mxu0 %v6794
    %7697 = vmatprep.subr.bf16.mxu0 %v6803
    %7698 = vmatpush1.bf16.msra.mxu0 %v6802
    %7699 = vmatprep.subr.bf16.mxu0 %v6811
    %7700 = vmatpush1.bf16.msra.mxu0 %v6810
    %7701 = vmatprep.subr.bf16.mxu0 %v6819
    %7702 = vmatpush1.bf16.msra.mxu0 %v6818
    %7703 = vmatprep.subr.bf16.mxu0 %v6827
    %7704 = vmatpush1.bf16.msra.mxu0 %v6826
    %7705 = vmatprep.subr.bf16.mxu0 %v6835
    %7706 = vmatpush1.bf16.msra.mxu0 %v6834
    %7707 = vmatprep.subr.bf16.mxu0 %v6843
    %7708 = vmatpush1.bf16.msra.mxu0 %v6842
    %7709 = vmatprep.subr.bf16.mxu0 %v6851
    %7710 = vmatpush1.bf16.msra.mxu0 %v6850
    %7711 = vmatprep.subr.bf16.mxu0 %v6859
    %7712 = vmatpush1.bf16.msra.mxu0 %v6858
    %7713 = vmatprep.subr.bf16.mxu0 %v6867
    %7714 = vmatpush1.bf16.msra.mxu0 %v6866
    %7715 = vmatprep.subr.bf16.mxu0 %v6875
    %7716 = vmatpush1.bf16.msra.mxu0 %v6874
    %7717 = vmatprep.subr.bf16.mxu0 %v6883
    %7718 = vmatpush1.bf16.msra.mxu0 %v6882
    %7719 = vmatprep.mubr.bf16.mxu0 %v4285
    %7720 = vmatmul.mubr.bf16.gmra.mrb[0].mxu0 %v4284
    %v7721 = vpop.f32.mrb[0].mxu0
    %v7722 = vadd.f32 %v7681, %v7721
    %v7723 = vpop.f32.mrb[0].mxu0
    %v7724 = vadd.f32 %v7683, %v7723
    %v7725 = vpop.f32.mrb[0].mxu0
    %v7726 = vpop.f32.mrb[0].mxu0
    %7727 = vdwg.mxu0
    %7728 = vmatprep.subr.bf16.mxu0 %v6381
    %7729 = vmatpush1.bf16.msra.mxu0 %v6380
    %7730 = vmatprep.subr.bf16.mxu0 %v6389
    %7731 = vmatpush1.bf16.msra.mxu0 %v6388
    %7732 = vmatprep.subr.bf16.mxu0 %v6397
    %7733 = vmatpush1.bf16.msra.mxu0 %v6396
    %7734 = vmatprep.subr.bf16.mxu0 %v6405
    %7735 = vmatpush1.bf16.msra.mxu0 %v6404
    %7736 = vmatprep.subr.bf16.mxu0 %v6413
    %7737 = vmatpush1.bf16.msra.mxu0 %v6412
    %7738 = vmatprep.subr.bf16.mxu0 %v6421
    %7739 = vmatpush1.bf16.msra.mxu0 %v6420
    %7740 = vmatprep.subr.bf16.mxu0 %v6429
    %7741 = vmatpush1.bf16.msra.mxu0 %v6428
    %7742 = vmatprep.subr.bf16.mxu0 %v6437
    %7743 = vmatpush1.bf16.msra.mxu0 %v6436
    %7744 = vmatprep.subr.bf16.mxu0 %v6445
    %7745 = vmatpush1.bf16.msra.mxu0 %v6444
    %7746 = vmatprep.subr.bf16.mxu0 %v6453
    %7747 = vmatpush1.bf16.msra.mxu0 %v6452
    %7748 = vmatprep.subr.bf16.mxu0 %v6461
    %7749 = vmatpush1.bf16.msra.mxu0 %v6460
    %7750 = vmatprep.subr.bf16.mxu0 %v6469
    %7751 = vmatpush1.bf16.msra.mxu0 %v6468
    %7752 = vmatprep.subr.bf16.mxu0 %v6477
    %7753 = vmatpush1.bf16.msra.mxu0 %v6476
    %7754 = vmatprep.subr.bf16.mxu0 %v6485
    %7755 = vmatpush1.bf16.msra.mxu0 %v6484
    %7756 = vmatprep.subr.bf16.mxu0 %v6493
    %7757 = vmatpush1.bf16.msra.mxu0 %v6492
    %7758 = vmatprep.subr.bf16.mxu0 %v6501
    %7759 = vmatpush1.bf16.msra.mxu0 %v6500
    %7760 = vmatprep.mubr.bf16.mxu0 %v4279
    %7761 = vmatmul.mubr.bf16.gmra.mrb[0].mxu0 %v4278
    %v7762 = vpop.f32.mrb[0].mxu0
    %v7763 = vadd.f32 %v4819, %v7762
    %v7764 = vpop.f32.mrb[0].mxu0
    %v7765 = vadd.f32 %v4823, %v7764
    %v7766 = vpop.f32.mrb[0].mxu0
    %v7767 = vpop.f32.mrb[0].mxu0
    %7768 = vdwg.mxu0
    %7769 = vmatprep.subr.bf16.mxu0 %v6509
    %7770 = vmatpush1.bf16.msra.mxu0 %v6508
    %7771 = vmatprep.subr.bf16.mxu0 %v6517
    %7772 = vmatpush1.bf16.msra.mxu0 %v6516
    %7773 = vmatprep.subr.bf16.mxu0 %v6525
    %7774 = vmatpush1.bf16.msra.mxu0 %v6524
    %7775 = vmatprep.subr.bf16.mxu0 %v6533
    %7776 = vmatpush1.bf16.msra.mxu0 %v6532
    %7777 = vmatprep.subr.bf16.mxu0 %v6541
    %7778 = vmatpush1.bf16.msra.mxu0 %v6540
    %7779 = vmatprep.subr.bf16.mxu0 %v6549
    %7780 = vmatpush1.bf16.msra.mxu0 %v6548
    %7781 = vmatprep.subr.bf16.mxu0 %v6557
    %7782 = vmatpush1.bf16.msra.mxu0 %v6556
    %7783 = vmatprep.subr.bf16.mxu0 %v6565
    %7784 = vmatpush1.bf16.msra.mxu0 %v6564
    %7785 = vmatprep.subr.bf16.mxu0 %v6573
    %7786 = vmatpush1.bf16.msra.mxu0 %v6572
    %7787 = vmatprep.subr.bf16.mxu0 %v6581
    %7788 = vmatpush1.bf16.msra.mxu0 %v6580
    %7789 = vmatprep.subr.bf16.mxu0 %v6589
    %7790 = vmatpush1.bf16.msra.mxu0 %v6588
    %7791 = vmatprep.subr.bf16.mxu0 %v6597
    %7792 = vmatpush1.bf16.msra.mxu0 %v6596
    %7793 = vmatprep.subr.bf16.mxu0 %v6605
    %7794 = vmatpush1.bf16.msra.mxu0 %v6604
    %7795 = vmatprep.subr.bf16.mxu0 %v6613
    %7796 = vmatpush1.bf16.msra.mxu0 %v6612
    %7797 = vmatprep.subr.bf16.mxu0 %v6621
    %7798 = vmatpush1.bf16.msra.mxu0 %v6620
    %7799 = vmatprep.subr.bf16.mxu0 %v6629
    %7800 = vmatpush1.bf16.msra.mxu0 %v6628
    %7801 = vmatprep.mubr.bf16.mxu0 %v4281
    %7802 = vmatmul.mubr.bf16.gmra.mrb[0].mxu0 %v4280
    %v7803 = vpop.f32.mrb[0].mxu0
    %v7804 = vadd.f32 %v7763, %v7803
    %v7805 = vpop.f32.mrb[0].mxu0
    %v7806 = vadd.f32 %v7765, %v7805
    %v7807 = vpop.f32.mrb[0].mxu0
    %v7808 = vpop.f32.mrb[0].mxu0
    %7809 = vdwg.mxu0
    %7810 = vmatprep.subr.bf16.mxu0 %v6637
    %7811 = vmatpush1.bf16.msra.mxu0 %v6636
    %7812 = vmatprep.subr.bf16.mxu0 %v6645
    %7813 = vmatpush1.bf16.msra.mxu0 %v6644
    %7814 = vmatprep.subr.bf16.mxu0 %v6653
    %7815 = vmatpush1.bf16.msra.mxu0 %v6652
    %7816 = vmatprep.subr.bf16.mxu0 %v6661
    %7817 = vmatpush1.bf16.msra.mxu0 %v6660
    %7818 = vmatprep.subr.bf16.mxu0 %v6669
    %7819 = vmatpush1.bf16.msra.mxu0 %v6668
    %7820 = vmatprep.subr.bf16.mxu0 %v6677
    %7821 = vmatpush1.bf16.msra.mxu0 %v6676
    %7822 = vmatprep.subr.bf16.mxu0 %v6685
    %7823 = vmatpush1.bf16.msra.mxu0 %v6684
    %7824 = vmatprep.subr.bf16.mxu0 %v6693
    %7825 = vmatpush1.bf16.msra.mxu0 %v6692
    %7826 = vmatprep.subr.bf16.mxu0 %v6701
    %7827 = vmatpush1.bf16.msra.mxu0 %v6700
    %7828 = vmatprep.subr.bf16.mxu0 %v6709
    %7829 = vmatpush1.bf16.msra.mxu0 %v6708
    %7830 = vmatprep.subr.bf16.mxu0 %v6717
    %7831 = vmatpush1.bf16.msra.mxu0 %v6716
    %7832 = vmatprep.subr.bf16.mxu0 %v6725
    %7833 = vmatpush1.bf16.msra.mxu0 %v6724
    %7834 = vmatprep.subr.bf16.mxu0 %v6733
    %7835 = vmatpush1.bf16.msra.mxu0 %v6732
    %7836 = vmatprep.subr.bf16.mxu0 %v6741
    %7837 = vmatpush1.bf16.msra.mxu0 %v6740
    %7838 = vmatprep.subr.bf16.mxu0 %v6749
    %7839 = vmatpush1.bf16.msra.mxu0 %v6748
    %7840 = vmatprep.subr.bf16.mxu0 %v6757
    %7841 = vmatpush1.bf16.msra.mxu0 %v6756
    %7842 = vmatprep.mubr.bf16.mxu0 %v4283
    %7843 = vmatmul.mubr.bf16.gmra.mrb[0].mxu0 %v4282
    %v7844 = vpop.f32.mrb[0].mxu0
    %v7845 = vadd.f32 %v7804, %v7844
    %v7846 = vpop.f32.mrb[0].mxu0
    %v7847 = vadd.f32 %v7806, %v7846
    %v7848 = vpop.f32.mrb[0].mxu0
    %v7849 = vpop.f32.mrb[0].mxu0
    %7850 = vdwg.mxu0
    %7851 = vmatprep.subr.bf16.mxu0 %v6765
    %7852 = vmatpush1.bf16.msra.mxu0 %v6764
    %7853 = vmatprep.subr.bf16.mxu0 %v6773
    %7854 = vmatpush1.bf16.msra.mxu0 %v6772
    %7855 = vmatprep.subr.bf16.mxu0 %v6781
    %7856 = vmatpush1.bf16.msra.mxu0 %v6780
    %7857 = vmatprep.subr.bf16.mxu0 %v6789
    %7858 = vmatpush1.bf16.msra.mxu0 %v6788
    %7859 = vmatprep.subr.bf16.mxu0 %v6797
    %7860 = vmatpush1.bf16.msra.mxu0 %v6796
    %7861 = vmatprep.subr.bf16.mxu0 %v6805
    %7862 = vmatpush1.bf16.msra.mxu0 %v6804
    %7863 = vmatprep.subr.bf16.mxu0 %v6813
    %7864 = vmatpush1.bf16.msra.mxu0 %v6812
    %7865 = vmatprep.subr.bf16.mxu0 %v6821
    %7866 = vmatpush1.bf16.msra.mxu0 %v6820
    %7867 = vmatprep.subr.bf16.mxu0 %v6829
    %7868 = vmatpush1.bf16.msra.mxu0 %v6828
    %7869 = vmatprep.subr.bf16.mxu0 %v6837
    %7870 = vmatpush1.bf16.msra.mxu0 %v6836
    %7871 = vmatprep.subr.bf16.mxu0 %v6845
    %7872 = vmatpush1.bf16.msra.mxu0 %v6844
    %7873 = vmatprep.subr.bf16.mxu0 %v6853
    %7874 = vmatpush1.bf16.msra.mxu0 %v6852
    %7875 = vmatprep.subr.bf16.mxu0 %v6861
    %7876 = vmatpush1.bf16.msra.mxu0 %v6860
    %7877 = vmatprep.subr.bf16.mxu0 %v6869
    %7878 = vmatpush1.bf16.msra.mxu0 %v6868
    %7879 = vmatprep.subr.bf16.mxu0 %v6877
    %7880 = vmatpush1.bf16.msra.mxu0 %v6876
    %7881 = vmatprep.subr.bf16.mxu0 %v6885
    %7882 = vmatpush1.bf16.msra.mxu0 %v6884
    %7883 = vmatprep.mubr.bf16.mxu0 %v4285
    %7884 = vmatmul.mubr.bf16.gmra.mrb[0].mxu0 %v4284
    %v7885 = vpop.f32.mrb[0].mxu0
    %v7886 = vadd.f32 %v7845, %v7885
    %v7887 = vpop.f32.mrb[0].mxu0
    %v7888 = vadd.f32 %v7847, %v7887
    %v7889 = vpop.f32.mrb[0].mxu0
    %v7890 = vpop.f32.mrb[0].mxu0
    %7891 = vdwg.mxu0
    %7892 = vmatprep.subr.bf16.mxu0 %v6383
    %7893 = vmatpush1.bf16.msra.mxu0 %v6382
    %7894 = vmatprep.subr.bf16.mxu0 %v6391
    %7895 = vmatpush1.bf16.msra.mxu0 %v6390
    %7896 = vmatprep.subr.bf16.mxu0 %v6399
    %7897 = vmatpush1.bf16.msra.mxu0 %v6398
    %7898 = vmatprep.subr.bf16.mxu0 %v6407
    %7899 = vmatpush1.bf16.msra.mxu0 %v6406
    %7900 = vmatprep.subr.bf16.mxu0 %v6415
    %7901 = vmatpush1.bf16.msra.mxu0 %v6414
    %7902 = vmatprep.subr.bf16.mxu0 %v6423
    %7903 = vmatpush1.bf16.msra.mxu0 %v6422
    %7904 = vmatprep.subr.bf16.mxu0 %v6431
    %7905 = vmatpush1.bf16.msra.mxu0 %v6430
    %7906 = vmatprep.subr.bf16.mxu0 %v6439
    %7907 = vmatpush1.bf16.msra.mxu0 %v6438
    %7908 = vmatprep.subr.bf16.mxu0 %v6447
    %7909 = vmatpush1.bf16.msra.mxu0 %v6446
    %7910 = vmatprep.subr.bf16.mxu0 %v6455
    %7911 = vmatpush1.bf16.msra.mxu0 %v6454
    %7912 = vmatprep.subr.bf16.mxu0 %v6463
    %7913 = vmatpush1.bf16.msra.mxu0 %v6462
    %7914 = vmatprep.subr.bf16.mxu0 %v6471
    %7915 = vmatpush1.bf16.msra.mxu0 %v6470
    %7916 = vmatprep.subr.bf16.mxu0 %v6479
    %7917 = vmatpush1.bf16.msra.mxu0 %v6478
    %7918 = vmatprep.subr.bf16.mxu0 %v6487
    %7919 = vmatpush1.bf16.msra.mxu0 %v6486
    %7920 = vmatprep.subr.bf16.mxu0 %v6495
    %7921 = vmatpush1.bf16.msra.mxu0 %v6494
    %7922 = vmatprep.subr.bf16.mxu0 %v6503
    %7923 = vmatpush1.bf16.msra.mxu0 %v6502
    %7924 = vmatprep.mubr.bf16.mxu0 %v4279
    %7925 = vmatmul.mubr.bf16.gmra.mrb[0].mxu0 %v4278
    %v7926 = vpop.f32.mrb[0].mxu0
    %v7927 = vadd.f32 %v4827, %v7926
    %v7928 = vpop.f32.mrb[0].mxu0
    %v7929 = vadd.f32 %v4831, %v7928
    %v7930 = vpop.f32.mrb[0].mxu0
    %v7931 = vpop.f32.mrb[0].mxu0
    %7932 = vdwg.mxu0
    %7933 = vmatprep.subr.bf16.mxu0 %v6511
    %7934 = vmatpush1.bf16.msra.mxu0 %v6510
    %7935 = vmatprep.subr.bf16.mxu0 %v6519
    %7936 = vmatpush1.bf16.msra.mxu0 %v6518
    %7937 = vmatprep.subr.bf16.mxu0 %v6527
    %7938 = vmatpush1.bf16.msra.mxu0 %v6526
    %7939 = vmatprep.subr.bf16.mxu0 %v6535
    %7940 = vmatpush1.bf16.msra.mxu0 %v6534
    %7941 = vmatprep.subr.bf16.mxu0 %v6543
    %7942 = vmatpush1.bf16.msra.mxu0 %v6542
    %7943 = vmatprep.subr.bf16.mxu0 %v6551
    %7944 = vmatpush1.bf16.msra.mxu0 %v6550
    %7945 = vmatprep.subr.bf16.mxu0 %v6559
    %7946 = vmatpush1.bf16.msra.mxu0 %v6558
    %7947 = vmatprep.subr.bf16.mxu0 %v6567
    %7948 = vmatpush1.bf16.msra.mxu0 %v6566
    %7949 = vmatprep.subr.bf16.mxu0 %v6575
    %7950 = vmatpush1.bf16.msra.mxu0 %v6574
    %7951 = vmatprep.subr.bf16.mxu0 %v6583
    %7952 = vmatpush1.bf16.msra.mxu0 %v6582
    %7953 = vmatprep.subr.bf16.mxu0 %v6591
    %7954 = vmatpush1.bf16.msra.mxu0 %v6590
    %7955 = vmatprep.subr.bf16.mxu0 %v6599
    %7956 = vmatpush1.bf16.msra.mxu0 %v6598
    %7957 = vmatprep.subr.bf16.mxu0 %v6607
    %7958 = vmatpush1.bf16.msra.mxu0 %v6606
    %7959 = vmatprep.subr.bf16.mxu0 %v6615
    %7960 = vmatpush1.bf16.msra.mxu0 %v6614
    %7961 = vmatprep.subr.bf16.mxu0 %v6623
    %7962 = vmatpush1.bf16.msra.mxu0 %v6622
    %7963 = vmatprep.subr.bf16.mxu0 %v6631
    %7964 = vmatpush1.bf16.msra.mxu0 %v6630
    %7965 = vmatprep.mubr.bf16.mxu0 %v4281
    %7966 = vmatmul.mubr.bf16.gmra.mrb[0].mxu0 %v4280
    %v7967 = vpop.f32.mrb[0].mxu0
    %v7968 = vadd.f32 %v7927, %v7967
    %v7969 = vpop.f32.mrb[0].mxu0
    %v7970 = vadd.f32 %v7929, %v7969
    %v7971 = vpop.f32.mrb[0].mxu0
    %v7972 = vpop.f32.mrb[0].mxu0
    %7973 = vdwg.mxu0
    %7974 = vmatprep.subr.bf16.mxu0 %v6639
    %7975 = vmatpush1.bf16.msra.mxu0 %v6638
    %7976 = vmatprep.subr.bf16.mxu0 %v6647
    %7977 = vmatpush1.bf16.msra.mxu0 %v6646
    %7978 = vmatprep.subr.bf16.mxu0 %v6655
    %7979 = vmatpush1.bf16.msra.mxu0 %v6654
    %7980 = vmatprep.subr.bf16.mxu0 %v6663
    %7981 = vmatpush1.bf16.msra.mxu0 %v6662
    %7982 = vmatprep.subr.bf16.mxu0 %v6671
    %7983 = vmatpush1.bf16.msra.mxu0 %v6670
    %7984 = vmatprep.subr.bf16.mxu0 %v6679
    %7985 = vmatpush1.bf16.msra.mxu0 %v6678
    %7986 = vmatprep.subr.bf16.mxu0 %v6687
    %7987 = vmatpush1.bf16.msra.mxu0 %v6686
    %7988 = vmatprep.subr.bf16.mxu0 %v6695
    %7989 = vmatpush1.bf16.msra.mxu0 %v6694
    %7990 = vmatprep.subr.bf16.mxu0 %v6703
    %7991 = vmatpush1.bf16.msra.mxu0 %v6702
    %7992 = vmatprep.subr.bf16.mxu0 %v6711
    %7993 = vmatpush1.bf16.msra.mxu0 %v6710
    %7994 = vmatprep.subr.bf16.mxu0 %v6719
    %7995 = vmatpush1.bf16.msra.mxu0 %v6718
    %7996 = vmatprep.subr.bf16.mxu0 %v6727
    %7997 = vmatpush1.bf16.msra.mxu0 %v6726
    %7998 = vmatprep.subr.bf16.mxu0 %v6735
    %7999 = vmatpush1.bf16.msra.mxu0 %v6734
    %8000 = vmatprep.subr.bf16.mxu0 %v6743
    %8001 = vmatpush1.bf16.msra.mxu0 %v6742
    %8002 = vmatprep.subr.bf16.mxu0 %v6751
    %8003 = vmatpush1.bf16.msra.mxu0 %v6750
    %8004 = vmatprep.subr.bf16.mxu0 %v6759
    %8005 = vmatpush1.bf16.msra.mxu0 %v6758
    %8006 = vmatprep.mubr.bf16.mxu0 %v4283
    %8007 = vmatmul.mubr.bf16.gmra.mrb[0].mxu0 %v4282
    %v8008 = vpop.f32.mrb[0].mxu0
    %v8009 = vadd.f32 %v7968, %v8008
    %v8010 = vpop.f32.mrb[0].mxu0
    %v8011 = vadd.f32 %v7970, %v8010
    %v8012 = vpop.f32.mrb[0].mxu0
    %v8013 = vpop.f32.mrb[0].mxu0
    %8014 = vdwg.mxu0
    %8015 = vmatprep.subr.bf16.mxu0 %v6767
    %8016 = vmatpush1.bf16.msra.mxu0 %v6766
    %8017 = vmatprep.subr.bf16.mxu0 %v6775
    %8018 = vmatpush1.bf16.msra.mxu0 %v6774
    %8019 = vmatprep.subr.bf16.mxu0 %v6783
    %8020 = vmatpush1.bf16.msra.mxu0 %v6782
    %8021 = vmatprep.subr.bf16.mxu0 %v6791
    %8022 = vmatpush1.bf16.msra.mxu0 %v6790
    %8023 = vmatprep.subr.bf16.mxu0 %v6799
    %8024 = vmatpush1.bf16.msra.mxu0 %v6798
    %8025 = vmatprep.subr.bf16.mxu0 %v6807
    %8026 = vmatpush1.bf16.msra.mxu0 %v6806
    %8027 = vmatprep.subr.bf16.mxu0 %v6815
    %8028 = vmatpush1.bf16.msra.mxu0 %v6814
    %8029 = vmatprep.subr.bf16.mxu0 %v6823
    %8030 = vmatpush1.bf16.msra.mxu0 %v6822
    %8031 = vmatprep.subr.bf16.mxu0 %v6831
    %8032 = vmatpush1.bf16.msra.mxu0 %v6830
    %8033 = vmatprep.subr.bf16.mxu0 %v6839
    %8034 = vmatpush1.bf16.msra.mxu0 %v6838
    %8035 = vmatprep.subr.bf16.mxu0 %v6847
    %8036 = vmatpush1.bf16.msra.mxu0 %v6846
    %8037 = vmatprep.subr.bf16.mxu0 %v6855
    %8038 = vmatpush1.bf16.msra.mxu0 %v6854
    %8039 = vmatprep.subr.bf16.mxu0 %v6863
    %8040 = vmatpush1.bf16.msra.mxu0 %v6862
    %8041 = vmatprep.subr.bf16.mxu0 %v6871
    %8042 = vmatpush1.bf16.msra.mxu0 %v6870
    %8043 = vmatprep.subr.bf16.mxu0 %v6879
    %8044 = vmatpush1.bf16.msra.mxu0 %v6878
    %8045 = vmatprep.subr.bf16.mxu0 %v6887
    %8046 = vmatpush1.bf16.msra.mxu0 %v6886
    %8047 = vmatprep.mubr.bf16.mxu0 %v4285
    %8048 = vmatmul.mubr.bf16.gmra.mrb[0].mxu0 %v4284
    %v8049 = vpop.f32.mrb[0].mxu0
    %v8050 = vadd.f32 %v8009, %v8049
    %v8051 = vpop.f32.mrb[0].mxu0
    %v8052 = vadd.f32 %v8011, %v8051
    %v8053 = vpop.f32.mrb[0].mxu0
    %v8054 = vpop.f32.mrb[0].mxu0
    %8055 = vdwg.mxu0
    %v8056 = vmax.f32 %v7558, 0.0
    %v8057 = vmax.f32 %v7560, 0.0
    %v8058 = vmax.f32 %v7722, 0.0
    %v8059 = vmax.f32 %v7724, 0.0
    %v8060 = vmax.f32 %v7886, 0.0
    %v8061 = vmax.f32 %v7888, 0.0
    %v8062 = vmax.f32 %v8050, 0.0
    %v8063 = vmax.f32 %v8052, 0.0
    %v8064 = vpack.c.bf16 %v8056, %v8056
    %v8065 = vpack.c.bf16 %v8057, %v8057
    %v8066 = vpack.c.bf16 %v8058, %v8058
    %v8067 = vpack.c.bf16 %v8059, %v8059
    %v8068 = vpack.c.bf16 %v8060, %v8060
    %v8069 = vpack.c.bf16 %v8061, %v8061
    %v8070 = vpack.c.bf16 %v8062, %v8062
    %v8071 = vpack.c.bf16 %v8063, %v8063
    %v8072 = vld [vmem:[#allocation14] sm:$0xff]
    %v8073 = vld [vmem:[#allocation14 + $0x8] sm:$0xff]
    %v8074 = vld [vmem:[#allocation14 + $0x10] sm:$0xff]
    %v8075 = vld [vmem:[#allocation14 + $0x18] sm:$0xff]
    %v8076 = vld [vmem:[#allocation14 + $0x20] sm:$0xff]
    %v8077 = vld [vmem:[#allocation14 + $0x28] sm:$0xff]
    %v8078 = vld [vmem:[#allocation14 + $0x30] sm:$0xff]
    %v8079 = vld [vmem:[#allocation14 + $0x38] sm:$0xff]
    %v8080 = vld [vmem:[#allocation14 + $0x40] sm:$0xff]
    %v8081 = vld [vmem:[#allocation14 + $0x48] sm:$0xff]
    %v8082 = vld [vmem:[#allocation14 + $0x50] sm:$0xff]
    %v8083 = vld [vmem:[#allocation14 + $0x58] sm:$0xff]
    %v8084 = vld [vmem:[#allocation14 + $0x60] sm:$0xff]
    %v8085 = vld [vmem:[#allocation14 + $0x68] sm:$0xff]
    %v8086 = vld [vmem:[#allocation14 + $0x70] sm:$0xff]
    %v8087 = vld [vmem:[#allocation14 + $0x78] sm:$0xff]
    %v8088 = vld [vmem:[#allocation14 + $0x80] sm:$0xff]
    %v8089 = vld [vmem:[#allocation14 + $0x88] sm:$0xff]
    %v8090 = vld [vmem:[#allocation14 + $0x90] sm:$0xff]
    %v8091 = vld [vmem:[#allocation14 + $0x98] sm:$0xff]
    %v8092 = vld [vmem:[#allocation14 + $0xa0] sm:$0xff]
    %v8093 = vld [vmem:[#allocation14 + $0xa8] sm:$0xff]
    %v8094 = vld [vmem:[#allocation14 + $0xb0] sm:$0xff]
    %v8095 = vld [vmem:[#allocation14 + $0xb8] sm:$0xff]
    %v8096 = vld [vmem:[#allocation14 + $0xc0] sm:$0xff]
    %v8097 = vld [vmem:[#allocation14 + $0xc8] sm:$0xff]
    %v8098 = vld [vmem:[#allocation14 + $0xd0] sm:$0xff]
    %v8099 = vld [vmem:[#allocation14 + $0xd8] sm:$0xff]
    %v8100 = vld [vmem:[#allocation14 + $0xe0] sm:$0xff]
    %v8101 = vld [vmem:[#allocation14 + $0xe8] sm:$0xff]
    %v8102 = vld [vmem:[#allocation14 + $0xf0] sm:$0xff]
    %v8103 = vld [vmem:[#allocation14 + $0xf8] sm:$0xff]
    %v8104 = vld [vmem:[#allocation14 + $0x100] sm:$0xff]
    %v8105 = vld [vmem:[#allocation14 + $0x108] sm:$0xff]
    %v8106 = vld [vmem:[#allocation14 + $0x110] sm:$0xff]
    %v8107 = vld [vmem:[#allocation14 + $0x118] sm:$0xff]
    %v8108 = vld [vmem:[#allocation14 + $0x120] sm:$0xff]
    %v8109 = vld [vmem:[#allocation14 + $0x128] sm:$0xff]
    %v8110 = vld [vmem:[#allocation14 + $0x130] sm:$0xff]
    %v8111 = vld [vmem:[#allocation14 + $0x138] sm:$0xff]
    %v8112 = vld [vmem:[#allocation14 + $0x140] sm:$0xff]
    %v8113 = vld [vmem:[#allocation14 + $0x148] sm:$0xff]
    %v8114 = vld [vmem:[#allocation14 + $0x150] sm:$0xff]
    %v8115 = vld [vmem:[#allocation14 + $0x158] sm:$0xff]
    %v8116 = vld [vmem:[#allocation14 + $0x160] sm:$0xff]
    %v8117 = vld [vmem:[#allocation14 + $0x168] sm:$0xff]
    %v8118 = vld [vmem:[#allocation14 + $0x170] sm:$0xff]
    %v8119 = vld [vmem:[#allocation14 + $0x178] sm:$0xff]
    %v8120 = vld [vmem:[#allocation14 + $0x180] sm:$0xff]
    %v8121 = vld [vmem:[#allocation14 + $0x188] sm:$0xff]
    %v8122 = vld [vmem:[#allocation14 + $0x190] sm:$0xff]
    %v8123 = vld [vmem:[#allocation14 + $0x198] sm:$0xff]
    %v8124 = vld [vmem:[#allocation14 + $0x1a0] sm:$0xff]
    %v8125 = vld [vmem:[#allocation14 + $0x1a8] sm:$0xff]
    %v8126 = vld [vmem:[#allocation14 + $0x1b0] sm:$0xff]
    %v8127 = vld [vmem:[#allocation14 + $0x1b8] sm:$0xff]
    %v8128 = vld [vmem:[#allocation14 + $0x1c0] sm:$0xff]
    %v8129 = vld [vmem:[#allocation14 + $0x1c8] sm:$0xff]
    %v8130 = vld [vmem:[#allocation14 + $0x1d0] sm:$0xff]
    %v8131 = vld [vmem:[#allocation14 + $0x1d8] sm:$0xff]
    %v8132 = vld [vmem:[#allocation14 + $0x1e0] sm:$0xff]
    %v8133 = vld [vmem:[#allocation14 + $0x1e8] sm:$0xff]
    %v8134 = vld [vmem:[#allocation14 + $0x1f0] sm:$0xff]
    %v8135 = vld [vmem:[#allocation14 + $0x1f8] sm:$0xff]
    %v8136 = vld [vmem:[#allocation14 + $0x200] sm:$0xff]
    %v8137 = vld [vmem:[#allocation14 + $0x208] sm:$0xff]
    %v8138 = vld [vmem:[#allocation14 + $0x210] sm:$0xff]
    %v8139 = vld [vmem:[#allocation14 + $0x218] sm:$0xff]
    %v8140 = vld [vmem:[#allocation14 + $0x220] sm:$0xff]
    %v8141 = vld [vmem:[#allocation14 + $0x228] sm:$0xff]
    %v8142 = vld [vmem:[#allocation14 + $0x230] sm:$0xff]
    %v8143 = vld [vmem:[#allocation14 + $0x238] sm:$0xff]
    %v8144 = vld [vmem:[#allocation14 + $0x240] sm:$0xff]
    %v8145 = vld [vmem:[#allocation14 + $0x248] sm:$0xff]
    %v8146 = vld [vmem:[#allocation14 + $0x250] sm:$0xff]
    %v8147 = vld [vmem:[#allocation14 + $0x258] sm:$0xff]
    %v8148 = vld [vmem:[#allocation14 + $0x260] sm:$0xff]
    %v8149 = vld [vmem:[#allocation14 + $0x268] sm:$0xff]
    %v8150 = vld [vmem:[#allocation14 + $0x270] sm:$0xff]
    %v8151 = vld [vmem:[#allocation14 + $0x278] sm:$0xff]
    %v8152 = vld [vmem:[#allocation14 + $0x280] sm:$0xff]
    %v8153 = vld [vmem:[#allocation14 + $0x288] sm:$0xff]
    %v8154 = vld [vmem:[#allocation14 + $0x290] sm:$0xff]
    %v8155 = vld [vmem:[#allocation14 + $0x298] sm:$0xff]
    %v8156 = vld [vmem:[#allocation14 + $0x2a0] sm:$0xff]
    %v8157 = vld [vmem:[#allocation14 + $0x2a8] sm:$0xff]
    %v8158 = vld [vmem:[#allocation14 + $0x2b0] sm:$0xff]
    %v8159 = vld [vmem:[#allocation14 + $0x2b8] sm:$0xff]
    %v8160 = vld [vmem:[#allocation14 + $0x2c0] sm:$0xff]
    %v8161 = vld [vmem:[#allocation14 + $0x2c8] sm:$0xff]
    %v8162 = vld [vmem:[#allocation14 + $0x2d0] sm:$0xff]
    %v8163 = vld [vmem:[#allocation14 + $0x2d8] sm:$0xff]
    %v8164 = vld [vmem:[#allocation14 + $0x2e0] sm:$0xff]
    %v8165 = vld [vmem:[#allocation14 + $0x2e8] sm:$0xff]
    %v8166 = vld [vmem:[#allocation14 + $0x2f0] sm:$0xff]
    %v8167 = vld [vmem:[#allocation14 + $0x2f8] sm:$0xff]
    %v8168 = vld [vmem:[#allocation14 + $0x300] sm:$0xff]
    %v8169 = vld [vmem:[#allocation14 + $0x308] sm:$0xff]
    %v8170 = vld [vmem:[#allocation14 + $0x310] sm:$0xff]
    %v8171 = vld [vmem:[#allocation14 + $0x318] sm:$0xff]
    %v8172 = vld [vmem:[#allocation14 + $0x320] sm:$0xff]
    %v8173 = vld [vmem:[#allocation14 + $0x328] sm:$0xff]
    %v8174 = vld [vmem:[#allocation14 + $0x330] sm:$0xff]
    %v8175 = vld [vmem:[#allocation14 + $0x338] sm:$0xff]
    %v8176 = vld [vmem:[#allocation14 + $0x340] sm:$0xff]
    %v8177 = vld [vmem:[#allocation14 + $0x348] sm:$0xff]
    %v8178 = vld [vmem:[#allocation14 + $0x350] sm:$0xff]
    %v8179 = vld [vmem:[#allocation14 + $0x358] sm:$0xff]
    %v8180 = vld [vmem:[#allocation14 + $0x360] sm:$0xff]
    %v8181 = vld [vmem:[#allocation14 + $0x368] sm:$0xff]
    %v8182 = vld [vmem:[#allocation14 + $0x370] sm:$0xff]
    %v8183 = vld [vmem:[#allocation14 + $0x378] sm:$0xff]
    %v8184 = vld [vmem:[#allocation14 + $0x380] sm:$0xff]
    %v8185 = vld [vmem:[#allocation14 + $0x388] sm:$0xff]
    %v8186 = vld [vmem:[#allocation14 + $0x390] sm:$0xff]
    %v8187 = vld [vmem:[#allocation14 + $0x398] sm:$0xff]
    %v8188 = vld [vmem:[#allocation14 + $0x3a0] sm:$0xff]
    %v8189 = vld [vmem:[#allocation14 + $0x3a8] sm:$0xff]
    %v8190 = vld [vmem:[#allocation14 + $0x3b0] sm:$0xff]
    %v8191 = vld [vmem:[#allocation14 + $0x3b8] sm:$0xff]
    %v8192 = vld [vmem:[#allocation14 + $0x3c0] sm:$0xff]
    %v8193 = vld [vmem:[#allocation14 + $0x3c8] sm:$0xff]
    %v8194 = vld [vmem:[#allocation14 + $0x3d0] sm:$0xff]
    %v8195 = vld [vmem:[#allocation14 + $0x3d8] sm:$0xff]
    %v8196 = vld [vmem:[#allocation14 + $0x3e0] sm:$0xff]
    %v8197 = vld [vmem:[#allocation14 + $0x3e8] sm:$0xff]
    %v8198 = vld [vmem:[#allocation14 + $0x3f0] sm:$0xff]
    %v8199 = vld [vmem:[#allocation14 + $0x3f8] sm:$0xff]
    %v8200 = vld [vmem:[#allocation14 + $0x400] sm:$0xff]
    %v8201 = vld [vmem:[#allocation14 + $0x408] sm:$0xff]
    %v8202 = vld [vmem:[#allocation14 + $0x410] sm:$0xff]
    %v8203 = vld [vmem:[#allocation14 + $0x418] sm:$0xff]
    %v8204 = vld [vmem:[#allocation14 + $0x420] sm:$0xff]
    %v8205 = vld [vmem:[#allocation14 + $0x428] sm:$0xff]
    %v8206 = vld [vmem:[#allocation14 + $0x430] sm:$0xff]
    %v8207 = vld [vmem:[#allocation14 + $0x438] sm:$0xff]
    %v8208 = vld [vmem:[#allocation14 + $0x440] sm:$0xff]
    %v8209 = vld [vmem:[#allocation14 + $0x448] sm:$0xff]
    %v8210 = vld [vmem:[#allocation14 + $0x450] sm:$0xff]
    %v8211 = vld [vmem:[#allocation14 + $0x458] sm:$0xff]
    %v8212 = vld [vmem:[#allocation14 + $0x460] sm:$0xff]
    %v8213 = vld [vmem:[#allocation14 + $0x468] sm:$0xff]
    %v8214 = vld [vmem:[#allocation14 + $0x470] sm:$0xff]
    %v8215 = vld [vmem:[#allocation14 + $0x478] sm:$0xff]
    %v8216 = vld [vmem:[#allocation14 + $0x480] sm:$0xff]
    %v8217 = vld [vmem:[#allocation14 + $0x488] sm:$0xff]
    %v8218 = vld [vmem:[#allocation14 + $0x490] sm:$0xff]
    %v8219 = vld [vmem:[#allocation14 + $0x498] sm:$0xff]
    %v8220 = vld [vmem:[#allocation14 + $0x4a0] sm:$0xff]
    %v8221 = vld [vmem:[#allocation14 + $0x4a8] sm:$0xff]
    %v8222 = vld [vmem:[#allocation14 + $0x4b0] sm:$0xff]
    %v8223 = vld [vmem:[#allocation14 + $0x4b8] sm:$0xff]
    %v8224 = vld [vmem:[#allocation14 + $0x4c0] sm:$0xff]
    %v8225 = vld [vmem:[#allocation14 + $0x4c8] sm:$0xff]
    %v8226 = vld [vmem:[#allocation14 + $0x4d0] sm:$0xff]
    %v8227 = vld [vmem:[#allocation14 + $0x4d8] sm:$0xff]
    %v8228 = vld [vmem:[#allocation14 + $0x4e0] sm:$0xff]
    %v8229 = vld [vmem:[#allocation14 + $0x4e8] sm:$0xff]
    %v8230 = vld [vmem:[#allocation14 + $0x4f0] sm:$0xff]
    %v8231 = vld [vmem:[#allocation14 + $0x4f8] sm:$0xff]
    %v8232 = vld [vmem:[#allocation14 + $0x500] sm:$0xff]
    %v8233 = vld [vmem:[#allocation14 + $0x508] sm:$0xff]
    %v8234 = vld [vmem:[#allocation14 + $0x510] sm:$0xff]
    %v8235 = vld [vmem:[#allocation14 + $0x518] sm:$0xff]
    %v8236 = vld [vmem:[#allocation14 + $0x520] sm:$0xff]
    %v8237 = vld [vmem:[#allocation14 + $0x528] sm:$0xff]
    %v8238 = vld [vmem:[#allocation14 + $0x530] sm:$0xff]
    %v8239 = vld [vmem:[#allocation14 + $0x538] sm:$0xff]
    %v8240 = vld [vmem:[#allocation14 + $0x540] sm:$0xff]
    %v8241 = vld [vmem:[#allocation14 + $0x548] sm:$0xff]
    %v8242 = vld [vmem:[#allocation14 + $0x550] sm:$0xff]
    %v8243 = vld [vmem:[#allocation14 + $0x558] sm:$0xff]
    %v8244 = vld [vmem:[#allocation14 + $0x560] sm:$0xff]
    %v8245 = vld [vmem:[#allocation14 + $0x568] sm:$0xff]
    %v8246 = vld [vmem:[#allocation14 + $0x570] sm:$0xff]
    %v8247 = vld [vmem:[#allocation14 + $0x578] sm:$0xff]
    %v8248 = vld [vmem:[#allocation14 + $0x580] sm:$0xff]
    %v8249 = vld [vmem:[#allocation14 + $0x588] sm:$0xff]
    %v8250 = vld [vmem:[#allocation14 + $0x590] sm:$0xff]
    %v8251 = vld [vmem:[#allocation14 + $0x598] sm:$0xff]
    %v8252 = vld [vmem:[#allocation14 + $0x5a0] sm:$0xff]
    %v8253 = vld [vmem:[#allocation14 + $0x5a8] sm:$0xff]
    %v8254 = vld [vmem:[#allocation14 + $0x5b0] sm:$0xff]
    %v8255 = vld [vmem:[#allocation14 + $0x5b8] sm:$0xff]
    %v8256 = vld [vmem:[#allocation14 + $0x5c0] sm:$0xff]
    %v8257 = vld [vmem:[#allocation14 + $0x5c8] sm:$0xff]
    %v8258 = vld [vmem:[#allocation14 + $0x5d0] sm:$0xff]
    %v8259 = vld [vmem:[#allocation14 + $0x5d8] sm:$0xff]
    %v8260 = vld [vmem:[#allocation14 + $0x5e0] sm:$0xff]
    %v8261 = vld [vmem:[#allocation14 + $0x5e8] sm:$0xff]
    %v8262 = vld [vmem:[#allocation14 + $0x5f0] sm:$0xff]
    %v8263 = vld [vmem:[#allocation14 + $0x5f8] sm:$0xff]
    %v8264 = vld [vmem:[#allocation14 + $0x600] sm:$0xff]
    %v8265 = vld [vmem:[#allocation14 + $0x608] sm:$0xff]
    %v8266 = vld [vmem:[#allocation14 + $0x610] sm:$0xff]
    %v8267 = vld [vmem:[#allocation14 + $0x618] sm:$0xff]
    %v8268 = vld [vmem:[#allocation14 + $0x620] sm:$0xff]
    %v8269 = vld [vmem:[#allocation14 + $0x628] sm:$0xff]
    %v8270 = vld [vmem:[#allocation14 + $0x630] sm:$0xff]
    %v8271 = vld [vmem:[#allocation14 + $0x638] sm:$0xff]
    %v8272 = vld [vmem:[#allocation14 + $0x640] sm:$0xff]
    %v8273 = vld [vmem:[#allocation14 + $0x648] sm:$0xff]
    %v8274 = vld [vmem:[#allocation14 + $0x650] sm:$0xff]
    %v8275 = vld [vmem:[#allocation14 + $0x658] sm:$0xff]
    %v8276 = vld [vmem:[#allocation14 + $0x660] sm:$0xff]
    %v8277 = vld [vmem:[#allocation14 + $0x668] sm:$0xff]
    %v8278 = vld [vmem:[#allocation14 + $0x670] sm:$0xff]
    %v8279 = vld [vmem:[#allocation14 + $0x678] sm:$0xff]
    %v8280 = vld [vmem:[#allocation14 + $0x680] sm:$0xff]
    %v8281 = vld [vmem:[#allocation14 + $0x688] sm:$0xff]
    %v8282 = vld [vmem:[#allocation14 + $0x690] sm:$0xff]
    %v8283 = vld [vmem:[#allocation14 + $0x698] sm:$0xff]
    %v8284 = vld [vmem:[#allocation14 + $0x6a0] sm:$0xff]
    %v8285 = vld [vmem:[#allocation14 + $0x6a8] sm:$0xff]
    %v8286 = vld [vmem:[#allocation14 + $0x6b0] sm:$0xff]
    %v8287 = vld [vmem:[#allocation14 + $0x6b8] sm:$0xff]
    %v8288 = vld [vmem:[#allocation14 + $0x6c0] sm:$0xff]
    %v8289 = vld [vmem:[#allocation14 + $0x6c8] sm:$0xff]
    %v8290 = vld [vmem:[#allocation14 + $0x6d0] sm:$0xff]
    %v8291 = vld [vmem:[#allocation14 + $0x6d8] sm:$0xff]
    %v8292 = vld [vmem:[#allocation14 + $0x6e0] sm:$0xff]
    %v8293 = vld [vmem:[#allocation14 + $0x6e8] sm:$0xff]
    %v8294 = vld [vmem:[#allocation14 + $0x6f0] sm:$0xff]
    %v8295 = vld [vmem:[#allocation14 + $0x6f8] sm:$0xff]
    %v8296 = vld [vmem:[#allocation14 + $0x700] sm:$0xff]
    %v8297 = vld [vmem:[#allocation14 + $0x708] sm:$0xff]
    %v8298 = vld [vmem:[#allocation14 + $0x710] sm:$0xff]
    %v8299 = vld [vmem:[#allocation14 + $0x718] sm:$0xff]
    %v8300 = vld [vmem:[#allocation14 + $0x720] sm:$0xff]
    %v8301 = vld [vmem:[#allocation14 + $0x728] sm:$0xff]
    %v8302 = vld [vmem:[#allocation14 + $0x730] sm:$0xff]
    %v8303 = vld [vmem:[#allocation14 + $0x738] sm:$0xff]
    %v8304 = vld [vmem:[#allocation14 + $0x740] sm:$0xff]
    %v8305 = vld [vmem:[#allocation14 + $0x748] sm:$0xff]
    %v8306 = vld [vmem:[#allocation14 + $0x750] sm:$0xff]
    %v8307 = vld [vmem:[#allocation14 + $0x758] sm:$0xff]
    %v8308 = vld [vmem:[#allocation14 + $0x760] sm:$0xff]
    %v8309 = vld [vmem:[#allocation14 + $0x768] sm:$0xff]
    %v8310 = vld [vmem:[#allocation14 + $0x770] sm:$0xff]
    %v8311 = vld [vmem:[#allocation14 + $0x778] sm:$0xff]
    %v8312 = vld [vmem:[#allocation14 + $0x780] sm:$0xff]
    %v8313 = vld [vmem:[#allocation14 + $0x788] sm:$0xff]
    %v8314 = vld [vmem:[#allocation14 + $0x790] sm:$0xff]
    %v8315 = vld [vmem:[#allocation14 + $0x798] sm:$0xff]
    %v8316 = vld [vmem:[#allocation14 + $0x7a0] sm:$0xff]
    %v8317 = vld [vmem:[#allocation14 + $0x7a8] sm:$0xff]
    %v8318 = vld [vmem:[#allocation14 + $0x7b0] sm:$0xff]
    %v8319 = vld [vmem:[#allocation14 + $0x7b8] sm:$0xff]
    %v8320 = vld [vmem:[#allocation14 + $0x7c0] sm:$0xff]
    %v8321 = vld [vmem:[#allocation14 + $0x7c8] sm:$0xff]
    %v8322 = vld [vmem:[#allocation14 + $0x7d0] sm:$0xff]
    %v8323 = vld [vmem:[#allocation14 + $0x7d8] sm:$0xff]
    %v8324 = vld [vmem:[#allocation14 + $0x7e0] sm:$0xff]
    %v8325 = vld [vmem:[#allocation14 + $0x7e8] sm:$0xff]
    %v8326 = vld [vmem:[#allocation14 + $0x7f0] sm:$0xff]
    %v8327 = vld [vmem:[#allocation14 + $0x7f8] sm:$0xff]
    %v8328 = vld [vmem:[#allocation16] sm:$0xf]
    %v8330 = vlaneseq
    %v8331 = vshrl.u32 %v8330, 7
    %v8332 = vsub.s32 0, %v8331
    %v8333 = vrot.slane %v8328, %v8332
    %v8334 = vlaneseq
    %v8335 = vshrl.u32 %v8334, 7
    %v8336 = vsub.s32 1, %v8335
    %v8337 = vrot.slane %v8328, %v8336
    %v8338 = vlaneseq
    %v8339 = vshrl.u32 %v8338, 7
    %v8340 = vsub.s32 2, %v8339
    %v8341 = vrot.slane %v8328, %v8340
    %v8342 = vlaneseq
    %v8343 = vshrl.u32 %v8342, 7
    %v8344 = vsub.s32 3, %v8343
    %v8345 = vrot.slane %v8328, %v8344
    %v8606 = vunpack.c.l.b16 %v8072
    %v8607 = vunpack.c.h.b16 %v8072
    %v8608 = vunpack.c.l.b16 %v8073
    %v8609 = vunpack.c.h.b16 %v8073
    %v8610 = vunpack.c.l.b16 %v8074
    %v8611 = vunpack.c.h.b16 %v8074
    %v8612 = vunpack.c.l.b16 %v8075
    %v8613 = vunpack.c.h.b16 %v8075
    %v8614 = vunpack.c.l.b16 %v8076
    %v8615 = vunpack.c.h.b16 %v8076
    %v8616 = vunpack.c.l.b16 %v8077
    %v8617 = vunpack.c.h.b16 %v8077
    %v8618 = vunpack.c.l.b16 %v8078
    %v8619 = vunpack.c.h.b16 %v8078
    %v8620 = vunpack.c.l.b16 %v8079
    %v8621 = vunpack.c.h.b16 %v8079
    %v8622 = vunpack.c.l.b16 %v8080
    %v8623 = vunpack.c.h.b16 %v8080
    %v8624 = vunpack.c.l.b16 %v8081
    %v8625 = vunpack.c.h.b16 %v8081
    %v8626 = vunpack.c.l.b16 %v8082
    %v8627 = vunpack.c.h.b16 %v8082
    %v8628 = vunpack.c.l.b16 %v8083
    %v8629 = vunpack.c.h.b16 %v8083
    %v8630 = vunpack.c.l.b16 %v8084
    %v8631 = vunpack.c.h.b16 %v8084
    %v8632 = vunpack.c.l.b16 %v8085
    %v8633 = vunpack.c.h.b16 %v8085
    %v8634 = vunpack.c.l.b16 %v8086
    %v8635 = vunpack.c.h.b16 %v8086
    %v8636 = vunpack.c.l.b16 %v8087
    %v8637 = vunpack.c.h.b16 %v8087
    %v8638 = vunpack.c.l.b16 %v8088
    %v8639 = vunpack.c.h.b16 %v8088
    %v8640 = vunpack.c.l.b16 %v8089
    %v8641 = vunpack.c.h.b16 %v8089
    %v8642 = vunpack.c.l.b16 %v8090
    %v8643 = vunpack.c.h.b16 %v8090
    %v8644 = vunpack.c.l.b16 %v8091
    %v8645 = vunpack.c.h.b16 %v8091
    %v8646 = vunpack.c.l.b16 %v8092
    %v8647 = vunpack.c.h.b16 %v8092
    %v8648 = vunpack.c.l.b16 %v8093
    %v8649 = vunpack.c.h.b16 %v8093
    %v8650 = vunpack.c.l.b16 %v8094
    %v8651 = vunpack.c.h.b16 %v8094
    %v8652 = vunpack.c.l.b16 %v8095
    %v8653 = vunpack.c.h.b16 %v8095
    %v8654 = vunpack.c.l.b16 %v8096
    %v8655 = vunpack.c.h.b16 %v8096
    %v8656 = vunpack.c.l.b16 %v8097
    %v8657 = vunpack.c.h.b16 %v8097
    %v8658 = vunpack.c.l.b16 %v8098
    %v8659 = vunpack.c.h.b16 %v8098
    %v8660 = vunpack.c.l.b16 %v8099
    %v8661 = vunpack.c.h.b16 %v8099
    %v8662 = vunpack.c.l.b16 %v8100
    %v8663 = vunpack.c.h.b16 %v8100
    %v8664 = vunpack.c.l.b16 %v8101
    %v8665 = vunpack.c.h.b16 %v8101
    %v8666 = vunpack.c.l.b16 %v8102
    %v8667 = vunpack.c.h.b16 %v8102
    %v8668 = vunpack.c.l.b16 %v8103
    %v8669 = vunpack.c.h.b16 %v8103
    %v8670 = vunpack.c.l.b16 %v8104
    %v8671 = vunpack.c.h.b16 %v8104
    %v8672 = vunpack.c.l.b16 %v8105
    %v8673 = vunpack.c.h.b16 %v8105
    %v8674 = vunpack.c.l.b16 %v8106
    %v8675 = vunpack.c.h.b16 %v8106
    %v8676 = vunpack.c.l.b16 %v8107
    %v8677 = vunpack.c.h.b16 %v8107
    %v8678 = vunpack.c.l.b16 %v8108
    %v8679 = vunpack.c.h.b16 %v8108
    %v8680 = vunpack.c.l.b16 %v8109
    %v8681 = vunpack.c.h.b16 %v8109
    %v8682 = vunpack.c.l.b16 %v8110
    %v8683 = vunpack.c.h.b16 %v8110
    %v8684 = vunpack.c.l.b16 %v8111
    %v8685 = vunpack.c.h.b16 %v8111
    %v8686 = vunpack.c.l.b16 %v8112
    %v8687 = vunpack.c.h.b16 %v8112
    %v8688 = vunpack.c.l.b16 %v8113
    %v8689 = vunpack.c.h.b16 %v8113
    %v8690 = vunpack.c.l.b16 %v8114
    %v8691 = vunpack.c.h.b16 %v8114
    %v8692 = vunpack.c.l.b16 %v8115
    %v8693 = vunpack.c.h.b16 %v8115
    %v8694 = vunpack.c.l.b16 %v8116
    %v8695 = vunpack.c.h.b16 %v8116
    %v8696 = vunpack.c.l.b16 %v8117
    %v8697 = vunpack.c.h.b16 %v8117
    %v8698 = vunpack.c.l.b16 %v8118
    %v8699 = vunpack.c.h.b16 %v8118
    %v8700 = vunpack.c.l.b16 %v8119
    %v8701 = vunpack.c.h.b16 %v8119
    %v8702 = vunpack.c.l.b16 %v8120
    %v8703 = vunpack.c.h.b16 %v8120
    %v8704 = vunpack.c.l.b16 %v8121
    %v8705 = vunpack.c.h.b16 %v8121
    %v8706 = vunpack.c.l.b16 %v8122
    %v8707 = vunpack.c.h.b16 %v8122
    %v8708 = vunpack.c.l.b16 %v8123
    %v8709 = vunpack.c.h.b16 %v8123
    %v8710 = vunpack.c.l.b16 %v8124
    %v8711 = vunpack.c.h.b16 %v8124
    %v8712 = vunpack.c.l.b16 %v8125
    %v8713 = vunpack.c.h.b16 %v8125
    %v8714 = vunpack.c.l.b16 %v8126
    %v8715 = vunpack.c.h.b16 %v8126
    %v8716 = vunpack.c.l.b16 %v8127
    %v8717 = vunpack.c.h.b16 %v8127
    %v8718 = vunpack.c.l.b16 %v8128
    %v8719 = vunpack.c.h.b16 %v8128
    %v8720 = vunpack.c.l.b16 %v8129
    %v8721 = vunpack.c.h.b16 %v8129
    %v8722 = vunpack.c.l.b16 %v8130
    %v8723 = vunpack.c.h.b16 %v8130
    %v8724 = vunpack.c.l.b16 %v8131
    %v8725 = vunpack.c.h.b16 %v8131
    %v8726 = vunpack.c.l.b16 %v8132
    %v8727 = vunpack.c.h.b16 %v8132
    %v8728 = vunpack.c.l.b16 %v8133
    %v8729 = vunpack.c.h.b16 %v8133
    %v8730 = vunpack.c.l.b16 %v8134
    %v8731 = vunpack.c.h.b16 %v8134
    %v8732 = vunpack.c.l.b16 %v8135
    %v8733 = vunpack.c.h.b16 %v8135
    %v8734 = vunpack.c.l.b16 %v8136
    %v8735 = vunpack.c.h.b16 %v8136
    %v8736 = vunpack.c.l.b16 %v8137
    %v8737 = vunpack.c.h.b16 %v8137
    %v8738 = vunpack.c.l.b16 %v8138
    %v8739 = vunpack.c.h.b16 %v8138
    %v8740 = vunpack.c.l.b16 %v8139
    %v8741 = vunpack.c.h.b16 %v8139
    %v8742 = vunpack.c.l.b16 %v8140
    %v8743 = vunpack.c.h.b16 %v8140
    %v8744 = vunpack.c.l.b16 %v8141
    %v8745 = vunpack.c.h.b16 %v8141
    %v8746 = vunpack.c.l.b16 %v8142
    %v8747 = vunpack.c.h.b16 %v8142
    %v8748 = vunpack.c.l.b16 %v8143
    %v8749 = vunpack.c.h.b16 %v8143
    %v8750 = vunpack.c.l.b16 %v8144
    %v8751 = vunpack.c.h.b16 %v8144
    %v8752 = vunpack.c.l.b16 %v8145
    %v8753 = vunpack.c.h.b16 %v8145
    %v8754 = vunpack.c.l.b16 %v8146
    %v8755 = vunpack.c.h.b16 %v8146
    %v8756 = vunpack.c.l.b16 %v8147
    %v8757 = vunpack.c.h.b16 %v8147
    %v8758 = vunpack.c.l.b16 %v8148
    %v8759 = vunpack.c.h.b16 %v8148
    %v8760 = vunpack.c.l.b16 %v8149
    %v8761 = vunpack.c.h.b16 %v8149
    %v8762 = vunpack.c.l.b16 %v8150
    %v8763 = vunpack.c.h.b16 %v8150
    %v8764 = vunpack.c.l.b16 %v8151
    %v8765 = vunpack.c.h.b16 %v8151
    %v8766 = vunpack.c.l.b16 %v8152
    %v8767 = vunpack.c.h.b16 %v8152
    %v8768 = vunpack.c.l.b16 %v8153
    %v8769 = vunpack.c.h.b16 %v8153
    %v8770 = vunpack.c.l.b16 %v8154
    %v8771 = vunpack.c.h.b16 %v8154
    %v8772 = vunpack.c.l.b16 %v8155
    %v8773 = vunpack.c.h.b16 %v8155
    %v8774 = vunpack.c.l.b16 %v8156
    %v8775 = vunpack.c.h.b16 %v8156
    %v8776 = vunpack.c.l.b16 %v8157
    %v8777 = vunpack.c.h.b16 %v8157
    %v8778 = vunpack.c.l.b16 %v8158
    %v8779 = vunpack.c.h.b16 %v8158
    %v8780 = vunpack.c.l.b16 %v8159
    %v8781 = vunpack.c.h.b16 %v8159
    %v8782 = vunpack.c.l.b16 %v8160
    %v8783 = vunpack.c.h.b16 %v8160
    %v8784 = vunpack.c.l.b16 %v8161
    %v8785 = vunpack.c.h.b16 %v8161
    %v8786 = vunpack.c.l.b16 %v8162
    %v8787 = vunpack.c.h.b16 %v8162
    %v8788 = vunpack.c.l.b16 %v8163
    %v8789 = vunpack.c.h.b16 %v8163
    %v8790 = vunpack.c.l.b16 %v8164
    %v8791 = vunpack.c.h.b16 %v8164
    %v8792 = vunpack.c.l.b16 %v8165
    %v8793 = vunpack.c.h.b16 %v8165
    %v8794 = vunpack.c.l.b16 %v8166
    %v8795 = vunpack.c.h.b16 %v8166
    %v8796 = vunpack.c.l.b16 %v8167
    %v8797 = vunpack.c.h.b16 %v8167
    %v8798 = vunpack.c.l.b16 %v8168
    %v8799 = vunpack.c.h.b16 %v8168
    %v8800 = vunpack.c.l.b16 %v8169
    %v8801 = vunpack.c.h.b16 %v8169
    %v8802 = vunpack.c.l.b16 %v8170
    %v8803 = vunpack.c.h.b16 %v8170
    %v8804 = vunpack.c.l.b16 %v8171
    %v8805 = vunpack.c.h.b16 %v8171
    %v8806 = vunpack.c.l.b16 %v8172
    %v8807 = vunpack.c.h.b16 %v8172
    %v8808 = vunpack.c.l.b16 %v8173
    %v8809 = vunpack.c.h.b16 %v8173
    %v8810 = vunpack.c.l.b16 %v8174
    %v8811 = vunpack.c.h.b16 %v8174
    %v8812 = vunpack.c.l.b16 %v8175
    %v8813 = vunpack.c.h.b16 %v8175
    %v8814 = vunpack.c.l.b16 %v8176
    %v8815 = vunpack.c.h.b16 %v8176
    %v8816 = vunpack.c.l.b16 %v8177
    %v8817 = vunpack.c.h.b16 %v8177
    %v8818 = vunpack.c.l.b16 %v8178
    %v8819 = vunpack.c.h.b16 %v8178
    %v8820 = vunpack.c.l.b16 %v8179
    %v8821 = vunpack.c.h.b16 %v8179
    %v8822 = vunpack.c.l.b16 %v8180
    %v8823 = vunpack.c.h.b16 %v8180
    %v8824 = vunpack.c.l.b16 %v8181
    %v8825 = vunpack.c.h.b16 %v8181
    %v8826 = vunpack.c.l.b16 %v8182
    %v8827 = vunpack.c.h.b16 %v8182
    %v8828 = vunpack.c.l.b16 %v8183
    %v8829 = vunpack.c.h.b16 %v8183
    %v8830 = vunpack.c.l.b16 %v8184
    %v8831 = vunpack.c.h.b16 %v8184
    %v8832 = vunpack.c.l.b16 %v8185
    %v8833 = vunpack.c.h.b16 %v8185
    %v8834 = vunpack.c.l.b16 %v8186
    %v8835 = vunpack.c.h.b16 %v8186
    %v8836 = vunpack.c.l.b16 %v8187
    %v8837 = vunpack.c.h.b16 %v8187
    %v8838 = vunpack.c.l.b16 %v8188
    %v8839 = vunpack.c.h.b16 %v8188
    %v8840 = vunpack.c.l.b16 %v8189
    %v8841 = vunpack.c.h.b16 %v8189
    %v8842 = vunpack.c.l.b16 %v8190
    %v8843 = vunpack.c.h.b16 %v8190
    %v8844 = vunpack.c.l.b16 %v8191
    %v8845 = vunpack.c.h.b16 %v8191
    %v8846 = vunpack.c.l.b16 %v8192
    %v8847 = vunpack.c.h.b16 %v8192
    %v8848 = vunpack.c.l.b16 %v8193
    %v8849 = vunpack.c.h.b16 %v8193
    %v8850 = vunpack.c.l.b16 %v8194
    %v8851 = vunpack.c.h.b16 %v8194
    %v8852 = vunpack.c.l.b16 %v8195
    %v8853 = vunpack.c.h.b16 %v8195
    %v8854 = vunpack.c.l.b16 %v8196
    %v8855 = vunpack.c.h.b16 %v8196
    %v8856 = vunpack.c.l.b16 %v8197
    %v8857 = vunpack.c.h.b16 %v8197
    %v8858 = vunpack.c.l.b16 %v8198
    %v8859 = vunpack.c.h.b16 %v8198
    %v8860 = vunpack.c.l.b16 %v8199
    %v8861 = vunpack.c.h.b16 %v8199
    %v8862 = vunpack.c.l.b16 %v8200
    %v8863 = vunpack.c.h.b16 %v8200
    %v8864 = vunpack.c.l.b16 %v8201
    %v8865 = vunpack.c.h.b16 %v8201
    %v8866 = vunpack.c.l.b16 %v8202
    %v8867 = vunpack.c.h.b16 %v8202
    %v8868 = vunpack.c.l.b16 %v8203
    %v8869 = vunpack.c.h.b16 %v8203
    %v8870 = vunpack.c.l.b16 %v8204
    %v8871 = vunpack.c.h.b16 %v8204
    %v8872 = vunpack.c.l.b16 %v8205
    %v8873 = vunpack.c.h.b16 %v8205
    %v8874 = vunpack.c.l.b16 %v8206
    %v8875 = vunpack.c.h.b16 %v8206
    %v8876 = vunpack.c.l.b16 %v8207
    %v8877 = vunpack.c.h.b16 %v8207
    %v8878 = vunpack.c.l.b16 %v8208
    %v8879 = vunpack.c.h.b16 %v8208
    %v8880 = vunpack.c.l.b16 %v8209
    %v8881 = vunpack.c.h.b16 %v8209
    %v8882 = vunpack.c.l.b16 %v8210
    %v8883 = vunpack.c.h.b16 %v8210
    %v8884 = vunpack.c.l.b16 %v8211
    %v8885 = vunpack.c.h.b16 %v8211
    %v8886 = vunpack.c.l.b16 %v8212
    %v8887 = vunpack.c.h.b16 %v8212
    %v8888 = vunpack.c.l.b16 %v8213
    %v8889 = vunpack.c.h.b16 %v8213
    %v8890 = vunpack.c.l.b16 %v8214
    %v8891 = vunpack.c.h.b16 %v8214
    %v8892 = vunpack.c.l.b16 %v8215
    %v8893 = vunpack.c.h.b16 %v8215
    %v8894 = vunpack.c.l.b16 %v8216
    %v8895 = vunpack.c.h.b16 %v8216
    %v8896 = vunpack.c.l.b16 %v8217
    %v8897 = vunpack.c.h.b16 %v8217
    %v8898 = vunpack.c.l.b16 %v8218
    %v8899 = vunpack.c.h.b16 %v8218
    %v8900 = vunpack.c.l.b16 %v8219
    %v8901 = vunpack.c.h.b16 %v8219
    %v8902 = vunpack.c.l.b16 %v8220
    %v8903 = vunpack.c.h.b16 %v8220
    %v8904 = vunpack.c.l.b16 %v8221
    %v8905 = vunpack.c.h.b16 %v8221
    %v8906 = vunpack.c.l.b16 %v8222
    %v8907 = vunpack.c.h.b16 %v8222
    %v8908 = vunpack.c.l.b16 %v8223
    %v8909 = vunpack.c.h.b16 %v8223
    %v8910 = vunpack.c.l.b16 %v8224
    %v8911 = vunpack.c.h.b16 %v8224
    %v8912 = vunpack.c.l.b16 %v8225
    %v8913 = vunpack.c.h.b16 %v8225
    %v8914 = vunpack.c.l.b16 %v8226
    %v8915 = vunpack.c.h.b16 %v8226
    %v8916 = vunpack.c.l.b16 %v8227
    %v8917 = vunpack.c.h.b16 %v8227
    %v8918 = vunpack.c.l.b16 %v8228
    %v8919 = vunpack.c.h.b16 %v8228
    %v8920 = vunpack.c.l.b16 %v8229
    %v8921 = vunpack.c.h.b16 %v8229
    %v8922 = vunpack.c.l.b16 %v8230
    %v8923 = vunpack.c.h.b16 %v8230
    %v8924 = vunpack.c.l.b16 %v8231
    %v8925 = vunpack.c.h.b16 %v8231
    %v8926 = vunpack.c.l.b16 %v8232
    %v8927 = vunpack.c.h.b16 %v8232
    %v8928 = vunpack.c.l.b16 %v8233
    %v8929 = vunpack.c.h.b16 %v8233
    %v8930 = vunpack.c.l.b16 %v8234
    %v8931 = vunpack.c.h.b16 %v8234
    %v8932 = vunpack.c.l.b16 %v8235
    %v8933 = vunpack.c.h.b16 %v8235
    %v8934 = vunpack.c.l.b16 %v8236
    %v8935 = vunpack.c.h.b16 %v8236
    %v8936 = vunpack.c.l.b16 %v8237
    %v8937 = vunpack.c.h.b16 %v8237
    %v8938 = vunpack.c.l.b16 %v8238
    %v8939 = vunpack.c.h.b16 %v8238
    %v8940 = vunpack.c.l.b16 %v8239
    %v8941 = vunpack.c.h.b16 %v8239
    %v8942 = vunpack.c.l.b16 %v8240
    %v8943 = vunpack.c.h.b16 %v8240
    %v8944 = vunpack.c.l.b16 %v8241
    %v8945 = vunpack.c.h.b16 %v8241
    %v8946 = vunpack.c.l.b16 %v8242
    %v8947 = vunpack.c.h.b16 %v8242
    %v8948 = vunpack.c.l.b16 %v8243
    %v8949 = vunpack.c.h.b16 %v8243
    %v8950 = vunpack.c.l.b16 %v8244
    %v8951 = vunpack.c.h.b16 %v8244
    %v8952 = vunpack.c.l.b16 %v8245
    %v8953 = vunpack.c.h.b16 %v8245
    %v8954 = vunpack.c.l.b16 %v8246
    %v8955 = vunpack.c.h.b16 %v8246
    %v8956 = vunpack.c.l.b16 %v8247
    %v8957 = vunpack.c.h.b16 %v8247
    %v8958 = vunpack.c.l.b16 %v8248
    %v8959 = vunpack.c.h.b16 %v8248
    %v8960 = vunpack.c.l.b16 %v8249
    %v8961 = vunpack.c.h.b16 %v8249
    %v8962 = vunpack.c.l.b16 %v8250
    %v8963 = vunpack.c.h.b16 %v8250
    %v8964 = vunpack.c.l.b16 %v8251
    %v8965 = vunpack.c.h.b16 %v8251
    %v8966 = vunpack.c.l.b16 %v8252
    %v8967 = vunpack.c.h.b16 %v8252
    %v8968 = vunpack.c.l.b16 %v8253
    %v8969 = vunpack.c.h.b16 %v8253
    %v8970 = vunpack.c.l.b16 %v8254
    %v8971 = vunpack.c.h.b16 %v8254
    %v8972 = vunpack.c.l.b16 %v8255
    %v8973 = vunpack.c.h.b16 %v8255
    %v8974 = vunpack.c.l.b16 %v8256
    %v8975 = vunpack.c.h.b16 %v8256
    %v8976 = vunpack.c.l.b16 %v8257
    %v8977 = vunpack.c.h.b16 %v8257
    %v8978 = vunpack.c.l.b16 %v8258
    %v8979 = vunpack.c.h.b16 %v8258
    %v8980 = vunpack.c.l.b16 %v8259
    %v8981 = vunpack.c.h.b16 %v8259
    %v8982 = vunpack.c.l.b16 %v8260
    %v8983 = vunpack.c.h.b16 %v8260
    %v8984 = vunpack.c.l.b16 %v8261
    %v8985 = vunpack.c.h.b16 %v8261
    %v8986 = vunpack.c.l.b16 %v8262
    %v8987 = vunpack.c.h.b16 %v8262
    %v8988 = vunpack.c.l.b16 %v8263
    %v8989 = vunpack.c.h.b16 %v8263
    %v8990 = vunpack.c.l.b16 %v8264
    %v8991 = vunpack.c.h.b16 %v8264
    %v8992 = vunpack.c.l.b16 %v8265
    %v8993 = vunpack.c.h.b16 %v8265
    %v8994 = vunpack.c.l.b16 %v8266
    %v8995 = vunpack.c.h.b16 %v8266
    %v8996 = vunpack.c.l.b16 %v8267
    %v8997 = vunpack.c.h.b16 %v8267
    %v8998 = vunpack.c.l.b16 %v8268
    %v8999 = vunpack.c.h.b16 %v8268
    %v9000 = vunpack.c.l.b16 %v8269
    %v9001 = vunpack.c.h.b16 %v8269
    %v9002 = vunpack.c.l.b16 %v8270
    %v9003 = vunpack.c.h.b16 %v8270
    %v9004 = vunpack.c.l.b16 %v8271
    %v9005 = vunpack.c.h.b16 %v8271
    %v9006 = vunpack.c.l.b16 %v8272
    %v9007 = vunpack.c.h.b16 %v8272
    %v9008 = vunpack.c.l.b16 %v8273
    %v9009 = vunpack.c.h.b16 %v8273
    %v9010 = vunpack.c.l.b16 %v8274
    %v9011 = vunpack.c.h.b16 %v8274
    %v9012 = vunpack.c.l.b16 %v8275
    %v9013 = vunpack.c.h.b16 %v8275
    %v9014 = vunpack.c.l.b16 %v8276
    %v9015 = vunpack.c.h.b16 %v8276
    %v9016 = vunpack.c.l.b16 %v8277
    %v9017 = vunpack.c.h.b16 %v8277
    %v9018 = vunpack.c.l.b16 %v8278
    %v9019 = vunpack.c.h.b16 %v8278
    %v9020 = vunpack.c.l.b16 %v8279
    %v9021 = vunpack.c.h.b16 %v8279
    %v9022 = vunpack.c.l.b16 %v8280
    %v9023 = vunpack.c.h.b16 %v8280
    %v9024 = vunpack.c.l.b16 %v8281
    %v9025 = vunpack.c.h.b16 %v8281
    %v9026 = vunpack.c.l.b16 %v8282
    %v9027 = vunpack.c.h.b16 %v8282
    %v9028 = vunpack.c.l.b16 %v8283
    %v9029 = vunpack.c.h.b16 %v8283
    %v9030 = vunpack.c.l.b16 %v8284
    %v9031 = vunpack.c.h.b16 %v8284
    %v9032 = vunpack.c.l.b16 %v8285
    %v9033 = vunpack.c.h.b16 %v8285
    %v9034 = vunpack.c.l.b16 %v8286
    %v9035 = vunpack.c.h.b16 %v8286
    %v9036 = vunpack.c.l.b16 %v8287
    %v9037 = vunpack.c.h.b16 %v8287
    %v9038 = vunpack.c.l.b16 %v8288
    %v9039 = vunpack.c.h.b16 %v8288
    %v9040 = vunpack.c.l.b16 %v8289
    %v9041 = vunpack.c.h.b16 %v8289
    %v9042 = vunpack.c.l.b16 %v8290
    %v9043 = vunpack.c.h.b16 %v8290
    %v9044 = vunpack.c.l.b16 %v8291
    %v9045 = vunpack.c.h.b16 %v8291
    %v9046 = vunpack.c.l.b16 %v8292
    %v9047 = vunpack.c.h.b16 %v8292
    %v9048 = vunpack.c.l.b16 %v8293
    %v9049 = vunpack.c.h.b16 %v8293
    %v9050 = vunpack.c.l.b16 %v8294
    %v9051 = vunpack.c.h.b16 %v8294
    %v9052 = vunpack.c.l.b16 %v8295
    %v9053 = vunpack.c.h.b16 %v8295
    %v9054 = vunpack.c.l.b16 %v8296
    %v9055 = vunpack.c.h.b16 %v8296
    %v9056 = vunpack.c.l.b16 %v8297
    %v9057 = vunpack.c.h.b16 %v8297
    %v9058 = vunpack.c.l.b16 %v8298
    %v9059 = vunpack.c.h.b16 %v8298
    %v9060 = vunpack.c.l.b16 %v8299
    %v9061 = vunpack.c.h.b16 %v8299
    %v9062 = vunpack.c.l.b16 %v8300
    %v9063 = vunpack.c.h.b16 %v8300
    %v9064 = vunpack.c.l.b16 %v8301
    %v9065 = vunpack.c.h.b16 %v8301
    %v9066 = vunpack.c.l.b16 %v8302
    %v9067 = vunpack.c.h.b16 %v8302
    %v9068 = vunpack.c.l.b16 %v8303
    %v9069 = vunpack.c.h.b16 %v8303
    %v9070 = vunpack.c.l.b16 %v8304
    %v9071 = vunpack.c.h.b16 %v8304
    %v9072 = vunpack.c.l.b16 %v8305
    %v9073 = vunpack.c.h.b16 %v8305
    %v9074 = vunpack.c.l.b16 %v8306
    %v9075 = vunpack.c.h.b16 %v8306
    %v9076 = vunpack.c.l.b16 %v8307
    %v9077 = vunpack.c.h.b16 %v8307
    %v9078 = vunpack.c.l.b16 %v8308
    %v9079 = vunpack.c.h.b16 %v8308
    %v9080 = vunpack.c.l.b16 %v8309
    %v9081 = vunpack.c.h.b16 %v8309
    %v9082 = vunpack.c.l.b16 %v8310
    %v9083 = vunpack.c.h.b16 %v8310
    %v9084 = vunpack.c.l.b16 %v8311
    %v9085 = vunpack.c.h.b16 %v8311
    %v9086 = vunpack.c.l.b16 %v8312
    %v9087 = vunpack.c.h.b16 %v8312
    %v9088 = vunpack.c.l.b16 %v8313
    %v9089 = vunpack.c.h.b16 %v8313
    %v9090 = vunpack.c.l.b16 %v8314
    %v9091 = vunpack.c.h.b16 %v8314
    %v9092 = vunpack.c.l.b16 %v8315
    %v9093 = vunpack.c.h.b16 %v8315
    %v9094 = vunpack.c.l.b16 %v8316
    %v9095 = vunpack.c.h.b16 %v8316
    %v9096 = vunpack.c.l.b16 %v8317
    %v9097 = vunpack.c.h.b16 %v8317
    %v9098 = vunpack.c.l.b16 %v8318
    %v9099 = vunpack.c.h.b16 %v8318
    %v9100 = vunpack.c.l.b16 %v8319
    %v9101 = vunpack.c.h.b16 %v8319
    %v9102 = vunpack.c.l.b16 %v8320
    %v9103 = vunpack.c.h.b16 %v8320
    %v9104 = vunpack.c.l.b16 %v8321
    %v9105 = vunpack.c.h.b16 %v8321
    %v9106 = vunpack.c.l.b16 %v8322
    %v9107 = vunpack.c.h.b16 %v8322
    %v9108 = vunpack.c.l.b16 %v8323
    %v9109 = vunpack.c.h.b16 %v8323
    %v9110 = vunpack.c.l.b16 %v8324
    %v9111 = vunpack.c.h.b16 %v8324
    %v9112 = vunpack.c.l.b16 %v8325
    %v9113 = vunpack.c.h.b16 %v8325
    %v9114 = vunpack.c.l.b16 %v8326
    %v9115 = vunpack.c.h.b16 %v8326
    %v9116 = vunpack.c.l.b16 %v8327
    %v9117 = vunpack.c.h.b16 %v8327
    %v9118 = vpack.c.b16 %v8610, %v8606
    %v9119 = vpack.c.b16 %v8611, %v8607
    %v9120 = vpack.c.b16 %v8612, %v8608
    %v9121 = vpack.c.b16 %v8613, %v8609
    %v9122 = vpack.c.b16 %v8618, %v8614
    %v9123 = vpack.c.b16 %v8619, %v8615
    %v9124 = vpack.c.b16 %v8620, %v8616
    %v9125 = vpack.c.b16 %v8621, %v8617
    %v9126 = vpack.c.b16 %v8626, %v8622
    %v9127 = vpack.c.b16 %v8627, %v8623
    %v9128 = vpack.c.b16 %v8628, %v8624
    %v9129 = vpack.c.b16 %v8629, %v8625
    %v9130 = vpack.c.b16 %v8634, %v8630
    %v9131 = vpack.c.b16 %v8635, %v8631
    %v9132 = vpack.c.b16 %v8636, %v8632
    %v9133 = vpack.c.b16 %v8637, %v8633
    %v9134 = vpack.c.b16 %v8642, %v8638
    %v9135 = vpack.c.b16 %v8643, %v8639
    %v9136 = vpack.c.b16 %v8644, %v8640
    %v9137 = vpack.c.b16 %v8645, %v8641
    %v9138 = vpack.c.b16 %v8650, %v8646
    %v9139 = vpack.c.b16 %v8651, %v8647
    %v9140 = vpack.c.b16 %v8652, %v8648
    %v9141 = vpack.c.b16 %v8653, %v8649
    %v9142 = vpack.c.b16 %v8658, %v8654
    %v9143 = vpack.c.b16 %v8659, %v8655
    %v9144 = vpack.c.b16 %v8660, %v8656
    %v9145 = vpack.c.b16 %v8661, %v8657
    %v9146 = vpack.c.b16 %v8666, %v8662
    %v9147 = vpack.c.b16 %v8667, %v8663
    %v9148 = vpack.c.b16 %v8668, %v8664
    %v9149 = vpack.c.b16 %v8669, %v8665
    %v9150 = vpack.c.b16 %v8674, %v8670
    %v9151 = vpack.c.b16 %v8675, %v8671
    %v9152 = vpack.c.b16 %v8676, %v8672
    %v9153 = vpack.c.b16 %v8677, %v8673
    %v9154 = vpack.c.b16 %v8682, %v8678
    %v9155 = vpack.c.b16 %v8683, %v8679
    %v9156 = vpack.c.b16 %v8684, %v8680
    %v9157 = vpack.c.b16 %v8685, %v8681
    %v9158 = vpack.c.b16 %v8690, %v8686
    %v9159 = vpack.c.b16 %v8691, %v8687
    %v9160 = vpack.c.b16 %v8692, %v8688
    %v9161 = vpack.c.b16 %v8693, %v8689
    %v9162 = vpack.c.b16 %v8698, %v8694
    %v9163 = vpack.c.b16 %v8699, %v8695
    %v9164 = vpack.c.b16 %v8700, %v8696
    %v9165 = vpack.c.b16 %v8701, %v8697
    %v9166 = vpack.c.b16 %v8706, %v8702
    %v9167 = vpack.c.b16 %v8707, %v8703
    %v9168 = vpack.c.b16 %v8708, %v8704
    %v9169 = vpack.c.b16 %v8709, %v8705
    %v9170 = vpack.c.b16 %v8714, %v8710
    %v9171 = vpack.c.b16 %v8715, %v8711
    %v9172 = vpack.c.b16 %v8716, %v8712
    %v9173 = vpack.c.b16 %v8717, %v8713
    %v9174 = vpack.c.b16 %v8722, %v8718
    %v9175 = vpack.c.b16 %v8723, %v8719
    %v9176 = vpack.c.b16 %v8724, %v8720
    %v9177 = vpack.c.b16 %v8725, %v8721
    %v9178 = vpack.c.b16 %v8730, %v8726
    %v9179 = vpack.c.b16 %v8731, %v8727
    %v9180 = vpack.c.b16 %v8732, %v8728
    %v9181 = vpack.c.b16 %v8733, %v8729
    %v9182 = vpack.c.b16 %v8738, %v8734
    %v9183 = vpack.c.b16 %v8739, %v8735
    %v9184 = vpack.c.b16 %v8740, %v8736
    %v9185 = vpack.c.b16 %v8741, %v8737
    %v9186 = vpack.c.b16 %v8746, %v8742
    %v9187 = vpack.c.b16 %v8747, %v8743
    %v9188 = vpack.c.b16 %v8748, %v8744
    %v9189 = vpack.c.b16 %v8749, %v8745
    %v9190 = vpack.c.b16 %v8754, %v8750
    %v9191 = vpack.c.b16 %v8755, %v8751
    %v9192 = vpack.c.b16 %v8756, %v8752
    %v9193 = vpack.c.b16 %v8757, %v8753
    %v9194 = vpack.c.b16 %v8762, %v8758
    %v9195 = vpack.c.b16 %v8763, %v8759
    %v9196 = vpack.c.b16 %v8764, %v8760
    %v9197 = vpack.c.b16 %v8765, %v8761
    %v9198 = vpack.c.b16 %v8770, %v8766
    %v9199 = vpack.c.b16 %v8771, %v8767
    %v9200 = vpack.c.b16 %v8772, %v8768
    %v9201 = vpack.c.b16 %v8773, %v8769
    %v9202 = vpack.c.b16 %v8778, %v8774
    %v9203 = vpack.c.b16 %v8779, %v8775
    %v9204 = vpack.c.b16 %v8780, %v8776
    %v9205 = vpack.c.b16 %v8781, %v8777
    %v9206 = vpack.c.b16 %v8786, %v8782
    %v9207 = vpack.c.b16 %v8787, %v8783
    %v9208 = vpack.c.b16 %v8788, %v8784
    %v9209 = vpack.c.b16 %v8789, %v8785
    %v9210 = vpack.c.b16 %v8794, %v8790
    %v9211 = vpack.c.b16 %v8795, %v8791
    %v9212 = vpack.c.b16 %v8796, %v8792
    %v9213 = vpack.c.b16 %v8797, %v8793
    %v9214 = vpack.c.b16 %v8802, %v8798
    %v9215 = vpack.c.b16 %v8803, %v8799
    %v9216 = vpack.c.b16 %v8804, %v8800
    %v9217 = vpack.c.b16 %v8805, %v8801
    %v9218 = vpack.c.b16 %v8810, %v8806
    %v9219 = vpack.c.b16 %v8811, %v8807
    %v9220 = vpack.c.b16 %v8812, %v8808
    %v9221 = vpack.c.b16 %v8813, %v8809
    %v9222 = vpack.c.b16 %v8818, %v8814
    %v9223 = vpack.c.b16 %v8819, %v8815
    %v9224 = vpack.c.b16 %v8820, %v8816
    %v9225 = vpack.c.b16 %v8821, %v8817
    %v9226 = vpack.c.b16 %v8826, %v8822
    %v9227 = vpack.c.b16 %v8827, %v8823
    %v9228 = vpack.c.b16 %v8828, %v8824
    %v9229 = vpack.c.b16 %v8829, %v8825
    %v9230 = vpack.c.b16 %v8834, %v8830
    %v9231 = vpack.c.b16 %v8835, %v8831
    %v9232 = vpack.c.b16 %v8836, %v8832
    %v9233 = vpack.c.b16 %v8837, %v8833
    %v9234 = vpack.c.b16 %v8842, %v8838
    %v9235 = vpack.c.b16 %v8843, %v8839
    %v9236 = vpack.c.b16 %v8844, %v8840
    %v9237 = vpack.c.b16 %v8845, %v8841
    %v9238 = vpack.c.b16 %v8850, %v8846
    %v9239 = vpack.c.b16 %v8851, %v8847
    %v9240 = vpack.c.b16 %v8852, %v8848
    %v9241 = vpack.c.b16 %v8853, %v8849
    %v9242 = vpack.c.b16 %v8858, %v8854
    %v9243 = vpack.c.b16 %v8859, %v8855
    %v9244 = vpack.c.b16 %v8860, %v8856
    %v9245 = vpack.c.b16 %v8861, %v8857
    %v9246 = vpack.c.b16 %v8866, %v8862
    %v9247 = vpack.c.b16 %v8867, %v8863
    %v9248 = vpack.c.b16 %v8868, %v8864
    %v9249 = vpack.c.b16 %v8869, %v8865
    %v9250 = vpack.c.b16 %v8874, %v8870
    %v9251 = vpack.c.b16 %v8875, %v8871
    %v9252 = vpack.c.b16 %v8876, %v8872
    %v9253 = vpack.c.b16 %v8877, %v8873
    %v9254 = vpack.c.b16 %v8882, %v8878
    %v9255 = vpack.c.b16 %v8883, %v8879
    %v9256 = vpack.c.b16 %v8884, %v8880
    %v9257 = vpack.c.b16 %v8885, %v8881
    %v9258 = vpack.c.b16 %v8890, %v8886
    %v9259 = vpack.c.b16 %v8891, %v8887
    %v9260 = vpack.c.b16 %v8892, %v8888
    %v9261 = vpack.c.b16 %v8893, %v8889
    %v9262 = vpack.c.b16 %v8898, %v8894
    %v9263 = vpack.c.b16 %v8899, %v8895
    %v9264 = vpack.c.b16 %v8900, %v8896
    %v9265 = vpack.c.b16 %v8901, %v8897
    %v9266 = vpack.c.b16 %v8906, %v8902
    %v9267 = vpack.c.b16 %v8907, %v8903
    %v9268 = vpack.c.b16 %v8908, %v8904
    %v9269 = vpack.c.b16 %v8909, %v8905
    %v9270 = vpack.c.b16 %v8914, %v8910
    %v9271 = vpack.c.b16 %v8915, %v8911
    %v9272 = vpack.c.b16 %v8916, %v8912
    %v9273 = vpack.c.b16 %v8917, %v8913
    %v9274 = vpack.c.b16 %v8922, %v8918
    %v9275 = vpack.c.b16 %v8923, %v8919
    %v9276 = vpack.c.b16 %v8924, %v8920
    %v9277 = vpack.c.b16 %v8925, %v8921
    %v9278 = vpack.c.b16 %v8930, %v8926
    %v9279 = vpack.c.b16 %v8931, %v8927
    %v9280 = vpack.c.b16 %v8932, %v8928
    %v9281 = vpack.c.b16 %v8933, %v8929
    %v9282 = vpack.c.b16 %v8938, %v8934
    %v9283 = vpack.c.b16 %v8939, %v8935
    %v9284 = vpack.c.b16 %v8940, %v8936
    %v9285 = vpack.c.b16 %v8941, %v8937
    %v9286 = vpack.c.b16 %v8946, %v8942
    %v9287 = vpack.c.b16 %v8947, %v8943
    %v9288 = vpack.c.b16 %v8948, %v8944
    %v9289 = vpack.c.b16 %v8949, %v8945
    %v9290 = vpack.c.b16 %v8954, %v8950
    %v9291 = vpack.c.b16 %v8955, %v8951
    %v9292 = vpack.c.b16 %v8956, %v8952
    %v9293 = vpack.c.b16 %v8957, %v8953
    %v9294 = vpack.c.b16 %v8962, %v8958
    %v9295 = vpack.c.b16 %v8963, %v8959
    %v9296 = vpack.c.b16 %v8964, %v8960
    %v9297 = vpack.c.b16 %v8965, %v8961
    %v9298 = vpack.c.b16 %v8970, %v8966
    %v9299 = vpack.c.b16 %v8971, %v8967
    %v9300 = vpack.c.b16 %v8972, %v8968
    %v9301 = vpack.c.b16 %v8973, %v8969
    %v9302 = vpack.c.b16 %v8978, %v8974
    %v9303 = vpack.c.b16 %v8979, %v8975
    %v9304 = vpack.c.b16 %v8980, %v8976
    %v9305 = vpack.c.b16 %v8981, %v8977
    %v9306 = vpack.c.b16 %v8986, %v8982
    %v9307 = vpack.c.b16 %v8987, %v8983
    %v9308 = vpack.c.b16 %v8988, %v8984
    %v9309 = vpack.c.b16 %v8989, %v8985
    %v9310 = vpack.c.b16 %v8994, %v8990
    %v9311 = vpack.c.b16 %v8995, %v8991
    %v9312 = vpack.c.b16 %v8996, %v8992
    %v9313 = vpack.c.b16 %v8997, %v8993
    %v9314 = vpack.c.b16 %v9002, %v8998
    %v9315 = vpack.c.b16 %v9003, %v8999
    %v9316 = vpack.c.b16 %v9004, %v9000
    %v9317 = vpack.c.b16 %v9005, %v9001
    %v9318 = vpack.c.b16 %v9010, %v9006
    %v9319 = vpack.c.b16 %v9011, %v9007
    %v9320 = vpack.c.b16 %v9012, %v9008
    %v9321 = vpack.c.b16 %v9013, %v9009
    %v9322 = vpack.c.b16 %v9018, %v9014
    %v9323 = vpack.c.b16 %v9019, %v9015
    %v9324 = vpack.c.b16 %v9020, %v9016
    %v9325 = vpack.c.b16 %v9021, %v9017
    %v9326 = vpack.c.b16 %v9026, %v9022
    %v9327 = vpack.c.b16 %v9027, %v9023
    %v9328 = vpack.c.b16 %v9028, %v9024
    %v9329 = vpack.c.b16 %v9029, %v9025
    %v9330 = vpack.c.b16 %v9034, %v9030
    %v9331 = vpack.c.b16 %v9035, %v9031
    %v9332 = vpack.c.b16 %v9036, %v9032
    %v9333 = vpack.c.b16 %v9037, %v9033
    %v9334 = vpack.c.b16 %v9042, %v9038
    %v9335 = vpack.c.b16 %v9043, %v9039
    %v9336 = vpack.c.b16 %v9044, %v9040
    %v9337 = vpack.c.b16 %v9045, %v9041
    %v9338 = vpack.c.b16 %v9050, %v9046
    %v9339 = vpack.c.b16 %v9051, %v9047
    %v9340 = vpack.c.b16 %v9052, %v9048
    %v9341 = vpack.c.b16 %v9053, %v9049
    %v9342 = vpack.c.b16 %v9058, %v9054
    %v9343 = vpack.c.b16 %v9059, %v9055
    %v9344 = vpack.c.b16 %v9060, %v9056
    %v9345 = vpack.c.b16 %v9061, %v9057
    %v9346 = vpack.c.b16 %v9066, %v9062
    %v9347 = vpack.c.b16 %v9067, %v9063
    %v9348 = vpack.c.b16 %v9068, %v9064
    %v9349 = vpack.c.b16 %v9069, %v9065
    %v9350 = vpack.c.b16 %v9074, %v9070
    %v9351 = vpack.c.b16 %v9075, %v9071
    %v9352 = vpack.c.b16 %v9076, %v9072
    %v9353 = vpack.c.b16 %v9077, %v9073
    %v9354 = vpack.c.b16 %v9082, %v9078
    %v9355 = vpack.c.b16 %v9083, %v9079
    %v9356 = vpack.c.b16 %v9084, %v9080
    %v9357 = vpack.c.b16 %v9085, %v9081
    %v9358 = vpack.c.b16 %v9090, %v9086
    %v9359 = vpack.c.b16 %v9091, %v9087
    %v9360 = vpack.c.b16 %v9092, %v9088
    %v9361 = vpack.c.b16 %v9093, %v9089
    %v9362 = vpack.c.b16 %v9098, %v9094
    %v9363 = vpack.c.b16 %v9099, %v9095
    %v9364 = vpack.c.b16 %v9100, %v9096
    %v9365 = vpack.c.b16 %v9101, %v9097
    %v9366 = vpack.c.b16 %v9106, %v9102
    %v9367 = vpack.c.b16 %v9107, %v9103
    %v9368 = vpack.c.b16 %v9108, %v9104
    %v9369 = vpack.c.b16 %v9109, %v9105
    %v9370 = vpack.c.b16 %v9114, %v9110
    %v9371 = vpack.c.b16 %v9115, %v9111
    %v9372 = vpack.c.b16 %v9116, %v9112
    %v9373 = vpack.c.b16 %v9117, %v9113
    %9630 = vmatprep.subr.bf16.mxu0 %v9119
    %9631 = vmatpush1.bf16.msra.mxu0 %v9118
    %9632 = vmatprep.subr.bf16.mxu0 %v9123
    %9633 = vmatpush1.bf16.msra.mxu0 %v9122
    %9634 = vmatprep.subr.bf16.mxu0 %v9127
    %9635 = vmatpush1.bf16.msra.mxu0 %v9126
    %9636 = vmatprep.subr.bf16.mxu0 %v9131
    %9637 = vmatpush1.bf16.msra.mxu0 %v9130
    %9638 = vmatprep.subr.bf16.mxu0 %v9135
    %9639 = vmatpush1.bf16.msra.mxu0 %v9134
    %9640 = vmatprep.subr.bf16.mxu0 %v9139
    %9641 = vmatpush1.bf16.msra.mxu0 %v9138
    %9642 = vmatprep.subr.bf16.mxu0 %v9143
    %9643 = vmatpush1.bf16.msra.mxu0 %v9142
    %9644 = vmatprep.subr.bf16.mxu0 %v9147
    %9645 = vmatpush1.bf16.msra.mxu0 %v9146
    %9646 = vmatprep.subr.bf16.mxu0 %v9151
    %9647 = vmatpush1.bf16.msra.mxu0 %v9150
    %9648 = vmatprep.subr.bf16.mxu0 %v9155
    %9649 = vmatpush1.bf16.msra.mxu0 %v9154
    %9650 = vmatprep.subr.bf16.mxu0 %v9159
    %9651 = vmatpush1.bf16.msra.mxu0 %v9158
    %9652 = vmatprep.subr.bf16.mxu0 %v9163
    %9653 = vmatpush1.bf16.msra.mxu0 %v9162
    %9654 = vmatprep.subr.bf16.mxu0 %v9167
    %9655 = vmatpush1.bf16.msra.mxu0 %v9166
    %9656 = vmatprep.subr.bf16.mxu0 %v9171
    %9657 = vmatpush1.bf16.msra.mxu0 %v9170
    %9658 = vmatprep.subr.bf16.mxu0 %v9175
    %9659 = vmatpush1.bf16.msra.mxu0 %v9174
    %9660 = vmatprep.subr.bf16.mxu0 %v9179
    %9661 = vmatpush1.bf16.msra.mxu0 %v9178
    %9662 = vmatprep.mubr.bf16.mxu0 %v8065
    %9663 = vmatmul.mubr.bf16.gmra.mrb[0].mxu0 %v8064
    %v9664 = vpop.f32.mrb[0].mxu0
    %v9665 = vadd.f32 %v8333, %v9664
    %v9666 = vpop.f32.mrb[0].mxu0
    %v9667 = vadd.f32 %v8337, %v9666
    %v9668 = vpop.f32.mrb[0].mxu0
    %v9669 = vpop.f32.mrb[0].mxu0
    %9670 = vdwg.mxu0
    %9671 = vmatprep.subr.bf16.mxu0 %v9183
    %9672 = vmatpush1.bf16.msra.mxu0 %v9182
    %9673 = vmatprep.subr.bf16.mxu0 %v9187
    %9674 = vmatpush1.bf16.msra.mxu0 %v9186
    %9675 = vmatprep.subr.bf16.mxu0 %v9191
    %9676 = vmatpush1.bf16.msra.mxu0 %v9190
    %9677 = vmatprep.subr.bf16.mxu0 %v9195
    %9678 = vmatpush1.bf16.msra.mxu0 %v9194
    %9679 = vmatprep.subr.bf16.mxu0 %v9199
    %9680 = vmatpush1.bf16.msra.mxu0 %v9198
    %9681 = vmatprep.subr.bf16.mxu0 %v9203
    %9682 = vmatpush1.bf16.msra.mxu0 %v9202
    %9683 = vmatprep.subr.bf16.mxu0 %v9207
    %9684 = vmatpush1.bf16.msra.mxu0 %v9206
    %9685 = vmatprep.subr.bf16.mxu0 %v9211
    %9686 = vmatpush1.bf16.msra.mxu0 %v9210
    %9687 = vmatprep.subr.bf16.mxu0 %v9215
    %9688 = vmatpush1.bf16.msra.mxu0 %v9214
    %9689 = vmatprep.subr.bf16.mxu0 %v9219
    %9690 = vmatpush1.bf16.msra.mxu0 %v9218
    %9691 = vmatprep.subr.bf16.mxu0 %v9223
    %9692 = vmatpush1.bf16.msra.mxu0 %v9222
    %9693 = vmatprep.subr.bf16.mxu0 %v9227
    %9694 = vmatpush1.bf16.msra.mxu0 %v9226
    %9695 = vmatprep.subr.bf16.mxu0 %v9231
    %9696 = vmatpush1.bf16.msra.mxu0 %v9230
    %9697 = vmatprep.subr.bf16.mxu0 %v9235
    %9698 = vmatpush1.bf16.msra.mxu0 %v9234
    %9699 = vmatprep.subr.bf16.mxu0 %v9239
    %9700 = vmatpush1.bf16.msra.mxu0 %v9238
    %9701 = vmatprep.subr.bf16.mxu0 %v9243
    %9702 = vmatpush1.bf16.msra.mxu0 %v9242
    %9703 = vmatprep.mubr.bf16.mxu0 %v8067
    %9704 = vmatmul.mubr.bf16.gmra.mrb[0].mxu0 %v8066
    %v9705 = vpop.f32.mrb[0].mxu0
    %v9706 = vadd.f32 %v9665, %v9705
    %v9707 = vpop.f32.mrb[0].mxu0
    %v9708 = vadd.f32 %v9667, %v9707
    %v9709 = vpop.f32.mrb[0].mxu0
    %v9710 = vpop.f32.mrb[0].mxu0
    %9711 = vdwg.mxu0
    %9712 = vmatprep.subr.bf16.mxu0 %v9247
    %9713 = vmatpush1.bf16.msra.mxu0 %v9246
    %9714 = vmatprep.subr.bf16.mxu0 %v9251
    %9715 = vmatpush1.bf16.msra.mxu0 %v9250
    %9716 = vmatprep.subr.bf16.mxu0 %v9255
    %9717 = vmatpush1.bf16.msra.mxu0 %v9254
    %9718 = vmatprep.subr.bf16.mxu0 %v9259
    %9719 = vmatpush1.bf16.msra.mxu0 %v9258
    %9720 = vmatprep.subr.bf16.mxu0 %v9263
    %9721 = vmatpush1.bf16.msra.mxu0 %v9262
    %9722 = vmatprep.subr.bf16.mxu0 %v9267
    %9723 = vmatpush1.bf16.msra.mxu0 %v9266
    %9724 = vmatprep.subr.bf16.mxu0 %v9271
    %9725 = vmatpush1.bf16.msra.mxu0 %v9270
    %9726 = vmatprep.subr.bf16.mxu0 %v9275
    %9727 = vmatpush1.bf16.msra.mxu0 %v9274
    %9728 = vmatprep.subr.bf16.mxu0 %v9279
    %9729 = vmatpush1.bf16.msra.mxu0 %v9278
    %9730 = vmatprep.subr.bf16.mxu0 %v9283
    %9731 = vmatpush1.bf16.msra.mxu0 %v9282
    %9732 = vmatprep.subr.bf16.mxu0 %v9287
    %9733 = vmatpush1.bf16.msra.mxu0 %v9286
    %9734 = vmatprep.subr.bf16.mxu0 %v9291
    %9735 = vmatpush1.bf16.msra.mxu0 %v9290
    %9736 = vmatprep.subr.bf16.mxu0 %v9295
    %9737 = vmatpush1.bf16.msra.mxu0 %v9294
    %9738 = vmatprep.subr.bf16.mxu0 %v9299
    %9739 = vmatpush1.bf16.msra.mxu0 %v9298
    %9740 = vmatprep.subr.bf16.mxu0 %v9303
    %9741 = vmatpush1.bf16.msra.mxu0 %v9302
    %9742 = vmatprep.subr.bf16.mxu0 %v9307
    %9743 = vmatpush1.bf16.msra.mxu0 %v9306
    %9744 = vmatprep.mubr.bf16.mxu0 %v8069
    %9745 = vmatmul.mubr.bf16.gmra.mrb[0].mxu0 %v8068
    %v9746 = vpop.f32.mrb[0].mxu0
    %v9747 = vadd.f32 %v9706, %v9746
    %v9748 = vpop.f32.mrb[0].mxu0
    %v9749 = vadd.f32 %v9708, %v9748
    %v9750 = vpop.f32.mrb[0].mxu0
    %v9751 = vpop.f32.mrb[0].mxu0
    %9752 = vdwg.mxu0
    %9753 = vmatprep.subr.bf16.mxu0 %v9311
    %9754 = vmatpush1.bf16.msra.mxu0 %v9310
    %9755 = vmatprep.subr.bf16.mxu0 %v9315
    %9756 = vmatpush1.bf16.msra.mxu0 %v9314
    %9757 = vmatprep.subr.bf16.mxu0 %v9319
    %9758 = vmatpush1.bf16.msra.mxu0 %v9318
    %9759 = vmatprep.subr.bf16.mxu0 %v9323
    %9760 = vmatpush1.bf16.msra.mxu0 %v9322
    %9761 = vmatprep.subr.bf16.mxu0 %v9327
    %9762 = vmatpush1.bf16.msra.mxu0 %v9326
    %9763 = vmatprep.subr.bf16.mxu0 %v9331
    %9764 = vmatpush1.bf16.msra.mxu0 %v9330
    %9765 = vmatprep.subr.bf16.mxu0 %v9335
    %9766 = vmatpush1.bf16.msra.mxu0 %v9334
    %9767 = vmatprep.subr.bf16.mxu0 %v9339
    %9768 = vmatpush1.bf16.msra.mxu0 %v9338
    %9769 = vmatprep.subr.bf16.mxu0 %v9343
    %9770 = vmatpush1.bf16.msra.mxu0 %v9342
    %9771 = vmatprep.subr.bf16.mxu0 %v9347
    %9772 = vmatpush1.bf16.msra.mxu0 %v9346
    %9773 = vmatprep.subr.bf16.mxu0 %v9351
    %9774 = vmatpush1.bf16.msra.mxu0 %v9350
    %9775 = vmatprep.subr.bf16.mxu0 %v9355
    %9776 = vmatpush1.bf16.msra.mxu0 %v9354
    %9777 = vmatprep.subr.bf16.mxu0 %v9359
    %9778 = vmatpush1.bf16.msra.mxu0 %v9358
    %9779 = vmatprep.subr.bf16.mxu0 %v9363
    %9780 = vmatpush1.bf16.msra.mxu0 %v9362
    %9781 = vmatprep.subr.bf16.mxu0 %v9367
    %9782 = vmatpush1.bf16.msra.mxu0 %v9366
    %9783 = vmatprep.subr.bf16.mxu0 %v9371
    %9784 = vmatpush1.bf16.msra.mxu0 %v9370
    %9785 = vmatprep.mubr.bf16.mxu0 %v8071
    %9786 = vmatmul.mubr.bf16.gmra.mrb[0].mxu0 %v8070
    %v9787 = vpop.f32.mrb[0].mxu0
    %v9788 = vadd.f32 %v9747, %v9787
    %v9789 = vpop.f32.mrb[0].mxu0
    %v9790 = vadd.f32 %v9749, %v9789
    %v9791 = vpop.f32.mrb[0].mxu0
    %v9792 = vpop.f32.mrb[0].mxu0
    %9793 = vdwg.mxu0
    %9794 = vmatprep.subr.bf16.mxu0 %v9121
    %9795 = vmatpush1.bf16.msra.mxu0 %v9120
    %9796 = vmatprep.subr.bf16.mxu0 %v9125
    %9797 = vmatpush1.bf16.msra.mxu0 %v9124
    %9798 = vmatprep.subr.bf16.mxu0 %v9129
    %9799 = vmatpush1.bf16.msra.mxu0 %v9128
    %9800 = vmatprep.subr.bf16.mxu0 %v9133
    %9801 = vmatpush1.bf16.msra.mxu0 %v9132
    %9802 = vmatprep.subr.bf16.mxu0 %v9137
    %9803 = vmatpush1.bf16.msra.mxu0 %v9136
    %9804 = vmatprep.subr.bf16.mxu0 %v9141
    %9805 = vmatpush1.bf16.msra.mxu0 %v9140
    %9806 = vmatprep.subr.bf16.mxu0 %v9145
    %9807 = vmatpush1.bf16.msra.mxu0 %v9144
    %9808 = vmatprep.subr.bf16.mxu0 %v9149
    %9809 = vmatpush1.bf16.msra.mxu0 %v9148
    %9810 = vmatprep.subr.bf16.mxu0 %v9153
    %9811 = vmatpush1.bf16.msra.mxu0 %v9152
    %9812 = vmatprep.subr.bf16.mxu0 %v9157
    %9813 = vmatpush1.bf16.msra.mxu0 %v9156
    %9814 = vmatprep.subr.bf16.mxu0 %v9161
    %9815 = vmatpush1.bf16.msra.mxu0 %v9160
    %9816 = vmatprep.subr.bf16.mxu0 %v9165
    %9817 = vmatpush1.bf16.msra.mxu0 %v9164
    %9818 = vmatprep.subr.bf16.mxu0 %v9169
    %9819 = vmatpush1.bf16.msra.mxu0 %v9168
    %9820 = vmatprep.subr.bf16.mxu0 %v9173
    %9821 = vmatpush1.bf16.msra.mxu0 %v9172
    %9822 = vmatprep.subr.bf16.mxu0 %v9177
    %9823 = vmatpush1.bf16.msra.mxu0 %v9176
    %9824 = vmatprep.subr.bf16.mxu0 %v9181
    %9825 = vmatpush1.bf16.msra.mxu0 %v9180
    %9826 = vmatprep.mubr.bf16.mxu0 %v8065
    %9827 = vmatmul.mubr.bf16.gmra.mrb[0].mxu0 %v8064
    %v9828 = vpop.f32.mrb[0].mxu0
    %v9829 = vadd.f32 %v8341, %v9828
    %v9830 = vpop.f32.mrb[0].mxu0
    %v9831 = vadd.f32 %v8345, %v9830
    %v9832 = vpop.f32.mrb[0].mxu0
    %v9833 = vpop.f32.mrb[0].mxu0
    %9834 = vdwg.mxu0
    %9835 = vmatprep.subr.bf16.mxu0 %v9185
    %9836 = vmatpush1.bf16.msra.mxu0 %v9184
    %9837 = vmatprep.subr.bf16.mxu0 %v9189
    %9838 = vmatpush1.bf16.msra.mxu0 %v9188
    %9839 = vmatprep.subr.bf16.mxu0 %v9193
    %9840 = vmatpush1.bf16.msra.mxu0 %v9192
    %9841 = vmatprep.subr.bf16.mxu0 %v9197
    %9842 = vmatpush1.bf16.msra.mxu0 %v9196
    %9843 = vmatprep.subr.bf16.mxu0 %v9201
    %9844 = vmatpush1.bf16.msra.mxu0 %v9200
    %9845 = vmatprep.subr.bf16.mxu0 %v9205
    %9846 = vmatpush1.bf16.msra.mxu0 %v9204
    %9847 = vmatprep.subr.bf16.mxu0 %v9209
    %9848 = vmatpush1.bf16.msra.mxu0 %v9208
    %9849 = vmatprep.subr.bf16.mxu0 %v9213
    %9850 = vmatpush1.bf16.msra.mxu0 %v9212
    %9851 = vmatprep.subr.bf16.mxu0 %v9217
    %9852 = vmatpush1.bf16.msra.mxu0 %v9216
    %9853 = vmatprep.subr.bf16.mxu0 %v9221
    %9854 = vmatpush1.bf16.msra.mxu0 %v9220
    %9855 = vmatprep.subr.bf16.mxu0 %v9225
    %9856 = vmatpush1.bf16.msra.mxu0 %v9224
    %9857 = vmatprep.subr.bf16.mxu0 %v9229
    %9858 = vmatpush1.bf16.msra.mxu0 %v9228
    %9859 = vmatprep.subr.bf16.mxu0 %v9233
    %9860 = vmatpush1.bf16.msra.mxu0 %v9232
    %9861 = vmatprep.subr.bf16.mxu0 %v9237
    %9862 = vmatpush1.bf16.msra.mxu0 %v9236
    %9863 = vmatprep.subr.bf16.mxu0 %v9241
    %9864 = vmatpush1.bf16.msra.mxu0 %v9240
    %9865 = vmatprep.subr.bf16.mxu0 %v9245
    %9866 = vmatpush1.bf16.msra.mxu0 %v9244
    %9867 = vmatprep.mubr.bf16.mxu0 %v8067
    %9868 = vmatmul.mubr.bf16.gmra.mrb[0].mxu0 %v8066
    %v9869 = vpop.f32.mrb[0].mxu0
    %v9870 = vadd.f32 %v9829, %v9869
    %v9871 = vpop.f32.mrb[0].mxu0
    %v9872 = vadd.f32 %v9831, %v9871
    %v9873 = vpop.f32.mrb[0].mxu0
    %v9874 = vpop.f32.mrb[0].mxu0
    %9875 = vdwg.mxu0
    %9876 = vmatprep.subr.bf16.mxu0 %v9249
    %9877 = vmatpush1.bf16.msra.mxu0 %v9248
    %9878 = vmatprep.subr.bf16.mxu0 %v9253
    %9879 = vmatpush1.bf16.msra.mxu0 %v9252
    %9880 = vmatprep.subr.bf16.mxu0 %v9257
    %9881 = vmatpush1.bf16.msra.mxu0 %v9256
    %9882 = vmatprep.subr.bf16.mxu0 %v9261
    %9883 = vmatpush1.bf16.msra.mxu0 %v9260
    %9884 = vmatprep.subr.bf16.mxu0 %v9265
    %9885 = vmatpush1.bf16.msra.mxu0 %v9264
    %9886 = vmatprep.subr.bf16.mxu0 %v9269
    %9887 = vmatpush1.bf16.msra.mxu0 %v9268
    %9888 = vmatprep.subr.bf16.mxu0 %v9273
    %9889 = vmatpush1.bf16.msra.mxu0 %v9272
    %9890 = vmatprep.subr.bf16.mxu0 %v9277
    %9891 = vmatpush1.bf16.msra.mxu0 %v9276
    %9892 = vmatprep.subr.bf16.mxu0 %v9281
    %9893 = vmatpush1.bf16.msra.mxu0 %v9280
    %9894 = vmatprep.subr.bf16.mxu0 %v9285
    %9895 = vmatpush1.bf16.msra.mxu0 %v9284
    %9896 = vmatprep.subr.bf16.mxu0 %v9289
    %9897 = vmatpush1.bf16.msra.mxu0 %v9288
    %9898 = vmatprep.subr.bf16.mxu0 %v9293
    %9899 = vmatpush1.bf16.msra.mxu0 %v9292
    %9900 = vmatprep.subr.bf16.mxu0 %v9297
    %9901 = vmatpush1.bf16.msra.mxu0 %v9296
    %9902 = vmatprep.subr.bf16.mxu0 %v9301
    %9903 = vmatpush1.bf16.msra.mxu0 %v9300
    %9904 = vmatprep.subr.bf16.mxu0 %v9305
    %9905 = vmatpush1.bf16.msra.mxu0 %v9304
    %9906 = vmatprep.subr.bf16.mxu0 %v9309
    %9907 = vmatpush1.bf16.msra.mxu0 %v9308
    %9908 = vmatprep.mubr.bf16.mxu0 %v8069
    %9909 = vmatmul.mubr.bf16.gmra.mrb[0].mxu0 %v8068
    %v9910 = vpop.f32.mrb[0].mxu0
    %v9911 = vadd.f32 %v9870, %v9910
    %v9912 = vpop.f32.mrb[0].mxu0
    %v9913 = vadd.f32 %v9872, %v9912
    %v9914 = vpop.f32.mrb[0].mxu0
    %v9915 = vpop.f32.mrb[0].mxu0
    %9916 = vdwg.mxu0
    %9917 = vmatprep.subr.bf16.mxu0 %v9313
    %9918 = vmatpush1.bf16.msra.mxu0 %v9312
    %9919 = vmatprep.subr.bf16.mxu0 %v9317
    %9920 = vmatpush1.bf16.msra.mxu0 %v9316
    %9921 = vmatprep.subr.bf16.mxu0 %v9321
    %9922 = vmatpush1.bf16.msra.mxu0 %v9320
    %9923 = vmatprep.subr.bf16.mxu0 %v9325
    %9924 = vmatpush1.bf16.msra.mxu0 %v9324
    %9925 = vmatprep.subr.bf16.mxu0 %v9329
    %9926 = vmatpush1.bf16.msra.mxu0 %v9328
    %9927 = vmatprep.subr.bf16.mxu0 %v9333
    %9928 = vmatpush1.bf16.msra.mxu0 %v9332
    %9929 = vmatprep.subr.bf16.mxu0 %v9337
    %9930 = vmatpush1.bf16.msra.mxu0 %v9336
    %9931 = vmatprep.subr.bf16.mxu0 %v9341
    %9932 = vmatpush1.bf16.msra.mxu0 %v9340
    %9933 = vmatprep.subr.bf16.mxu0 %v9345
    %9934 = vmatpush1.bf16.msra.mxu0 %v9344
    %9935 = vmatprep.subr.bf16.mxu0 %v9349
    %9936 = vmatpush1.bf16.msra.mxu0 %v9348
    %9937 = vmatprep.subr.bf16.mxu0 %v9353
    %9938 = vmatpush1.bf16.msra.mxu0 %v9352
    %9939 = vmatprep.subr.bf16.mxu0 %v9357
    %9940 = vmatpush1.bf16.msra.mxu0 %v9356
    %9941 = vmatprep.subr.bf16.mxu0 %v9361
    %9942 = vmatpush1.bf16.msra.mxu0 %v9360
    %9943 = vmatprep.subr.bf16.mxu0 %v9365
    %9944 = vmatpush1.bf16.msra.mxu0 %v9364
    %9945 = vmatprep.subr.bf16.mxu0 %v9369
    %9946 = vmatpush1.bf16.msra.mxu0 %v9368
    %9947 = vmatprep.subr.bf16.mxu0 %v9373
    %9948 = vmatpush1.bf16.msra.mxu0 %v9372
    %9949 = vmatprep.mubr.bf16.mxu0 %v8071
    %9950 = vmatmul.mubr.bf16.gmra.mrb[0].mxu0 %v8070
    %v9951 = vpop.f32.mrb[0].mxu0
    %v9952 = vadd.f32 %v9911, %v9951
    %v9953 = vpop.f32.mrb[0].mxu0
    %v9954 = vadd.f32 %v9913, %v9953
    %v9955 = vpop.f32.mrb[0].mxu0
    %v9956 = vpop.f32.mrb[0].mxu0
    %9957 = vdwg.mxu0
    %v9958 = vmax.f32 %v9788, 0.0
    %v9959 = vmax.f32 %v9790, 0.0
    %v9960 = vmax.f32 %v9952, 0.0
    %v9961 = vmax.f32 %v9954, 0.0
    %v9962 = vpack.c.bf16 %v9958, %v9958
    %v9963 = vpack.c.bf16 %v9959, %v9959
    %v9964 = vpack.c.bf16 %v9960, %v9960
    %v9965 = vpack.c.bf16 %v9961, %v9961
    %v9966 = vld [vmem:[#allocation17] sm:$0xf]
    %v9967 = vld [vmem:[#allocation17 + $0x4] sm:$0xf]
    %v9968 = vld [vmem:[#allocation17 + $0x8] sm:$0xf]
    %v9969 = vld [vmem:[#allocation17 + $0xc] sm:$0xf]
    %v9970 = vld [vmem:[#allocation17 + $0x10] sm:$0xf]
    %v9971 = vld [vmem:[#allocation17 + $0x14] sm:$0xf]
    %v9972 = vld [vmem:[#allocation17 + $0x18] sm:$0xf]
    %v9973 = vld [vmem:[#allocation17 + $0x1c] sm:$0xf]
    %v9974 = vld [vmem:[#allocation17 + $0x20] sm:$0xf]
    %v9975 = vld [vmem:[#allocation17 + $0x24] sm:$0xf]
    %v9976 = vld [vmem:[#allocation17 + $0x28] sm:$0xf]
    %v9977 = vld [vmem:[#allocation17 + $0x2c] sm:$0xf]
    %v9978 = vld [vmem:[#allocation17 + $0x30] sm:$0xf]
    %v9979 = vld [vmem:[#allocation17 + $0x34] sm:$0xf]
    %v9980 = vld [vmem:[#allocation17 + $0x38] sm:$0xf]
    %v9981 = vld [vmem:[#allocation17 + $0x3c] sm:$0xf]
    %v9982 = vld [vmem:[#allocation17 + $0x40] sm:$0xf]
    %v9983 = vld [vmem:[#allocation17 + $0x44] sm:$0xf]
    %v9984 = vld [vmem:[#allocation17 + $0x48] sm:$0xf]
    %v9985 = vld [vmem:[#allocation17 + $0x4c] sm:$0xf]
    %v9986 = vld [vmem:[#allocation17 + $0x50] sm:$0xf]
    %v9987 = vld [vmem:[#allocation17 + $0x54] sm:$0xf]
    %v9988 = vld [vmem:[#allocation17 + $0x58] sm:$0xf]
    %v9989 = vld [vmem:[#allocation17 + $0x5c] sm:$0xf]
    %v9990 = vld [vmem:[#allocation17 + $0x60] sm:$0xf]
    %v9991 = vld [vmem:[#allocation17 + $0x64] sm:$0xf]
    %v9992 = vld [vmem:[#allocation17 + $0x68] sm:$0xf]
    %v9993 = vld [vmem:[#allocation17 + $0x6c] sm:$0xf]
    %v9994 = vld [vmem:[#allocation17 + $0x70] sm:$0xf]
    %v9995 = vld [vmem:[#allocation17 + $0x74] sm:$0xf]
    %v9996 = vld [vmem:[#allocation17 + $0x78] sm:$0xf]
    %v9997 = vld [vmem:[#allocation17 + $0x7c] sm:$0xf]
    %v9998 = vld [vmem:[#allocation17 + $0x80] sm:$0xf]
    %v9999 = vld [vmem:[#allocation17 + $0x84] sm:$0xf]
    %v10000 = vld [vmem:[#allocation17 + $0x88] sm:$0xf]
    %v10001 = vld [vmem:[#allocation17 + $0x8c] sm:$0xf]
    %v10002 = vld [vmem:[#allocation17 + $0x90] sm:$0xf]
    %v10003 = vld [vmem:[#allocation17 + $0x94] sm:$0xf]
    %v10004 = vld [vmem:[#allocation17 + $0x98] sm:$0xf]
    %v10005 = vld [vmem:[#allocation17 + $0x9c] sm:$0xf]
    %v10006 = vld [vmem:[#allocation17 + $0xa0] sm:$0xf]
    %v10007 = vld [vmem:[#allocation17 + $0xa4] sm:$0xf]
    %v10008 = vld [vmem:[#allocation17 + $0xa8] sm:$0xf]
    %v10009 = vld [vmem:[#allocation17 + $0xac] sm:$0xf]
    %v10010 = vld [vmem:[#allocation17 + $0xb0] sm:$0xf]
    %v10011 = vld [vmem:[#allocation17 + $0xb4] sm:$0xf]
    %v10012 = vld [vmem:[#allocation17 + $0xb8] sm:$0xf]
    %v10013 = vld [vmem:[#allocation17 + $0xbc] sm:$0xf]
    %v10014 = vld [vmem:[#allocation17 + $0xc0] sm:$0xf]
    %v10015 = vld [vmem:[#allocation17 + $0xc4] sm:$0xf]
    %v10016 = vld [vmem:[#allocation17 + $0xc8] sm:$0xf]
    %v10017 = vld [vmem:[#allocation17 + $0xcc] sm:$0xf]
    %v10018 = vld [vmem:[#allocation17 + $0xd0] sm:$0xf]
    %v10019 = vld [vmem:[#allocation17 + $0xd4] sm:$0xf]
    %v10020 = vld [vmem:[#allocation17 + $0xd8] sm:$0xf]
    %v10021 = vld [vmem:[#allocation17 + $0xdc] sm:$0xf]
    %v10022 = vld [vmem:[#allocation17 + $0xe0] sm:$0xf]
    %v10023 = vld [vmem:[#allocation17 + $0xe4] sm:$0xf]
    %v10024 = vld [vmem:[#allocation17 + $0xe8] sm:$0xf]
    %v10025 = vld [vmem:[#allocation17 + $0xec] sm:$0xf]
    %v10026 = vld [vmem:[#allocation17 + $0xf0] sm:$0xf]
    %v10027 = vld [vmem:[#allocation17 + $0xf4] sm:$0xf]
    %v10028 = vld [vmem:[#allocation17 + $0xf8] sm:$0xf]
    %v10029 = vld [vmem:[#allocation17 + $0xfc] sm:$0xf]
    %v10030 = vld [vmem:[#allocation19] sm:$0x1]
    %v10032 = vlaneseq
    %v10033 = vshrl.u32 %v10032, 7
    %v10034 = vsub.s32 0, %v10033
    %v10035 = vrot.slane %v10030, %v10034
    %v10101 = vunpack.c.l.b16 %v9966
    %v10102 = vunpack.c.l.b16 %v9967
    %v10103 = vunpack.c.l.b16 %v9968
    %v10104 = vunpack.c.l.b16 %v9969
    %v10105 = vunpack.c.l.b16 %v9970
    %v10106 = vunpack.c.l.b16 %v9971
    %v10107 = vunpack.c.l.b16 %v9972
    %v10108 = vunpack.c.l.b16 %v9973
    %v10109 = vunpack.c.l.b16 %v9974
    %v10110 = vunpack.c.l.b16 %v9975
    %v10111 = vunpack.c.l.b16 %v9976
    %v10112 = vunpack.c.l.b16 %v9977
    %v10113 = vunpack.c.l.b16 %v9978
    %v10114 = vunpack.c.l.b16 %v9979
    %v10115 = vunpack.c.l.b16 %v9980
    %v10116 = vunpack.c.l.b16 %v9981
    %v10117 = vunpack.c.l.b16 %v9982
    %v10118 = vunpack.c.l.b16 %v9983
    %v10119 = vunpack.c.l.b16 %v9984
    %v10120 = vunpack.c.l.b16 %v9985
    %v10121 = vunpack.c.l.b16 %v9986
    %v10122 = vunpack.c.l.b16 %v9987
    %v10123 = vunpack.c.l.b16 %v9988
    %v10124 = vunpack.c.l.b16 %v9989
    %v10125 = vunpack.c.l.b16 %v9990
    %v10126 = vunpack.c.l.b16 %v9991
    %v10127 = vunpack.c.l.b16 %v9992
    %v10128 = vunpack.c.l.b16 %v9993
    %v10129 = vunpack.c.l.b16 %v9994
    %v10130 = vunpack.c.l.b16 %v9995
    %v10131 = vunpack.c.l.b16 %v9996
    %v10132 = vunpack.c.l.b16 %v9997
    %v10133 = vunpack.c.l.b16 %v9998
    %v10134 = vunpack.c.l.b16 %v9999
    %v10135 = vunpack.c.l.b16 %v10000
    %v10136 = vunpack.c.l.b16 %v10001
    %v10137 = vunpack.c.l.b16 %v10002
    %v10138 = vunpack.c.l.b16 %v10003
    %v10139 = vunpack.c.l.b16 %v10004
    %v10140 = vunpack.c.l.b16 %v10005
    %v10141 = vunpack.c.l.b16 %v10006
    %v10142 = vunpack.c.l.b16 %v10007
    %v10143 = vunpack.c.l.b16 %v10008
    %v10144 = vunpack.c.l.b16 %v10009
    %v10145 = vunpack.c.l.b16 %v10010
    %v10146 = vunpack.c.l.b16 %v10011
    %v10147 = vunpack.c.l.b16 %v10012
    %v10148 = vunpack.c.l.b16 %v10013
    %v10149 = vunpack.c.l.b16 %v10014
    %v10150 = vunpack.c.l.b16 %v10015
    %v10151 = vunpack.c.l.b16 %v10016
    %v10152 = vunpack.c.l.b16 %v10017
    %v10153 = vunpack.c.l.b16 %v10018
    %v10154 = vunpack.c.l.b16 %v10019
    %v10155 = vunpack.c.l.b16 %v10020
    %v10156 = vunpack.c.l.b16 %v10021
    %v10157 = vunpack.c.l.b16 %v10022
    %v10158 = vunpack.c.l.b16 %v10023
    %v10159 = vunpack.c.l.b16 %v10024
    %v10160 = vunpack.c.l.b16 %v10025
    %v10161 = vunpack.c.l.b16 %v10026
    %v10162 = vunpack.c.l.b16 %v10027
    %v10163 = vunpack.c.l.b16 %v10028
    %v10164 = vunpack.c.l.b16 %v10029
    %v10165 = vpack.c.b16 %v10102, %v10101
    %v10166 = vpack.c.b16 %v10104, %v10103
    %v10167 = vpack.c.b16 %v10106, %v10105
    %v10168 = vpack.c.b16 %v10108, %v10107
    %v10169 = vpack.c.b16 %v10110, %v10109
    %v10170 = vpack.c.b16 %v10112, %v10111
    %v10171 = vpack.c.b16 %v10114, %v10113
    %v10172 = vpack.c.b16 %v10116, %v10115
    %v10173 = vpack.c.b16 %v10118, %v10117
    %v10174 = vpack.c.b16 %v10120, %v10119
    %v10175 = vpack.c.b16 %v10122, %v10121
    %v10176 = vpack.c.b16 %v10124, %v10123
    %v10177 = vpack.c.b16 %v10126, %v10125
    %v10178 = vpack.c.b16 %v10128, %v10127
    %v10179 = vpack.c.b16 %v10130, %v10129
    %v10180 = vpack.c.b16 %v10132, %v10131
    %v10181 = vpack.c.b16 %v10134, %v10133
    %v10182 = vpack.c.b16 %v10136, %v10135
    %v10183 = vpack.c.b16 %v10138, %v10137
    %v10184 = vpack.c.b16 %v10140, %v10139
    %v10185 = vpack.c.b16 %v10142, %v10141
    %v10186 = vpack.c.b16 %v10144, %v10143
    %v10187 = vpack.c.b16 %v10146, %v10145
    %v10188 = vpack.c.b16 %v10148, %v10147
    %v10189 = vpack.c.b16 %v10150, %v10149
    %v10190 = vpack.c.b16 %v10152, %v10151
    %v10191 = vpack.c.b16 %v10154, %v10153
    %v10192 = vpack.c.b16 %v10156, %v10155
    %v10193 = vpack.c.b16 %v10158, %v10157
    %v10194 = vpack.c.b16 %v10160, %v10159
    %v10195 = vpack.c.b16 %v10162, %v10161
    %v10196 = vpack.c.b16 %v10164, %v10163
    %10229 = vmatprep.subr.bf16.mxu0 0
    %10230 = vmatpush1.bf16.msra.mxu0 %v10165
    %10231 = vmatprep.subr.bf16.mxu0 0
    %10232 = vmatpush1.bf16.msra.mxu0 %v10166
    %10233 = vmatprep.subr.bf16.mxu0 0
    %10234 = vmatpush1.bf16.msra.mxu0 %v10167
    %10235 = vmatprep.subr.bf16.mxu0 0
    %10236 = vmatpush1.bf16.msra.mxu0 %v10168
    %10237 = vmatprep.subr.bf16.mxu0 0
    %10238 = vmatpush1.bf16.msra.mxu0 %v10169
    %10239 = vmatprep.subr.bf16.mxu0 0
    %10240 = vmatpush1.bf16.msra.mxu0 %v10170
    %10241 = vmatprep.subr.bf16.mxu0 0
    %10242 = vmatpush1.bf16.msra.mxu0 %v10171
    %10243 = vmatprep.subr.bf16.mxu0 0
    %10244 = vmatpush1.bf16.msra.mxu0 %v10172
    %10245 = vmatprep.subr.bf16.mxu0 0
    %10246 = vmatpush1.bf16.msra.mxu0 %v10173
    %10247 = vmatprep.subr.bf16.mxu0 0
    %10248 = vmatpush1.bf16.msra.mxu0 %v10174
    %10249 = vmatprep.subr.bf16.mxu0 0
    %10250 = vmatpush1.bf16.msra.mxu0 %v10175
    %10251 = vmatprep.subr.bf16.mxu0 0
    %10252 = vmatpush1.bf16.msra.mxu0 %v10176
    %10253 = vmatprep.subr.bf16.mxu0 0
    %10254 = vmatpush1.bf16.msra.mxu0 %v10177
    %10255 = vmatprep.subr.bf16.mxu0 0
    %10256 = vmatpush1.bf16.msra.mxu0 %v10178
    %10257 = vmatprep.subr.bf16.mxu0 0
    %10258 = vmatpush1.bf16.msra.mxu0 %v10179
    %10259 = vmatprep.subr.bf16.mxu0 0
    %10260 = vmatpush1.bf16.msra.mxu0 %v10180
    %10261 = vmatprep.mubr.bf16.mxu0 %v9963
    %10262 = vmatmul.mubr.bf16.gmra.mrb[0].mxu0 %v9962
    %v10263 = vpop.f32.mrb[0].mxu0
    %v10264 = vadd.f32 %v10035, %v10263
    %v10265 = vpop.f32.mrb[0].mxu0
    %v10266 = vpop.f32.mrb[0].mxu0
    %v10267 = vpop.f32.mrb[0].mxu0
    %10268 = vdwg.mxu0
    %10269 = vmatprep.subr.bf16.mxu0 0
    %10270 = vmatpush1.bf16.msra.mxu0 %v10181
    %10271 = vmatprep.subr.bf16.mxu0 0
    %10272 = vmatpush1.bf16.msra.mxu0 %v10182
    %10273 = vmatprep.subr.bf16.mxu0 0
    %10274 = vmatpush1.bf16.msra.mxu0 %v10183
    %10275 = vmatprep.subr.bf16.mxu0 0
    %10276 = vmatpush1.bf16.msra.mxu0 %v10184
    %10277 = vmatprep.subr.bf16.mxu0 0
    %10278 = vmatpush1.bf16.msra.mxu0 %v10185
    %10279 = vmatprep.subr.bf16.mxu0 0
    %10280 = vmatpush1.bf16.msra.mxu0 %v10186
    %10281 = vmatprep.subr.bf16.mxu0 0
    %10282 = vmatpush1.bf16.msra.mxu0 %v10187
    %10283 = vmatprep.subr.bf16.mxu0 0
    %10284 = vmatpush1.bf16.msra.mxu0 %v10188
    %10285 = vmatprep.subr.bf16.mxu0 0
    %10286 = vmatpush1.bf16.msra.mxu0 %v10189
    %10287 = vmatprep.subr.bf16.mxu0 0
    %10288 = vmatpush1.bf16.msra.mxu0 %v10190
    %10289 = vmatprep.subr.bf16.mxu0 0
    %10290 = vmatpush1.bf16.msra.mxu0 %v10191
    %10291 = vmatprep.subr.bf16.mxu0 0
    %10292 = vmatpush1.bf16.msra.mxu0 %v10192
    %10293 = vmatprep.subr.bf16.mxu0 0
    %10294 = vmatpush1.bf16.msra.mxu0 %v10193
    %10295 = vmatprep.subr.bf16.mxu0 0
    %10296 = vmatpush1.bf16.msra.mxu0 %v10194
    %10297 = vmatprep.subr.bf16.mxu0 0
    %10298 = vmatpush1.bf16.msra.mxu0 %v10195
    %10299 = vmatprep.subr.bf16.mxu0 0
    %10300 = vmatpush1.bf16.msra.mxu0 %v10196
    %10301 = vmatprep.mubr.bf16.mxu0 %v9965
    %10302 = vmatmul.mubr.bf16.gmra.mrb[0].mxu0 %v9964
    %v10303 = vpop.f32.mrb[0].mxu0
    %v10304 = vadd.f32 %v10264, %v10303
    %v10305 = vpop.f32.mrb[0].mxu0
    %v10306 = vpop.f32.mrb[0].mxu0
    %v10307 = vpop.f32.mrb[0].mxu0
    %10308 = vdwg.mxu0
    %10309 = vmax.xlane.f32.xlu0 %v10304
    %v10310 = vpop.xlane.xlu0 %10309
    %v10311 = vsub.f32 %v10304, %v10310
    %v10312 = vmul.f32 %v10311, 1.442695
    %v10313 = vpow.pop %v10312
    %10314 = vadd.xlane.f32.xlu0 %v10313
    %v10315 = vpop.xlane.xlu0 %10314
    %v10316 = vrcp.pop %v10315
    %v10317 = vmul.f32 %v10313, %v10316
    %10318 = vst [vmem:[#allocation20] sm:$0xff] %v10317
    // Predicated region
    $region90: #{tpu_custom_call.1} parent=1 // pred_check
      _
    $region91: #{tpu_custom_call.1} parent=1 // pred_check_branch
      %10320 = sbr.rel (0) target = $region93
    $region92: #{tpu_custom_call.1} parent=1 // pred_region
      %s10322 = ssub.s32 128, 128
      %10323 = vsyncadd [#allocation4], %s10322
      %s10325 = sshll.u32 [#allocation20], 4
      %s10326 = int_to_ptr.vmem [resolvable:$true] %s10325
      %10328 = dma.vmem_to_hbm [thread:$0]  %s10326, 128, %s11, [#allocation4]
    $region93: #{tpu_custom_call.1} parent=1 // pred_fallthru
      _
    // Predicated region
    $region94: #{tpu_custom_call.1} parent=1 // pred_check
      _
    $region95: #{tpu_custom_call.1} parent=1 // pred_check_branch
      %10330 = sbr.rel (0) target = $region97
    $region96: #{tpu_custom_call.1} parent=1 // pred_region
      %10331 = dma.done [#allocation4], 128
    $region97: #{tpu_custom_call.1} parent=1 // pred_fallthru
      _
    %10332 = vsyncpa [#allocation3], 1
    %10333 = vsyncpa [#allocation6], 1
    %10334 = vsyncpa [#allocation9], 1
    %10335 = vsyncpa [#allocation12], 1
    %10336 = vsyncpa [#allocation15], 1
    %10337 = vsyncpa [#allocation18], 1
    %10338 = vsyncpa [#allocation4], 1

</llo_original>
